<compile_context>
chip_gen: v5e
topology: v5e:2x2
jax: 0.10.0
libtpu: 0.0.40
codegen_flags: <defaults>
</compile_context>

<pallas_src>
import functools

import jax
import jax.numpy as jnp
from jax import lax
from jax.experimental import pallas as pl
from jax.experimental.pallas import tpu as pltpu

EPS = 1e-5
LANE = 128
VMEM_LIMIT = 32 * 1024 * 1024  # explicit scoped-VMEM cap; safe on v5e/v6e/v7x


def _round_up(x, m):
    return (x + m - 1) // m * m


def _pick_d_tile(N, D, H, W, Cin, cp):
    """Output-depth tile: raise matmul M to d_tile*H*W while keeping the
    per-step working set a few MiB (v7x has only 64 MiB VMEM / 32 MiB scoped)
    and keeping >= 2 parallel grid steps so both v7x TensorCores get work."""
    per_d = 4 * ((H + 2) * (W + 2) * Cin            # padded activation slab
                 + H * W * (27 * Cin + cp)          # im2col slab + matmul out
                 + H * W * Cin)                     # loaded input block
    budget = 4 * 1024 * 1024
    best = 1
    for t in range(1, D + 1):
        if D % t:
            continue
        if t * H * W > 2048:                        # target M ~ 256-2048
            continue
        if t * per_d > budget:
            continue
        if t != 1 and N * (D // t) < 2:             # keep 2 TCs busy on v7x
            continue
        best = t
    return best


def _pick_tm(m):
    # 512-1024 rows already reach ~85%+ of the HBM roofline for an
    # elementwise pass; prefer a tile that leaves >= 2 grid steps (v7x).
    for t in (1024, 512, 256, 128, 64, 32, 16, 8):
        if m % t == 0 and m // t >= 2:
            return t
    for t in (1024, 512, 256, 128, 64, 32, 16, 8):
        if m % t == 0:
            return t
    return m  # tiny / odd M fallback


# ---------------------------------------------------------------------------
# Conv3d(k=3, pad=1) kernel: one (n, depth-tile) step = one 27-tap MXU matmul.
# Optionally applies the previous block's BN+ReLU to its input (fusion).
# Also emits per-tile partial [sum, sum_sq] for this conv's BatchNorm.
# ---------------------------------------------------------------------------
def _conv_block_kernel(*refs, d_tile, H, W, Cin, Cout, nb, apply_act):
    """refs (in order):
      prev_ref : (1, 1,      H, W, Cin)   depth plane db*d_tile-1 (clamped)
      main_ref : (1, d_tile, H, W, Cin)   depths [db*d_tile, (db+1)*d_tile)
      next_ref : (1, 1,      H, W, Cin)   depth plane (db+1)*d_tile (clamped)
      w_ref    : (27*Cin, cp)             packed weights, VMEM-resident
      [scale_ref, shift_ref : (1, Cin)]   fused BN+ReLU of the previous block
      y_ref    : (1, d_tile, H, W, Cout)  raw conv output (pre-BN)
      stats_ref: (1, 1, 2, Cout)          per-tile [sum, sum_sq] of y
      xpad_ref : (d_tile+2, H+2, W+2, Cin) VMEM scratch (halo-padded slab)
    """
    if apply_act:
        (prev_ref, main_ref, next_ref, w_ref, scale_ref, shift_ref,
         y_ref, stats_ref, xpad_ref) = refs
    else:
        (prev_ref, main_ref, next_ref, w_ref,
         y_ref, stats_ref, xpad_ref) = refs

    db = pl.program_id(1)
    # prev / next planes are clamped duplicates at the volume boundary; they
    # must act as conv zero padding (post-activation), so mask them there.
    lo_ok = (db > 0).astype(jnp.float32)
    hi_ok = (db < nb - 1).astype(jnp.float32)

    prev = prev_ref[0]                               # (1, H, W, Cin)
    main = main_ref[0]                               # (d_tile, H, W, Cin)
    nxt = next_ref[0]                                # (1, H, W, Cin)

    if apply_act:
        scale = scale_ref[...].reshape(1, 1, 1, Cin)
        shift = shift_ref[...].reshape(1, 1, 1, Cin)
        prev = jnp.maximum(prev * scale + shift, 0.0)
        main = jnp.maximum(main * scale + shift, 0.0)
        nxt = jnp.maximum(nxt * scale + shift, 0.0)

    # Halo-padded activation slab assembled in VMEM (no HBM pad pass):
    # spatial halo stays zero from the buffer clear; depth halo is masked.
    xpad_ref[...] = jnp.zeros_like(xpad_ref)
    xpad_ref[0:1, 1:H + 1, 1:W + 1, :] = prev * lo_ok
    xpad_ref[1:d_tile + 1, 1:H + 1, 1:W + 1, :] = main
    xpad_ref[d_tile + 1:d_tile + 2, 1:H + 1, 1:W + 1, :] = nxt * hi_ok
    xp = xpad_ref[...]                               # (d_tile+2, H+2, W+2, Cin)

    # im2col over all 27 taps -> ONE MXU matmul with K = 27*Cin.
    # TODO(synk): the lane-offset concat could be rebuilt with pltpu.roll
    # (XLU) if the VPU shuffle ever becomes the binding unit.
    parts = [xp[kd:kd + d_tile, kh:kh + H, kw:kw + W, :]
             for kd in range(3) for kh in range(3) for kw in range(3)]
    slab = jnp.concatenate(parts, axis=-1).reshape(d_tile * H * W, 27 * Cin)
    y = jnp.dot(slab, w_ref[...], preferred_element_type=jnp.float32)

    yc = y[:, :Cout]                     # drop MXU lane padding before HBM
    y_ref[0] = yc.reshape(d_tile, H, W, Cout)
    s = jnp.sum(yc, axis=0, keepdims=True)           # (1, Cout)
    ss = jnp.sum(yc * yc, axis=0, keepdims=True)     # (1, Cout)
    stats_ref[0, 0] = jnp.concatenate([s, ss], axis=0)


def _conv3d_raw(x_ndhwc, w, scale_shift=None):
    """Conv3d(k=3, pad=1, bias-free) + per-tile partial BN statistics.

    If scale_shift=(scale, shift) is given, relu(scale*x + shift) is applied to
    the input inside the kernel (fused BN+ReLU of the previous block).
    Returns raw conv output (N, D, H, W, Cout) and stats (N, nb, 2, Cout).
    """
    N, D, H, W, Cin = x_ndhwc.shape
    Cout = w.shape[0]
    cp = _round_up(max(Cout, LANE), LANE)
    d_tile = _pick_d_tile(N, D, H, W, Cin, cp)
    nb = D // d_tile

    # (Cout, Cin, kd, kh, kw) -> row ((kd*3+kh)*3+kw)*Cin + c, lane-padded cols.
    wt = jnp.transpose(w, (2, 3, 4, 1, 0)).reshape(27 * Cin, Cout)
    wt = jnp.pad(wt, ((0, 0), (0, cp - Cout)))

    apply_act = scale_shift is not None
    kernel = functools.partial(_conv_block_kernel, d_tile=d_tile, H=H, W=W,
                               Cin=Cin, Cout=Cout, nb=nb, apply_act=apply_act)

    in_specs = [
        pl.BlockSpec((1, 1, H, W, Cin),
                     lambda n, db: (n, jnp.maximum(db * d_tile - 1, 0), 0, 0, 0)),
        pl.BlockSpec((1, d_tile, H, W, Cin),
                     lambda n, db: (n, db, 0, 0, 0)),
        pl.BlockSpec((1, 1, H, W, Cin),
                     lambda n, db: (n, jnp.minimum((db + 1) * d_tile, D - 1),
                                    0, 0, 0)),
        # Constant index_map keeps the packed weights VMEM-resident.
        pl.BlockSpec((27 * Cin, cp), lambda n, db: (0, 0)),
    ]
    args = [x_ndhwc, x_ndhwc, x_ndhwc, wt]
    if apply_act:
        scale, shift = scale_shift
        in_specs += [pl.BlockSpec((1, Cin), lambda n, db: (0, 0)),
                     pl.BlockSpec((1, Cin), lambda n, db: (0, 0))]
        args += [scale.reshape(1, Cin).astype(jnp.float32),
                 shift.reshape(1, Cin).astype(jnp.float32)]

    y, stats = pl.pallas_call(
        kernel,
        out_shape=(jax.ShapeDtypeStruct((N, D, H, W, Cout), jnp.float32),
                   jax.ShapeDtypeStruct((N, nb, 2, Cout), jnp.float32)),
        grid=(N, nb),
        in_specs=in_specs,
        out_specs=(
            pl.BlockSpec((1, d_tile, H, W, Cout), lambda n, db: (n, db, 0, 0, 0)),
            pl.BlockSpec((1, 1, 2, Cout), lambda n, db: (n, db, 0, 0)),
        ),
        scratch_shapes=[pltpu.VMEM((d_tile + 2, H + 2, W + 2, Cin), jnp.float32)],
        compiler_params=pltpu.CompilerParams(
            dimension_semantics=("parallel", "parallel"),
            vmem_limit_bytes=VMEM_LIMIT),
    )(*args)
    return y, stats


# ---------------------------------------------------------------------------
# BatchNorm (training-mode batch statistics) affine + final BN+ReLU pass
# ---------------------------------------------------------------------------
def _bn_affine(stats, gamma, beta, m):
    """Global batch mean / biased var from per-tile [sum, sum_sq] partials."""
    s = jnp.sum(stats, axis=(0, 1))                  # (2, C)
    mean = s[0] / m
    # TODO(synk): E[y^2]-mean^2 can cancel at very large N*D*H*W; switch to a
    # Welford-style combine of the tile partials if tolerance demands it.
    var = jnp.maximum(s[1] / m - mean * mean, 0.0)
    scale = gamma * lax.rsqrt(var + EPS)
    shift = beta - mean * scale
    return scale, shift


def _bn_relu_kernel(y_ref, scale_ref, shift_ref, o_ref):
    o_ref[...] = jnp.maximum(y_ref[...] * scale_ref[...] + shift_ref[...], 0.0)


def _bn_relu_apply(y, scale, shift):
    M, C = y.shape
    tm = _pick_tm(M)
    return pl.pallas_call(
        _bn_relu_kernel,
        out_shape=jax.ShapeDtypeStruct((M, C), jnp.float32),
        grid=(M // tm,),
        in_specs=[pl.BlockSpec((tm, C), lambda i: (i, 0)),
                  pl.BlockSpec((1, C), lambda i: (0, 0)),
                  pl.BlockSpec((1, C), lambda i: (0, 0))],
        out_specs=pl.BlockSpec((tm, C), lambda i: (i, 0)),
        input_output_aliases={0: 0},                 # normalize in place
        compiler_params=pltpu.CompilerParams(
            dimension_semantics=("parallel",),
            vmem_limit_bytes=VMEM_LIMIT),
    )(y, scale, shift)


# ---------------------------------------------------------------------------
# downDouble3dConv forward
# ---------------------------------------------------------------------------
def down_double_3d_conv(x_ncdhw, params):
    """downDouble3dConv forward: (N, C, D, H, W) -> (N, out_ch, D, H, W).

    Conv biases (params["b1"]/["b2"]) are accepted but unused: training-mode
    BatchNorm subtracts the batch mean, which cancels them exactly.
    """
    x = jnp.transpose(x_ncdhw, (0, 2, 3, 4, 1))      # NCDHW -> NDHWC
    N, D, H, W, _ = x.shape
    m = N * D * H * W

    # Block 1: conv (raw output) + partial stats; BN1+ReLU is fused into the
    # next conv's input path, so the intermediate is written/read exactly once.
    y1, st1 = _conv3d_raw(x, params["w1"])
    scale1, shift1 = _bn_affine(st1, params["g1"], params["be1"], m)

    # Block 2: reads raw y1, applies BN1+ReLU in-kernel, convolves.
    y2, st2 = _conv3d_raw(y1, params["w2"], scale_shift=(scale1, shift1))
    scale2, shift2 = _bn_affine(st2, params["g2"], params["be2"], m)

    cout = params["w2"].shape[0]
    out = _bn_relu_apply(y2.reshape(m, cout),
                         scale2.reshape(1, cout), shift2.reshape(1, cout))
    out = out.reshape(N, D, H, W, cout)
    return jnp.transpose(out, (0, 4, 1, 2, 3))       # NDHWC -> NCDHW


# ---------------------------------------------------------------------------
# Pure-JAX reference (lax.conv + training-mode BN + ReLU) for validation
# ---------------------------------------------------------------------------
def _reference(x_ncdhw, params):
    def block(x, w, b, g, be):
        wj = jnp.transpose(w, (2, 3, 4, 1, 0))       # DHWIO
        y = lax.conv_general_dilated(
            x, wj, window_strides=(1, 1, 1), padding=((1, 1), (1, 1), (1, 1)),
            dimension_numbers=("NDHWC", "DHWIO", "NDHWC"))
        y = y + b
        mean = jnp.mean(y, axis=(0, 1, 2, 3), keepdims=True)
        var = jnp.mean(jnp.square(y - mean), axis=(0, 1, 2, 3), keepdims=True)
        y = (y - mean) * lax.rsqrt(var + EPS) * g + be
        return jnp.maximum(y, 0.0)

    x = jnp.transpose(x_ncdhw, (0, 2, 3, 4, 1))
    h = block(x, params["w1"], params["b1"], params["g1"], params["be1"])
    h = block(h, params["w2"], params["b2"], params["g2"], params["be2"])
    return jnp.transpose(h, (0, 4, 1, 2, 3))


if __name__ == "__main__":
    in_ch, out_ch = 4, 8
    N, D, H, W = 2, 4, 8, 8

    key = jax.random.PRNGKey(0)
    ks = jax.random.split(key, 9)
    params = {
        "w1": 0.1 * jax.random.normal(ks[0], (in_ch, in_ch, 3, 3, 3), jnp.float32),
        "b1": 0.1 * jax.random.normal(ks[1], (in_ch,), jnp.float32),
        "g1": 1.0 + 0.1 * jax.random.normal(ks[2], (in_ch,), jnp.float32),
        "be1": 0.1 * jax.random.normal(ks[3], (in_ch,), jnp.float32),
        "w2": 0.1 * jax.random.normal(ks[4], (out_ch, in_ch, 3, 3, 3), jnp.float32),
        "b2": 0.1 * jax.random.normal(ks[5], (out_ch,), jnp.float32),
        "g2": 1.0 + 0.1 * jax.random.normal(ks[6], (out_ch,), jnp.float32),
        "be2": 0.1 * jax.random.normal(ks[7], (out_ch,), jnp.float32),
    }
    x = jax.random.normal(ks[8], (N, in_ch, D, H, W), jnp.float32)  # NCDHW

    out = jax.jit(down_double_3d_conv)(x, params)
    out = jax.block_until_ready(out)

    ref = jax.block_until_ready(_reference(x, params))
    assert out.shape == (N, out_ch, D, H, W), out.shape
    assert jnp.allclose(out, ref, rtol=1e-4, atol=1e-4), float(
        jnp.max(jnp.abs(out - ref)))

    print("KERNEL_OK")
</pallas_src>

<mosaic_0001>
module attributes {stable_mosaic.version = 11 : i64} {
  func.func @_conv_block_kernel(%arg0: i32, %arg1: i32, %arg2: memref<1x1x8x8x4xf32, #tpu.memory_space<vmem>>, %arg3: memref<1x4x8x8x4xf32, #tpu.memory_space<vmem>>, %arg4: memref<1x1x8x8x4xf32, #tpu.memory_space<vmem>>, %arg5: memref<108x128xf32, #tpu.memory_space<vmem>>, %arg6: memref<1x4xf32, #tpu.memory_space<vmem>>, %arg7: memref<1x4xf32, #tpu.memory_space<vmem>>, %arg8: memref<1x4x8x8x8xf32, #tpu.memory_space<vmem>>, %arg9: memref<1x1x2x8xf32, #tpu.memory_space<vmem>>, %arg10: memref<6x10x10x4xf32, #tpu.memory_space<vmem>>) attributes {dimension_semantics = [#tpu.dimension_semantics<parallel>, #tpu.dimension_semantics<parallel>], iteration_bounds = array<i64: 2, 1>, scalar_prefetch = 0 : i64, scratch_operands = 1 : i64, tpu.core_type = #tpu.core_type<tc>, window_params = [{transform_indices = @transform_0, window_bounds = array<i64: 1, 1, 8, 8, 4>}, {transform_indices = @transform_1, window_bounds = array<i64: 1, 4, 8, 8, 4>}, {transform_indices = @transform_2, window_bounds = array<i64: 1, 1, 8, 8, 4>}, {pipeline_mode = #tpu.pipeline_mode<synchronous>, transform_indices = @transform_3, window_bounds = array<i64: 108, 128>}, {pipeline_mode = #tpu.pipeline_mode<synchronous>, transform_indices = @transform_4, window_bounds = array<i64: 1, 4>}, {pipeline_mode = #tpu.pipeline_mode<synchronous>, transform_indices = @transform_5, window_bounds = array<i64: 1, 4>}, {transform_indices = @transform_6, window_bounds = array<i64: 1, 4, 8, 8, 8>}, {transform_indices = @transform_7, window_bounds = array<i64: 1, 1, 2, 8>}]} {
    %c0_i32 = arith.constant 0 : i32
    %0 = arith.cmpi sgt, %arg1, %c0_i32 : i32
    %1 = arith.extui %0 : i1 to i32
    %2 = arith.sitofp %1 : i32 to f32
    %c0_i32_0 = arith.constant 0 : i32
    %3 = arith.cmpi slt, %arg1, %c0_i32_0 : i32
    %4 = arith.extui %3 : i1 to i32
    %5 = arith.sitofp %4 : i32 to f32
    %c0 = arith.constant 0 : index
    %c0_1 = arith.constant 0 : index
    %c0_2 = arith.constant 0 : index
    %c0_3 = arith.constant 0 : index
    %c0_4 = arith.constant 0 : index
    %6 = vector.load %arg2[%c0, %c0_1, %c0_2, %c0_3, %c0_4] : memref<1x1x8x8x4xf32, #tpu.memory_space<vmem>>, vector<1x1x8x8x4xf32>
    %7 = vector.shape_cast %6 : vector<1x1x8x8x4xf32> to vector<1x8x8x4xf32>
    %c0_5 = arith.constant 0 : index
    %c0_6 = arith.constant 0 : index
    %c0_7 = arith.constant 0 : index
    %c0_8 = arith.constant 0 : index
    %c0_9 = arith.constant 0 : index
    %8 = vector.load %arg3[%c0_5, %c0_6, %c0_7, %c0_8, %c0_9] : memref<1x4x8x8x4xf32, #tpu.memory_space<vmem>>, vector<1x4x8x8x4xf32>
    %9 = vector.shape_cast %8 : vector<1x4x8x8x4xf32> to vector<4x8x8x4xf32>
    %c0_10 = arith.constant 0 : index
    %c0_11 = arith.constant 0 : index
    %c0_12 = arith.constant 0 : index
    %c0_13 = arith.constant 0 : index
    %c0_14 = arith.constant 0 : index
    %10 = vector.load %arg4[%c0_10, %c0_11, %c0_12, %c0_13, %c0_14] : memref<1x1x8x8x4xf32, #tpu.memory_space<vmem>>, vector<1x1x8x8x4xf32>
    %11 = vector.shape_cast %10 : vector<1x1x8x8x4xf32> to vector<1x8x8x4xf32>
    %c0_15 = arith.constant 0 : index
    %c0_16 = arith.constant 0 : index
    %12 = vector.load %arg6[%c0_15, %c0_16] : memref<1x4xf32, #tpu.memory_space<vmem>>, vector<1x4xf32>
    %13 = vector.shape_cast %12 : vector<1x4xf32> to vector<1x1x1x4xf32>
    %c0_17 = arith.constant 0 : index
    %c0_18 = arith.constant 0 : index
    %14 = vector.load %arg7[%c0_17, %c0_18] : memref<1x4xf32, #tpu.memory_space<vmem>>, vector<1x4xf32>
    %15 = vector.shape_cast %14 : vector<1x4xf32> to vector<1x1x1x4xf32>
    %16 = vector.broadcast %13 : vector<1x1x1x4xf32> to vector<1x8x8x4xf32>
    %17 = arith.mulf %7, %16 : vector<1x8x8x4xf32>
    %18 = vector.broadcast %15 : vector<1x1x1x4xf32> to vector<1x8x8x4xf32>
    %19 = arith.addf %17, %18 : vector<1x8x8x4xf32>
    %cst = arith.constant 0.000000e+00 : f32
    %20 = vector.broadcast %cst : f32 to vector<1x8x8x4xf32>
    %21 = arith.maximumf %19, %20 : vector<1x8x8x4xf32>
    %22 = vector.broadcast %13 : vector<1x1x1x4xf32> to vector<4x8x8x4xf32>
    %23 = arith.mulf %9, %22 : vector<4x8x8x4xf32>
    %24 = vector.broadcast %15 : vector<1x1x1x4xf32> to vector<4x8x8x4xf32>
    %25 = arith.addf %23, %24 : vector<4x8x8x4xf32>
    %cst_19 = arith.constant 0.000000e+00 : f32
    %26 = vector.broadcast %cst_19 : f32 to vector<4x8x8x4xf32>
    %27 = arith.maximumf %25, %26 : vector<4x8x8x4xf32>
    %28 = vector.broadcast %13 : vector<1x1x1x4xf32> to vector<1x8x8x4xf32>
    %29 = arith.mulf %11, %28 : vector<1x8x8x4xf32>
    %30 = vector.broadcast %15 : vector<1x1x1x4xf32> to vector<1x8x8x4xf32>
    %31 = arith.addf %29, %30 : vector<1x8x8x4xf32>
    %cst_20 = arith.constant 0.000000e+00 : f32
    %32 = vector.broadcast %cst_20 : f32 to vector<1x8x8x4xf32>
    %33 = arith.maximumf %31, %32 : vector<1x8x8x4xf32>
    %cst_21 = arith.constant 0.000000e+00 : f32
    %34 = vector.broadcast %cst_21 : f32 to vector<6x10x10x4xf32>
    %c0_22 = arith.constant 0 : index
    %c0_23 = arith.constant 0 : index
    %c0_24 = arith.constant 0 : index
    %c0_25 = arith.constant 0 : index
    %35 = vector.load %arg10[%c0_22, %c0_23, %c0_24, %c0_25] : memref<6x10x10x4xf32, #tpu.memory_space<vmem>>, vector<6x10x10x4xf32>
    tpu.vector_store %arg10[%c0_22, %c0_23, %c0_24, %c0_25], %34 {strides = array<i32>} : memref<6x10x10x4xf32, #tpu.memory_space<vmem>>, vector<6x10x10x4xf32>,
    %36 = vector.broadcast %2 : f32 to vector<1x8x8x4xf32>
    %37 = arith.mulf %21, %36 : vector<1x8x8x4xf32>
    %c0_26 = arith.constant 0 : index
    %c1 = arith.constant 1 : index
    %c1_27 = arith.constant 1 : index
    %c0_28 = arith.constant 0 : index
    %38 = vector.load %arg10[%c0_26, %c1, %c1_27, %c0_28] : memref<6x10x10x4xf32, #tpu.memory_space<vmem>>, vector<1x8x8x4xf32>
    tpu.vector_store %arg10[%c0_26, %c1, %c1_27, %c0_28], %37 {strides = array<i32>} : memref<6x10x10x4xf32, #tpu.memory_space<vmem>>, vector<1x8x8x4xf32>,
    %c1_29 = arith.constant 1 : index
    %c1_30 = arith.constant 1 : index
    %c1_31 = arith.constant 1 : index
    %c0_32 = arith.constant 0 : index
    %39 = vector.load %arg10[%c1_29, %c1_30, %c1_31, %c0_32] : memref<6x10x10x4xf32, #tpu.memory_space<vmem>>, vector<4x8x8x4xf32>
    tpu.vector_store %arg10[%c1_29, %c1_30, %c1_31, %c0_32], %27 {strides = array<i32>} : memref<6x10x10x4xf32, #tpu.memory_space<vmem>>, vector<4x8x8x4xf32>,
    %40 = vector.broadcast %5 : f32 to vector<1x8x8x4xf32>
    %41 = arith.mulf %33, %40 : vector<1x8x8x4xf32>
    %c5 = arith.constant 5 : index
    %c1_33 = arith.constant 1 : index
    %c1_34 = arith.constant 1 : index
    %c0_35 = arith.constant 0 : index
    %42 = vector.load %arg10[%c5, %c1_33, %c1_34, %c0_35] : memref<6x10x10x4xf32, #tpu.memory_space<vmem>>, vector<1x8x8x4xf32>
    tpu.vector_store %arg10[%c5, %c1_33, %c1_34, %c0_35], %41 {strides = array<i32>} : memref<6x10x10x4xf32, #tpu.memory_space<vmem>>, vector<1x8x8x4xf32>,
    %c0_36 = arith.constant 0 : index
    %c0_37 = arith.constant 0 : index
    %c0_38 = arith.constant 0 : index
    %c0_39 = arith.constant 0 : index
    %43 = vector.load %arg10[%c0_36, %c0_37, %c0_38, %c0_39] : memref<6x10x10x4xf32, #tpu.memory_space<vmem>>, vector<6x10x10x4xf32>
    %44 = vector.extract_strided_slice %43 {offsets = [0, 0, 0, 0], sizes = [4, 8, 8, 4], strides = [1, 1, 1, 1]} : vector<6x10x10x4xf32> to vector<4x8x8x4xf32>
    %45 = vector.extract_strided_slice %43 {offsets = [0, 0, 1, 0], sizes = [4, 8, 8, 4], strides = [1, 1, 1, 1]} : vector<6x10x10x4xf32> to vector<4x8x8x4xf32>
    %46 = vector.extract_strided_slice %43 {offsets = [0, 0, 2, 0], sizes = [4, 8, 8, 4], strides = [1, 1, 1, 1]} : vector<6x10x10x4xf32> to vector<4x8x8x4xf32>
    %47 = vector.extract_strided_slice %43 {offsets = [0, 1, 0, 0], sizes = [4, 8, 8, 4], strides = [1, 1, 1, 1]} : vector<6x10x10x4xf32> to vector<4x8x8x4xf32>
    %48 = vector.extract_strided_slice %43 {offsets = [0, 1, 1, 0], sizes = [4, 8, 8, 4], strides = [1, 1, 1, 1]} : vector<6x10x10x4xf32> to vector<4x8x8x4xf32>
    %49 = vector.extract_strided_slice %43 {offsets = [0, 1, 2, 0], sizes = [4, 8, 8, 4], strides = [1, 1, 1, 1]} : vector<6x10x10x4xf32> to vector<4x8x8x4xf32>
    %50 = vector.extract_strided_slice %43 {offsets = [0, 2, 0, 0], sizes = [4, 8, 8, 4], strides = [1, 1, 1, 1]} : vector<6x10x10x4xf32> to vector<4x8x8x4xf32>
    %51 = vector.extract_strided_slice %43 {offsets = [0, 2, 1, 0], sizes = [4, 8, 8, 4], strides = [1, 1, 1, 1]} : vector<6x10x10x4xf32> to vector<4x8x8x4xf32>
    %52 = vector.extract_strided_slice %43 {offsets = [0, 2, 2, 0], sizes = [4, 8, 8, 4], strides = [1, 1, 1, 1]} : vector<6x10x10x4xf32> to vector<4x8x8x4xf32>
    %53 = vector.extract_strided_slice %43 {offsets = [1, 0, 0, 0], sizes = [4, 8, 8, 4], strides = [1, 1, 1, 1]} : vector<6x10x10x4xf32> to vector<4x8x8x4xf32>
    %54 = vector.extract_strided_slice %43 {offsets = [1, 0, 1, 0], sizes = [4, 8, 8, 4], strides = [1, 1, 1, 1]} : vector<6x10x10x4xf32> to vector<4x8x8x4xf32>
    %55 = vector.extract_strided_slice %43 {offsets = [1, 0, 2, 0], sizes = [4, 8, 8, 4], strides = [1, 1, 1, 1]} : vector<6x10x10x4xf32> to vector<4x8x8x4xf32>
    %56 = vector.extract_strided_slice %43 {offsets = [1, 1, 0, 0], sizes = [4, 8, 8, 4], strides = [1, 1, 1, 1]} : vector<6x10x10x4xf32> to vector<4x8x8x4xf32>
    %57 = vector.extract_strided_slice %43 {offsets = [1, 1, 1, 0], sizes = [4, 8, 8, 4], strides = [1, 1, 1, 1]} : vector<6x10x10x4xf32> to vector<4x8x8x4xf32>
    %58 = vector.extract_strided_slice %43 {offsets = [1, 1, 2, 0], sizes = [4, 8, 8, 4], strides = [1, 1, 1, 1]} : vector<6x10x10x4xf32> to vector<4x8x8x4xf32>
    %59 = vector.extract_strided_slice %43 {offsets = [1, 2, 0, 0], sizes = [4, 8, 8, 4], strides = [1, 1, 1, 1]} : vector<6x10x10x4xf32> to vector<4x8x8x4xf32>
    %60 = vector.extract_strided_slice %43 {offsets = [1, 2, 1, 0], sizes = [4, 8, 8, 4], strides = [1, 1, 1, 1]} : vector<6x10x10x4xf32> to vector<4x8x8x4xf32>
    %61 = vector.extract_strided_slice %43 {offsets = [1, 2, 2, 0], sizes = [4, 8, 8, 4], strides = [1, 1, 1, 1]} : vector<6x10x10x4xf32> to vector<4x8x8x4xf32>
    %62 = vector.extract_strided_slice %43 {offsets = [2, 0, 0, 0], sizes = [4, 8, 8, 4], strides = [1, 1, 1, 1]} : vector<6x10x10x4xf32> to vector<4x8x8x4xf32>
    %63 = vector.extract_strided_slice %43 {offsets = [2, 0, 1, 0], sizes = [4, 8, 8, 4], strides = [1, 1, 1, 1]} : vector<6x10x10x4xf32> to vector<4x8x8x4xf32>
    %64 = vector.extract_strided_slice %43 {offsets = [2, 0, 2, 0], sizes = [4, 8, 8, 4], strides = [1, 1, 1, 1]} : vector<6x10x10x4xf32> to vector<4x8x8x4xf32>
    %65 = vector.extract_strided_slice %43 {offsets = [2, 1, 0, 0], sizes = [4, 8, 8, 4], strides = [1, 1, 1, 1]} : vector<6x10x10x4xf32> to vector<4x8x8x4xf32>
    %66 = vector.extract_strided_slice %43 {offsets = [2, 1, 1, 0], sizes = [4, 8, 8, 4], strides = [1, 1, 1, 1]} : vector<6x10x10x4xf32> to vector<4x8x8x4xf32>
    %67 = vector.extract_strided_slice %43 {offsets = [2, 1, 2, 0], sizes = [4, 8, 8, 4], strides = [1, 1, 1, 1]} : vector<6x10x10x4xf32> to vector<4x8x8x4xf32>
    %68 = vector.extract_strided_slice %43 {offsets = [2, 2, 0, 0], sizes = [4, 8, 8, 4], strides = [1, 1, 1, 1]} : vector<6x10x10x4xf32> to vector<4x8x8x4xf32>
    %69 = vector.extract_strided_slice %43 {offsets = [2, 2, 1, 0], sizes = [4, 8, 8, 4], strides = [1, 1, 1, 1]} : vector<6x10x10x4xf32> to vector<4x8x8x4xf32>
    %70 = vector.extract_strided_slice %43 {offsets = [2, 2, 2, 0], sizes = [4, 8, 8, 4], strides = [1, 1, 1, 1]} : vector<6x10x10x4xf32> to vector<4x8x8x4xf32>
    %71 = tpu.concatenate %44, %45, %46, %47, %48, %49, %50, %51, %52, %53, %54, %55, %56, %57, %58, %59 in 3 : vector<4x8x8x4xf32>, vector<4x8x8x4xf32>, vector<4x8x8x4xf32>, vector<4x8x8x4xf32>, vector<4x8x8x4xf32>, vector<4x8x8x4xf32>, vector<4x8x8x4xf32>, vector<4x8x8x4xf32>, vector<4x8x8x4xf32>, vector<4x8x8x4xf32>, vector<4x8x8x4xf32>, vector<4x8x8x4xf32>, vector<4x8x8x4xf32>, vector<4x8x8x4xf32>, vector<4x8x8x4xf32>, vector<4x8x8x4xf32> -> vector<4x8x8x64xf32>
    %72 = tpu.concatenate %60, %61, %62, %63, %64, %65, %66, %67, %68, %69, %70 in 3 : vector<4x8x8x4xf32>, vector<4x8x8x4xf32>, vector<4x8x8x4xf32>, vector<4x8x8x4xf32>, vector<4x8x8x4xf32>, vector<4x8x8x4xf32>, vector<4x8x8x4xf32>, vector<4x8x8x4xf32>, vector<4x8x8x4xf32>, vector<4x8x8x4xf32>, vector<4x8x8x4xf32> -> vector<4x8x8x44xf32>
    %73 = tpu.concatenate %71, %72 in 3 : vector<4x8x8x64xf32>, vector<4x8x8x44xf32> -> vector<4x8x8x108xf32>
    %74 = vector.shape_cast %73 : vector<4x8x8x108xf32> to vector<256x108xf32>
    %c0_40 = arith.constant 0 : index
    %c0_41 = arith.constant 0 : index
    %75 = vector.load %arg5[%c0_40, %c0_41] : memref<108x128xf32, #tpu.memory_space<vmem>>, vector<108x128xf32>
    %cst_42 = arith.constant dense<0.000000e+00> : vector<256x128xf32>
    %76 = tpu.matmul %74, %75, %cst_42 {dimension_numbers = #tpu.dot_dimension_numbers<[1], [0], [0], [1], [0, 0, 1, 1], [], []>} : vector<256x108xf32>, vector<108x128xf32>, vector<256x128xf32> -> vector<256x128xf32>
    %77 = vector.extract_strided_slice %76 {offsets = [0, 0], sizes = [256, 8], strides = [1, 1]} : vector<256x128xf32> to vector<256x8xf32>
    %78 = vector.shape_cast %77 : vector<256x8xf32> to vector<4x8x8x8xf32>
    %c0_43 = arith.constant 0 : index
    %c0_44 = arith.constant 0 : index
    %c0_45 = arith.constant 0 : index
    %c0_46 = arith.constant 0 : index
    %c0_47 = arith.constant 0 : index
    %79 = vector.load %arg8[%c0_43, %c0_44, %c0_45, %c0_46, %c0_47] : memref<1x4x8x8x8xf32, #tpu.memory_space<vmem>>, vector<1x4x8x8x8xf32>
    %80 = vector.shape_cast %79 : vector<1x4x8x8x8xf32> to vector<4x8x8x8xf32>
    %81 = vector.shape_cast %78 : vector<4x8x8x8xf32> to vector<1x4x8x8x8xf32>
    tpu.vector_store %arg8[%c0_43, %c0_44, %c0_45, %c0_46, %c0_47], %81 {strides = array<i32>} : memref<1x4x8x8x8xf32, #tpu.memory_space<vmem>>, vector<1x4x8x8x8xf32>,
    %cst_48 = arith.constant dense<0.000000e+00> : vector<8xf32>
    %82 = vector.multi_reduction <add>, %77, %cst_48 [0] : vector<256x8xf32> to vector<8xf32>
    %83 = vector.shape_cast %82 : vector<8xf32> to vector<1x8xf32>
    %84 = arith.mulf %77, %77 : vector<256x8xf32>
    %cst_49 = arith.constant dense<0.000000e+00> : vector<8xf32>
    %85 = vector.multi_reduction <add>, %84, %cst_49 [0] : vector<256x8xf32> to vector<8xf32>
    %86 = vector.shape_cast %85 : vector<8xf32> to vector<1x8xf32>
    %87 = tpu.concatenate %83, %86 in 0 : vector<1x8xf32>, vector<1x8xf32> -> vector<2x8xf32>
    %c0_50 = arith.constant 0 : index
    %c0_51 = arith.constant 0 : index
    %c0_52 = arith.constant 0 : index
    %c0_53 = arith.constant 0 : index
    %88 = vector.load %arg9[%c0_50, %c0_51, %c0_52, %c0_53] : memref<1x1x2x8xf32, #tpu.memory_space<vmem>>, vector<1x1x2x8xf32>
    %89 = vector.shape_cast %88 : vector<1x1x2x8xf32> to vector<2x8xf32>
    %90 = vector.shape_cast %87 : vector<2x8xf32> to vector<1x1x2x8xf32>
    tpu.vector_store %arg9[%c0_50, %c0_51, %c0_52, %c0_53], %90 {strides = array<i32>} : memref<1x1x2x8xf32, #tpu.memory_space<vmem>>, vector<1x1x2x8xf32>,
    return
  }
  func.func @transform_0(%arg0: i32, %arg1: i32) -> (i32, i32, i32, i32, i32) {
    %c4_i32 = arith.constant 4 : i32
    %0 = arith.muli %arg1, %c4_i32 : i32
    %c1_i32 = arith.constant 1 : i32
    %1 = arith.subi %0, %c1_i32 : i32
    %c0_i32 = arith.constant 0 : i32
    %2 = arith.maxsi %1, %c0_i32 : i32
    %c0_i32_0 = arith.constant 0 : i32
    %c0_i32_1 = arith.constant 0 : i32
    %c0_i32_2 = arith.constant 0 : i32
    %c0_i32_3 = arith.constant 0 : i32
    return %arg0, %2, %c0_i32_0, %c0_i32_1, %c0_i32_2 : i32, i32, i32, i32, i32
  }
  func.func @transform_1(%arg0: i32, %arg1: i32) -> (i32, i32, i32, i32, i32) {
    %c0_i32 = arith.constant 0 : i32
    %c0_i32_0 = arith.constant 0 : i32
    %c0_i32_1 = arith.constant 0 : i32
    %c0_i32_2 = arith.constant 0 : i32
    return %arg0, %arg1, %c0_i32, %c0_i32_0, %c0_i32_1 : i32, i32, i32, i32, i32
  }
  func.func @transform_2(%arg0: i32, %arg1: i32) -> (i32, i32, i32, i32, i32) {
    %c1_i32 = arith.constant 1 : i32
    %0 = arith.addi %arg1, %c1_i32 : i32
    %c4_i32 = arith.constant 4 : i32
    %1 = arith.muli %0, %c4_i32 : i32
    %c3_i32 = arith.constant 3 : i32
    %2 = arith.minsi %1, %c3_i32 : i32
    %c0_i32 = arith.constant 0 : i32
    %c0_i32_0 = arith.constant 0 : i32
    %c0_i32_1 = arith.constant 0 : i32
    %c0_i32_2 = arith.constant 0 : i32
    return %arg0, %2, %c0_i32, %c0_i32_0, %c0_i32_1 : i32, i32, i32, i32, i32
  }
  func.func @transform_3(%arg0: i32, %arg1: i32) -> (i32, i32) {
    %c0_i32 = arith.constant 0 : i32
    %c0_i32_0 = arith.constant 0 : i32
    %c0_i32_1 = arith.constant 0 : i32
    return %c0_i32, %c0_i32_0 : i32, i32
  }
  func.func @transform_4(%arg0: i32, %arg1: i32) -> (i32, i32) {
    %c0_i32 = arith.constant 0 : i32
    %c0_i32_0 = arith.constant 0 : i32
    %c0_i32_1 = arith.constant 0 : i32
    return %c0_i32, %c0_i32_0 : i32, i32
  }
  func.func @transform_5(%arg0: i32, %arg1: i32) -> (i32, i32) {
    %c0_i32 = arith.constant 0 : i32
    %c0_i32_0 = arith.constant 0 : i32
    %c0_i32_1 = arith.constant 0 : i32
    return %c0_i32, %c0_i32_0 : i32, i32
  }
  func.func @transform_6(%arg0: i32, %arg1: i32) -> (i32, i32, i32, i32, i32) {
    %c0_i32 = arith.constant 0 : i32
    %c0_i32_0 = arith.constant 0 : i32
    %c0_i32_1 = arith.constant 0 : i32
    %c0_i32_2 = arith.constant 0 : i32
    return %arg0, %arg1, %c0_i32, %c0_i32_0, %c0_i32_1 : i32, i32, i32, i32, i32
  }
  func.func @transform_7(%arg0: i32, %arg1: i32) -> (i32, i32, i32, i32) {
    %c0_i32 = arith.constant 0 : i32
    %c0_i32_0 = arith.constant 0 : i32
    %c0_i32_1 = arith.constant 0 : i32
    return %arg0, %arg1, %c0_i32, %c0_i32_0 : i32, i32, i32, i32
  }
}

module attributes {stable_mosaic.version = 11 : i64} {
  func.func @_conv_block_kernel(%arg0: i32, %arg1: i32, %arg2: memref<1x1x8x8x4xf32, #tpu.memory_space<vmem>>, %arg3: memref<1x4x8x8x4xf32, #tpu.memory_space<vmem>>, %arg4: memref<1x1x8x8x4xf32, #tpu.memory_space<vmem>>, %arg5: memref<108x128xf32, #tpu.memory_space<vmem>>, %arg6: memref<1x4x8x8x4xf32, #tpu.memory_space<vmem>>, %arg7: memref<1x1x2x4xf32, #tpu.memory_space<vmem>>, %arg8: memref<6x10x10x4xf32, #tpu.memory_space<vmem>>) attributes {dimension_semantics = [#tpu.dimension_semantics<parallel>, #tpu.dimension_semantics<parallel>], iteration_bounds = array<i64: 2, 1>, scalar_prefetch = 0 : i64, scratch_operands = 1 : i64, tpu.core_type = #tpu.core_type<tc>, window_params = [{transform_indices = @transform_0, window_bounds = array<i64: 1, 1, 8, 8, 4>}, {transform_indices = @transform_1, window_bounds = array<i64: 1, 4, 8, 8, 4>}, {transform_indices = @transform_2, window_bounds = array<i64: 1, 1, 8, 8, 4>}, {pipeline_mode = #tpu.pipeline_mode<synchronous>, transform_indices = @transform_3, window_bounds = array<i64: 108, 128>}, {transform_indices = @transform_4, window_bounds = array<i64: 1, 4, 8, 8, 4>}, {transform_indices = @transform_5, window_bounds = array<i64: 1, 1, 2, 4>}]} {
    %c0_i32 = arith.constant 0 : i32
    %0 = arith.cmpi sgt, %arg1, %c0_i32 : i32
    %1 = arith.extui %0 : i1 to i32
    %2 = arith.sitofp %1 : i32 to f32
    %c0_i32_0 = arith.constant 0 : i32
    %3 = arith.cmpi slt, %arg1, %c0_i32_0 : i32
    %4 = arith.extui %3 : i1 to i32
    %5 = arith.sitofp %4 : i32 to f32
    %c0 = arith.constant 0 : index
    %c0_1 = arith.constant 0 : index
    %c0_2 = arith.constant 0 : index
    %c0_3 = arith.constant 0 : index
    %c0_4 = arith.constant 0 : index
    %6 = vector.load %arg2[%c0, %c0_1, %c0_2, %c0_3, %c0_4] : memref<1x1x8x8x4xf32, #tpu.memory_space<vmem>>, vector<1x1x8x8x4xf32>
    %7 = vector.shape_cast %6 : vector<1x1x8x8x4xf32> to vector<1x8x8x4xf32>
    %c0_5 = arith.constant 0 : index
    %c0_6 = arith.constant 0 : index
    %c0_7 = arith.constant 0 : index
    %c0_8 = arith.constant 0 : index
    %c0_9 = arith.constant 0 : index
    %8 = vector.load %arg3[%c0_5, %c0_6, %c0_7, %c0_8, %c0_9] : memref<1x4x8x8x4xf32, #tpu.memory_space<vmem>>, vector<1x4x8x8x4xf32>
    %9 = vector.shape_cast %8 : vector<1x4x8x8x4xf32> to vector<4x8x8x4xf32>
    %c0_10 = arith.constant 0 : index
    %c0_11 = arith.constant 0 : index
    %c0_12 = arith.constant 0 : index
    %c0_13 = arith.constant 0 : index
    %c0_14 = arith.constant 0 : index
    %10 = vector.load %arg4[%c0_10, %c0_11, %c0_12, %c0_13, %c0_14] : memref<1x1x8x8x4xf32, #tpu.memory_space<vmem>>, vector<1x1x8x8x4xf32>
    %11 = vector.shape_cast %10 : vector<1x1x8x8x4xf32> to vector<1x8x8x4xf32>
    %cst = arith.constant 0.000000e+00 : f32
    %12 = vector.broadcast %cst : f32 to vector<6x10x10x4xf32>
    %c0_15 = arith.constant 0 : index
    %c0_16 = arith.constant 0 : index
    %c0_17 = arith.constant 0 : index
    %c0_18 = arith.constant 0 : index
    %13 = vector.load %arg8[%c0_15, %c0_16, %c0_17, %c0_18] : memref<6x10x10x4xf32, #tpu.memory_space<vmem>>, vector<6x10x10x4xf32>
    tpu.vector_store %arg8[%c0_15, %c0_16, %c0_17, %c0_18], %12 {strides = array<i32>} : memref<6x10x10x4xf32, #tpu.memory_space<vmem>>, vector<6x10x10x4xf32>,
    %14 = vector.broadcast %2 : f32 to vector<1x8x8x4xf32>
    %15 = arith.mulf %7, %14 : vector<1x8x8x4xf32>
    %c0_19 = arith.constant 0 : index
    %c1 = arith.constant 1 : index
    %c1_20 = arith.constant 1 : index
    %c0_21 = arith.constant 0 : index
    %16 = vector.load %arg8[%c0_19, %c1, %c1_20, %c0_21] : memref<6x10x10x4xf32, #tpu.memory_space<vmem>>, vector<1x8x8x4xf32>
    tpu.vector_store %arg8[%c0_19, %c1, %c1_20, %c0_21], %15 {strides = array<i32>} : memref<6x10x10x4xf32, #tpu.memory_space<vmem>>, vector<1x8x8x4xf32>,
    %c1_22 = arith.constant 1 : index
    %c1_23 = arith.constant 1 : index
    %c1_24 = arith.constant 1 : index
    %c0_25 = arith.constant 0 : index
    %17 = vector.load %arg8[%c1_22, %c1_23, %c1_24, %c0_25] : memref<6x10x10x4xf32, #tpu.memory_space<vmem>>, vector<4x8x8x4xf32>
    tpu.vector_store %arg8[%c1_22, %c1_23, %c1_24, %c0_25], %9 {strides = array<i32>} : memref<6x10x10x4xf32, #tpu.memory_space<vmem>>, vector<4x8x8x4xf32>,
    %18 = vector.broadcast %5 : f32 to vector<1x8x8x4xf32>
    %19 = arith.mulf %11, %18 : vector<1x8x8x4xf32>
    %c5 = arith.constant 5 : index
    %c1_26 = arith.constant 1 : index
    %c1_27 = arith.constant 1 : index
    %c0_28 = arith.constant 0 : index
    %20 = vector.load %arg8[%c5, %c1_26, %c1_27, %c0_28] : memref<6x10x10x4xf32, #tpu.memory_space<vmem>>, vector<1x8x8x4xf32>
    tpu.vector_store %arg8[%c5, %c1_26, %c1_27, %c0_28], %19 {strides = array<i32>} : memref<6x10x10x4xf32, #tpu.memory_space<vmem>>, vector<1x8x8x4xf32>,
    %c0_29 = arith.constant 0 : index
    %c0_30 = arith.constant 0 : index
    %c0_31 = arith.constant 0 : index
    %c0_32 = arith.constant 0 : index
    %21 = vector.load %arg8[%c0_29, %c0_30, %c0_31, %c0_32] : memref<6x10x10x4xf32, #tpu.memory_space<vmem>>, vector<6x10x10x4xf32>
    %22 = vector.extract_strided_slice %21 {offsets = [0, 0, 0, 0], sizes = [4, 8, 8, 4], strides = [1, 1, 1, 1]} : vector<6x10x10x4xf32> to vector<4x8x8x4xf32>
    %23 = vector.extract_strided_slice %21 {offsets = [0, 0, 1, 0], sizes = [4, 8, 8, 4], strides = [1, 1, 1, 1]} : vector<6x10x10x4xf32> to vector<4x8x8x4xf32>
    %24 = vector.extract_strided_slice %21 {offsets = [0, 0, 2, 0], sizes = [4, 8, 8, 4], strides = [1, 1, 1, 1]} : vector<6x10x10x4xf32> to vector<4x8x8x4xf32>
    %25 = vector.extract_strided_slice %21 {offsets = [0, 1, 0, 0], sizes = [4, 8, 8, 4], strides = [1, 1, 1, 1]} : vector<6x10x10x4xf32> to vector<4x8x8x4xf32>
    %26 = vector.extract_strided_slice %21 {offsets = [0, 1, 1, 0], sizes = [4, 8, 8, 4], strides = [1, 1, 1, 1]} : vector<6x10x10x4xf32> to vector<4x8x8x4xf32>
    %27 = vector.extract_strided_slice %21 {offsets = [0, 1, 2, 0], sizes = [4, 8, 8, 4], strides = [1, 1, 1, 1]} : vector<6x10x10x4xf32> to vector<4x8x8x4xf32>
    %28 = vector.extract_strided_slice %21 {offsets = [0, 2, 0, 0], sizes = [4, 8, 8, 4], strides = [1, 1, 1, 1]} : vector<6x10x10x4xf32> to vector<4x8x8x4xf32>
    %29 = vector.extract_strided_slice %21 {offsets = [0, 2, 1, 0], sizes = [4, 8, 8, 4], strides = [1, 1, 1, 1]} : vector<6x10x10x4xf32> to vector<4x8x8x4xf32>
    %30 = vector.extract_strided_slice %21 {offsets = [0, 2, 2, 0], sizes = [4, 8, 8, 4], strides = [1, 1, 1, 1]} : vector<6x10x10x4xf32> to vector<4x8x8x4xf32>
    %31 = vector.extract_strided_slice %21 {offsets = [1, 0, 0, 0], sizes = [4, 8, 8, 4], strides = [1, 1, 1, 1]} : vector<6x10x10x4xf32> to vector<4x8x8x4xf32>
    %32 = vector.extract_strided_slice %21 {offsets = [1, 0, 1, 0], sizes = [4, 8, 8, 4], strides = [1, 1, 1, 1]} : vector<6x10x10x4xf32> to vector<4x8x8x4xf32>
    %33 = vector.extract_strided_slice %21 {offsets = [1, 0, 2, 0], sizes = [4, 8, 8, 4], strides = [1, 1, 1, 1]} : vector<6x10x10x4xf32> to vector<4x8x8x4xf32>
    %34 = vector.extract_strided_slice %21 {offsets = [1, 1, 0, 0], sizes = [4, 8, 8, 4], strides = [1, 1, 1, 1]} : vector<6x10x10x4xf32> to vector<4x8x8x4xf32>
    %35 = vector.extract_strided_slice %21 {offsets = [1, 1, 1, 0], sizes = [4, 8, 8, 4], strides = [1, 1, 1, 1]} : vector<6x10x10x4xf32> to vector<4x8x8x4xf32>
    %36 = vector.extract_strided_slice %21 {offsets = [1, 1, 2, 0], sizes = [4, 8, 8, 4], strides = [1, 1, 1, 1]} : vector<6x10x10x4xf32> to vector<4x8x8x4xf32>
    %37 = vector.extract_strided_slice %21 {offsets = [1, 2, 0, 0], sizes = [4, 8, 8, 4], strides = [1, 1, 1, 1]} : vector<6x10x10x4xf32> to vector<4x8x8x4xf32>
    %38 = vector.extract_strided_slice %21 {offsets = [1, 2, 1, 0], sizes = [4, 8, 8, 4], strides = [1, 1, 1, 1]} : vector<6x10x10x4xf32> to vector<4x8x8x4xf32>
    %39 = vector.extract_strided_slice %21 {offsets = [1, 2, 2, 0], sizes = [4, 8, 8, 4], strides = [1, 1, 1, 1]} : vector<6x10x10x4xf32> to vector<4x8x8x4xf32>
    %40 = vector.extract_strided_slice %21 {offsets = [2, 0, 0, 0], sizes = [4, 8, 8, 4], strides = [1, 1, 1, 1]} : vector<6x10x10x4xf32> to vector<4x8x8x4xf32>
    %41 = vector.extract_strided_slice %21 {offsets = [2, 0, 1, 0], sizes = [4, 8, 8, 4], strides = [1, 1, 1, 1]} : vector<6x10x10x4xf32> to vector<4x8x8x4xf32>
    %42 = vector.extract_strided_slice %21 {offsets = [2, 0, 2, 0], sizes = [4, 8, 8, 4], strides = [1, 1, 1, 1]} : vector<6x10x10x4xf32> to vector<4x8x8x4xf32>
    %43 = vector.extract_strided_slice %21 {offsets = [2, 1, 0, 0], sizes = [4, 8, 8, 4], strides = [1, 1, 1, 1]} : vector<6x10x10x4xf32> to vector<4x8x8x4xf32>
    %44 = vector.extract_strided_slice %21 {offsets = [2, 1, 1, 0], sizes = [4, 8, 8, 4], strides = [1, 1, 1, 1]} : vector<6x10x10x4xf32> to vector<4x8x8x4xf32>
    %45 = vector.extract_strided_slice %21 {offsets = [2, 1, 2, 0], sizes = [4, 8, 8, 4], strides = [1, 1, 1, 1]} : vector<6x10x10x4xf32> to vector<4x8x8x4xf32>
    %46 = vector.extract_strided_slice %21 {offsets = [2, 2, 0, 0], sizes = [4, 8, 8, 4], strides = [1, 1, 1, 1]} : vector<6x10x10x4xf32> to vector<4x8x8x4xf32>
    %47 = vector.extract_strided_slice %21 {offsets = [2, 2, 1, 0], sizes = [4, 8, 8, 4], strides = [1, 1, 1, 1]} : vector<6x10x10x4xf32> to vector<4x8x8x4xf32>
    %48 = vector.extract_strided_slice %21 {offsets = [2, 2, 2, 0], sizes = [4, 8, 8, 4], strides = [1, 1, 1, 1]} : vector<6x10x10x4xf32> to vector<4x8x8x4xf32>
    %49 = tpu.concatenate %22, %23, %24, %25, %26, %27, %28, %29, %30, %31, %32, %33, %34, %35, %36, %37 in 3 : vector<4x8x8x4xf32>, vector<4x8x8x4xf32>, vector<4x8x8x4xf32>, vector<4x8x8x4xf32>, vector<4x8x8x4xf32>, vector<4x8x8x4xf32>, vector<4x8x8x4xf32>, vector<4x8x8x4xf32>, vector<4x8x8x4xf32>, vector<4x8x8x4xf32>, vector<4x8x8x4xf32>, vector<4x8x8x4xf32>, vector<4x8x8x4xf32>, vector<4x8x8x4xf32>, vector<4x8x8x4xf32>, vector<4x8x8x4xf32> -> vector<4x8x8x64xf32>
    %50 = tpu.concatenate %38, %39, %40, %41, %42, %43, %44, %45, %46, %47, %48 in 3 : vector<4x8x8x4xf32>, vector<4x8x8x4xf32>, vector<4x8x8x4xf32>, vector<4x8x8x4xf32>, vector<4x8x8x4xf32>, vector<4x8x8x4xf32>, vector<4x8x8x4xf32>, vector<4x8x8x4xf32>, vector<4x8x8x4xf32>, vector<4x8x8x4xf32>, vector<4x8x8x4xf32> -> vector<4x8x8x44xf32>
    %51 = tpu.concatenate %49, %50 in 3 : vector<4x8x8x64xf32>, vector<4x8x8x44xf32> -> vector<4x8x8x108xf32>
    %52 = vector.shape_cast %51 : vector<4x8x8x108xf32> to vector<256x108xf32>
    %c0_33 = arith.constant 0 : index
    %c0_34 = arith.constant 0 : index
    %53 = vector.load %arg5[%c0_33, %c0_34] : memref<108x128xf32, #tpu.memory_space<vmem>>, vector<108x128xf32>
    %cst_35 = arith.constant dense<0.000000e+00> : vector<256x128xf32>
    %54 = tpu.matmul %52, %53, %cst_35 {dimension_numbers = #tpu.dot_dimension_numbers<[1], [0], [0], [1], [0, 0, 1, 1], [], []>} : vector<256x108xf32>, vector<108x128xf32>, vector<256x128xf32> -> vector<256x128xf32>
    %55 = vector.extract_strided_slice %54 {offsets = [0, 0], sizes = [256, 4], strides = [1, 1]} : vector<256x128xf32> to vector<256x4xf32>
    %56 = vector.shape_cast %55 : vector<256x4xf32> to vector<4x8x8x4xf32>
    %c0_36 = arith.constant 0 : index
    %c0_37 = arith.constant 0 : index
    %c0_38 = arith.constant 0 : index
    %c0_39 = arith.constant 0 : index
    %c0_40 = arith.constant 0 : index
    %57 = vector.load %arg6[%c0_36, %c0_37, %c0_38, %c0_39, %c0_40] : memref<1x4x8x8x4xf32, #tpu.memory_space<vmem>>, vector<1x4x8x8x4xf32>
    %58 = vector.shape_cast %57 : vector<1x4x8x8x4xf32> to vector<4x8x8x4xf32>
    %59 = vector.shape_cast %56 : vector<4x8x8x4xf32> to vector<1x4x8x8x4xf32>
    tpu.vector_store %arg6[%c0_36, %c0_37, %c0_38, %c0_39, %c0_40], %59 {strides = array<i32>} : memref<1x4x8x8x4xf32, #tpu.memory_space<vmem>>, vector<1x4x8x8x4xf32>,
    %cst_41 = arith.constant dense<0.000000e+00> : vector<4xf32>
    %60 = vector.multi_reduction <add>, %55, %cst_41 [0] : vector<256x4xf32> to vector<4xf32>
    %61 = vector.shape_cast %60 : vector<4xf32> to vector<1x4xf32>
    %62 = arith.mulf %55, %55 : vector<256x4xf32>
    %cst_42 = arith.constant dense<0.000000e+00> : vector<4xf32>
    %63 = vector.multi_reduction <add>, %62, %cst_42 [0] : vector<256x4xf32> to vector<4xf32>
    %64 = vector.shape_cast %63 : vector<4xf32> to vector<1x4xf32>
    %65 = tpu.concatenate %61, %64 in 0 : vector<1x4xf32>, vector<1x4xf32> -> vector<2x4xf32>
    %c0_43 = arith.constant 0 : index
    %c0_44 = arith.constant 0 : index
    %c0_45 = arith.constant 0 : index
    %c0_46 = arith.constant 0 : index
    %66 = vector.load %arg7[%c0_43, %c0_44, %c0_45, %c0_46] : memref<1x1x2x4xf32, #tpu.memory_space<vmem>>, vector<1x1x2x4xf32>
    %67 = vector.shape_cast %66 : vector<1x1x2x4xf32> to vector<2x4xf32>
    %68 = vector.shape_cast %65 : vector<2x4xf32> to vector<1x1x2x4xf32>
    tpu.vector_store %arg7[%c0_43, %c0_44, %c0_45, %c0_46], %68 {strides = array<i32>} : memref<1x1x2x4xf32, #tpu.memory_space<vmem>>, vector<1x1x2x4xf32>,
    return
  }
  func.func @transform_0(%arg0: i32, %arg1: i32) -> (i32, i32, i32, i32, i32) {
    %c4_i32 = arith.constant 4 : i32
    %0 = arith.muli %arg1, %c4_i32 : i32
    %c1_i32 = arith.constant 1 : i32
    %1 = arith.subi %0, %c1_i32 : i32
    %c0_i32 = arith.constant 0 : i32
    %2 = arith.maxsi %1, %c0_i32 : i32
    %c0_i32_0 = arith.constant 0 : i32
    %c0_i32_1 = arith.constant 0 : i32
    %c0_i32_2 = arith.constant 0 : i32
    %c0_i32_3 = arith.constant 0 : i32
    return %arg0, %2, %c0_i32_0, %c0_i32_1, %c0_i32_2 : i32, i32, i32, i32, i32
  }
  func.func @transform_1(%arg0: i32, %arg1: i32) -> (i32, i32, i32, i32, i32) {
    %c0_i32 = arith.constant 0 : i32
    %c0_i32_0 = arith.constant 0 : i32
    %c0_i32_1 = arith.constant 0 : i32
    %c0_i32_2 = arith.constant 0 : i32
    return %arg0, %arg1, %c0_i32, %c0_i32_0, %c0_i32_1 : i32, i32, i32, i32, i32
  }
  func.func @transform_2(%arg0: i32, %arg1: i32) -> (i32, i32, i32, i32, i32) {
    %c1_i32 = arith.constant 1 : i32
    %0 = arith.addi %arg1, %c1_i32 : i32
    %c4_i32 = arith.constant 4 : i32
    %1 = arith.muli %0, %c4_i32 : i32
    %c3_i32 = arith.constant 3 : i32
    %2 = arith.minsi %1, %c3_i32 : i32
    %c0_i32 = arith.constant 0 : i32
    %c0_i32_0 = arith.constant 0 : i32
    %c0_i32_1 = arith.constant 0 : i32
    %c0_i32_2 = arith.constant 0 : i32
    return %arg0, %2, %c0_i32, %c0_i32_0, %c0_i32_1 : i32, i32, i32, i32, i32
  }
  func.func @transform_3(%arg0: i32, %arg1: i32) -> (i32, i32) {
    %c0_i32 = arith.constant 0 : i32
    %c0_i32_0 = arith.constant 0 : i32
    %c0_i32_1 = arith.constant 0 : i32
    return %c0_i32, %c0_i32_0 : i32, i32
  }
  func.func @transform_4(%arg0: i32, %arg1: i32) -> (i32, i32, i32, i32, i32) {
    %c0_i32 = arith.constant 0 : i32
    %c0_i32_0 = arith.constant 0 : i32
    %c0_i32_1 = arith.constant 0 : i32
    %c0_i32_2 = arith.constant 0 : i32
    return %arg0, %arg1, %c0_i32, %c0_i32_0, %c0_i32_1 : i32, i32, i32, i32, i32
  }
  func.func @transform_5(%arg0: i32, %arg1: i32) -> (i32, i32, i32, i32) {
    %c0_i32 = arith.constant 0 : i32
    %c0_i32_0 = arith.constant 0 : i32
    %c0_i32_1 = arith.constant 0 : i32
    return %arg0, %arg1, %c0_i32, %c0_i32_0 : i32, i32, i32, i32
  }
}

module attributes {stable_mosaic.version = 11 : i64} {
  func.func @_bn_relu_kernel(%arg0: i32, %arg1: memref<256x8xf32, #tpu.memory_space<vmem>>, %arg2: memref<1x8xf32, #tpu.memory_space<vmem>>, %arg3: memref<1x8xf32, #tpu.memory_space<vmem>>, %arg4: memref<256x8xf32, #tpu.memory_space<vmem>>) attributes {dimension_semantics = [#tpu.dimension_semantics<parallel>], iteration_bounds = array<i64: 2>, scalar_prefetch = 0 : i64, scratch_operands = 0 : i64, tpu.core_type = #tpu.core_type<tc>, window_params = [{transform_indices = @transform_0, window_bounds = array<i64: 256, 8>}, {pipeline_mode = #tpu.pipeline_mode<synchronous>, transform_indices = @transform_1, window_bounds = array<i64: 1, 8>}, {pipeline_mode = #tpu.pipeline_mode<synchronous>, transform_indices = @transform_2, window_bounds = array<i64: 1, 8>}, {transform_indices = @transform_3, window_bounds = array<i64: 256, 8>}]} {
    %c0 = arith.constant 0 : index
    %c0_0 = arith.constant 0 : index
    %0 = vector.load %arg1[%c0, %c0_0] : memref<256x8xf32, #tpu.memory_space<vmem>>, vector<256x8xf32>
    %c0_1 = arith.constant 0 : index
    %c0_2 = arith.constant 0 : index
    %1 = vector.load %arg2[%c0_1, %c0_2] : memref<1x8xf32, #tpu.memory_space<vmem>>, vector<1x8xf32>
    %2 = vector.broadcast %1 : vector<1x8xf32> to vector<256x8xf32>
    %3 = arith.mulf %0, %2 : vector<256x8xf32>
    %c0_3 = arith.constant 0 : index
    %c0_4 = arith.constant 0 : index
    %4 = vector.load %arg3[%c0_3, %c0_4] : memref<1x8xf32, #tpu.memory_space<vmem>>, vector<1x8xf32>
    %5 = vector.broadcast %4 : vector<1x8xf32> to vector<256x8xf32>
    %6 = arith.addf %3, %5 : vector<256x8xf32>
    %cst = arith.constant 0.000000e+00 : f32
    %7 = vector.broadcast %cst : f32 to vector<256x8xf32>
    %8 = arith.maximumf %6, %7 : vector<256x8xf32>
    %c0_5 = arith.constant 0 : index
    %c0_6 = arith.constant 0 : index
    %9 = vector.load %arg4[%c0_5, %c0_6] : memref<256x8xf32, #tpu.memory_space<vmem>>, vector<256x8xf32>
    tpu.vector_store %arg4[%c0_5, %c0_6], %8 {strides = array<i32>} : memref<256x8xf32, #tpu.memory_space<vmem>>, vector<256x8xf32>,
    return
  }
  func.func @transform_0(%arg0: i32) -> (i32, i32) {
    %c0_i32 = arith.constant 0 : i32
    %c0_i32_0 = arith.constant 0 : i32
    return %arg0, %c0_i32 : i32, i32
  }
  func.func @transform_1(%arg0: i32) -> (i32, i32) {
    %c0_i32 = arith.constant 0 : i32
    %c0_i32_0 = arith.constant 0 : i32
    %c0_i32_1 = arith.constant 0 : i32
    return %c0_i32, %c0_i32_0 : i32, i32
  }
  func.func @transform_2(%arg0: i32) -> (i32, i32) {
    %c0_i32 = arith.constant 0 : i32
    %c0_i32_0 = arith.constant 0 : i32
    %c0_i32_1 = arith.constant 0 : i32
    return %c0_i32, %c0_i32_0 : i32, i32
  }
  func.func @transform_3(%arg0: i32) -> (i32, i32) {
    %c0_i32 = arith.constant 0 : i32
    %c0_i32_0 = arith.constant 0 : i32
    return %arg0, %c0_i32 : i32, i32
  }
}

</mosaic_0001>

<llo_original>
// kernel: down_double_3d_conv.5
$region0: #{down_double_3d_conv.5}
  #allocation0 [shape = 'u32[]', space=smem, size = 0x4, offset = 0x4, fixed_abs, tag = 'smem constant byte address 0x4 - core index']
  #allocation1 [shape = 'u32[72,128]{1,0:T(1,128)}', space=vmem, size = 0x9000, scoped, tag = 'internal scratch']
  %s0 = inlined_call_operand.vmem [shape: f32[512,8], index: 0, kind: input, shape index: {}, may-alias: {0,3}]
  %s1 = inlined_call_operand.vmem [shape: f32[1,8], index: 1, kind: input, shape index: {}]
  %s2 = inlined_call_operand.vmem [shape: f32[1,8], index: 2, kind: input, shape index: {}]
  %s3 = inlined_call_operand.vmem [shape: f32[512,8], index: 3, kind: output, shape index: {}, may-alias: {0,3}]
  %s4 = sld [smem:[#allocation0]]
  $region45: #{down_double_3d_conv.5} parent=0
    _
  %s6 = ssub.s32 1, %s4
  %s7 = scalar_select 0, %s6, %s4
  loop: start=0, step=1, limit=4
  $region2: #{down_double_3d_conv.5} parent=0 // loop_pre_header
    _
  $region3: #{down_double_3d_conv.5} parent=0 // loop_header
    %s9 = sphi 0, %s13
    %p10 = scmp.ge.s32.totalorder %s9, 4
    %s19 = sphi 0, %s21
    %s22 = sphi 0, %s19
    %s23 = sphi 0, %s22
    %s39 = sphi 0, %s23
    %s43 = sphi 0, %s43
    %s45 = sphi 0, %s43
    %s46 = sphi 0, %s45
    %s60 = sphi 0, %s46
    %s64 = sphi 0, %s64
    %s66 = sphi 0, %s64
    %s67 = sphi 0, %s66
    %s81 = sphi 0, %s67
    %s87 = sphi 0, %s89
    %s90 = sphi 0, %s87
    %s91 = sphi 0, %s90
    %s107 = sphi 0, %s91
  $region4: #{down_double_3d_conv.5} parent=0 // loop_header_branch
    %12 = sbr.rel (%p10) target = $region8
  $region5: #{down_double_3d_conv.5} parent=0 // loop_body
    %s14 = ssub.s32 %s9, 1
    %s15 = ssub.s32 %s9, 2
    %s16 = sadd.s32 %s9, 1
    %s17 = ssub.s32 %s9, %s16
    %p18 = scmp.eq.s32.totalorder %s17, 0
    %s20 = sadd.s32 %s19, 1
    %s21 = scalar_select %p18, %s19, %s20
    %p24 = pneg %p18
    %p25 = scmp.eq.s32.totalorder %s9, 1
    %p26 = por %p24, %p25
    %p27 = scmp.ne.s32.totalorder %s19, %s22
    %p28 = scmp.eq.s32.totalorder %s9, 0
    %p29 = por %p27, %p28
    %p30 = scmp.ne.s32.totalorder %s19, %s22
    %p31 = scmp.eq.s32.totalorder %s14, 1
    %p32 = por %p30, %p31
    %p33 = scmp.ne.s32.totalorder %s22, %s23
    %p34 = scmp.eq.s32.totalorder %s14, 0
    %p35 = por %p33, %p34
    %p36 = scmp.ne.s32.totalorder %s22, %s23
    %p37 = scmp.eq.s32.totalorder %s15, 1
    %p38 = por %p36, %p37
    %p40 = scmp.ne.s32.totalorder %s23, %s39
    %p41 = scmp.eq.s32.totalorder %s15, 0
    %p42 = por %p40, %p41
    %s44 = sadd.s32 %s43, 1
    %p47 = scmp.eq.s32.totalorder %s9, 1
    %p48 = scmp.ne.s32.totalorder %s43, %s45
    %p49 = scmp.eq.s32.totalorder %s9, 0
    %p50 = por %p48, %p49
    %p51 = scmp.ne.s32.totalorder %s43, %s45
    %p52 = scmp.eq.s32.totalorder %s14, 1
    %p53 = por %p51, %p52
    %p54 = scmp.ne.s32.totalorder %s45, %s46
    %p55 = scmp.eq.s32.totalorder %s14, 0
    %p56 = por %p54, %p55
    %p57 = scmp.ne.s32.totalorder %s45, %s46
    %p58 = scmp.eq.s32.totalorder %s15, 1
    %p59 = por %p57, %p58
    %p61 = scmp.ne.s32.totalorder %s46, %s60
    %p62 = scmp.eq.s32.totalorder %s15, 0
    %p63 = por %p61, %p62
    %s65 = sadd.s32 %s64, 1
    %p68 = scmp.eq.s32.totalorder %s9, 1
    %p69 = scmp.ne.s32.totalorder %s64, %s66
    %p70 = scmp.eq.s32.totalorder %s9, 0
    %p71 = por %p69, %p70
    %p72 = scmp.ne.s32.totalorder %s64, %s66
    %p73 = scmp.eq.s32.totalorder %s14, 1
    %p74 = por %p72, %p73
    %p75 = scmp.ne.s32.totalorder %s66, %s67
    %p76 = scmp.eq.s32.totalorder %s14, 0
    %p77 = por %p75, %p76
    %p78 = scmp.ne.s32.totalorder %s66, %s67
    %p79 = scmp.eq.s32.totalorder %s15, 1
    %p80 = por %p78, %p79
    %p82 = scmp.ne.s32.totalorder %s67, %s81
    %p83 = scmp.eq.s32.totalorder %s15, 0
    %p84 = por %p82, %p83
    %s85 = ssub.s32 %s9, %s16
    %p86 = scmp.eq.s32.totalorder %s85, 0
    %s88 = sadd.s32 %s87, 1
    %s89 = scalar_select %p86, %s87, %s88
    %p92 = pneg %p86
    %p93 = scmp.eq.s32.totalorder %s9, 1
    %p94 = por %p92, %p93
    %p95 = scmp.ne.s32.totalorder %s87, %s90
    %p96 = scmp.eq.s32.totalorder %s9, 0
    %p97 = por %p95, %p96
    %p98 = scmp.ne.s32.totalorder %s87, %s90
    %p99 = scmp.eq.s32.totalorder %s14, 1
    %p100 = por %p98, %p99
    %p101 = scmp.ne.s32.totalorder %s90, %s91
    %p102 = scmp.eq.s32.totalorder %s14, 0
    %p103 = por %p101, %p102
    %p104 = scmp.ne.s32.totalorder %s90, %s91
    %p105 = scmp.eq.s32.totalorder %s15, 1
    %p106 = por %p104, %p105
    %p108 = scmp.ne.s32.totalorder %s91, %s107
    %p109 = scmp.eq.s32.totalorder %s15, 0
    %p110 = por %p108, %p109
    %p111 = scmp.le.s32.totalorder 1, %s9
    %p112 = scmp.lt.s32.totalorder %s9, 3
    %p113 = pnand %p111, %p112
    %p114 = pneg %p113
    // Predicated region
    $region9: #{down_double_3d_conv.5} parent=5 // pred_check
      _
    $region10: #{down_double_3d_conv.5} parent=5 // pred_check_branch
      %116 = sbr.rel (%p113) target = $region12
    $region11: #{down_double_3d_conv.5} parent=5 // pred_region
      %s117 = ssub.s32 %s9, 1
      // Predicated region
      $region13: #{down_double_3d_conv.5} parent=11 // pred_check
        %p118 = pneg %p56
      $region14: #{down_double_3d_conv.5} parent=11 // pred_check_branch
        %120 = sbr.rel (%p118) target = $region16
      $region15: #{down_double_3d_conv.5} parent=11 // pred_region
        _
      $region16: #{down_double_3d_conv.5} parent=11 // pred_fallthru
        _
      // Predicated region
      $region17: #{down_double_3d_conv.5} parent=11 // pred_check
        %p121 = pneg %p77
      $region18: #{down_double_3d_conv.5} parent=11 // pred_check_branch
        %123 = sbr.rel (%p121) target = $region20
      $region19: #{down_double_3d_conv.5} parent=11 // pred_region
        _
      $region20: #{down_double_3d_conv.5} parent=11 // pred_fallthru
        _
    $region12: #{down_double_3d_conv.5} parent=5 // pred_fallthru
      _
    %p124 = scmp.lt.s32.totalorder %s9, 2
    // Predicated region
    $region21: #{down_double_3d_conv.5} parent=5 // pred_check
      %p125 = pneg %p124
    $region22: #{down_double_3d_conv.5} parent=5 // pred_check_branch
      %127 = sbr.rel (%p125) target = $region24
    $region23: #{down_double_3d_conv.5} parent=5 // pred_region
      // Predicated region
      $region25: #{down_double_3d_conv.5} parent=23 // pred_check
        %p128 = pneg %p29
      $region26: #{down_double_3d_conv.5} parent=23 // pred_check_branch
        %130 = sbr.rel (%p128) target = $region28
      $region27: #{down_double_3d_conv.5} parent=23 // pred_region
        %s131 = smul.u32 32, %s9
        %p132 = scmp.lt.s32.totalorder %s131, 63
        %s133 = scalar_select %p132, %s131, 63
        %s134 = smul.addr %s133, 8
        %s135 = scalar_lea.vmem %s0, %s134
        %s136 = smul.u32 32, %s9
      $region28: #{down_double_3d_conv.5} parent=23 // pred_fallthru
        _
    $region24: #{down_double_3d_conv.5} parent=5 // pred_fallthru
      _
    %p137 = scmp.le.s32.totalorder 1, %s9
    %p138 = scmp.lt.s32.totalorder %s9, 3
    %p139 = pnand %p137, %p138
    %p140 = pneg %p139
    // Predicated region
    $region29: #{down_double_3d_conv.5} parent=5 // pred_check
      _
    $region30: #{down_double_3d_conv.5} parent=5 // pred_check_branch
      %142 = sbr.rel (%p139) target = $region32
    $region31: #{down_double_3d_conv.5} parent=5 // pred_region
      %s143 = ssub.s32 %s9, 1
      %s144 = smul.u32 32, %s14
      %p145 = scmp.lt.s32.totalorder %s144, 63
      %s146 = scalar_select %p145, %s144, 63
      %s147 = smul.addr %s146, 8
      %s148 = scalar_lea.vmem %s0, %s147
      %p149 = pneg %p35
      %p150 = pneg %p32
      %p151 = pneg %p56
      %p152 = pneg %p53
      %p153 = pneg %p77
      %p154 = pneg %p74
      %p155 = pneg %p103
      %p156 = pneg %p100
      %s157 = smul.u32 32, %s14
      %p158 = scmp.lt.s32.totalorder %s157, 63
      %s159 = scalar_select %p158, %s157, 63
      %s160 = smul.addr %s159, 8
      %s161 = scalar_lea.vmem %s3, %s160
      %s162 = smul.u32 32, %s14
      %p163 = scmp.lt.s32.totalorder %s162, 63
      %s164 = scalar_select %p163, %s162, 63
      %s165 = smul.addr %s164, 8
      %s166 = scalar_lea.vmem %s0, %s165
      %s167 = smul.u32 32, %s14
      %s168 = smul.u32 32, %s14
      %p169 = scmp.lt.s32.totalorder %s168, 63
      %s170 = scalar_select %p169, %s168, 63
      %s171 = smul.addr %s170, 8
      %s172 = scalar_lea.vmem %s3, %s171
      %s173 = smul.u32 32, %s14
      %v174 = vld [vmem:[%s166] sm:$0xff]
      %v175 = vld [vmem:[%s166 + $0x8] sm:$0xff]
      %v176 = vld [vmem:[%s166 + $0x10] sm:$0xff]
      %v177 = vld [vmem:[%s166 + $0x18] sm:$0xff]
      %v178 = vld [vmem:[%s166 + $0x20] sm:$0xff]
      %v179 = vld [vmem:[%s166 + $0x28] sm:$0xff]
      %v180 = vld [vmem:[%s166 + $0x30] sm:$0xff]
      %v181 = vld [vmem:[%s166 + $0x38] sm:$0xff]
      %v182 = vld [vmem:[%s166 + $0x40] sm:$0xff]
      %v183 = vld [vmem:[%s166 + $0x48] sm:$0xff]
      %v184 = vld [vmem:[%s166 + $0x50] sm:$0xff]
      %v185 = vld [vmem:[%s166 + $0x58] sm:$0xff]
      %v186 = vld [vmem:[%s166 + $0x60] sm:$0xff]
      %v187 = vld [vmem:[%s166 + $0x68] sm:$0xff]
      %v188 = vld [vmem:[%s166 + $0x70] sm:$0xff]
      %v189 = vld [vmem:[%s166 + $0x78] sm:$0xff]
      %v190 = vld [vmem:[%s166 + $0x80] sm:$0xff]
      %v191 = vld [vmem:[%s166 + $0x88] sm:$0xff]
      %v192 = vld [vmem:[%s166 + $0x90] sm:$0xff]
      %v193 = vld [vmem:[%s166 + $0x98] sm:$0xff]
      %v194 = vld [vmem:[%s166 + $0xa0] sm:$0xff]
      %v195 = vld [vmem:[%s166 + $0xa8] sm:$0xff]
      %v196 = vld [vmem:[%s166 + $0xb0] sm:$0xff]
      %v197 = vld [vmem:[%s166 + $0xb8] sm:$0xff]
      %v198 = vld [vmem:[%s166 + $0xc0] sm:$0xff]
      %v199 = vld [vmem:[%s166 + $0xc8] sm:$0xff]
      %v200 = vld [vmem:[%s166 + $0xd0] sm:$0xff]
      %v201 = vld [vmem:[%s166 + $0xd8] sm:$0xff]
      %v202 = vld [vmem:[%s166 + $0xe0] sm:$0xff]
      %v203 = vld [vmem:[%s166 + $0xe8] sm:$0xff]
      %v204 = vld [vmem:[%s166 + $0xf0] sm:$0xff]
      %v205 = vld [vmem:[%s166 + $0xf8] sm:$0xff]
      %v206 = vld [vmem:[%s1] sm:$0x1]
      %v208 = vperm.slane %v206, 0
      %v210 = vmul.f32 %v174, %v208
      %v211 = vmul.f32 %v175, %v208
      %v212 = vmul.f32 %v176, %v208
      %v213 = vmul.f32 %v177, %v208
      %v214 = vmul.f32 %v178, %v208
      %v215 = vmul.f32 %v179, %v208
      %v216 = vmul.f32 %v180, %v208
      %v217 = vmul.f32 %v181, %v208
      %v218 = vmul.f32 %v182, %v208
      %v219 = vmul.f32 %v183, %v208
      %v220 = vmul.f32 %v184, %v208
      %v221 = vmul.f32 %v185, %v208
      %v222 = vmul.f32 %v186, %v208
      %v223 = vmul.f32 %v187, %v208
      %v224 = vmul.f32 %v188, %v208
      %v225 = vmul.f32 %v189, %v208
      %v226 = vmul.f32 %v190, %v208
      %v227 = vmul.f32 %v191, %v208
      %v228 = vmul.f32 %v192, %v208
      %v229 = vmul.f32 %v193, %v208
      %v230 = vmul.f32 %v194, %v208
      %v231 = vmul.f32 %v195, %v208
      %v232 = vmul.f32 %v196, %v208
      %v233 = vmul.f32 %v197, %v208
      %v234 = vmul.f32 %v198, %v208
      %v235 = vmul.f32 %v199, %v208
      %v236 = vmul.f32 %v200, %v208
      %v237 = vmul.f32 %v201, %v208
      %v238 = vmul.f32 %v202, %v208
      %v239 = vmul.f32 %v203, %v208
      %v240 = vmul.f32 %v204, %v208
      %v241 = vmul.f32 %v205, %v208
      %v242 = vld [vmem:[%s2] sm:$0x1]
      %v244 = vperm.slane %v242, 0
      %v246 = vadd.f32 %v210, %v244
      %v247 = vadd.f32 %v211, %v244
      %v248 = vadd.f32 %v212, %v244
      %v249 = vadd.f32 %v213, %v244
      %v250 = vadd.f32 %v214, %v244
      %v251 = vadd.f32 %v215, %v244
      %v252 = vadd.f32 %v216, %v244
      %v253 = vadd.f32 %v217, %v244
      %v254 = vadd.f32 %v218, %v244
      %v255 = vadd.f32 %v219, %v244
      %v256 = vadd.f32 %v220, %v244
      %v257 = vadd.f32 %v221, %v244
      %v258 = vadd.f32 %v222, %v244
      %v259 = vadd.f32 %v223, %v244
      %v260 = vadd.f32 %v224, %v244
      %v261 = vadd.f32 %v225, %v244
      %v262 = vadd.f32 %v226, %v244
      %v263 = vadd.f32 %v227, %v244
      %v264 = vadd.f32 %v228, %v244
      %v265 = vadd.f32 %v229, %v244
      %v266 = vadd.f32 %v230, %v244
      %v267 = vadd.f32 %v231, %v244
      %v268 = vadd.f32 %v232, %v244
      %v269 = vadd.f32 %v233, %v244
      %v270 = vadd.f32 %v234, %v244
      %v271 = vadd.f32 %v235, %v244
      %v272 = vadd.f32 %v236, %v244
      %v273 = vadd.f32 %v237, %v244
      %v274 = vadd.f32 %v238, %v244
      %v275 = vadd.f32 %v239, %v244
      %v276 = vadd.f32 %v240, %v244
      %v277 = vadd.f32 %v241, %v244
      %v278 = vmax.f32 %v246, 0.0
      %v279 = vmax.f32 %v247, 0.0
      %v280 = vmax.f32 %v248, 0.0
      %v281 = vmax.f32 %v249, 0.0
      %v282 = vmax.f32 %v250, 0.0
      %v283 = vmax.f32 %v251, 0.0
      %v284 = vmax.f32 %v252, 0.0
      %v285 = vmax.f32 %v253, 0.0
      %v286 = vmax.f32 %v254, 0.0
      %v287 = vmax.f32 %v255, 0.0
      %v288 = vmax.f32 %v256, 0.0
      %v289 = vmax.f32 %v257, 0.0
      %v290 = vmax.f32 %v258, 0.0
      %v291 = vmax.f32 %v259, 0.0
      %v292 = vmax.f32 %v260, 0.0
      %v293 = vmax.f32 %v261, 0.0
      %v294 = vmax.f32 %v262, 0.0
      %v295 = vmax.f32 %v263, 0.0
      %v296 = vmax.f32 %v264, 0.0
      %v297 = vmax.f32 %v265, 0.0
      %v298 = vmax.f32 %v266, 0.0
      %v299 = vmax.f32 %v267, 0.0
      %v300 = vmax.f32 %v268, 0.0
      %v301 = vmax.f32 %v269, 0.0
      %v302 = vmax.f32 %v270, 0.0
      %v303 = vmax.f32 %v271, 0.0
      %v304 = vmax.f32 %v272, 0.0
      %v305 = vmax.f32 %v273, 0.0
      %v306 = vmax.f32 %v274, 0.0
      %v307 = vmax.f32 %v275, 0.0
      %v308 = vmax.f32 %v276, 0.0
      %v309 = vmax.f32 %v277, 0.0
      %vm310 = vcmask 64512
      %311 = vst.msk [vmem:[%s172] sm:$0xff] %vm310, %v278
      %312 = vst.msk [vmem:[%s172 + $0x8] sm:$0xff] %vm310, %v279
      %313 = vst.msk [vmem:[%s172 + $0x10] sm:$0xff] %vm310, %v280
      %314 = vst.msk [vmem:[%s172 + $0x18] sm:$0xff] %vm310, %v281
      %315 = vst.msk [vmem:[%s172 + $0x20] sm:$0xff] %vm310, %v282
      %316 = vst.msk [vmem:[%s172 + $0x28] sm:$0xff] %vm310, %v283
      %317 = vst.msk [vmem:[%s172 + $0x30] sm:$0xff] %vm310, %v284
      %318 = vst.msk [vmem:[%s172 + $0x38] sm:$0xff] %vm310, %v285
      %319 = vst.msk [vmem:[%s172 + $0x40] sm:$0xff] %vm310, %v286
      %320 = vst.msk [vmem:[%s172 + $0x48] sm:$0xff] %vm310, %v287
      %321 = vst.msk [vmem:[%s172 + $0x50] sm:$0xff] %vm310, %v288
      %322 = vst.msk [vmem:[%s172 + $0x58] sm:$0xff] %vm310, %v289
      %323 = vst.msk [vmem:[%s172 + $0x60] sm:$0xff] %vm310, %v290
      %324 = vst.msk [vmem:[%s172 + $0x68] sm:$0xff] %vm310, %v291
      %325 = vst.msk [vmem:[%s172 + $0x70] sm:$0xff] %vm310, %v292
      %326 = vst.msk [vmem:[%s172 + $0x78] sm:$0xff] %vm310, %v293
      %327 = vst.msk [vmem:[%s172 + $0x80] sm:$0xff] %vm310, %v294
      %328 = vst.msk [vmem:[%s172 + $0x88] sm:$0xff] %vm310, %v295
      %329 = vst.msk [vmem:[%s172 + $0x90] sm:$0xff] %vm310, %v296
      %330 = vst.msk [vmem:[%s172 + $0x98] sm:$0xff] %vm310, %v297
      %331 = vst.msk [vmem:[%s172 + $0xa0] sm:$0xff] %vm310, %v298
      %332 = vst.msk [vmem:[%s172 + $0xa8] sm:$0xff] %vm310, %v299
      %333 = vst.msk [vmem:[%s172 + $0xb0] sm:$0xff] %vm310, %v300
      %334 = vst.msk [vmem:[%s172 + $0xb8] sm:$0xff] %vm310, %v301
      %335 = vst.msk [vmem:[%s172 + $0xc0] sm:$0xff] %vm310, %v302
      %336 = vst.msk [vmem:[%s172 + $0xc8] sm:$0xff] %vm310, %v303
      %337 = vst.msk [vmem:[%s172 + $0xd0] sm:$0xff] %vm310, %v304
      %338 = vst.msk [vmem:[%s172 + $0xd8] sm:$0xff] %vm310, %v305
      %339 = vst.msk [vmem:[%s172 + $0xe0] sm:$0xff] %vm310, %v306
      %340 = vst.msk [vmem:[%s172 + $0xe8] sm:$0xff] %vm310, %v307
      %341 = vst.msk [vmem:[%s172 + $0xf0] sm:$0xff] %vm310, %v308
      %342 = vst.msk [vmem:[%s172 + $0xf8] sm:$0xff] %vm310, %v309
      %s343 = smul.u32 32, %s14
      %p344 = scmp.lt.s32.totalorder %s343, 63
      %s345 = scalar_select %p344, %s343, 63
      %s346 = smul.addr %s345, 8
      %s347 = scalar_lea.vmem %s3, %s346
      // Predicated region
      $region33: #{down_double_3d_conv.5} parent=31 // pred_check
        %p348 = pneg %p100
      $region34: #{down_double_3d_conv.5} parent=31 // pred_check_branch
        %350 = sbr.rel (%p348) target = $region36
      $region35: #{down_double_3d_conv.5} parent=31 // pred_region
        %s351 = smul.u32 32, %s14
      $region36: #{down_double_3d_conv.5} parent=31 // pred_fallthru
        _
    $region32: #{down_double_3d_conv.5} parent=5 // pred_fallthru
      _
    %p352 = scmp.le.s32.totalorder 2, %s9
    // Predicated region
    $region37: #{down_double_3d_conv.5} parent=5 // pred_check
      %p353 = pneg %p352
    $region38: #{down_double_3d_conv.5} parent=5 // pred_check_branch
      %355 = sbr.rel (%p353) target = $region40
    $region39: #{down_double_3d_conv.5} parent=5 // pred_region
      %s356 = ssub.s32 %s9, 2
      // Predicated region
      $region41: #{down_double_3d_conv.5} parent=39 // pred_check
        %p357 = pneg %p106
      $region42: #{down_double_3d_conv.5} parent=39 // pred_check_branch
        %359 = sbr.rel (%p357) target = $region44
      $region43: #{down_double_3d_conv.5} parent=39 // pred_region
        %s360 = smul.u32 32, %s15
        %p361 = scmp.lt.s32.totalorder %s360, 63
        %s362 = scalar_select %p361, %s360, 63
        %s363 = smul.addr %s362, 8
        %s364 = scalar_lea.vmem %s3, %s363
      $region44: #{down_double_3d_conv.5} parent=39 // pred_fallthru
        _
    $region40: #{down_double_3d_conv.5} parent=5 // pred_fallthru
      _
  $region6: #{down_double_3d_conv.5} parent=0 // loop_footer
    %s13 = sadd.s32 1, %s9
  $region7: #{down_double_3d_conv.5} parent=0 // loop_footer_branch
    %8 = sbr.rel target = $region3
  $region8: #{down_double_3d_conv.5} parent=0 // loop_exit
    _

// kernel: down_double_3d_conv.4
$region0: #{down_double_3d_conv.4}
  #allocation0 [shape = 'u32[]', space=smem, size = 0x4, offset = 0x4, fixed_abs, tag = 'smem constant byte address 0x4 - core index']
  #allocation1 [shape = 'u32[72,128]{1,0:T(1,128)}', space=vmem, size = 0x9000, scoped, tag = 'internal scratch']
  #allocation2 [shape = 'f32[6,10,10,4]{3,2,1,0:T(8,128)}', space=vmem, size = 0x78000, scoped, tag = 'scratch operand']
  %s0 = inlined_call_operand.vmem [shape: f32[2,4,8,8,4], index: 0, kind: input, shape index: {}, may-alias: {0,1,2}]
  %s1 = inlined_call_operand.vmem [shape: f32[2,4,8,8,4], index: 1, kind: input, shape index: {}, may-alias: {0,1,2}]
  %s2 = inlined_call_operand.vmem [shape: f32[2,4,8,8,4], index: 2, kind: input, shape index: {}, may-alias: {0,1,2}]
  %s3 = inlined_call_operand.vmem [shape: f32[108,128], index: 3, kind: input, shape index: {}]
  %s4 = inlined_call_operand.vmem [shape: f32[1,4], index: 4, kind: input, shape index: {}]
  %s5 = inlined_call_operand.vmem [shape: f32[1,4], index: 5, kind: input, shape index: {}]
  %s6 = inlined_call_operand.vmem [shape: f32[2,4,8,8,8], index: 6, kind: output, shape index: {0}]
  %s7 = inlined_call_operand.vmem [shape: f32[2,1,2,8], index: 7, kind: output, shape index: {1}]
  %8 = xla_tuple %s6, %s7
  %s9 = sld [smem:[#allocation0]]
  $region65: #{down_double_3d_conv.4} parent=0
    _
  %s11 = ssub.s32 1, %s9
  %s12 = scalar_select 0, %s11, %s9
  loop: start=0, step=1, limit=4
  $region2: #{down_double_3d_conv.4} parent=0 // loop_pre_header
    _
  $region3: #{down_double_3d_conv.4} parent=0 // loop_header
    %s14 = sphi 0, %s18
    %p15 = scmp.ge.s32.totalorder %s14, 4
    %s21 = sphi 0, %s33
    %s22 = sphi 0, %s29
    %s23 = sphi 0, %s21
    %s24 = sphi 0, %s22
    %s25 = sphi 0, %s23
    %s26 = sphi 0, %s24
    %s46 = sphi 0, %s48
    %s49 = sphi 0, %s46
    %s50 = sphi 0, %s49
    %s66 = sphi 0, %s50
    %s74 = sphi 0, %s76
    %s77 = sphi 0, %s74
    %s78 = sphi 0, %s77
    %s94 = sphi 0, %s78
    %s110 = sphi 0, %s112
    %s113 = sphi 0, %s110
    %s114 = sphi 0, %s113
    %s130 = sphi 0, %s114
    %s134 = sphi 0, %s134
    %s136 = sphi 0, %s134
    %s137 = sphi 0, %s136
    %s151 = sphi 0, %s137
    %s155 = sphi 0, %s155
    %s157 = sphi 0, %s155
    %s158 = sphi 0, %s157
    %s172 = sphi 0, %s158
    %s176 = sphi 0, %s176
    %s178 = sphi 0, %s176
    %s179 = sphi 0, %s178
    %s193 = sphi 0, %s179
    %s201 = sphi 0, %s203
    %s204 = sphi 0, %s201
    %s205 = sphi 0, %s204
    %s221 = sphi 0, %s205
    %s229 = sphi 0, %s231
    %s232 = sphi 0, %s229
    %s233 = sphi 0, %s232
    %s249 = sphi 0, %s233
  $region4: #{down_double_3d_conv.4} parent=0 // loop_header_branch
    %17 = sbr.rel (%p15) target = $region8
  $region5: #{down_double_3d_conv.4} parent=0 // loop_body
    %s19 = ssub.s32 %s14, 1
    %s20 = ssub.s32 %s14, 2
    %s27 = sadd.s32 1, %s22
    %p28 = scmp.ge.s32.totalorder %s27, 1
    %s29 = scalar_select %p28, 0, %s27
    %s30 = sadd.s32 1, %s21
    %s31 = scalar_select %p28, %s30, %s21
    %p32 = scmp.ge.s32.totalorder %s31, 2
    %s33 = scalar_select %p32, 0, %s31
    %s34 = smul.u32 %s22, 4
    %s35 = ssub.s32 %s34, 1
    %p36 = scmp.gt.s32.totalorder %s35, 0
    %s37 = scalar_select %p36, %s35, 0
    %s38 = smul.u32 %s29, 4
    %s39 = ssub.s32 %s38, 1
    %p40 = scmp.gt.s32.totalorder %s39, 0
    %s41 = scalar_select %p40, %s39, 0
    %s42 = ssub.s32 %s21, %s33
    %s43 = ssub.s32 %s37, %s41
    %s44 = sor.u32 %s42, %s43
    %p45 = scmp.eq.s32.totalorder %s44, 0
    %s47 = sadd.s32 %s46, 1
    %s48 = scalar_select %p45, %s46, %s47
    %p51 = pneg %p45
    %p52 = scmp.eq.s32.totalorder %s14, 1
    %p53 = por %p51, %p52
    %p54 = scmp.ne.s32.totalorder %s46, %s49
    %p55 = scmp.eq.s32.totalorder %s14, 0
    %p56 = por %p54, %p55
    %p57 = scmp.ne.s32.totalorder %s46, %s49
    %p58 = scmp.eq.s32.totalorder %s19, 1
    %p59 = por %p57, %p58
    %p60 = scmp.ne.s32.totalorder %s49, %s50
    %p61 = scmp.eq.s32.totalorder %s19, 0
    %p62 = por %p60, %p61
    %p63 = scmp.ne.s32.totalorder %s49, %s50
    %p64 = scmp.eq.s32.totalorder %s20, 1
    %p65 = por %p63, %p64
    %p67 = scmp.ne.s32.totalorder %s50, %s66
    %p68 = scmp.eq.s32.totalorder %s20, 0
    %p69 = por %p67, %p68
    %s70 = ssub.s32 %s21, %s33
    %s71 = ssub.s32 %s22, %s29
    %s72 = sor.u32 %s70, %s71
    %p73 = scmp.eq.s32.totalorder %s72, 0
    %s75 = sadd.s32 %s74, 1
    %s76 = scalar_select %p73, %s74, %s75
    %p79 = pneg %p73
    %p80 = scmp.eq.s32.totalorder %s14, 1
    %p81 = por %p79, %p80
    %p82 = scmp.ne.s32.totalorder %s74, %s77
    %p83 = scmp.eq.s32.totalorder %s14, 0
    %p84 = por %p82, %p83
    %p85 = scmp.ne.s32.totalorder %s74, %s77
    %p86 = scmp.eq.s32.totalorder %s19, 1
    %p87 = por %p85, %p86
    %p88 = scmp.ne.s32.totalorder %s77, %s78
    %p89 = scmp.eq.s32.totalorder %s19, 0
    %p90 = por %p88, %p89
    %p91 = scmp.ne.s32.totalorder %s77, %s78
    %p92 = scmp.eq.s32.totalorder %s20, 1
    %p93 = por %p91, %p92
    %p95 = scmp.ne.s32.totalorder %s78, %s94
    %p96 = scmp.eq.s32.totalorder %s20, 0
    %p97 = por %p95, %p96
    %s98 = sadd.s32 %s22, 1
    %s99 = smul.u32 %s98, 4
    %p100 = scmp.lt.s32.totalorder %s99, 3
    %s101 = scalar_select %p100, %s99, 3
    %s102 = sadd.s32 %s29, 1
    %s103 = smul.u32 %s102, 4
    %p104 = scmp.lt.s32.totalorder %s103, 3
    %s105 = scalar_select %p104, %s103, 3
    %s106 = ssub.s32 %s21, %s33
    %s107 = ssub.s32 %s101, %s105
    %s108 = sor.u32 %s106, %s107
    %p109 = scmp.eq.s32.totalorder %s108, 0
    %s111 = sadd.s32 %s110, 1
    %s112 = scalar_select %p109, %s110, %s111
    %p115 = pneg %p109
    %p116 = scmp.eq.s32.totalorder %s14, 1
    %p117 = por %p115, %p116
    %p118 = scmp.ne.s32.totalorder %s110, %s113
    %p119 = scmp.eq.s32.totalorder %s14, 0
    %p120 = por %p118, %p119
    %p121 = scmp.ne.s32.totalorder %s110, %s113
    %p122 = scmp.eq.s32.totalorder %s19, 1
    %p123 = por %p121, %p122
    %p124 = scmp.ne.s32.totalorder %s113, %s114
    %p125 = scmp.eq.s32.totalorder %s19, 0
    %p126 = por %p124, %p125
    %p127 = scmp.ne.s32.totalorder %s113, %s114
    %p128 = scmp.eq.s32.totalorder %s20, 1
    %p129 = por %p127, %p128
    %p131 = scmp.ne.s32.totalorder %s114, %s130
    %p132 = scmp.eq.s32.totalorder %s20, 0
    %p133 = por %p131, %p132
    %s135 = sadd.s32 %s134, 1
    %p138 = scmp.eq.s32.totalorder %s14, 1
    %p139 = scmp.ne.s32.totalorder %s134, %s136
    %p140 = scmp.eq.s32.totalorder %s14, 0
    %p141 = por %p139, %p140
    %p142 = scmp.ne.s32.totalorder %s134, %s136
    %p143 = scmp.eq.s32.totalorder %s19, 1
    %p144 = por %p142, %p143
    %p145 = scmp.ne.s32.totalorder %s136, %s137
    %p146 = scmp.eq.s32.totalorder %s19, 0
    %p147 = por %p145, %p146
    %p148 = scmp.ne.s32.totalorder %s136, %s137
    %p149 = scmp.eq.s32.totalorder %s20, 1
    %p150 = por %p148, %p149
    %p152 = scmp.ne.s32.totalorder %s137, %s151
    %p153 = scmp.eq.s32.totalorder %s20, 0
    %p154 = por %p152, %p153
    %s156 = sadd.s32 %s155, 1
    %p159 = scmp.eq.s32.totalorder %s14, 1
    %p160 = scmp.ne.s32.totalorder %s155, %s157
    %p161 = scmp.eq.s32.totalorder %s14, 0
    %p162 = por %p160, %p161
    %p163 = scmp.ne.s32.totalorder %s155, %s157
    %p164 = scmp.eq.s32.totalorder %s19, 1
    %p165 = por %p163, %p164
    %p166 = scmp.ne.s32.totalorder %s157, %s158
    %p167 = scmp.eq.s32.totalorder %s19, 0
    %p168 = por %p166, %p167
    %p169 = scmp.ne.s32.totalorder %s157, %s158
    %p170 = scmp.eq.s32.totalorder %s20, 1
    %p171 = por %p169, %p170
    %p173 = scmp.ne.s32.totalorder %s158, %s172
    %p174 = scmp.eq.s32.totalorder %s20, 0
    %p175 = por %p173, %p174
    %s177 = sadd.s32 %s176, 1
    %p180 = scmp.eq.s32.totalorder %s14, 1
    %p181 = scmp.ne.s32.totalorder %s176, %s178
    %p182 = scmp.eq.s32.totalorder %s14, 0
    %p183 = por %p181, %p182
    %p184 = scmp.ne.s32.totalorder %s176, %s178
    %p185 = scmp.eq.s32.totalorder %s19, 1
    %p186 = por %p184, %p185
    %p187 = scmp.ne.s32.totalorder %s178, %s179
    %p188 = scmp.eq.s32.totalorder %s19, 0
    %p189 = por %p187, %p188
    %p190 = scmp.ne.s32.totalorder %s178, %s179
    %p191 = scmp.eq.s32.totalorder %s20, 1
    %p192 = por %p190, %p191
    %p194 = scmp.ne.s32.totalorder %s179, %s193
    %p195 = scmp.eq.s32.totalorder %s20, 0
    %p196 = por %p194, %p195
    %s197 = ssub.s32 %s21, %s33
    %s198 = ssub.s32 %s22, %s29
    %s199 = sor.u32 %s197, %s198
    %p200 = scmp.eq.s32.totalorder %s199, 0
    %s202 = sadd.s32 %s201, 1
    %s203 = scalar_select %p200, %s201, %s202
    %p206 = pneg %p200
    %p207 = scmp.eq.s32.totalorder %s14, 1
    %p208 = por %p206, %p207
    %p209 = scmp.ne.s32.totalorder %s201, %s204
    %p210 = scmp.eq.s32.totalorder %s14, 0
    %p211 = por %p209, %p210
    %p212 = scmp.ne.s32.totalorder %s201, %s204
    %p213 = scmp.eq.s32.totalorder %s19, 1
    %p214 = por %p212, %p213
    %p215 = scmp.ne.s32.totalorder %s204, %s205
    %p216 = scmp.eq.s32.totalorder %s19, 0
    %p217 = por %p215, %p216
    %p218 = scmp.ne.s32.totalorder %s204, %s205
    %p219 = scmp.eq.s32.totalorder %s20, 1
    %p220 = por %p218, %p219
    %p222 = scmp.ne.s32.totalorder %s205, %s221
    %p223 = scmp.eq.s32.totalorder %s20, 0
    %p224 = por %p222, %p223
    %s225 = ssub.s32 %s21, %s33
    %s226 = ssub.s32 %s22, %s29
    %s227 = sor.u32 %s225, %s226
    %p228 = scmp.eq.s32.totalorder %s227, 0
    %s230 = sadd.s32 %s229, 1
    %s231 = scalar_select %p228, %s229, %s230
    %p234 = pneg %p228
    %p235 = scmp.eq.s32.totalorder %s14, 1
    %p236 = por %p234, %p235
    %p237 = scmp.ne.s32.totalorder %s229, %s232
    %p238 = scmp.eq.s32.totalorder %s14, 0
    %p239 = por %p237, %p238
    %p240 = scmp.ne.s32.totalorder %s229, %s232
    %p241 = scmp.eq.s32.totalorder %s19, 1
    %p242 = por %p240, %p241
    %p243 = scmp.ne.s32.totalorder %s232, %s233
    %p244 = scmp.eq.s32.totalorder %s19, 0
    %p245 = por %p243, %p244
    %p246 = scmp.ne.s32.totalorder %s232, %s233
    %p247 = scmp.eq.s32.totalorder %s20, 1
    %p248 = por %p246, %p247
    %p250 = scmp.ne.s32.totalorder %s233, %s249
    %p251 = scmp.eq.s32.totalorder %s20, 0
    %p252 = por %p250, %p251
    %p253 = scmp.le.s32.totalorder 1, %s14
    %p254 = scmp.lt.s32.totalorder %s14, 3
    %p255 = pnand %p253, %p254
    %p256 = pneg %p255
    // Predicated region
    $region9: #{down_double_3d_conv.4} parent=5 // pred_check
      _
    $region10: #{down_double_3d_conv.4} parent=5 // pred_check_branch
      %258 = sbr.rel (%p255) target = $region12
    $region11: #{down_double_3d_conv.4} parent=5 // pred_region
      %s259 = ssub.s32 %s14, 1
      // Predicated region
      $region13: #{down_double_3d_conv.4} parent=11 // pred_check
        %p260 = pneg %p147
      $region14: #{down_double_3d_conv.4} parent=11 // pred_check_branch
        %262 = sbr.rel (%p260) target = $region16
      $region15: #{down_double_3d_conv.4} parent=11 // pred_region
        _
      $region16: #{down_double_3d_conv.4} parent=11 // pred_fallthru
        _
      // Predicated region
      $region17: #{down_double_3d_conv.4} parent=11 // pred_check
        %p263 = pneg %p168
      $region18: #{down_double_3d_conv.4} parent=11 // pred_check_branch
        %265 = sbr.rel (%p263) target = $region20
      $region19: #{down_double_3d_conv.4} parent=11 // pred_region
        _
      $region20: #{down_double_3d_conv.4} parent=11 // pred_fallthru
        _
      // Predicated region
      $region21: #{down_double_3d_conv.4} parent=11 // pred_check
        %p266 = pneg %p189
      $region22: #{down_double_3d_conv.4} parent=11 // pred_check_branch
        %268 = sbr.rel (%p266) target = $region24
      $region23: #{down_double_3d_conv.4} parent=11 // pred_region
        _
      $region24: #{down_double_3d_conv.4} parent=11 // pred_fallthru
        _
    $region12: #{down_double_3d_conv.4} parent=5 // pred_fallthru
      _
    %p269 = scmp.lt.s32.totalorder %s14, 2
    // Predicated region
    $region25: #{down_double_3d_conv.4} parent=5 // pred_check
      %p270 = pneg %p269
    $region26: #{down_double_3d_conv.4} parent=5 // pred_check_branch
      %272 = sbr.rel (%p270) target = $region28
    $region27: #{down_double_3d_conv.4} parent=5 // pred_region
      // Predicated region
      $region29: #{down_double_3d_conv.4} parent=27 // pred_check
        %p273 = pneg %p56
      $region30: #{down_double_3d_conv.4} parent=27 // pred_check_branch
        %275 = sbr.rel (%p273) target = $region32
      $region31: #{down_double_3d_conv.4} parent=27 // pred_region
        %s276 = smul.u32 %s22, 4
        %s277 = ssub.s32 %s276, 1
        %p278 = scmp.gt.s32.totalorder %s277, 0
        %s279 = scalar_select %p278, %s277, 0
        %p280 = scmp.lt.s32.totalorder %s21, 1
        %s281 = scalar_select %p280, %s21, 1
        %p282 = scmp.lt.s32.totalorder %s279, 3
        %s283 = scalar_select %p282, %s279, 3
        %s284 = smul.addr %s283, 8
        %s285 = smul.addr %s281, 32
        %s286 = sadd.s32 %s284, %s285
        %s287 = smul.addr %s286, 8
        %s288 = scalar_lea.vmem %s0, %s287
        %s289 = smul.u32 %s22, 4
        %s290 = ssub.s32 %s289, 1
        %p291 = scmp.gt.s32.totalorder %s290, 0
        %s292 = scalar_select %p291, %s290, 0
      $region32: #{down_double_3d_conv.4} parent=27 // pred_fallthru
        _
      // Predicated region
      $region33: #{down_double_3d_conv.4} parent=27 // pred_check
        %p293 = pneg %p84
      $region34: #{down_double_3d_conv.4} parent=27 // pred_check_branch
        %295 = sbr.rel (%p293) target = $region36
      $region35: #{down_double_3d_conv.4} parent=27 // pred_region
        %s296 = smul.u32 4, %s22
        %p297 = scmp.lt.s32.totalorder %s21, 1
        %s298 = scalar_select %p297, %s21, 1
        %p299 = scmp.lt.s32.totalorder %s296, 3
        %s300 = scalar_select %p299, %s296, 3
        %s301 = smul.addr %s300, 8
        %s302 = smul.addr %s298, 32
        %s303 = sadd.s32 %s301, %s302
        %s304 = smul.addr %s303, 8
        %s305 = scalar_lea.vmem %s1, %s304
        %s306 = smul.u32 4, %s22
      $region36: #{down_double_3d_conv.4} parent=27 // pred_fallthru
        _
      // Predicated region
      $region37: #{down_double_3d_conv.4} parent=27 // pred_check
        %p307 = pneg %p120
      $region38: #{down_double_3d_conv.4} parent=27 // pred_check_branch
        %309 = sbr.rel (%p307) target = $region40
      $region39: #{down_double_3d_conv.4} parent=27 // pred_region
        %s310 = sadd.s32 %s22, 1
        %s311 = smul.u32 %s310, 4
        %p312 = scmp.lt.s32.totalorder %s311, 3
        %s313 = scalar_select %p312, %s311, 3
        %p314 = scmp.lt.s32.totalorder %s21, 1
        %s315 = scalar_select %p314, %s21, 1
        %p316 = scmp.lt.s32.totalorder %s313, 3
        %s317 = scalar_select %p316, %s313, 3
        %s318 = smul.addr %s317, 8
        %s319 = smul.addr %s315, 32
        %s320 = sadd.s32 %s318, %s319
        %s321 = smul.addr %s320, 8
        %s322 = scalar_lea.vmem %s2, %s321
        %s323 = sadd.s32 %s22, 1
        %s324 = smul.u32 %s323, 4
        %p325 = scmp.lt.s32.totalorder %s324, 3
        %s326 = scalar_select %p325, %s324, 3
      $region40: #{down_double_3d_conv.4} parent=27 // pred_fallthru
        _
    $region28: #{down_double_3d_conv.4} parent=5 // pred_fallthru
      _
    %p327 = scmp.le.s32.totalorder 1, %s14
    %p328 = scmp.lt.s32.totalorder %s14, 3
    %p329 = pnand %p327, %p328
    %p330 = pneg %p329
    // Predicated region
    $region41: #{down_double_3d_conv.4} parent=5 // pred_check
      _
    $region42: #{down_double_3d_conv.4} parent=5 // pred_check_branch
      %332 = sbr.rel (%p329) target = $region44
    $region43: #{down_double_3d_conv.4} parent=5 // pred_region
      %s333 = ssub.s32 %s14, 1
      %s334 = smul.u32 %s24, 4
      %s335 = ssub.s32 %s334, 1
      %p336 = scmp.gt.s32.totalorder %s335, 0
      %s337 = scalar_select %p336, %s335, 0
      %p338 = scmp.lt.s32.totalorder %s23, 1
      %s339 = scalar_select %p338, %s23, 1
      %p340 = scmp.lt.s32.totalorder %s337, 3
      %s341 = scalar_select %p340, %s337, 3
      %s342 = smul.addr %s341, 8
      %s343 = smul.addr %s339, 32
      %s344 = sadd.s32 %s342, %s343
      %s345 = smul.addr %s344, 8
      %s346 = scalar_lea.vmem %s0, %s345
      %p347 = pneg %p62
      %p348 = pneg %p59
      %s349 = smul.u32 4, %s24
      %p350 = scmp.lt.s32.totalorder %s23, 1
      %s351 = scalar_select %p350, %s23, 1
      %p352 = scmp.lt.s32.totalorder %s349, 3
      %s353 = scalar_select %p352, %s349, 3
      %s354 = smul.addr %s353, 8
      %s355 = smul.addr %s351, 32
      %s356 = sadd.s32 %s354, %s355
      %s357 = smul.addr %s356, 8
      %s358 = scalar_lea.vmem %s1, %s357
      %p359 = pneg %p90
      %p360 = pneg %p87
      %s361 = sadd.s32 %s24, 1
      %s362 = smul.u32 %s361, 4
      %p363 = scmp.lt.s32.totalorder %s362, 3
      %s364 = scalar_select %p363, %s362, 3
      %p365 = scmp.lt.s32.totalorder %s23, 1
      %s366 = scalar_select %p365, %s23, 1
      %p367 = scmp.lt.s32.totalorder %s364, 3
      %s368 = scalar_select %p367, %s364, 3
      %s369 = smul.addr %s368, 8
      %s370 = smul.addr %s366, 32
      %s371 = sadd.s32 %s369, %s370
      %s372 = smul.addr %s371, 8
      %s373 = scalar_lea.vmem %s2, %s372
      %p374 = pneg %p126
      %p375 = pneg %p123
      %p376 = pneg %p147
      %p377 = pneg %p144
      %p378 = pneg %p168
      %p379 = pneg %p165
      %p380 = pneg %p189
      %p381 = pneg %p186
      %p382 = pneg %p217
      %p383 = pneg %p214
      %s384 = smul.u32 4, %s24
      %p385 = scmp.lt.s32.totalorder %s23, 1
      %s386 = scalar_select %p385, %s23, 1
      %p387 = scmp.lt.s32.totalorder %s384, 3
      %s388 = scalar_select %p387, %s384, 3
      %s389 = smul.addr %s388, 8
      %s390 = smul.addr %s386, 32
      %s391 = sadd.s32 %s389, %s390
      %s392 = smul.addr %s391, 8
      %s393 = scalar_lea.vmem %s6, %s392
      %p394 = pneg %p245
      %p395 = pneg %p242
      %p396 = scmp.lt.s32.totalorder %s23, 1
      %s397 = scalar_select %p396, %s23, 1
      %p398 = scmp.lt.s32.totalorder %s24, 0
      %s399 = scalar_select %p398, %s24, 0
      %s400 = sadd.s32 %s399, %s397
      %s401 = smul.addr %s400, 2
      %s402 = scalar_lea.vmem %s7, %s401
      %s403 = smul.u32 %s24, 4
      %s404 = ssub.s32 %s403, 1
      %p405 = scmp.gt.s32.totalorder %s404, 0
      %s406 = scalar_select %p405, %s404, 0
      %p407 = scmp.lt.s32.totalorder %s23, 1
      %s408 = scalar_select %p407, %s23, 1
      %p409 = scmp.lt.s32.totalorder %s406, 3
      %s410 = scalar_select %p409, %s406, 3
      %s411 = smul.addr %s410, 8
      %s412 = smul.addr %s408, 32
      %s413 = sadd.s32 %s411, %s412
      %s414 = smul.addr %s413, 8
      %s415 = scalar_lea.vmem %s0, %s414
      %s416 = smul.u32 %s24, 4
      %s417 = ssub.s32 %s416, 1
      %p418 = scmp.gt.s32.totalorder %s417, 0
      %s419 = scalar_select %p418, %s417, 0
      %s420 = smul.u32 4, %s24
      %p421 = scmp.lt.s32.totalorder %s23, 1
      %s422 = scalar_select %p421, %s23, 1
      %p423 = scmp.lt.s32.totalorder %s420, 3
      %s424 = scalar_select %p423, %s420, 3
      %s425 = smul.addr %s424, 8
      %s426 = smul.addr %s422, 32
      %s427 = sadd.s32 %s425, %s426
      %s428 = smul.addr %s427, 8
      %s429 = scalar_lea.vmem %s1, %s428
      %s430 = smul.u32 4, %s24
      %s431 = sadd.s32 %s24, 1
      %s432 = smul.u32 %s431, 4
      %p433 = scmp.lt.s32.totalorder %s432, 3
      %s434 = scalar_select %p433, %s432, 3
      %p435 = scmp.lt.s32.totalorder %s23, 1
      %s436 = scalar_select %p435, %s23, 1
      %p437 = scmp.lt.s32.totalorder %s434, 3
      %s438 = scalar_select %p437, %s434, 3
      %s439 = smul.addr %s438, 8
      %s440 = smul.addr %s436, 32
      %s441 = sadd.s32 %s439, %s440
      %s442 = smul.addr %s441, 8
      %s443 = scalar_lea.vmem %s2, %s442
      %s444 = sadd.s32 %s24, 1
      %s445 = smul.u32 %s444, 4
      %p446 = scmp.lt.s32.totalorder %s445, 3
      %s447 = scalar_select %p446, %s445, 3
      %s448 = smul.u32 4, %s24
      %p449 = scmp.lt.s32.totalorder %s23, 1
      %s450 = scalar_select %p449, %s23, 1
      %p451 = scmp.lt.s32.totalorder %s448, 3
      %s452 = scalar_select %p451, %s448, 3
      %s453 = smul.addr %s452, 8
      %s454 = smul.addr %s450, 32
      %s455 = sadd.s32 %s453, %s454
      %s456 = smul.addr %s455, 8
      %s457 = scalar_lea.vmem %s6, %s456
      %s458 = smul.u32 4, %s24
      %p459 = scmp.lt.s32.totalorder %s23, 1
      %s460 = scalar_select %p459, %s23, 1
      %p461 = scmp.lt.s32.totalorder %s24, 0
      %s462 = scalar_select %p461, %s24, 0
      %s463 = sadd.s32 %s462, %s460
      %s464 = smul.addr %s463, 2
      %s465 = scalar_lea.vmem %s7, %s464
      %p466 = scmp.gt.s32.totalorder %s24, 0
      %s467 = scalar_select %p466, 1, 0
      %s468 = scvt.s32.f32 %s467
      %p469 = scmp.lt.s32.totalorder %s24, 0
      %s470 = scalar_select %p469, 1, 0
      %s471 = scvt.s32.f32 %s470
      %v472 = vld [vmem:[%s415] sm:$0xff]
      %v473 = vld [vmem:[%s415 + $0x8] sm:$0xff]
      %v474 = vld [vmem:[%s415 + $0x10] sm:$0xff]
      %v475 = vld [vmem:[%s415 + $0x18] sm:$0xff]
      %v476 = vld [vmem:[%s415 + $0x20] sm:$0xff]
      %v477 = vld [vmem:[%s415 + $0x28] sm:$0xff]
      %v478 = vld [vmem:[%s415 + $0x30] sm:$0xff]
      %v479 = vld [vmem:[%s415 + $0x38] sm:$0xff]
      %v480 = vld [vmem:[%s429] sm:$0xff]
      %v481 = vld [vmem:[%s429 + $0x8] sm:$0xff]
      %v482 = vld [vmem:[%s429 + $0x10] sm:$0xff]
      %v483 = vld [vmem:[%s429 + $0x18] sm:$0xff]
      %v484 = vld [vmem:[%s429 + $0x20] sm:$0xff]
      %v485 = vld [vmem:[%s429 + $0x28] sm:$0xff]
      %v486 = vld [vmem:[%s429 + $0x30] sm:$0xff]
      %v487 = vld [vmem:[%s429 + $0x38] sm:$0xff]
      %v488 = vld [vmem:[%s429 + $0x40] sm:$0xff]
      %v489 = vld [vmem:[%s429 + $0x48] sm:$0xff]
      %v490 = vld [vmem:[%s429 + $0x50] sm:$0xff]
      %v491 = vld [vmem:[%s429 + $0x58] sm:$0xff]
      %v492 = vld [vmem:[%s429 + $0x60] sm:$0xff]
      %v493 = vld [vmem:[%s429 + $0x68] sm:$0xff]
      %v494 = vld [vmem:[%s429 + $0x70] sm:$0xff]
      %v495 = vld [vmem:[%s429 + $0x78] sm:$0xff]
      %v496 = vld [vmem:[%s429 + $0x80] sm:$0xff]
      %v497 = vld [vmem:[%s429 + $0x88] sm:$0xff]
      %v498 = vld [vmem:[%s429 + $0x90] sm:$0xff]
      %v499 = vld [vmem:[%s429 + $0x98] sm:$0xff]
      %v500 = vld [vmem:[%s429 + $0xa0] sm:$0xff]
      %v501 = vld [vmem:[%s429 + $0xa8] sm:$0xff]
      %v502 = vld [vmem:[%s429 + $0xb0] sm:$0xff]
      %v503 = vld [vmem:[%s429 + $0xb8] sm:$0xff]
      %v504 = vld [vmem:[%s429 + $0xc0] sm:$0xff]
      %v505 = vld [vmem:[%s429 + $0xc8] sm:$0xff]
      %v506 = vld [vmem:[%s429 + $0xd0] sm:$0xff]
      %v507 = vld [vmem:[%s429 + $0xd8] sm:$0xff]
      %v508 = vld [vmem:[%s429 + $0xe0] sm:$0xff]
      %v509 = vld [vmem:[%s429 + $0xe8] sm:$0xff]
      %v510 = vld [vmem:[%s429 + $0xf0] sm:$0xff]
      %v511 = vld [vmem:[%s429 + $0xf8] sm:$0xff]
      %v512 = vld [vmem:[%s443] sm:$0xff]
      %v513 = vld [vmem:[%s443 + $0x8] sm:$0xff]
      %v514 = vld [vmem:[%s443 + $0x10] sm:$0xff]
      %v515 = vld [vmem:[%s443 + $0x18] sm:$0xff]
      %v516 = vld [vmem:[%s443 + $0x20] sm:$0xff]
      %v517 = vld [vmem:[%s443 + $0x28] sm:$0xff]
      %v518 = vld [vmem:[%s443 + $0x30] sm:$0xff]
      %v519 = vld [vmem:[%s443 + $0x38] sm:$0xff]
      %v520 = vld [vmem:[%s4] sm:$0x1]
      %v521 = vld [vmem:[%s5] sm:$0x1]
      %v523 = vperm.slane %v520, 0
      %v525 = vmul.f32 %v472, %v523
      %v526 = vmul.f32 %v473, %v523
      %v527 = vmul.f32 %v474, %v523
      %v528 = vmul.f32 %v475, %v523
      %v529 = vmul.f32 %v476, %v523
      %v530 = vmul.f32 %v477, %v523
      %v531 = vmul.f32 %v478, %v523
      %v532 = vmul.f32 %v479, %v523
      %v534 = vperm.slane %v521, 0
      %v536 = vadd.f32 %v525, %v534
      %v537 = vadd.f32 %v526, %v534
      %v538 = vadd.f32 %v527, %v534
      %v539 = vadd.f32 %v528, %v534
      %v540 = vadd.f32 %v529, %v534
      %v541 = vadd.f32 %v530, %v534
      %v542 = vadd.f32 %v531, %v534
      %v543 = vadd.f32 %v532, %v534
      %v544 = vmax.f32 %v536, 0.0
      %v545 = vmax.f32 %v537, 0.0
      %v546 = vmax.f32 %v538, 0.0
      %v547 = vmax.f32 %v539, 0.0
      %v548 = vmax.f32 %v540, 0.0
      %v549 = vmax.f32 %v541, 0.0
      %v550 = vmax.f32 %v542, 0.0
      %v551 = vmax.f32 %v543, 0.0
      %v552 = vmul.f32 %v480, %v523
      %v553 = vmul.f32 %v481, %v523
      %v554 = vmul.f32 %v482, %v523
      %v555 = vmul.f32 %v483, %v523
      %v556 = vmul.f32 %v484, %v523
      %v557 = vmul.f32 %v485, %v523
      %v558 = vmul.f32 %v486, %v523
      %v559 = vmul.f32 %v487, %v523
      %v560 = vmul.f32 %v488, %v523
      %v561 = vmul.f32 %v489, %v523
      %v562 = vmul.f32 %v490, %v523
      %v563 = vmul.f32 %v491, %v523
      %v564 = vmul.f32 %v492, %v523
      %v565 = vmul.f32 %v493, %v523
      %v566 = vmul.f32 %v494, %v523
      %v567 = vmul.f32 %v495, %v523
      %v568 = vmul.f32 %v496, %v523
      %v569 = vmul.f32 %v497, %v523
      %v570 = vmul.f32 %v498, %v523
      %v571 = vmul.f32 %v499, %v523
      %v572 = vmul.f32 %v500, %v523
      %v573 = vmul.f32 %v501, %v523
      %v574 = vmul.f32 %v502, %v523
      %v575 = vmul.f32 %v503, %v523
      %v576 = vmul.f32 %v504, %v523
      %v577 = vmul.f32 %v505, %v523
      %v578 = vmul.f32 %v506, %v523
      %v579 = vmul.f32 %v507, %v523
      %v580 = vmul.f32 %v508, %v523
      %v581 = vmul.f32 %v509, %v523
      %v582 = vmul.f32 %v510, %v523
      %v583 = vmul.f32 %v511, %v523
      %v584 = vadd.f32 %v552, %v534
      %v585 = vadd.f32 %v553, %v534
      %v586 = vadd.f32 %v554, %v534
      %v587 = vadd.f32 %v555, %v534
      %v588 = vadd.f32 %v556, %v534
      %v589 = vadd.f32 %v557, %v534
      %v590 = vadd.f32 %v558, %v534
      %v591 = vadd.f32 %v559, %v534
      %v592 = vadd.f32 %v560, %v534
      %v593 = vadd.f32 %v561, %v534
      %v594 = vadd.f32 %v562, %v534
      %v595 = vadd.f32 %v563, %v534
      %v596 = vadd.f32 %v564, %v534
      %v597 = vadd.f32 %v565, %v534
      %v598 = vadd.f32 %v566, %v534
      %v599 = vadd.f32 %v567, %v534
      %v600 = vadd.f32 %v568, %v534
      %v601 = vadd.f32 %v569, %v534
      %v602 = vadd.f32 %v570, %v534
      %v603 = vadd.f32 %v571, %v534
      %v604 = vadd.f32 %v572, %v534
      %v605 = vadd.f32 %v573, %v534
      %v606 = vadd.f32 %v574, %v534
      %v607 = vadd.f32 %v575, %v534
      %v608 = vadd.f32 %v576, %v534
      %v609 = vadd.f32 %v577, %v534
      %v610 = vadd.f32 %v578, %v534
      %v611 = vadd.f32 %v579, %v534
      %v612 = vadd.f32 %v580, %v534
      %v613 = vadd.f32 %v581, %v534
      %v614 = vadd.f32 %v582, %v534
      %v615 = vadd.f32 %v583, %v534
      %v616 = vmax.f32 %v584, 0.0
      %v617 = vmax.f32 %v585, 0.0
      %v618 = vmax.f32 %v586, 0.0
      %v619 = vmax.f32 %v587, 0.0
      %v620 = vmax.f32 %v588, 0.0
      %v621 = vmax.f32 %v589, 0.0
      %v622 = vmax.f32 %v590, 0.0
      %v623 = vmax.f32 %v591, 0.0
      %v624 = vmax.f32 %v592, 0.0
      %v625 = vmax.f32 %v593, 0.0
      %v626 = vmax.f32 %v594, 0.0
      %v627 = vmax.f32 %v595, 0.0
      %v628 = vmax.f32 %v596, 0.0
      %v629 = vmax.f32 %v597, 0.0
      %v630 = vmax.f32 %v598, 0.0
      %v631 = vmax.f32 %v599, 0.0
      %v632 = vmax.f32 %v600, 0.0
      %v633 = vmax.f32 %v601, 0.0
      %v634 = vmax.f32 %v602, 0.0
      %v635 = vmax.f32 %v603, 0.0
      %v636 = vmax.f32 %v604, 0.0
      %v637 = vmax.f32 %v605, 0.0
      %v638 = vmax.f32 %v606, 0.0
      %v639 = vmax.f32 %v607, 0.0
      %v640 = vmax.f32 %v608, 0.0
      %v641 = vmax.f32 %v609, 0.0
      %v642 = vmax.f32 %v610, 0.0
      %v643 = vmax.f32 %v611, 0.0
      %v644 = vmax.f32 %v612, 0.0
      %v645 = vmax.f32 %v613, 0.0
      %v646 = vmax.f32 %v614, 0.0
      %v647 = vmax.f32 %v615, 0.0
      %v648 = vmul.f32 %v512, %v523
      %v649 = vmul.f32 %v513, %v523
      %v650 = vmul.f32 %v514, %v523
      %v651 = vmul.f32 %v515, %v523
      %v652 = vmul.f32 %v516, %v523
      %v653 = vmul.f32 %v517, %v523
      %v654 = vmul.f32 %v518, %v523
      %v655 = vmul.f32 %v519, %v523
      %v656 = vadd.f32 %v648, %v534
      %v657 = vadd.f32 %v649, %v534
      %v658 = vadd.f32 %v650, %v534
      %v659 = vadd.f32 %v651, %v534
      %v660 = vadd.f32 %v652, %v534
      %v661 = vadd.f32 %v653, %v534
      %v662 = vadd.f32 %v654, %v534
      %v663 = vadd.f32 %v655, %v534
      %v664 = vmax.f32 %v656, 0.0
      %v665 = vmax.f32 %v657, 0.0
      %v666 = vmax.f32 %v658, 0.0
      %v667 = vmax.f32 %v659, 0.0
      %v668 = vmax.f32 %v660, 0.0
      %v669 = vmax.f32 %v661, 0.0
      %v670 = vmax.f32 %v662, 0.0
      %v671 = vmax.f32 %v663, 0.0
      %vm672 = vcmask 31744
      %673 = vst.msk [vmem:[#allocation2] sm:$0xff] %vm672, 0.0
      %vm674 = vcmask 25600
      %675 = vst.msk [vmem:[#allocation2 + $0x8] sm:$0x3] %vm674, 0.0
      %676 = vst.msk [vmem:[#allocation2 + $0x10] sm:$0xff] %vm672, 0.0
      %677 = vst.msk [vmem:[#allocation2 + $0x18] sm:$0x3] %vm674, 0.0
      %678 = vst.msk [vmem:[#allocation2 + $0x20] sm:$0xff] %vm672, 0.0
      %679 = vst.msk [vmem:[#allocation2 + $0x28] sm:$0x3] %vm674, 0.0
      %680 = vst.msk [vmem:[#allocation2 + $0x30] sm:$0xff] %vm672, 0.0
      %681 = vst.msk [vmem:[#allocation2 + $0x38] sm:$0x3] %vm674, 0.0
      %682 = vst.msk [vmem:[#allocation2 + $0x40] sm:$0xff] %vm672, 0.0
      %683 = vst.msk [vmem:[#allocation2 + $0x48] sm:$0x3] %vm674, 0.0
      %684 = vst.msk [vmem:[#allocation2 + $0x50] sm:$0xff] %vm672, 0.0
      %685 = vst.msk [vmem:[#allocation2 + $0x58] sm:$0x3] %vm674, 0.0
      %686 = vst.msk [vmem:[#allocation2 + $0x60] sm:$0xff] %vm672, 0.0
      %687 = vst.msk [vmem:[#allocation2 + $0x68] sm:$0x3] %vm674, 0.0
      %688 = vst.msk [vmem:[#allocation2 + $0x70] sm:$0xff] %vm672, 0.0
      %689 = vst.msk [vmem:[#allocation2 + $0x78] sm:$0x3] %vm674, 0.0
      %690 = vst.msk [vmem:[#allocation2 + $0x80] sm:$0xff] %vm672, 0.0
      %691 = vst.msk [vmem:[#allocation2 + $0x88] sm:$0x3] %vm674, 0.0
      %692 = vst.msk [vmem:[#allocation2 + $0x90] sm:$0xff] %vm672, 0.0
      %693 = vst.msk [vmem:[#allocation2 + $0x98] sm:$0x3] %vm674, 0.0
      %694 = vst.msk [vmem:[#allocation2 + $0xa0] sm:$0xff] %vm672, 0.0
      %695 = vst.msk [vmem:[#allocation2 + $0xa8] sm:$0x3] %vm674, 0.0
      %696 = vst.msk [vmem:[#allocation2 + $0xb0] sm:$0xff] %vm672, 0.0
      %697 = vst.msk [vmem:[#allocation2 + $0xb8] sm:$0x3] %vm674, 0.0
      %698 = vst.msk [vmem:[#allocation2 + $0xc0] sm:$0xff] %vm672, 0.0
      %699 = vst.msk [vmem:[#allocation2 + $0xc8] sm:$0x3] %vm674, 0.0
      %700 = vst.msk [vmem:[#allocation2 + $0xd0] sm:$0xff] %vm672, 0.0
      %701 = vst.msk [vmem:[#allocation2 + $0xd8] sm:$0x3] %vm674, 0.0
      %702 = vst.msk [vmem:[#allocation2 + $0xe0] sm:$0xff] %vm672, 0.0
      %703 = vst.msk [vmem:[#allocation2 + $0xe8] sm:$0x3] %vm674, 0.0
      %704 = vst.msk [vmem:[#allocation2 + $0xf0] sm:$0xff] %vm672, 0.0
      %705 = vst.msk [vmem:[#allocation2 + $0xf8] sm:$0x3] %vm674, 0.0
      %706 = vst.msk [vmem:[#allocation2 + $0x100] sm:$0xff] %vm672, 0.0
      %707 = vst.msk [vmem:[#allocation2 + $0x108] sm:$0x3] %vm674, 0.0
      %708 = vst.msk [vmem:[#allocation2 + $0x110] sm:$0xff] %vm672, 0.0
      %709 = vst.msk [vmem:[#allocation2 + $0x118] sm:$0x3] %vm674, 0.0
      %710 = vst.msk [vmem:[#allocation2 + $0x120] sm:$0xff] %vm672, 0.0
      %711 = vst.msk [vmem:[#allocation2 + $0x128] sm:$0x3] %vm674, 0.0
      %712 = vst.msk [vmem:[#allocation2 + $0x130] sm:$0xff] %vm672, 0.0
      %713 = vst.msk [vmem:[#allocation2 + $0x138] sm:$0x3] %vm674, 0.0
      %714 = vst.msk [vmem:[#allocation2 + $0x140] sm:$0xff] %vm672, 0.0
      %715 = vst.msk [vmem:[#allocation2 + $0x148] sm:$0x3] %vm674, 0.0
      %716 = vst.msk [vmem:[#allocation2 + $0x150] sm:$0xff] %vm672, 0.0
      %717 = vst.msk [vmem:[#allocation2 + $0x158] sm:$0x3] %vm674, 0.0
      %718 = vst.msk [vmem:[#allocation2 + $0x160] sm:$0xff] %vm672, 0.0
      %719 = vst.msk [vmem:[#allocation2 + $0x168] sm:$0x3] %vm674, 0.0
      %720 = vst.msk [vmem:[#allocation2 + $0x170] sm:$0xff] %vm672, 0.0
      %721 = vst.msk [vmem:[#allocation2 + $0x178] sm:$0x3] %vm674, 0.0
      %722 = vst.msk [vmem:[#allocation2 + $0x180] sm:$0xff] %vm672, 0.0
      %723 = vst.msk [vmem:[#allocation2 + $0x188] sm:$0x3] %vm674, 0.0
      %724 = vst.msk [vmem:[#allocation2 + $0x190] sm:$0xff] %vm672, 0.0
      %725 = vst.msk [vmem:[#allocation2 + $0x198] sm:$0x3] %vm674, 0.0
      %726 = vst.msk [vmem:[#allocation2 + $0x1a0] sm:$0xff] %vm672, 0.0
      %727 = vst.msk [vmem:[#allocation2 + $0x1a8] sm:$0x3] %vm674, 0.0
      %728 = vst.msk [vmem:[#allocation2 + $0x1b0] sm:$0xff] %vm672, 0.0
      %729 = vst.msk [vmem:[#allocation2 + $0x1b8] sm:$0x3] %vm674, 0.0
      %730 = vst.msk [vmem:[#allocation2 + $0x1c0] sm:$0xff] %vm672, 0.0
      %731 = vst.msk [vmem:[#allocation2 + $0x1c8] sm:$0x3] %vm674, 0.0
      %732 = vst.msk [vmem:[#allocation2 + $0x1d0] sm:$0xff] %vm672, 0.0
      %733 = vst.msk [vmem:[#allocation2 + $0x1d8] sm:$0x3] %vm674, 0.0
      %734 = vst.msk [vmem:[#allocation2 + $0x1e0] sm:$0xff] %vm672, 0.0
      %735 = vst.msk [vmem:[#allocation2 + $0x1e8] sm:$0x3] %vm674, 0.0
      %736 = vst.msk [vmem:[#allocation2 + $0x1f0] sm:$0xff] %vm672, 0.0
      %737 = vst.msk [vmem:[#allocation2 + $0x1f8] sm:$0x3] %vm674, 0.0
      %738 = vst.msk [vmem:[#allocation2 + $0x200] sm:$0xff] %vm672, 0.0
      %739 = vst.msk [vmem:[#allocation2 + $0x208] sm:$0x3] %vm674, 0.0
      %740 = vst.msk [vmem:[#allocation2 + $0x210] sm:$0xff] %vm672, 0.0
      %741 = vst.msk [vmem:[#allocation2 + $0x218] sm:$0x3] %vm674, 0.0
      %742 = vst.msk [vmem:[#allocation2 + $0x220] sm:$0xff] %vm672, 0.0
      %743 = vst.msk [vmem:[#allocation2 + $0x228] sm:$0x3] %vm674, 0.0
      %744 = vst.msk [vmem:[#allocation2 + $0x230] sm:$0xff] %vm672, 0.0
      %745 = vst.msk [vmem:[#allocation2 + $0x238] sm:$0x3] %vm674, 0.0
      %746 = vst.msk [vmem:[#allocation2 + $0x240] sm:$0xff] %vm672, 0.0
      %747 = vst.msk [vmem:[#allocation2 + $0x248] sm:$0x3] %vm674, 0.0
      %748 = vst.msk [vmem:[#allocation2 + $0x250] sm:$0xff] %vm672, 0.0
      %749 = vst.msk [vmem:[#allocation2 + $0x258] sm:$0x3] %vm674, 0.0
      %750 = vst.msk [vmem:[#allocation2 + $0x260] sm:$0xff] %vm672, 0.0
      %751 = vst.msk [vmem:[#allocation2 + $0x268] sm:$0x3] %vm674, 0.0
      %752 = vst.msk [vmem:[#allocation2 + $0x270] sm:$0xff] %vm672, 0.0
      %753 = vst.msk [vmem:[#allocation2 + $0x278] sm:$0x3] %vm674, 0.0
      %754 = vst.msk [vmem:[#allocation2 + $0x280] sm:$0xff] %vm672, 0.0
      %755 = vst.msk [vmem:[#allocation2 + $0x288] sm:$0x3] %vm674, 0.0
      %756 = vst.msk [vmem:[#allocation2 + $0x290] sm:$0xff] %vm672, 0.0
      %757 = vst.msk [vmem:[#allocation2 + $0x298] sm:$0x3] %vm674, 0.0
      %758 = vst.msk [vmem:[#allocation2 + $0x2a0] sm:$0xff] %vm672, 0.0
      %759 = vst.msk [vmem:[#allocation2 + $0x2a8] sm:$0x3] %vm674, 0.0
      %760 = vst.msk [vmem:[#allocation2 + $0x2b0] sm:$0xff] %vm672, 0.0
      %761 = vst.msk [vmem:[#allocation2 + $0x2b8] sm:$0x3] %vm674, 0.0
      %762 = vst.msk [vmem:[#allocation2 + $0x2c0] sm:$0xff] %vm672, 0.0
      %763 = vst.msk [vmem:[#allocation2 + $0x2c8] sm:$0x3] %vm674, 0.0
      %764 = vst.msk [vmem:[#allocation2 + $0x2d0] sm:$0xff] %vm672, 0.0
      %765 = vst.msk [vmem:[#allocation2 + $0x2d8] sm:$0x3] %vm674, 0.0
      %766 = vst.msk [vmem:[#allocation2 + $0x2e0] sm:$0xff] %vm672, 0.0
      %767 = vst.msk [vmem:[#allocation2 + $0x2e8] sm:$0x3] %vm674, 0.0
      %768 = vst.msk [vmem:[#allocation2 + $0x2f0] sm:$0xff] %vm672, 0.0
      %769 = vst.msk [vmem:[#allocation2 + $0x2f8] sm:$0x3] %vm674, 0.0
      %770 = vst.msk [vmem:[#allocation2 + $0x300] sm:$0xff] %vm672, 0.0
      %771 = vst.msk [vmem:[#allocation2 + $0x308] sm:$0x3] %vm674, 0.0
      %772 = vst.msk [vmem:[#allocation2 + $0x310] sm:$0xff] %vm672, 0.0
      %773 = vst.msk [vmem:[#allocation2 + $0x318] sm:$0x3] %vm674, 0.0
      %774 = vst.msk [vmem:[#allocation2 + $0x320] sm:$0xff] %vm672, 0.0
      %775 = vst.msk [vmem:[#allocation2 + $0x328] sm:$0x3] %vm674, 0.0
      %776 = vst.msk [vmem:[#allocation2 + $0x330] sm:$0xff] %vm672, 0.0
      %777 = vst.msk [vmem:[#allocation2 + $0x338] sm:$0x3] %vm674, 0.0
      %778 = vst.msk [vmem:[#allocation2 + $0x340] sm:$0xff] %vm672, 0.0
      %779 = vst.msk [vmem:[#allocation2 + $0x348] sm:$0x3] %vm674, 0.0
      %780 = vst.msk [vmem:[#allocation2 + $0x350] sm:$0xff] %vm672, 0.0
      %781 = vst.msk [vmem:[#allocation2 + $0x358] sm:$0x3] %vm674, 0.0
      %782 = vst.msk [vmem:[#allocation2 + $0x360] sm:$0xff] %vm672, 0.0
      %783 = vst.msk [vmem:[#allocation2 + $0x368] sm:$0x3] %vm674, 0.0
      %784 = vst.msk [vmem:[#allocation2 + $0x370] sm:$0xff] %vm672, 0.0
      %785 = vst.msk [vmem:[#allocation2 + $0x378] sm:$0x3] %vm674, 0.0
      %786 = vst.msk [vmem:[#allocation2 + $0x380] sm:$0xff] %vm672, 0.0
      %787 = vst.msk [vmem:[#allocation2 + $0x388] sm:$0x3] %vm674, 0.0
      %788 = vst.msk [vmem:[#allocation2 + $0x390] sm:$0xff] %vm672, 0.0
      %789 = vst.msk [vmem:[#allocation2 + $0x398] sm:$0x3] %vm674, 0.0
      %790 = vst.msk [vmem:[#allocation2 + $0x3a0] sm:$0xff] %vm672, 0.0
      %791 = vst.msk [vmem:[#allocation2 + $0x3a8] sm:$0x3] %vm674, 0.0
      %792 = vst.msk [vmem:[#allocation2 + $0x3b0] sm:$0xff] %vm672, 0.0
      %793 = vst.msk [vmem:[#allocation2 + $0x3b8] sm:$0x3] %vm674, 0.0
      %v794 = vstv %s468
      %v795 = vmul.f32 %v544, %v794
      %v796 = vmul.f32 %v545, %v794
      %v797 = vmul.f32 %v546, %v794
      %v798 = vmul.f32 %v547, %v794
      %v799 = vmul.f32 %v548, %v794
      %v800 = vmul.f32 %v549, %v794
      %v801 = vmul.f32 %v550, %v794
      %v802 = vmul.f32 %v551, %v794
      %s803 = scalar_lea.vmem [#allocation2], 16
      %804 = vst.msk [vmem:[%s803 + $0x1] sm:$0xff] %vm672, %v795
      %805 = vst.msk [vmem:[%s803 + $0x11] sm:$0xff] %vm672, %v796
      %806 = vst.msk [vmem:[%s803 + $0x21] sm:$0xff] %vm672, %v797
      %807 = vst.msk [vmem:[%s803 + $0x31] sm:$0xff] %vm672, %v798
      %808 = vst.msk [vmem:[%s803 + $0x41] sm:$0xff] %vm672, %v799
      %809 = vst.msk [vmem:[%s803 + $0x51] sm:$0xff] %vm672, %v800
      %810 = vst.msk [vmem:[%s803 + $0x61] sm:$0xff] %vm672, %v801
      %811 = vst.msk [vmem:[%s803 + $0x71] sm:$0xff] %vm672, %v802
      %s812 = scalar_lea.vmem [#allocation2], 176
      %813 = vst.msk [vmem:[%s812 + $0x1] sm:$0xff] %vm672, %v616
      %814 = vst.msk [vmem:[%s812 + $0x11] sm:$0xff] %vm672, %v617
      %815 = vst.msk [vmem:[%s812 + $0x21] sm:$0xff] %vm672, %v618
      %816 = vst.msk [vmem:[%s812 + $0x31] sm:$0xff] %vm672, %v619
      %817 = vst.msk [vmem:[%s812 + $0x41] sm:$0xff] %vm672, %v620
      %818 = vst.msk [vmem:[%s812 + $0x51] sm:$0xff] %vm672, %v621
      %819 = vst.msk [vmem:[%s812 + $0x61] sm:$0xff] %vm672, %v622
      %820 = vst.msk [vmem:[%s812 + $0x71] sm:$0xff] %vm672, %v623
      %821 = vst.msk [vmem:[%s812 + $0xa1] sm:$0xff] %vm672, %v624
      %822 = vst.msk [vmem:[%s812 + $0xb1] sm:$0xff] %vm672, %v625
      %823 = vst.msk [vmem:[%s812 + $0xc1] sm:$0xff] %vm672, %v626
      %824 = vst.msk [vmem:[%s812 + $0xd1] sm:$0xff] %vm672, %v627
      %825 = vst.msk [vmem:[%s812 + $0xe1] sm:$0xff] %vm672, %v628
      %826 = vst.msk [vmem:[%s812 + $0xf1] sm:$0xff] %vm672, %v629
      %827 = vst.msk [vmem:[%s812 + $0x101] sm:$0xff] %vm672, %v630
      %828 = vst.msk [vmem:[%s812 + $0x111] sm:$0xff] %vm672, %v631
      %829 = vst.msk [vmem:[%s812 + $0x141] sm:$0xff] %vm672, %v632
      %830 = vst.msk [vmem:[%s812 + $0x151] sm:$0xff] %vm672, %v633
      %831 = vst.msk [vmem:[%s812 + $0x161] sm:$0xff] %vm672, %v634
      %832 = vst.msk [vmem:[%s812 + $0x171] sm:$0xff] %vm672, %v635
      %833 = vst.msk [vmem:[%s812 + $0x181] sm:$0xff] %vm672, %v636
      %834 = vst.msk [vmem:[%s812 + $0x191] sm:$0xff] %vm672, %v637
      %835 = vst.msk [vmem:[%s812 + $0x1a1] sm:$0xff] %vm672, %v638
      %836 = vst.msk [vmem:[%s812 + $0x1b1] sm:$0xff] %vm672, %v639
      %837 = vst.msk [vmem:[%s812 + $0x1e1] sm:$0xff] %vm672, %v640
      %838 = vst.msk [vmem:[%s812 + $0x1f1] sm:$0xff] %vm672, %v641
      %839 = vst.msk [vmem:[%s812 + $0x201] sm:$0xff] %vm672, %v642
      %840 = vst.msk [vmem:[%s812 + $0x211] sm:$0xff] %vm672, %v643
      %841 = vst.msk [vmem:[%s812 + $0x221] sm:$0xff] %vm672, %v644
      %842 = vst.msk [vmem:[%s812 + $0x231] sm:$0xff] %vm672, %v645
      %843 = vst.msk [vmem:[%s812 + $0x241] sm:$0xff] %vm672, %v646
      %844 = vst.msk [vmem:[%s812 + $0x251] sm:$0xff] %vm672, %v647
      %v845 = vstv %s471
      %v846 = vmul.f32 %v664, %v845
      %v847 = vmul.f32 %v665, %v845
      %v848 = vmul.f32 %v666, %v845
      %v849 = vmul.f32 %v667, %v845
      %v850 = vmul.f32 %v668, %v845
      %v851 = vmul.f32 %v669, %v845
      %v852 = vmul.f32 %v670, %v845
      %v853 = vmul.f32 %v671, %v845
      %s854 = scalar_lea.vmem [#allocation2], 816
      %855 = vst.msk [vmem:[%s854 + $0x1] sm:$0xff] %vm672, %v846
      %856 = vst.msk [vmem:[%s854 + $0x11] sm:$0xff] %vm672, %v847
      %857 = vst.msk [vmem:[%s854 + $0x21] sm:$0xff] %vm672, %v848
      %858 = vst.msk [vmem:[%s854 + $0x31] sm:$0xff] %vm672, %v849
      %859 = vst.msk [vmem:[%s854 + $0x41] sm:$0xff] %vm672, %v850
      %860 = vst.msk [vmem:[%s854 + $0x51] sm:$0xff] %vm672, %v851
      %861 = vst.msk [vmem:[%s854 + $0x61] sm:$0xff] %vm672, %v852
      %862 = vst.msk [vmem:[%s854 + $0x71] sm:$0xff] %vm672, %v853
      %v863 = vld [vmem:[#allocation2] sm:$0xff]
      %v864 = vld [vmem:[#allocation2 + $0x8] sm:$0x3]
      %v865 = vld [vmem:[#allocation2 + $0x10] sm:$0xff]
      %v866 = vld [vmem:[#allocation2 + $0x18] sm:$0x3]
      %v867 = vld [vmem:[#allocation2 + $0x20] sm:$0xff]
      %v868 = vld [vmem:[#allocation2 + $0x28] sm:$0x3]
      %v869 = vld [vmem:[#allocation2 + $0x30] sm:$0xff]
      %v870 = vld [vmem:[#allocation2 + $0x38] sm:$0x3]
      %v871 = vld [vmem:[#allocation2 + $0x40] sm:$0xff]
      %v872 = vld [vmem:[#allocation2 + $0x48] sm:$0x3]
      %v873 = vld [vmem:[#allocation2 + $0x50] sm:$0xff]
      %v874 = vld [vmem:[#allocation2 + $0x58] sm:$0x3]
      %v875 = vld [vmem:[#allocation2 + $0x60] sm:$0xff]
      %v876 = vld [vmem:[#allocation2 + $0x68] sm:$0x3]
      %v877 = vld [vmem:[#allocation2 + $0x70] sm:$0xff]
      %v878 = vld [vmem:[#allocation2 + $0x78] sm:$0x3]
      %v879 = vld [vmem:[#allocation2 + $0x80] sm:$0xff]
      %v880 = vld [vmem:[#allocation2 + $0x88] sm:$0x3]
      %v881 = vld [vmem:[#allocation2 + $0x90] sm:$0xff]
      %v882 = vld [vmem:[#allocation2 + $0x98] sm:$0x3]
      %v883 = vld [vmem:[#allocation2 + $0xa0] sm:$0xff]
      %v884 = vld [vmem:[#allocation2 + $0xa8] sm:$0x3]
      %v885 = vld [vmem:[#allocation2 + $0xb0] sm:$0xff]
      %v886 = vld [vmem:[#allocation2 + $0xb8] sm:$0x3]
      %v887 = vld [vmem:[#allocation2 + $0xc0] sm:$0xff]
      %v888 = vld [vmem:[#allocation2 + $0xc8] sm:$0x3]
      %v889 = vld [vmem:[#allocation2 + $0xd0] sm:$0xff]
      %v890 = vld [vmem:[#allocation2 + $0xd8] sm:$0x3]
      %v891 = vld [vmem:[#allocation2 + $0xe0] sm:$0xff]
      %v892 = vld [vmem:[#allocation2 + $0xe8] sm:$0x3]
      %v893 = vld [vmem:[#allocation2 + $0xf0] sm:$0xff]
      %v894 = vld [vmem:[#allocation2 + $0xf8] sm:$0x3]
      %v895 = vld [vmem:[#allocation2 + $0x100] sm:$0xff]
      %v896 = vld [vmem:[#allocation2 + $0x108] sm:$0x3]
      %v897 = vld [vmem:[#allocation2 + $0x110] sm:$0xff]
      %v898 = vld [vmem:[#allocation2 + $0x118] sm:$0x3]
      %v899 = vld [vmem:[#allocation2 + $0x120] sm:$0xff]
      %v900 = vld [vmem:[#allocation2 + $0x128] sm:$0x3]
      %v901 = vld [vmem:[#allocation2 + $0x130] sm:$0xff]
      %v902 = vld [vmem:[#allocation2 + $0x138] sm:$0x3]
      %v903 = vld [vmem:[#allocation2 + $0x140] sm:$0xff]
      %v904 = vld [vmem:[#allocation2 + $0x148] sm:$0x3]
      %v905 = vld [vmem:[#allocation2 + $0x150] sm:$0xff]
      %v906 = vld [vmem:[#allocation2 + $0x158] sm:$0x3]
      %v907 = vld [vmem:[#allocation2 + $0x160] sm:$0xff]
      %v908 = vld [vmem:[#allocation2 + $0x168] sm:$0x3]
      %v909 = vld [vmem:[#allocation2 + $0x170] sm:$0xff]
      %v910 = vld [vmem:[#allocation2 + $0x178] sm:$0x3]
      %v911 = vld [vmem:[#allocation2 + $0x180] sm:$0xff]
      %v912 = vld [vmem:[#allocation2 + $0x188] sm:$0x3]
      %v913 = vld [vmem:[#allocation2 + $0x190] sm:$0xff]
      %v914 = vld [vmem:[#allocation2 + $0x198] sm:$0x3]
      %v915 = vld [vmem:[#allocation2 + $0x1a0] sm:$0xff]
      %v916 = vld [vmem:[#allocation2 + $0x1a8] sm:$0x3]
      %v917 = vld [vmem:[#allocation2 + $0x1b0] sm:$0xff]
      %v918 = vld [vmem:[#allocation2 + $0x1b8] sm:$0x3]
      %v919 = vld [vmem:[#allocation2 + $0x1c0] sm:$0xff]
      %v920 = vld [vmem:[#allocation2 + $0x1c8] sm:$0x3]
      %v921 = vld [vmem:[#allocation2 + $0x1d0] sm:$0xff]
      %v922 = vld [vmem:[#allocation2 + $0x1d8] sm:$0x3]
      %v923 = vld [vmem:[#allocation2 + $0x1e0] sm:$0xff]
      %v924 = vld [vmem:[#allocation2 + $0x1e8] sm:$0x3]
      %v925 = vld [vmem:[#allocation2 + $0x1f0] sm:$0xff]
      %v926 = vld [vmem:[#allocation2 + $0x1f8] sm:$0x3]
      %v927 = vld [vmem:[#allocation2 + $0x200] sm:$0xff]
      %v928 = vld [vmem:[#allocation2 + $0x208] sm:$0x3]
      %v929 = vld [vmem:[#allocation2 + $0x210] sm:$0xff]
      %v930 = vld [vmem:[#allocation2 + $0x218] sm:$0x3]
      %v931 = vld [vmem:[#allocation2 + $0x220] sm:$0xff]
      %v932 = vld [vmem:[#allocation2 + $0x228] sm:$0x3]
      %v933 = vld [vmem:[#allocation2 + $0x230] sm:$0xff]
      %v934 = vld [vmem:[#allocation2 + $0x238] sm:$0x3]
      %v935 = vld [vmem:[#allocation2 + $0x240] sm:$0xff]
      %v936 = vld [vmem:[#allocation2 + $0x248] sm:$0x3]
      %v937 = vld [vmem:[#allocation2 + $0x250] sm:$0xff]
      %v938 = vld [vmem:[#allocation2 + $0x258] sm:$0x3]
      %v939 = vld [vmem:[#allocation2 + $0x260] sm:$0xff]
      %v940 = vld [vmem:[#allocation2 + $0x268] sm:$0x3]
      %v941 = vld [vmem:[#allocation2 + $0x270] sm:$0xff]
      %v942 = vld [vmem:[#allocation2 + $0x278] sm:$0x3]
      %v943 = vld [vmem:[#allocation2 + $0x280] sm:$0xff]
      %v944 = vld [vmem:[#allocation2 + $0x288] sm:$0x3]
      %v945 = vld [vmem:[#allocation2 + $0x290] sm:$0xff]
      %v946 = vld [vmem:[#allocation2 + $0x298] sm:$0x3]
      %v947 = vld [vmem:[#allocation2 + $0x2a0] sm:$0xff]
      %v948 = vld [vmem:[#allocation2 + $0x2a8] sm:$0x3]
      %v949 = vld [vmem:[#allocation2 + $0x2b0] sm:$0xff]
      %v950 = vld [vmem:[#allocation2 + $0x2b8] sm:$0x3]
      %v951 = vld [vmem:[#allocation2 + $0x2c0] sm:$0xff]
      %v952 = vld [vmem:[#allocation2 + $0x2c8] sm:$0x3]
      %v953 = vld [vmem:[#allocation2 + $0x2d0] sm:$0xff]
      %v954 = vld [vmem:[#allocation2 + $0x2d8] sm:$0x3]
      %v955 = vld [vmem:[#allocation2 + $0x2e0] sm:$0xff]
      %v956 = vld [vmem:[#allocation2 + $0x2e8] sm:$0x3]
      %v957 = vld [vmem:[#allocation2 + $0x2f0] sm:$0xff]
      %v958 = vld [vmem:[#allocation2 + $0x2f8] sm:$0x3]
      %v959 = vld [vmem:[#allocation2 + $0x300] sm:$0xff]
      %v960 = vld [vmem:[#allocation2 + $0x308] sm:$0x3]
      %v961 = vld [vmem:[#allocation2 + $0x310] sm:$0xff]
      %v962 = vld [vmem:[#allocation2 + $0x318] sm:$0x3]
      %v963 = vld [vmem:[#allocation2 + $0x320] sm:$0xff]
      %v964 = vld [vmem:[#allocation2 + $0x328] sm:$0x3]
      %v965 = vld [vmem:[#allocation2 + $0x330] sm:$0xff]
      %v966 = vld [vmem:[#allocation2 + $0x338] sm:$0x3]
      %v967 = vld [vmem:[#allocation2 + $0x340] sm:$0xff]
      %v968 = vld [vmem:[#allocation2 + $0x348] sm:$0x3]
      %v969 = vld [vmem:[#allocation2 + $0x350] sm:$0xff]
      %v970 = vld [vmem:[#allocation2 + $0x358] sm:$0x3]
      %v971 = vld [vmem:[#allocation2 + $0x360] sm:$0xff]
      %v972 = vld [vmem:[#allocation2 + $0x368] sm:$0x3]
      %v973 = vld [vmem:[#allocation2 + $0x370] sm:$0xff]
      %v974 = vld [vmem:[#allocation2 + $0x378] sm:$0x3]
      %v975 = vld [vmem:[#allocation2 + $0x380] sm:$0xff]
      %v976 = vld [vmem:[#allocation2 + $0x388] sm:$0x3]
      %v977 = vld [vmem:[#allocation2 + $0x390] sm:$0xff]
      %v978 = vld [vmem:[#allocation2 + $0x398] sm:$0x3]
      %v979 = vld [vmem:[#allocation2 + $0x3a0] sm:$0xff]
      %v980 = vld [vmem:[#allocation2 + $0x3a8] sm:$0x3]
      %v981 = vld [vmem:[#allocation2 + $0x3b0] sm:$0xff]
      %v982 = vld [vmem:[#allocation2 + $0x3b8] sm:$0x3]
      %vm1047 = vcmask 1046528
      %v1048 = vrot.slane %v863, 1
      %v1049 = vrot.slane %v864, 1
      %v1050 = vsel %vm1047, %v1048, %v1049
      %v1051 = vrot.slane %v865, 1
      %v1052 = vrot.slane %v866, 1
      %v1053 = vsel %vm1047, %v1051, %v1052
      %v1054 = vrot.slane %v867, 1
      %v1055 = vrot.slane %v868, 1
      %v1056 = vsel %vm1047, %v1054, %v1055
      %v1057 = vrot.slane %v869, 1
      %v1058 = vrot.slane %v870, 1
      %v1059 = vsel %vm1047, %v1057, %v1058
      %v1060 = vrot.slane %v871, 1
      %v1061 = vrot.slane %v872, 1
      %v1062 = vsel %vm1047, %v1060, %v1061
      %v1063 = vrot.slane %v873, 1
      %v1064 = vrot.slane %v874, 1
      %v1065 = vsel %vm1047, %v1063, %v1064
      %v1066 = vrot.slane %v875, 1
      %v1067 = vrot.slane %v876, 1
      %v1068 = vsel %vm1047, %v1066, %v1067
      %v1069 = vrot.slane %v877, 1
      %v1070 = vrot.slane %v878, 1
      %v1071 = vsel %vm1047, %v1069, %v1070
      %v1072 = vrot.slane %v883, 1
      %v1073 = vrot.slane %v884, 1
      %v1074 = vsel %vm1047, %v1072, %v1073
      %v1075 = vrot.slane %v885, 1
      %v1076 = vrot.slane %v886, 1
      %v1077 = vsel %vm1047, %v1075, %v1076
      %v1078 = vrot.slane %v887, 1
      %v1079 = vrot.slane %v888, 1
      %v1080 = vsel %vm1047, %v1078, %v1079
      %v1081 = vrot.slane %v889, 1
      %v1082 = vrot.slane %v890, 1
      %v1083 = vsel %vm1047, %v1081, %v1082
      %v1084 = vrot.slane %v891, 1
      %v1085 = vrot.slane %v892, 1
      %v1086 = vsel %vm1047, %v1084, %v1085
      %v1087 = vrot.slane %v893, 1
      %v1088 = vrot.slane %v894, 1
      %v1089 = vsel %vm1047, %v1087, %v1088
      %v1090 = vrot.slane %v895, 1
      %v1091 = vrot.slane %v896, 1
      %v1092 = vsel %vm1047, %v1090, %v1091
      %v1093 = vrot.slane %v897, 1
      %v1094 = vrot.slane %v898, 1
      %v1095 = vsel %vm1047, %v1093, %v1094
      %v1096 = vrot.slane %v903, 1
      %v1097 = vrot.slane %v904, 1
      %v1098 = vsel %vm1047, %v1096, %v1097
      %v1099 = vrot.slane %v905, 1
      %v1100 = vrot.slane %v906, 1
      %v1101 = vsel %vm1047, %v1099, %v1100
      %v1102 = vrot.slane %v907, 1
      %v1103 = vrot.slane %v908, 1
      %v1104 = vsel %vm1047, %v1102, %v1103
      %v1105 = vrot.slane %v909, 1
      %v1106 = vrot.slane %v910, 1
      %v1107 = vsel %vm1047, %v1105, %v1106
      %v1108 = vrot.slane %v911, 1
      %v1109 = vrot.slane %v912, 1
      %v1110 = vsel %vm1047, %v1108, %v1109
      %v1111 = vrot.slane %v913, 1
      %v1112 = vrot.slane %v914, 1
      %v1113 = vsel %vm1047, %v1111, %v1112
      %v1114 = vrot.slane %v915, 1
      %v1115 = vrot.slane %v916, 1
      %v1116 = vsel %vm1047, %v1114, %v1115
      %v1117 = vrot.slane %v917, 1
      %v1118 = vrot.slane %v918, 1
      %v1119 = vsel %vm1047, %v1117, %v1118
      %v1120 = vrot.slane %v923, 1
      %v1121 = vrot.slane %v924, 1
      %v1122 = vsel %vm1047, %v1120, %v1121
      %v1123 = vrot.slane %v925, 1
      %v1124 = vrot.slane %v926, 1
      %v1125 = vsel %vm1047, %v1123, %v1124
      %v1126 = vrot.slane %v927, 1
      %v1127 = vrot.slane %v928, 1
      %v1128 = vsel %vm1047, %v1126, %v1127
      %v1129 = vrot.slane %v929, 1
      %v1130 = vrot.slane %v930, 1
      %v1131 = vsel %vm1047, %v1129, %v1130
      %v1132 = vrot.slane %v931, 1
      %v1133 = vrot.slane %v932, 1
      %v1134 = vsel %vm1047, %v1132, %v1133
      %v1135 = vrot.slane %v933, 1
      %v1136 = vrot.slane %v934, 1
      %v1137 = vsel %vm1047, %v1135, %v1136
      %v1138 = vrot.slane %v935, 1
      %v1139 = vrot.slane %v936, 1
      %v1140 = vsel %vm1047, %v1138, %v1139
      %v1141 = vrot.slane %v937, 1
      %v1142 = vrot.slane %v938, 1
      %v1143 = vsel %vm1047, %v1141, %v1142
      %1144 = vrot.lane.b32.xlu0 %v1050, 4
      %v1145 = vpop.permute.xlu0 %1144
      %1146 = vrot.lane.b32.xlu0 %v1053, 4
      %v1147 = vpop.permute.xlu0 %1146
      %1148 = vrot.lane.b32.xlu0 %v1056, 4
      %v1149 = vpop.permute.xlu0 %1148
      %1150 = vrot.lane.b32.xlu0 %v1059, 4
      %v1151 = vpop.permute.xlu0 %1150
      %1152 = vrot.lane.b32.xlu0 %v1062, 4
      %v1153 = vpop.permute.xlu0 %1152
      %1154 = vrot.lane.b32.xlu0 %v1065, 4
      %v1155 = vpop.permute.xlu0 %1154
      %1156 = vrot.lane.b32.xlu0 %v1068, 4
      %v1157 = vpop.permute.xlu0 %1156
      %1158 = vrot.lane.b32.xlu0 %v1071, 4
      %v1159 = vpop.permute.xlu0 %1158
      %1160 = vrot.lane.b32.xlu0 %v1074, 4
      %v1161 = vpop.permute.xlu0 %1160
      %1162 = vrot.lane.b32.xlu0 %v1077, 4
      %v1163 = vpop.permute.xlu0 %1162
      %1164 = vrot.lane.b32.xlu0 %v1080, 4
      %v1165 = vpop.permute.xlu0 %1164
      %1166 = vrot.lane.b32.xlu0 %v1083, 4
      %v1167 = vpop.permute.xlu0 %1166
      %1168 = vrot.lane.b32.xlu0 %v1086, 4
      %v1169 = vpop.permute.xlu0 %1168
      %1170 = vrot.lane.b32.xlu0 %v1089, 4
      %v1171 = vpop.permute.xlu0 %1170
      %1172 = vrot.lane.b32.xlu0 %v1092, 4
      %v1173 = vpop.permute.xlu0 %1172
      %1174 = vrot.lane.b32.xlu0 %v1095, 4
      %v1175 = vpop.permute.xlu0 %1174
      %1176 = vrot.lane.b32.xlu0 %v1098, 4
      %v1177 = vpop.permute.xlu0 %1176
      %1178 = vrot.lane.b32.xlu0 %v1101, 4
      %v1179 = vpop.permute.xlu0 %1178
      %1180 = vrot.lane.b32.xlu0 %v1104, 4
      %v1181 = vpop.permute.xlu0 %1180
      %1182 = vrot.lane.b32.xlu0 %v1107, 4
      %v1183 = vpop.permute.xlu0 %1182
      %1184 = vrot.lane.b32.xlu0 %v1110, 4
      %v1185 = vpop.permute.xlu0 %1184
      %1186 = vrot.lane.b32.xlu0 %v1113, 4
      %v1187 = vpop.permute.xlu0 %1186
      %1188 = vrot.lane.b32.xlu0 %v1116, 4
      %v1189 = vpop.permute.xlu0 %1188
      %1190 = vrot.lane.b32.xlu0 %v1119, 4
      %v1191 = vpop.permute.xlu0 %1190
      %1192 = vrot.lane.b32.xlu0 %v1122, 4
      %v1193 = vpop.permute.xlu0 %1192
      %1194 = vrot.lane.b32.xlu0 %v1125, 4
      %v1195 = vpop.permute.xlu0 %1194
      %1196 = vrot.lane.b32.xlu0 %v1128, 4
      %v1197 = vpop.permute.xlu0 %1196
      %1198 = vrot.lane.b32.xlu0 %v1131, 4
      %v1199 = vpop.permute.xlu0 %1198
      %1200 = vrot.lane.b32.xlu0 %v1134, 4
      %v1201 = vpop.permute.xlu0 %1200
      %1202 = vrot.lane.b32.xlu0 %v1137, 4
      %v1203 = vpop.permute.xlu0 %1202
      %1204 = vrot.lane.b32.xlu0 %v1140, 4
      %v1205 = vpop.permute.xlu0 %1204
      %1206 = vrot.lane.b32.xlu0 %v1143, 4
      %v1207 = vpop.permute.xlu0 %1206
      %vm1240 = vcmask 1045504
      %v1241 = vrot.slane %v863, 2
      %v1242 = vrot.slane %v864, 2
      %v1243 = vsel %vm1240, %v1241, %v1242
      %v1244 = vrot.slane %v865, 2
      %v1245 = vrot.slane %v866, 2
      %v1246 = vsel %vm1240, %v1244, %v1245
      %v1247 = vrot.slane %v867, 2
      %v1248 = vrot.slane %v868, 2
      %v1249 = vsel %vm1240, %v1247, %v1248
      %v1250 = vrot.slane %v869, 2
      %v1251 = vrot.slane %v870, 2
      %v1252 = vsel %vm1240, %v1250, %v1251
      %v1253 = vrot.slane %v871, 2
      %v1254 = vrot.slane %v872, 2
      %v1255 = vsel %vm1240, %v1253, %v1254
      %v1256 = vrot.slane %v873, 2
      %v1257 = vrot.slane %v874, 2
      %v1258 = vsel %vm1240, %v1256, %v1257
      %v1259 = vrot.slane %v875, 2
      %v1260 = vrot.slane %v876, 2
      %v1261 = vsel %vm1240, %v1259, %v1260
      %v1262 = vrot.slane %v877, 2
      %v1263 = vrot.slane %v878, 2
      %v1264 = vsel %vm1240, %v1262, %v1263
      %v1265 = vrot.slane %v883, 2
      %v1266 = vrot.slane %v884, 2
      %v1267 = vsel %vm1240, %v1265, %v1266
      %v1268 = vrot.slane %v885, 2
      %v1269 = vrot.slane %v886, 2
      %v1270 = vsel %vm1240, %v1268, %v1269
      %v1271 = vrot.slane %v887, 2
      %v1272 = vrot.slane %v888, 2
      %v1273 = vsel %vm1240, %v1271, %v1272
      %v1274 = vrot.slane %v889, 2
      %v1275 = vrot.slane %v890, 2
      %v1276 = vsel %vm1240, %v1274, %v1275
      %v1277 = vrot.slane %v891, 2
      %v1278 = vrot.slane %v892, 2
      %v1279 = vsel %vm1240, %v1277, %v1278
      %v1280 = vrot.slane %v893, 2
      %v1281 = vrot.slane %v894, 2
      %v1282 = vsel %vm1240, %v1280, %v1281
      %v1283 = vrot.slane %v895, 2
      %v1284 = vrot.slane %v896, 2
      %v1285 = vsel %vm1240, %v1283, %v1284
      %v1286 = vrot.slane %v897, 2
      %v1287 = vrot.slane %v898, 2
      %v1288 = vsel %vm1240, %v1286, %v1287
      %v1289 = vrot.slane %v903, 2
      %v1290 = vrot.slane %v904, 2
      %v1291 = vsel %vm1240, %v1289, %v1290
      %v1292 = vrot.slane %v905, 2
      %v1293 = vrot.slane %v906, 2
      %v1294 = vsel %vm1240, %v1292, %v1293
      %v1295 = vrot.slane %v907, 2
      %v1296 = vrot.slane %v908, 2
      %v1297 = vsel %vm1240, %v1295, %v1296
      %v1298 = vrot.slane %v909, 2
      %v1299 = vrot.slane %v910, 2
      %v1300 = vsel %vm1240, %v1298, %v1299
      %v1301 = vrot.slane %v911, 2
      %v1302 = vrot.slane %v912, 2
      %v1303 = vsel %vm1240, %v1301, %v1302
      %v1304 = vrot.slane %v913, 2
      %v1305 = vrot.slane %v914, 2
      %v1306 = vsel %vm1240, %v1304, %v1305
      %v1307 = vrot.slane %v915, 2
      %v1308 = vrot.slane %v916, 2
      %v1309 = vsel %vm1240, %v1307, %v1308
      %v1310 = vrot.slane %v917, 2
      %v1311 = vrot.slane %v918, 2
      %v1312 = vsel %vm1240, %v1310, %v1311
      %v1313 = vrot.slane %v923, 2
      %v1314 = vrot.slane %v924, 2
      %v1315 = vsel %vm1240, %v1313, %v1314
      %v1316 = vrot.slane %v925, 2
      %v1317 = vrot.slane %v926, 2
      %v1318 = vsel %vm1240, %v1316, %v1317
      %v1319 = vrot.slane %v927, 2
      %v1320 = vrot.slane %v928, 2
      %v1321 = vsel %vm1240, %v1319, %v1320
      %v1322 = vrot.slane %v929, 2
      %v1323 = vrot.slane %v930, 2
      %v1324 = vsel %vm1240, %v1322, %v1323
      %v1325 = vrot.slane %v931, 2
      %v1326 = vrot.slane %v932, 2
      %v1327 = vsel %vm1240, %v1325, %v1326
      %v1328 = vrot.slane %v933, 2
      %v1329 = vrot.slane %v934, 2
      %v1330 = vsel %vm1240, %v1328, %v1329
      %v1331 = vrot.slane %v935, 2
      %v1332 = vrot.slane %v936, 2
      %v1333 = vsel %vm1240, %v1331, %v1332
      %v1334 = vrot.slane %v937, 2
      %v1335 = vrot.slane %v938, 2
      %v1336 = vsel %vm1240, %v1334, %v1335
      %1337 = vrot.lane.b32.xlu0 %v1243, 8
      %v1338 = vpop.permute.xlu0 %1337
      %1339 = vrot.lane.b32.xlu0 %v1246, 8
      %v1340 = vpop.permute.xlu0 %1339
      %1341 = vrot.lane.b32.xlu0 %v1249, 8
      %v1342 = vpop.permute.xlu0 %1341
      %1343 = vrot.lane.b32.xlu0 %v1252, 8
      %v1344 = vpop.permute.xlu0 %1343
      %1345 = vrot.lane.b32.xlu0 %v1255, 8
      %v1346 = vpop.permute.xlu0 %1345
      %1347 = vrot.lane.b32.xlu0 %v1258, 8
      %v1348 = vpop.permute.xlu0 %1347
      %1349 = vrot.lane.b32.xlu0 %v1261, 8
      %v1350 = vpop.permute.xlu0 %1349
      %1351 = vrot.lane.b32.xlu0 %v1264, 8
      %v1352 = vpop.permute.xlu0 %1351
      %1353 = vrot.lane.b32.xlu0 %v1267, 8
      %v1354 = vpop.permute.xlu0 %1353
      %1355 = vrot.lane.b32.xlu0 %v1270, 8
      %v1356 = vpop.permute.xlu0 %1355
      %1357 = vrot.lane.b32.xlu0 %v1273, 8
      %v1358 = vpop.permute.xlu0 %1357
      %1359 = vrot.lane.b32.xlu0 %v1276, 8
      %v1360 = vpop.permute.xlu0 %1359
      %1361 = vrot.lane.b32.xlu0 %v1279, 8
      %v1362 = vpop.permute.xlu0 %1361
      %1363 = vrot.lane.b32.xlu0 %v1282, 8
      %v1364 = vpop.permute.xlu0 %1363
      %1365 = vrot.lane.b32.xlu0 %v1285, 8
      %v1366 = vpop.permute.xlu0 %1365
      %1367 = vrot.lane.b32.xlu0 %v1288, 8
      %v1368 = vpop.permute.xlu0 %1367
      %1369 = vrot.lane.b32.xlu0 %v1291, 8
      %v1370 = vpop.permute.xlu0 %1369
      %1371 = vrot.lane.b32.xlu0 %v1294, 8
      %v1372 = vpop.permute.xlu0 %1371
      %1373 = vrot.lane.b32.xlu0 %v1297, 8
      %v1374 = vpop.permute.xlu0 %1373
      %1375 = vrot.lane.b32.xlu0 %v1300, 8
      %v1376 = vpop.permute.xlu0 %1375
      %1377 = vrot.lane.b32.xlu0 %v1303, 8
      %v1378 = vpop.permute.xlu0 %1377
      %1379 = vrot.lane.b32.xlu0 %v1306, 8
      %v1380 = vpop.permute.xlu0 %1379
      %1381 = vrot.lane.b32.xlu0 %v1309, 8
      %v1382 = vpop.permute.xlu0 %1381
      %1383 = vrot.lane.b32.xlu0 %v1312, 8
      %v1384 = vpop.permute.xlu0 %1383
      %1385 = vrot.lane.b32.xlu0 %v1315, 8
      %v1386 = vpop.permute.xlu0 %1385
      %1387 = vrot.lane.b32.xlu0 %v1318, 8
      %v1388 = vpop.permute.xlu0 %1387
      %1389 = vrot.lane.b32.xlu0 %v1321, 8
      %v1390 = vpop.permute.xlu0 %1389
      %1391 = vrot.lane.b32.xlu0 %v1324, 8
      %v1392 = vpop.permute.xlu0 %1391
      %1393 = vrot.lane.b32.xlu0 %v1327, 8
      %v1394 = vpop.permute.xlu0 %1393
      %1395 = vrot.lane.b32.xlu0 %v1330, 8
      %v1396 = vpop.permute.xlu0 %1395
      %1397 = vrot.lane.b32.xlu0 %v1333, 8
      %v1398 = vpop.permute.xlu0 %1397
      %1399 = vrot.lane.b32.xlu0 %v1336, 8
      %v1400 = vpop.permute.xlu0 %1399
      %1437 = vrot.lane.b32.xlu0 %v865, 12
      %v1438 = vpop.permute.xlu0 %1437
      %1439 = vrot.lane.b32.xlu0 %v867, 12
      %v1440 = vpop.permute.xlu0 %1439
      %1441 = vrot.lane.b32.xlu0 %v869, 12
      %v1442 = vpop.permute.xlu0 %1441
      %1443 = vrot.lane.b32.xlu0 %v871, 12
      %v1444 = vpop.permute.xlu0 %1443
      %1445 = vrot.lane.b32.xlu0 %v873, 12
      %v1446 = vpop.permute.xlu0 %1445
      %1447 = vrot.lane.b32.xlu0 %v875, 12
      %v1448 = vpop.permute.xlu0 %1447
      %1449 = vrot.lane.b32.xlu0 %v877, 12
      %v1450 = vpop.permute.xlu0 %1449
      %1451 = vrot.lane.b32.xlu0 %v879, 12
      %v1452 = vpop.permute.xlu0 %1451
      %1453 = vrot.lane.b32.xlu0 %v885, 12
      %v1454 = vpop.permute.xlu0 %1453
      %1455 = vrot.lane.b32.xlu0 %v887, 12
      %v1456 = vpop.permute.xlu0 %1455
      %1457 = vrot.lane.b32.xlu0 %v889, 12
      %v1458 = vpop.permute.xlu0 %1457
      %1459 = vrot.lane.b32.xlu0 %v891, 12
      %v1460 = vpop.permute.xlu0 %1459
      %1461 = vrot.lane.b32.xlu0 %v893, 12
      %v1462 = vpop.permute.xlu0 %1461
      %1463 = vrot.lane.b32.xlu0 %v895, 12
      %v1464 = vpop.permute.xlu0 %1463
      %1465 = vrot.lane.b32.xlu0 %v897, 12
      %v1466 = vpop.permute.xlu0 %1465
      %1467 = vrot.lane.b32.xlu0 %v899, 12
      %v1468 = vpop.permute.xlu0 %1467
      %1469 = vrot.lane.b32.xlu0 %v905, 12
      %v1470 = vpop.permute.xlu0 %1469
      %1471 = vrot.lane.b32.xlu0 %v907, 12
      %v1472 = vpop.permute.xlu0 %1471
      %1473 = vrot.lane.b32.xlu0 %v909, 12
      %v1474 = vpop.permute.xlu0 %1473
      %1475 = vrot.lane.b32.xlu0 %v911, 12
      %v1476 = vpop.permute.xlu0 %1475
      %1477 = vrot.lane.b32.xlu0 %v913, 12
      %v1478 = vpop.permute.xlu0 %1477
      %1479 = vrot.lane.b32.xlu0 %v915, 12
      %v1480 = vpop.permute.xlu0 %1479
      %1481 = vrot.lane.b32.xlu0 %v917, 12
      %v1482 = vpop.permute.xlu0 %1481
      %1483 = vrot.lane.b32.xlu0 %v919, 12
      %v1484 = vpop.permute.xlu0 %1483
      %1485 = vrot.lane.b32.xlu0 %v925, 12
      %v1486 = vpop.permute.xlu0 %1485
      %1487 = vrot.lane.b32.xlu0 %v927, 12
      %v1488 = vpop.permute.xlu0 %1487
      %1489 = vrot.lane.b32.xlu0 %v929, 12
      %v1490 = vpop.permute.xlu0 %1489
      %1491 = vrot.lane.b32.xlu0 %v931, 12
      %v1492 = vpop.permute.xlu0 %1491
      %1493 = vrot.lane.b32.xlu0 %v933, 12
      %v1494 = vpop.permute.xlu0 %1493
      %1495 = vrot.lane.b32.xlu0 %v935, 12
      %v1496 = vpop.permute.xlu0 %1495
      %1497 = vrot.lane.b32.xlu0 %v937, 12
      %v1498 = vpop.permute.xlu0 %1497
      %1499 = vrot.lane.b32.xlu0 %v939, 12
      %v1500 = vpop.permute.xlu0 %1499
      %v1537 = vrot.slane %v879, 1
      %v1538 = vrot.slane %v880, 1
      %v1539 = vsel %vm1047, %v1537, %v1538
      %v1540 = vrot.slane %v899, 1
      %v1541 = vrot.slane %v900, 1
      %v1542 = vsel %vm1047, %v1540, %v1541
      %v1543 = vrot.slane %v919, 1
      %v1544 = vrot.slane %v920, 1
      %v1545 = vsel %vm1047, %v1543, %v1544
      %v1546 = vrot.slane %v939, 1
      %v1547 = vrot.slane %v940, 1
      %v1548 = vsel %vm1047, %v1546, %v1547
      %1549 = vrot.lane.b32.xlu0 %v1053, 16
      %v1550 = vpop.permute.xlu0 %1549
      %1551 = vrot.lane.b32.xlu0 %v1056, 16
      %v1552 = vpop.permute.xlu0 %1551
      %1553 = vrot.lane.b32.xlu0 %v1059, 16
      %v1554 = vpop.permute.xlu0 %1553
      %1555 = vrot.lane.b32.xlu0 %v1062, 16
      %v1556 = vpop.permute.xlu0 %1555
      %1557 = vrot.lane.b32.xlu0 %v1065, 16
      %v1558 = vpop.permute.xlu0 %1557
      %1559 = vrot.lane.b32.xlu0 %v1068, 16
      %v1560 = vpop.permute.xlu0 %1559
      %1561 = vrot.lane.b32.xlu0 %v1071, 16
      %v1562 = vpop.permute.xlu0 %1561
      %1563 = vrot.lane.b32.xlu0 %v1539, 16
      %v1564 = vpop.permute.xlu0 %1563
      %1565 = vrot.lane.b32.xlu0 %v1077, 16
      %v1566 = vpop.permute.xlu0 %1565
      %1567 = vrot.lane.b32.xlu0 %v1080, 16
      %v1568 = vpop.permute.xlu0 %1567
      %1569 = vrot.lane.b32.xlu0 %v1083, 16
      %v1570 = vpop.permute.xlu0 %1569
      %1571 = vrot.lane.b32.xlu0 %v1086, 16
      %v1572 = vpop.permute.xlu0 %1571
      %1573 = vrot.lane.b32.xlu0 %v1089, 16
      %v1574 = vpop.permute.xlu0 %1573
      %1575 = vrot.lane.b32.xlu0 %v1092, 16
      %v1576 = vpop.permute.xlu0 %1575
      %1577 = vrot.lane.b32.xlu0 %v1095, 16
      %v1578 = vpop.permute.xlu0 %1577
      %1579 = vrot.lane.b32.xlu0 %v1542, 16
      %v1580 = vpop.permute.xlu0 %1579
      %1581 = vrot.lane.b32.xlu0 %v1101, 16
      %v1582 = vpop.permute.xlu0 %1581
      %1583 = vrot.lane.b32.xlu0 %v1104, 16
      %v1584 = vpop.permute.xlu0 %1583
      %1585 = vrot.lane.b32.xlu0 %v1107, 16
      %v1586 = vpop.permute.xlu0 %1585
      %1587 = vrot.lane.b32.xlu0 %v1110, 16
      %v1588 = vpop.permute.xlu0 %1587
      %1589 = vrot.lane.b32.xlu0 %v1113, 16
      %v1590 = vpop.permute.xlu0 %1589
      %1591 = vrot.lane.b32.xlu0 %v1116, 16
      %v1592 = vpop.permute.xlu0 %1591
      %1593 = vrot.lane.b32.xlu0 %v1119, 16
      %v1594 = vpop.permute.xlu0 %1593
      %1595 = vrot.lane.b32.xlu0 %v1545, 16
      %v1596 = vpop.permute.xlu0 %1595
      %1597 = vrot.lane.b32.xlu0 %v1125, 16
      %v1598 = vpop.permute.xlu0 %1597
      %1599 = vrot.lane.b32.xlu0 %v1128, 16
      %v1600 = vpop.permute.xlu0 %1599
      %1601 = vrot.lane.b32.xlu0 %v1131, 16
      %v1602 = vpop.permute.xlu0 %1601
      %1603 = vrot.lane.b32.xlu0 %v1134, 16
      %v1604 = vpop.permute.xlu0 %1603
      %1605 = vrot.lane.b32.xlu0 %v1137, 16
      %v1606 = vpop.permute.xlu0 %1605
      %1607 = vrot.lane.b32.xlu0 %v1140, 16
      %v1608 = vpop.permute.xlu0 %1607
      %1609 = vrot.lane.b32.xlu0 %v1143, 16
      %v1610 = vpop.permute.xlu0 %1609
      %1611 = vrot.lane.b32.xlu0 %v1548, 16
      %v1612 = vpop.permute.xlu0 %1611
      %v1645 = vrot.slane %v879, 2
      %v1646 = vrot.slane %v880, 2
      %v1647 = vsel %vm1240, %v1645, %v1646
      %v1648 = vrot.slane %v899, 2
      %v1649 = vrot.slane %v900, 2
      %v1650 = vsel %vm1240, %v1648, %v1649
      %v1651 = vrot.slane %v919, 2
      %v1652 = vrot.slane %v920, 2
      %v1653 = vsel %vm1240, %v1651, %v1652
      %v1654 = vrot.slane %v939, 2
      %v1655 = vrot.slane %v940, 2
      %v1656 = vsel %vm1240, %v1654, %v1655
      %1657 = vrot.lane.b32.xlu0 %v1246, 20
      %v1658 = vpop.permute.xlu0 %1657
      %1659 = vrot.lane.b32.xlu0 %v1249, 20
      %v1660 = vpop.permute.xlu0 %1659
      %1661 = vrot.lane.b32.xlu0 %v1252, 20
      %v1662 = vpop.permute.xlu0 %1661
      %1663 = vrot.lane.b32.xlu0 %v1255, 20
      %v1664 = vpop.permute.xlu0 %1663
      %1665 = vrot.lane.b32.xlu0 %v1258, 20
      %v1666 = vpop.permute.xlu0 %1665
      %1667 = vrot.lane.b32.xlu0 %v1261, 20
      %v1668 = vpop.permute.xlu0 %1667
      %1669 = vrot.lane.b32.xlu0 %v1264, 20
      %v1670 = vpop.permute.xlu0 %1669
      %1671 = vrot.lane.b32.xlu0 %v1647, 20
      %v1672 = vpop.permute.xlu0 %1671
      %1673 = vrot.lane.b32.xlu0 %v1270, 20
      %v1674 = vpop.permute.xlu0 %1673
      %1675 = vrot.lane.b32.xlu0 %v1273, 20
      %v1676 = vpop.permute.xlu0 %1675
      %1677 = vrot.lane.b32.xlu0 %v1276, 20
      %v1678 = vpop.permute.xlu0 %1677
      %1679 = vrot.lane.b32.xlu0 %v1279, 20
      %v1680 = vpop.permute.xlu0 %1679
      %1681 = vrot.lane.b32.xlu0 %v1282, 20
      %v1682 = vpop.permute.xlu0 %1681
      %1683 = vrot.lane.b32.xlu0 %v1285, 20
      %v1684 = vpop.permute.xlu0 %1683
      %1685 = vrot.lane.b32.xlu0 %v1288, 20
      %v1686 = vpop.permute.xlu0 %1685
      %1687 = vrot.lane.b32.xlu0 %v1650, 20
      %v1688 = vpop.permute.xlu0 %1687
      %1689 = vrot.lane.b32.xlu0 %v1294, 20
      %v1690 = vpop.permute.xlu0 %1689
      %1691 = vrot.lane.b32.xlu0 %v1297, 20
      %v1692 = vpop.permute.xlu0 %1691
      %1693 = vrot.lane.b32.xlu0 %v1300, 20
      %v1694 = vpop.permute.xlu0 %1693
      %1695 = vrot.lane.b32.xlu0 %v1303, 20
      %v1696 = vpop.permute.xlu0 %1695
      %1697 = vrot.lane.b32.xlu0 %v1306, 20
      %v1698 = vpop.permute.xlu0 %1697
      %1699 = vrot.lane.b32.xlu0 %v1309, 20
      %v1700 = vpop.permute.xlu0 %1699
      %1701 = vrot.lane.b32.xlu0 %v1312, 20
      %v1702 = vpop.permute.xlu0 %1701
      %1703 = vrot.lane.b32.xlu0 %v1653, 20
      %v1704 = vpop.permute.xlu0 %1703
      %1705 = vrot.lane.b32.xlu0 %v1318, 20
      %v1706 = vpop.permute.xlu0 %1705
      %1707 = vrot.lane.b32.xlu0 %v1321, 20
      %v1708 = vpop.permute.xlu0 %1707
      %1709 = vrot.lane.b32.xlu0 %v1324, 20
      %v1710 = vpop.permute.xlu0 %1709
      %1711 = vrot.lane.b32.xlu0 %v1327, 20
      %v1712 = vpop.permute.xlu0 %1711
      %1713 = vrot.lane.b32.xlu0 %v1330, 20
      %v1714 = vpop.permute.xlu0 %1713
      %1715 = vrot.lane.b32.xlu0 %v1333, 20
      %v1716 = vpop.permute.xlu0 %1715
      %1717 = vrot.lane.b32.xlu0 %v1336, 20
      %v1718 = vpop.permute.xlu0 %1717
      %1719 = vrot.lane.b32.xlu0 %v1656, 20
      %v1720 = vpop.permute.xlu0 %1719
      %1757 = vrot.lane.b32.xlu0 %v867, 24
      %v1758 = vpop.permute.xlu0 %1757
      %1759 = vrot.lane.b32.xlu0 %v869, 24
      %v1760 = vpop.permute.xlu0 %1759
      %1761 = vrot.lane.b32.xlu0 %v871, 24
      %v1762 = vpop.permute.xlu0 %1761
      %1763 = vrot.lane.b32.xlu0 %v873, 24
      %v1764 = vpop.permute.xlu0 %1763
      %1765 = vrot.lane.b32.xlu0 %v875, 24
      %v1766 = vpop.permute.xlu0 %1765
      %1767 = vrot.lane.b32.xlu0 %v877, 24
      %v1768 = vpop.permute.xlu0 %1767
      %1769 = vrot.lane.b32.xlu0 %v879, 24
      %v1770 = vpop.permute.xlu0 %1769
      %1771 = vrot.lane.b32.xlu0 %v881, 24
      %v1772 = vpop.permute.xlu0 %1771
      %1773 = vrot.lane.b32.xlu0 %v887, 24
      %v1774 = vpop.permute.xlu0 %1773
      %1775 = vrot.lane.b32.xlu0 %v889, 24
      %v1776 = vpop.permute.xlu0 %1775
      %1777 = vrot.lane.b32.xlu0 %v891, 24
      %v1778 = vpop.permute.xlu0 %1777
      %1779 = vrot.lane.b32.xlu0 %v893, 24
      %v1780 = vpop.permute.xlu0 %1779
      %1781 = vrot.lane.b32.xlu0 %v895, 24
      %v1782 = vpop.permute.xlu0 %1781
      %1783 = vrot.lane.b32.xlu0 %v897, 24
      %v1784 = vpop.permute.xlu0 %1783
      %1785 = vrot.lane.b32.xlu0 %v899, 24
      %v1786 = vpop.permute.xlu0 %1785
      %1787 = vrot.lane.b32.xlu0 %v901, 24
      %v1788 = vpop.permute.xlu0 %1787
      %1789 = vrot.lane.b32.xlu0 %v907, 24
      %v1790 = vpop.permute.xlu0 %1789
      %1791 = vrot.lane.b32.xlu0 %v909, 24
      %v1792 = vpop.permute.xlu0 %1791
      %1793 = vrot.lane.b32.xlu0 %v911, 24
      %v1794 = vpop.permute.xlu0 %1793
      %1795 = vrot.lane.b32.xlu0 %v913, 24
      %v1796 = vpop.permute.xlu0 %1795
      %1797 = vrot.lane.b32.xlu0 %v915, 24
      %v1798 = vpop.permute.xlu0 %1797
      %1799 = vrot.lane.b32.xlu0 %v917, 24
      %v1800 = vpop.permute.xlu0 %1799
      %1801 = vrot.lane.b32.xlu0 %v919, 24
      %v1802 = vpop.permute.xlu0 %1801
      %1803 = vrot.lane.b32.xlu0 %v921, 24
      %v1804 = vpop.permute.xlu0 %1803
      %1805 = vrot.lane.b32.xlu0 %v927, 24
      %v1806 = vpop.permute.xlu0 %1805
      %1807 = vrot.lane.b32.xlu0 %v929, 24
      %v1808 = vpop.permute.xlu0 %1807
      %1809 = vrot.lane.b32.xlu0 %v931, 24
      %v1810 = vpop.permute.xlu0 %1809
      %1811 = vrot.lane.b32.xlu0 %v933, 24
      %v1812 = vpop.permute.xlu0 %1811
      %1813 = vrot.lane.b32.xlu0 %v935, 24
      %v1814 = vpop.permute.xlu0 %1813
      %1815 = vrot.lane.b32.xlu0 %v937, 24
      %v1816 = vpop.permute.xlu0 %1815
      %1817 = vrot.lane.b32.xlu0 %v939, 24
      %v1818 = vpop.permute.xlu0 %1817
      %1819 = vrot.lane.b32.xlu0 %v941, 24
      %v1820 = vpop.permute.xlu0 %1819
      %v1857 = vrot.slane %v881, 1
      %v1858 = vrot.slane %v882, 1
      %v1859 = vsel %vm1047, %v1857, %v1858
      %v1860 = vrot.slane %v901, 1
      %v1861 = vrot.slane %v902, 1
      %v1862 = vsel %vm1047, %v1860, %v1861
      %v1863 = vrot.slane %v921, 1
      %v1864 = vrot.slane %v922, 1
      %v1865 = vsel %vm1047, %v1863, %v1864
      %v1866 = vrot.slane %v941, 1
      %v1867 = vrot.slane %v942, 1
      %v1868 = vsel %vm1047, %v1866, %v1867
      %1869 = vrot.lane.b32.xlu0 %v1056, 28
      %v1870 = vpop.permute.xlu0 %1869
      %1871 = vrot.lane.b32.xlu0 %v1059, 28
      %v1872 = vpop.permute.xlu0 %1871
      %1873 = vrot.lane.b32.xlu0 %v1062, 28
      %v1874 = vpop.permute.xlu0 %1873
      %1875 = vrot.lane.b32.xlu0 %v1065, 28
      %v1876 = vpop.permute.xlu0 %1875
      %1877 = vrot.lane.b32.xlu0 %v1068, 28
      %v1878 = vpop.permute.xlu0 %1877
      %1879 = vrot.lane.b32.xlu0 %v1071, 28
      %v1880 = vpop.permute.xlu0 %1879
      %1881 = vrot.lane.b32.xlu0 %v1539, 28
      %v1882 = vpop.permute.xlu0 %1881
      %1883 = vrot.lane.b32.xlu0 %v1859, 28
      %v1884 = vpop.permute.xlu0 %1883
      %1885 = vrot.lane.b32.xlu0 %v1080, 28
      %v1886 = vpop.permute.xlu0 %1885
      %1887 = vrot.lane.b32.xlu0 %v1083, 28
      %v1888 = vpop.permute.xlu0 %1887
      %1889 = vrot.lane.b32.xlu0 %v1086, 28
      %v1890 = vpop.permute.xlu0 %1889
      %1891 = vrot.lane.b32.xlu0 %v1089, 28
      %v1892 = vpop.permute.xlu0 %1891
      %1893 = vrot.lane.b32.xlu0 %v1092, 28
      %v1894 = vpop.permute.xlu0 %1893
      %1895 = vrot.lane.b32.xlu0 %v1095, 28
      %v1896 = vpop.permute.xlu0 %1895
      %1897 = vrot.lane.b32.xlu0 %v1542, 28
      %v1898 = vpop.permute.xlu0 %1897
      %1899 = vrot.lane.b32.xlu0 %v1862, 28
      %v1900 = vpop.permute.xlu0 %1899
      %1901 = vrot.lane.b32.xlu0 %v1104, 28
      %v1902 = vpop.permute.xlu0 %1901
      %1903 = vrot.lane.b32.xlu0 %v1107, 28
      %v1904 = vpop.permute.xlu0 %1903
      %1905 = vrot.lane.b32.xlu0 %v1110, 28
      %v1906 = vpop.permute.xlu0 %1905
      %1907 = vrot.lane.b32.xlu0 %v1113, 28
      %v1908 = vpop.permute.xlu0 %1907
      %1909 = vrot.lane.b32.xlu0 %v1116, 28
      %v1910 = vpop.permute.xlu0 %1909
      %1911 = vrot.lane.b32.xlu0 %v1119, 28
      %v1912 = vpop.permute.xlu0 %1911
      %1913 = vrot.lane.b32.xlu0 %v1545, 28
      %v1914 = vpop.permute.xlu0 %1913
      %1915 = vrot.lane.b32.xlu0 %v1865, 28
      %v1916 = vpop.permute.xlu0 %1915
      %1917 = vrot.lane.b32.xlu0 %v1128, 28
      %v1918 = vpop.permute.xlu0 %1917
      %1919 = vrot.lane.b32.xlu0 %v1131, 28
      %v1920 = vpop.permute.xlu0 %1919
      %1921 = vrot.lane.b32.xlu0 %v1134, 28
      %v1922 = vpop.permute.xlu0 %1921
      %1923 = vrot.lane.b32.xlu0 %v1137, 28
      %v1924 = vpop.permute.xlu0 %1923
      %1925 = vrot.lane.b32.xlu0 %v1140, 28
      %v1926 = vpop.permute.xlu0 %1925
      %1927 = vrot.lane.b32.xlu0 %v1143, 28
      %v1928 = vpop.permute.xlu0 %1927
      %1929 = vrot.lane.b32.xlu0 %v1548, 28
      %v1930 = vpop.permute.xlu0 %1929
      %1931 = vrot.lane.b32.xlu0 %v1868, 28
      %v1932 = vpop.permute.xlu0 %1931
      %v1965 = vrot.slane %v881, 2
      %v1966 = vrot.slane %v882, 2
      %v1967 = vsel %vm1240, %v1965, %v1966
      %v1968 = vrot.slane %v901, 2
      %v1969 = vrot.slane %v902, 2
      %v1970 = vsel %vm1240, %v1968, %v1969
      %v1971 = vrot.slane %v921, 2
      %v1972 = vrot.slane %v922, 2
      %v1973 = vsel %vm1240, %v1971, %v1972
      %v1974 = vrot.slane %v941, 2
      %v1975 = vrot.slane %v942, 2
      %v1976 = vsel %vm1240, %v1974, %v1975
      %1977 = vrot.lane.b32.xlu0 %v1249, 32
      %v1978 = vpop.permute.xlu0 %1977
      %1979 = vrot.lane.b32.xlu0 %v1252, 32
      %v1980 = vpop.permute.xlu0 %1979
      %1981 = vrot.lane.b32.xlu0 %v1255, 32
      %v1982 = vpop.permute.xlu0 %1981
      %1983 = vrot.lane.b32.xlu0 %v1258, 32
      %v1984 = vpop.permute.xlu0 %1983
      %1985 = vrot.lane.b32.xlu0 %v1261, 32
      %v1986 = vpop.permute.xlu0 %1985
      %1987 = vrot.lane.b32.xlu0 %v1264, 32
      %v1988 = vpop.permute.xlu0 %1987
      %1989 = vrot.lane.b32.xlu0 %v1647, 32
      %v1990 = vpop.permute.xlu0 %1989
      %1991 = vrot.lane.b32.xlu0 %v1967, 32
      %v1992 = vpop.permute.xlu0 %1991
      %1993 = vrot.lane.b32.xlu0 %v1273, 32
      %v1994 = vpop.permute.xlu0 %1993
      %1995 = vrot.lane.b32.xlu0 %v1276, 32
      %v1996 = vpop.permute.xlu0 %1995
      %1997 = vrot.lane.b32.xlu0 %v1279, 32
      %v1998 = vpop.permute.xlu0 %1997
      %1999 = vrot.lane.b32.xlu0 %v1282, 32
      %v2000 = vpop.permute.xlu0 %1999
      %2001 = vrot.lane.b32.xlu0 %v1285, 32
      %v2002 = vpop.permute.xlu0 %2001
      %2003 = vrot.lane.b32.xlu0 %v1288, 32
      %v2004 = vpop.permute.xlu0 %2003
      %2005 = vrot.lane.b32.xlu0 %v1650, 32
      %v2006 = vpop.permute.xlu0 %2005
      %2007 = vrot.lane.b32.xlu0 %v1970, 32
      %v2008 = vpop.permute.xlu0 %2007
      %2009 = vrot.lane.b32.xlu0 %v1297, 32
      %v2010 = vpop.permute.xlu0 %2009
      %2011 = vrot.lane.b32.xlu0 %v1300, 32
      %v2012 = vpop.permute.xlu0 %2011
      %2013 = vrot.lane.b32.xlu0 %v1303, 32
      %v2014 = vpop.permute.xlu0 %2013
      %2015 = vrot.lane.b32.xlu0 %v1306, 32
      %v2016 = vpop.permute.xlu0 %2015
      %2017 = vrot.lane.b32.xlu0 %v1309, 32
      %v2018 = vpop.permute.xlu0 %2017
      %2019 = vrot.lane.b32.xlu0 %v1312, 32
      %v2020 = vpop.permute.xlu0 %2019
      %2021 = vrot.lane.b32.xlu0 %v1653, 32
      %v2022 = vpop.permute.xlu0 %2021
      %2023 = vrot.lane.b32.xlu0 %v1973, 32
      %v2024 = vpop.permute.xlu0 %2023
      %2025 = vrot.lane.b32.xlu0 %v1321, 32
      %v2026 = vpop.permute.xlu0 %2025
      %2027 = vrot.lane.b32.xlu0 %v1324, 32
      %v2028 = vpop.permute.xlu0 %2027
      %2029 = vrot.lane.b32.xlu0 %v1327, 32
      %v2030 = vpop.permute.xlu0 %2029
      %2031 = vrot.lane.b32.xlu0 %v1330, 32
      %v2032 = vpop.permute.xlu0 %2031
      %2033 = vrot.lane.b32.xlu0 %v1333, 32
      %v2034 = vpop.permute.xlu0 %2033
      %2035 = vrot.lane.b32.xlu0 %v1336, 32
      %v2036 = vpop.permute.xlu0 %2035
      %2037 = vrot.lane.b32.xlu0 %v1656, 32
      %v2038 = vpop.permute.xlu0 %2037
      %2039 = vrot.lane.b32.xlu0 %v1976, 32
      %v2040 = vpop.permute.xlu0 %2039
      %2081 = vrot.lane.b32.xlu0 %v883, 36
      %v2082 = vpop.permute.xlu0 %2081
      %2083 = vrot.lane.b32.xlu0 %v885, 36
      %v2084 = vpop.permute.xlu0 %2083
      %2085 = vrot.lane.b32.xlu0 %v887, 36
      %v2086 = vpop.permute.xlu0 %2085
      %2087 = vrot.lane.b32.xlu0 %v889, 36
      %v2088 = vpop.permute.xlu0 %2087
      %2089 = vrot.lane.b32.xlu0 %v891, 36
      %v2090 = vpop.permute.xlu0 %2089
      %2091 = vrot.lane.b32.xlu0 %v893, 36
      %v2092 = vpop.permute.xlu0 %2091
      %2093 = vrot.lane.b32.xlu0 %v895, 36
      %v2094 = vpop.permute.xlu0 %2093
      %2095 = vrot.lane.b32.xlu0 %v897, 36
      %v2096 = vpop.permute.xlu0 %2095
      %2097 = vrot.lane.b32.xlu0 %v903, 36
      %v2098 = vpop.permute.xlu0 %2097
      %2099 = vrot.lane.b32.xlu0 %v905, 36
      %v2100 = vpop.permute.xlu0 %2099
      %2101 = vrot.lane.b32.xlu0 %v907, 36
      %v2102 = vpop.permute.xlu0 %2101
      %2103 = vrot.lane.b32.xlu0 %v909, 36
      %v2104 = vpop.permute.xlu0 %2103
      %2105 = vrot.lane.b32.xlu0 %v911, 36
      %v2106 = vpop.permute.xlu0 %2105
      %2107 = vrot.lane.b32.xlu0 %v913, 36
      %v2108 = vpop.permute.xlu0 %2107
      %2109 = vrot.lane.b32.xlu0 %v915, 36
      %v2110 = vpop.permute.xlu0 %2109
      %2111 = vrot.lane.b32.xlu0 %v917, 36
      %v2112 = vpop.permute.xlu0 %2111
      %2113 = vrot.lane.b32.xlu0 %v923, 36
      %v2114 = vpop.permute.xlu0 %2113
      %2115 = vrot.lane.b32.xlu0 %v925, 36
      %v2116 = vpop.permute.xlu0 %2115
      %2117 = vrot.lane.b32.xlu0 %v927, 36
      %v2118 = vpop.permute.xlu0 %2117
      %2119 = vrot.lane.b32.xlu0 %v929, 36
      %v2120 = vpop.permute.xlu0 %2119
      %2121 = vrot.lane.b32.xlu0 %v931, 36
      %v2122 = vpop.permute.xlu0 %2121
      %2123 = vrot.lane.b32.xlu0 %v933, 36
      %v2124 = vpop.permute.xlu0 %2123
      %2125 = vrot.lane.b32.xlu0 %v935, 36
      %v2126 = vpop.permute.xlu0 %2125
      %2127 = vrot.lane.b32.xlu0 %v937, 36
      %v2128 = vpop.permute.xlu0 %2127
      %2129 = vrot.lane.b32.xlu0 %v943, 36
      %v2130 = vpop.permute.xlu0 %2129
      %2131 = vrot.lane.b32.xlu0 %v945, 36
      %v2132 = vpop.permute.xlu0 %2131
      %2133 = vrot.lane.b32.xlu0 %v947, 36
      %v2134 = vpop.permute.xlu0 %2133
      %2135 = vrot.lane.b32.xlu0 %v949, 36
      %v2136 = vpop.permute.xlu0 %2135
      %2137 = vrot.lane.b32.xlu0 %v951, 36
      %v2138 = vpop.permute.xlu0 %2137
      %2139 = vrot.lane.b32.xlu0 %v953, 36
      %v2140 = vpop.permute.xlu0 %2139
      %2141 = vrot.lane.b32.xlu0 %v955, 36
      %v2142 = vpop.permute.xlu0 %2141
      %2143 = vrot.lane.b32.xlu0 %v957, 36
      %v2144 = vpop.permute.xlu0 %2143
      %v2185 = vrot.slane %v943, 1
      %v2186 = vrot.slane %v944, 1
      %v2187 = vsel %vm1047, %v2185, %v2186
      %v2188 = vrot.slane %v945, 1
      %v2189 = vrot.slane %v946, 1
      %v2190 = vsel %vm1047, %v2188, %v2189
      %v2191 = vrot.slane %v947, 1
      %v2192 = vrot.slane %v948, 1
      %v2193 = vsel %vm1047, %v2191, %v2192
      %v2194 = vrot.slane %v949, 1
      %v2195 = vrot.slane %v950, 1
      %v2196 = vsel %vm1047, %v2194, %v2195
      %v2197 = vrot.slane %v951, 1
      %v2198 = vrot.slane %v952, 1
      %v2199 = vsel %vm1047, %v2197, %v2198
      %v2200 = vrot.slane %v953, 1
      %v2201 = vrot.slane %v954, 1
      %v2202 = vsel %vm1047, %v2200, %v2201
      %v2203 = vrot.slane %v955, 1
      %v2204 = vrot.slane %v956, 1
      %v2205 = vsel %vm1047, %v2203, %v2204
      %v2206 = vrot.slane %v957, 1
      %v2207 = vrot.slane %v958, 1
      %v2208 = vsel %vm1047, %v2206, %v2207
      %2209 = vrot.lane.b32.xlu0 %v1074, 40
      %v2210 = vpop.permute.xlu0 %2209
      %2211 = vrot.lane.b32.xlu0 %v1077, 40
      %v2212 = vpop.permute.xlu0 %2211
      %2213 = vrot.lane.b32.xlu0 %v1080, 40
      %v2214 = vpop.permute.xlu0 %2213
      %2215 = vrot.lane.b32.xlu0 %v1083, 40
      %v2216 = vpop.permute.xlu0 %2215
      %2217 = vrot.lane.b32.xlu0 %v1086, 40
      %v2218 = vpop.permute.xlu0 %2217
      %2219 = vrot.lane.b32.xlu0 %v1089, 40
      %v2220 = vpop.permute.xlu0 %2219
      %2221 = vrot.lane.b32.xlu0 %v1092, 40
      %v2222 = vpop.permute.xlu0 %2221
      %2223 = vrot.lane.b32.xlu0 %v1095, 40
      %v2224 = vpop.permute.xlu0 %2223
      %2225 = vrot.lane.b32.xlu0 %v1098, 40
      %v2226 = vpop.permute.xlu0 %2225
      %2227 = vrot.lane.b32.xlu0 %v1101, 40
      %v2228 = vpop.permute.xlu0 %2227
      %2229 = vrot.lane.b32.xlu0 %v1104, 40
      %v2230 = vpop.permute.xlu0 %2229
      %2231 = vrot.lane.b32.xlu0 %v1107, 40
      %v2232 = vpop.permute.xlu0 %2231
      %2233 = vrot.lane.b32.xlu0 %v1110, 40
      %v2234 = vpop.permute.xlu0 %2233
      %2235 = vrot.lane.b32.xlu0 %v1113, 40
      %v2236 = vpop.permute.xlu0 %2235
      %2237 = vrot.lane.b32.xlu0 %v1116, 40
      %v2238 = vpop.permute.xlu0 %2237
      %2239 = vrot.lane.b32.xlu0 %v1119, 40
      %v2240 = vpop.permute.xlu0 %2239
      %2241 = vrot.lane.b32.xlu0 %v1122, 40
      %v2242 = vpop.permute.xlu0 %2241
      %2243 = vrot.lane.b32.xlu0 %v1125, 40
      %v2244 = vpop.permute.xlu0 %2243
      %2245 = vrot.lane.b32.xlu0 %v1128, 40
      %v2246 = vpop.permute.xlu0 %2245
      %2247 = vrot.lane.b32.xlu0 %v1131, 40
      %v2248 = vpop.permute.xlu0 %2247
      %2249 = vrot.lane.b32.xlu0 %v1134, 40
      %v2250 = vpop.permute.xlu0 %2249
      %2251 = vrot.lane.b32.xlu0 %v1137, 40
      %v2252 = vpop.permute.xlu0 %2251
      %2253 = vrot.lane.b32.xlu0 %v1140, 40
      %v2254 = vpop.permute.xlu0 %2253
      %2255 = vrot.lane.b32.xlu0 %v1143, 40
      %v2256 = vpop.permute.xlu0 %2255
      %2257 = vrot.lane.b32.xlu0 %v2187, 40
      %v2258 = vpop.permute.xlu0 %2257
      %2259 = vrot.lane.b32.xlu0 %v2190, 40
      %v2260 = vpop.permute.xlu0 %2259
      %2261 = vrot.lane.b32.xlu0 %v2193, 40
      %v2262 = vpop.permute.xlu0 %2261
      %2263 = vrot.lane.b32.xlu0 %v2196, 40
      %v2264 = vpop.permute.xlu0 %2263
      %2265 = vrot.lane.b32.xlu0 %v2199, 40
      %v2266 = vpop.permute.xlu0 %2265
      %2267 = vrot.lane.b32.xlu0 %v2202, 40
      %v2268 = vpop.permute.xlu0 %2267
      %2269 = vrot.lane.b32.xlu0 %v2205, 40
      %v2270 = vpop.permute.xlu0 %2269
      %2271 = vrot.lane.b32.xlu0 %v2208, 40
      %v2272 = vpop.permute.xlu0 %2271
      %v2305 = vrot.slane %v943, 2
      %v2306 = vrot.slane %v944, 2
      %v2307 = vsel %vm1240, %v2305, %v2306
      %v2308 = vrot.slane %v945, 2
      %v2309 = vrot.slane %v946, 2
      %v2310 = vsel %vm1240, %v2308, %v2309
      %v2311 = vrot.slane %v947, 2
      %v2312 = vrot.slane %v948, 2
      %v2313 = vsel %vm1240, %v2311, %v2312
      %v2314 = vrot.slane %v949, 2
      %v2315 = vrot.slane %v950, 2
      %v2316 = vsel %vm1240, %v2314, %v2315
      %v2317 = vrot.slane %v951, 2
      %v2318 = vrot.slane %v952, 2
      %v2319 = vsel %vm1240, %v2317, %v2318
      %v2320 = vrot.slane %v953, 2
      %v2321 = vrot.slane %v954, 2
      %v2322 = vsel %vm1240, %v2320, %v2321
      %v2323 = vrot.slane %v955, 2
      %v2324 = vrot.slane %v956, 2
      %v2325 = vsel %vm1240, %v2323, %v2324
      %v2326 = vrot.slane %v957, 2
      %v2327 = vrot.slane %v958, 2
      %v2328 = vsel %vm1240, %v2326, %v2327
      %2329 = vrot.lane.b32.xlu0 %v1267, 44
      %v2330 = vpop.permute.xlu0 %2329
      %2331 = vrot.lane.b32.xlu0 %v1270, 44
      %v2332 = vpop.permute.xlu0 %2331
      %2333 = vrot.lane.b32.xlu0 %v1273, 44
      %v2334 = vpop.permute.xlu0 %2333
      %2335 = vrot.lane.b32.xlu0 %v1276, 44
      %v2336 = vpop.permute.xlu0 %2335
      %2337 = vrot.lane.b32.xlu0 %v1279, 44
      %v2338 = vpop.permute.xlu0 %2337
      %2339 = vrot.lane.b32.xlu0 %v1282, 44
      %v2340 = vpop.permute.xlu0 %2339
      %2341 = vrot.lane.b32.xlu0 %v1285, 44
      %v2342 = vpop.permute.xlu0 %2341
      %2343 = vrot.lane.b32.xlu0 %v1288, 44
      %v2344 = vpop.permute.xlu0 %2343
      %2345 = vrot.lane.b32.xlu0 %v1291, 44
      %v2346 = vpop.permute.xlu0 %2345
      %2347 = vrot.lane.b32.xlu0 %v1294, 44
      %v2348 = vpop.permute.xlu0 %2347
      %2349 = vrot.lane.b32.xlu0 %v1297, 44
      %v2350 = vpop.permute.xlu0 %2349
      %2351 = vrot.lane.b32.xlu0 %v1300, 44
      %v2352 = vpop.permute.xlu0 %2351
      %2353 = vrot.lane.b32.xlu0 %v1303, 44
      %v2354 = vpop.permute.xlu0 %2353
      %2355 = vrot.lane.b32.xlu0 %v1306, 44
      %v2356 = vpop.permute.xlu0 %2355
      %2357 = vrot.lane.b32.xlu0 %v1309, 44
      %v2358 = vpop.permute.xlu0 %2357
      %2359 = vrot.lane.b32.xlu0 %v1312, 44
      %v2360 = vpop.permute.xlu0 %2359
      %2361 = vrot.lane.b32.xlu0 %v1315, 44
      %v2362 = vpop.permute.xlu0 %2361
      %2363 = vrot.lane.b32.xlu0 %v1318, 44
      %v2364 = vpop.permute.xlu0 %2363
      %2365 = vrot.lane.b32.xlu0 %v1321, 44
      %v2366 = vpop.permute.xlu0 %2365
      %2367 = vrot.lane.b32.xlu0 %v1324, 44
      %v2368 = vpop.permute.xlu0 %2367
      %2369 = vrot.lane.b32.xlu0 %v1327, 44
      %v2370 = vpop.permute.xlu0 %2369
      %2371 = vrot.lane.b32.xlu0 %v1330, 44
      %v2372 = vpop.permute.xlu0 %2371
      %2373 = vrot.lane.b32.xlu0 %v1333, 44
      %v2374 = vpop.permute.xlu0 %2373
      %2375 = vrot.lane.b32.xlu0 %v1336, 44
      %v2376 = vpop.permute.xlu0 %2375
      %2377 = vrot.lane.b32.xlu0 %v2307, 44
      %v2378 = vpop.permute.xlu0 %2377
      %2379 = vrot.lane.b32.xlu0 %v2310, 44
      %v2380 = vpop.permute.xlu0 %2379
      %2381 = vrot.lane.b32.xlu0 %v2313, 44
      %v2382 = vpop.permute.xlu0 %2381
      %2383 = vrot.lane.b32.xlu0 %v2316, 44
      %v2384 = vpop.permute.xlu0 %2383
      %2385 = vrot.lane.b32.xlu0 %v2319, 44
      %v2386 = vpop.permute.xlu0 %2385
      %2387 = vrot.lane.b32.xlu0 %v2322, 44
      %v2388 = vpop.permute.xlu0 %2387
      %2389 = vrot.lane.b32.xlu0 %v2325, 44
      %v2390 = vpop.permute.xlu0 %2389
      %2391 = vrot.lane.b32.xlu0 %v2328, 44
      %v2392 = vpop.permute.xlu0 %2391
      %2426 = vrot.lane.b32.xlu0 %v885, 48
      %v2427 = vpop.permute.xlu0 %2426
      %2428 = vrot.lane.b32.xlu0 %v887, 48
      %v2429 = vpop.permute.xlu0 %2428
      %2430 = vrot.lane.b32.xlu0 %v889, 48
      %v2431 = vpop.permute.xlu0 %2430
      %2432 = vrot.lane.b32.xlu0 %v891, 48
      %v2433 = vpop.permute.xlu0 %2432
      %2434 = vrot.lane.b32.xlu0 %v893, 48
      %v2435 = vpop.permute.xlu0 %2434
      %2436 = vrot.lane.b32.xlu0 %v895, 48
      %v2437 = vpop.permute.xlu0 %2436
      %2438 = vrot.lane.b32.xlu0 %v897, 48
      %v2439 = vpop.permute.xlu0 %2438
      %2440 = vrot.lane.b32.xlu0 %v899, 48
      %v2441 = vpop.permute.xlu0 %2440
      %2442 = vrot.lane.b32.xlu0 %v905, 48
      %v2443 = vpop.permute.xlu0 %2442
      %2444 = vrot.lane.b32.xlu0 %v907, 48
      %v2445 = vpop.permute.xlu0 %2444
      %2446 = vrot.lane.b32.xlu0 %v909, 48
      %v2447 = vpop.permute.xlu0 %2446
      %2448 = vrot.lane.b32.xlu0 %v911, 48
      %v2449 = vpop.permute.xlu0 %2448
      %2450 = vrot.lane.b32.xlu0 %v913, 48
      %v2451 = vpop.permute.xlu0 %2450
      %2452 = vrot.lane.b32.xlu0 %v915, 48
      %v2453 = vpop.permute.xlu0 %2452
      %2454 = vrot.lane.b32.xlu0 %v917, 48
      %v2455 = vpop.permute.xlu0 %2454
      %2456 = vrot.lane.b32.xlu0 %v919, 48
      %v2457 = vpop.permute.xlu0 %2456
      %2458 = vrot.lane.b32.xlu0 %v925, 48
      %v2459 = vpop.permute.xlu0 %2458
      %2460 = vrot.lane.b32.xlu0 %v927, 48
      %v2461 = vpop.permute.xlu0 %2460
      %2462 = vrot.lane.b32.xlu0 %v929, 48
      %v2463 = vpop.permute.xlu0 %2462
      %2464 = vrot.lane.b32.xlu0 %v931, 48
      %v2465 = vpop.permute.xlu0 %2464
      %2466 = vrot.lane.b32.xlu0 %v933, 48
      %v2467 = vpop.permute.xlu0 %2466
      %2468 = vrot.lane.b32.xlu0 %v935, 48
      %v2469 = vpop.permute.xlu0 %2468
      %2470 = vrot.lane.b32.xlu0 %v937, 48
      %v2471 = vpop.permute.xlu0 %2470
      %2472 = vrot.lane.b32.xlu0 %v939, 48
      %v2473 = vpop.permute.xlu0 %2472
      %2474 = vrot.lane.b32.xlu0 %v945, 48
      %v2475 = vpop.permute.xlu0 %2474
      %2476 = vrot.lane.b32.xlu0 %v947, 48
      %v2477 = vpop.permute.xlu0 %2476
      %2478 = vrot.lane.b32.xlu0 %v949, 48
      %v2479 = vpop.permute.xlu0 %2478
      %2480 = vrot.lane.b32.xlu0 %v951, 48
      %v2481 = vpop.permute.xlu0 %2480
      %2482 = vrot.lane.b32.xlu0 %v953, 48
      %v2483 = vpop.permute.xlu0 %2482
      %2484 = vrot.lane.b32.xlu0 %v955, 48
      %v2485 = vpop.permute.xlu0 %2484
      %2486 = vrot.lane.b32.xlu0 %v957, 48
      %v2487 = vpop.permute.xlu0 %2486
      %2488 = vrot.lane.b32.xlu0 %v959, 48
      %v2489 = vpop.permute.xlu0 %2488
      %v2523 = vrot.slane %v959, 1
      %v2524 = vrot.slane %v960, 1
      %v2525 = vsel %vm1047, %v2523, %v2524
      %2526 = vrot.lane.b32.xlu0 %v1077, 52
      %v2527 = vpop.permute.xlu0 %2526
      %2528 = vrot.lane.b32.xlu0 %v1080, 52
      %v2529 = vpop.permute.xlu0 %2528
      %2530 = vrot.lane.b32.xlu0 %v1083, 52
      %v2531 = vpop.permute.xlu0 %2530
      %2532 = vrot.lane.b32.xlu0 %v1086, 52
      %v2533 = vpop.permute.xlu0 %2532
      %2534 = vrot.lane.b32.xlu0 %v1089, 52
      %v2535 = vpop.permute.xlu0 %2534
      %2536 = vrot.lane.b32.xlu0 %v1092, 52
      %v2537 = vpop.permute.xlu0 %2536
      %2538 = vrot.lane.b32.xlu0 %v1095, 52
      %v2539 = vpop.permute.xlu0 %2538
      %2540 = vrot.lane.b32.xlu0 %v1542, 52
      %v2541 = vpop.permute.xlu0 %2540
      %2542 = vrot.lane.b32.xlu0 %v1101, 52
      %v2543 = vpop.permute.xlu0 %2542
      %2544 = vrot.lane.b32.xlu0 %v1104, 52
      %v2545 = vpop.permute.xlu0 %2544
      %2546 = vrot.lane.b32.xlu0 %v1107, 52
      %v2547 = vpop.permute.xlu0 %2546
      %2548 = vrot.lane.b32.xlu0 %v1110, 52
      %v2549 = vpop.permute.xlu0 %2548
      %2550 = vrot.lane.b32.xlu0 %v1113, 52
      %v2551 = vpop.permute.xlu0 %2550
      %2552 = vrot.lane.b32.xlu0 %v1116, 52
      %v2553 = vpop.permute.xlu0 %2552
      %2554 = vrot.lane.b32.xlu0 %v1119, 52
      %v2555 = vpop.permute.xlu0 %2554
      %2556 = vrot.lane.b32.xlu0 %v1545, 52
      %v2557 = vpop.permute.xlu0 %2556
      %2558 = vrot.lane.b32.xlu0 %v1125, 52
      %v2559 = vpop.permute.xlu0 %2558
      %2560 = vrot.lane.b32.xlu0 %v1128, 52
      %v2561 = vpop.permute.xlu0 %2560
      %2562 = vrot.lane.b32.xlu0 %v1131, 52
      %v2563 = vpop.permute.xlu0 %2562
      %2564 = vrot.lane.b32.xlu0 %v1134, 52
      %v2565 = vpop.permute.xlu0 %2564
      %2566 = vrot.lane.b32.xlu0 %v1137, 52
      %v2567 = vpop.permute.xlu0 %2566
      %2568 = vrot.lane.b32.xlu0 %v1140, 52
      %v2569 = vpop.permute.xlu0 %2568
      %2570 = vrot.lane.b32.xlu0 %v1143, 52
      %v2571 = vpop.permute.xlu0 %2570
      %2572 = vrot.lane.b32.xlu0 %v1548, 52
      %v2573 = vpop.permute.xlu0 %2572
      %2574 = vrot.lane.b32.xlu0 %v2190, 52
      %v2575 = vpop.permute.xlu0 %2574
      %2576 = vrot.lane.b32.xlu0 %v2193, 52
      %v2577 = vpop.permute.xlu0 %2576
      %2578 = vrot.lane.b32.xlu0 %v2196, 52
      %v2579 = vpop.permute.xlu0 %2578
      %2580 = vrot.lane.b32.xlu0 %v2199, 52
      %v2581 = vpop.permute.xlu0 %2580
      %2582 = vrot.lane.b32.xlu0 %v2202, 52
      %v2583 = vpop.permute.xlu0 %2582
      %2584 = vrot.lane.b32.xlu0 %v2205, 52
      %v2585 = vpop.permute.xlu0 %2584
      %2586 = vrot.lane.b32.xlu0 %v2208, 52
      %v2587 = vpop.permute.xlu0 %2586
      %2588 = vrot.lane.b32.xlu0 %v2525, 52
      %v2589 = vpop.permute.xlu0 %2588
      %v2622 = vrot.slane %v959, 2
      %v2623 = vrot.slane %v960, 2
      %v2624 = vsel %vm1240, %v2622, %v2623
      %2625 = vrot.lane.b32.xlu0 %v1270, 56
      %v2626 = vpop.permute.xlu0 %2625
      %2627 = vrot.lane.b32.xlu0 %v1273, 56
      %v2628 = vpop.permute.xlu0 %2627
      %2629 = vrot.lane.b32.xlu0 %v1276, 56
      %v2630 = vpop.permute.xlu0 %2629
      %2631 = vrot.lane.b32.xlu0 %v1279, 56
      %v2632 = vpop.permute.xlu0 %2631
      %2633 = vrot.lane.b32.xlu0 %v1282, 56
      %v2634 = vpop.permute.xlu0 %2633
      %2635 = vrot.lane.b32.xlu0 %v1285, 56
      %v2636 = vpop.permute.xlu0 %2635
      %2637 = vrot.lane.b32.xlu0 %v1288, 56
      %v2638 = vpop.permute.xlu0 %2637
      %2639 = vrot.lane.b32.xlu0 %v1650, 56
      %v2640 = vpop.permute.xlu0 %2639
      %2641 = vrot.lane.b32.xlu0 %v1294, 56
      %v2642 = vpop.permute.xlu0 %2641
      %2643 = vrot.lane.b32.xlu0 %v1297, 56
      %v2644 = vpop.permute.xlu0 %2643
      %2645 = vrot.lane.b32.xlu0 %v1300, 56
      %v2646 = vpop.permute.xlu0 %2645
      %2647 = vrot.lane.b32.xlu0 %v1303, 56
      %v2648 = vpop.permute.xlu0 %2647
      %2649 = vrot.lane.b32.xlu0 %v1306, 56
      %v2650 = vpop.permute.xlu0 %2649
      %2651 = vrot.lane.b32.xlu0 %v1309, 56
      %v2652 = vpop.permute.xlu0 %2651
      %2653 = vrot.lane.b32.xlu0 %v1312, 56
      %v2654 = vpop.permute.xlu0 %2653
      %2655 = vrot.lane.b32.xlu0 %v1653, 56
      %v2656 = vpop.permute.xlu0 %2655
      %2657 = vrot.lane.b32.xlu0 %v1318, 56
      %v2658 = vpop.permute.xlu0 %2657
      %2659 = vrot.lane.b32.xlu0 %v1321, 56
      %v2660 = vpop.permute.xlu0 %2659
      %2661 = vrot.lane.b32.xlu0 %v1324, 56
      %v2662 = vpop.permute.xlu0 %2661
      %2663 = vrot.lane.b32.xlu0 %v1327, 56
      %v2664 = vpop.permute.xlu0 %2663
      %2665 = vrot.lane.b32.xlu0 %v1330, 56
      %v2666 = vpop.permute.xlu0 %2665
      %2667 = vrot.lane.b32.xlu0 %v1333, 56
      %v2668 = vpop.permute.xlu0 %2667
      %2669 = vrot.lane.b32.xlu0 %v1336, 56
      %v2670 = vpop.permute.xlu0 %2669
      %2671 = vrot.lane.b32.xlu0 %v1656, 56
      %v2672 = vpop.permute.xlu0 %2671
      %2673 = vrot.lane.b32.xlu0 %v2310, 56
      %v2674 = vpop.permute.xlu0 %2673
      %2675 = vrot.lane.b32.xlu0 %v2313, 56
      %v2676 = vpop.permute.xlu0 %2675
      %2677 = vrot.lane.b32.xlu0 %v2316, 56
      %v2678 = vpop.permute.xlu0 %2677
      %2679 = vrot.lane.b32.xlu0 %v2319, 56
      %v2680 = vpop.permute.xlu0 %2679
      %2681 = vrot.lane.b32.xlu0 %v2322, 56
      %v2682 = vpop.permute.xlu0 %2681
      %2683 = vrot.lane.b32.xlu0 %v2325, 56
      %v2684 = vpop.permute.xlu0 %2683
      %2685 = vrot.lane.b32.xlu0 %v2328, 56
      %v2686 = vpop.permute.xlu0 %2685
      %2687 = vrot.lane.b32.xlu0 %v2624, 56
      %v2688 = vpop.permute.xlu0 %2687
      %2722 = vrot.lane.b32.xlu0 %v887, 60
      %v2723 = vpop.permute.xlu0 %2722
      %2724 = vrot.lane.b32.xlu0 %v889, 60
      %v2725 = vpop.permute.xlu0 %2724
      %2726 = vrot.lane.b32.xlu0 %v891, 60
      %v2727 = vpop.permute.xlu0 %2726
      %2728 = vrot.lane.b32.xlu0 %v893, 60
      %v2729 = vpop.permute.xlu0 %2728
      %2730 = vrot.lane.b32.xlu0 %v895, 60
      %v2731 = vpop.permute.xlu0 %2730
      %2732 = vrot.lane.b32.xlu0 %v897, 60
      %v2733 = vpop.permute.xlu0 %2732
      %2734 = vrot.lane.b32.xlu0 %v899, 60
      %v2735 = vpop.permute.xlu0 %2734
      %2736 = vrot.lane.b32.xlu0 %v901, 60
      %v2737 = vpop.permute.xlu0 %2736
      %2738 = vrot.lane.b32.xlu0 %v907, 60
      %v2739 = vpop.permute.xlu0 %2738
      %2740 = vrot.lane.b32.xlu0 %v909, 60
      %v2741 = vpop.permute.xlu0 %2740
      %2742 = vrot.lane.b32.xlu0 %v911, 60
      %v2743 = vpop.permute.xlu0 %2742
      %2744 = vrot.lane.b32.xlu0 %v913, 60
      %v2745 = vpop.permute.xlu0 %2744
      %2746 = vrot.lane.b32.xlu0 %v915, 60
      %v2747 = vpop.permute.xlu0 %2746
      %2748 = vrot.lane.b32.xlu0 %v917, 60
      %v2749 = vpop.permute.xlu0 %2748
      %2750 = vrot.lane.b32.xlu0 %v919, 60
      %v2751 = vpop.permute.xlu0 %2750
      %2752 = vrot.lane.b32.xlu0 %v921, 60
      %v2753 = vpop.permute.xlu0 %2752
      %2754 = vrot.lane.b32.xlu0 %v927, 60
      %v2755 = vpop.permute.xlu0 %2754
      %2756 = vrot.lane.b32.xlu0 %v929, 60
      %v2757 = vpop.permute.xlu0 %2756
      %2758 = vrot.lane.b32.xlu0 %v931, 60
      %v2759 = vpop.permute.xlu0 %2758
      %2760 = vrot.lane.b32.xlu0 %v933, 60
      %v2761 = vpop.permute.xlu0 %2760
      %2762 = vrot.lane.b32.xlu0 %v935, 60
      %v2763 = vpop.permute.xlu0 %2762
      %2764 = vrot.lane.b32.xlu0 %v937, 60
      %v2765 = vpop.permute.xlu0 %2764
      %2766 = vrot.lane.b32.xlu0 %v939, 60
      %v2767 = vpop.permute.xlu0 %2766
      %2768 = vrot.lane.b32.xlu0 %v941, 60
      %v2769 = vpop.permute.xlu0 %2768
      %2770 = vrot.lane.b32.xlu0 %v947, 60
      %v2771 = vpop.permute.xlu0 %2770
      %2772 = vrot.lane.b32.xlu0 %v949, 60
      %v2773 = vpop.permute.xlu0 %2772
      %2774 = vrot.lane.b32.xlu0 %v951, 60
      %v2775 = vpop.permute.xlu0 %2774
      %2776 = vrot.lane.b32.xlu0 %v953, 60
      %v2777 = vpop.permute.xlu0 %2776
      %2778 = vrot.lane.b32.xlu0 %v955, 60
      %v2779 = vpop.permute.xlu0 %2778
      %2780 = vrot.lane.b32.xlu0 %v957, 60
      %v2781 = vpop.permute.xlu0 %2780
      %2782 = vrot.lane.b32.xlu0 %v959, 60
      %v2783 = vpop.permute.xlu0 %2782
      %2784 = vrot.lane.b32.xlu0 %v961, 60
      %v2785 = vpop.permute.xlu0 %2784
      %v2818 = vsel %vm672, %v863, %v1145
      %v2819 = vsel %vm672, %v865, %v1147
      %v2820 = vsel %vm672, %v867, %v1149
      %v2821 = vsel %vm672, %v869, %v1151
      %v2822 = vsel %vm672, %v871, %v1153
      %v2823 = vsel %vm672, %v873, %v1155
      %v2824 = vsel %vm672, %v875, %v1157
      %v2825 = vsel %vm672, %v877, %v1159
      %v2826 = vsel %vm672, %v883, %v1161
      %v2827 = vsel %vm672, %v885, %v1163
      %v2828 = vsel %vm672, %v887, %v1165
      %v2829 = vsel %vm672, %v889, %v1167
      %v2830 = vsel %vm672, %v891, %v1169
      %v2831 = vsel %vm672, %v893, %v1171
      %v2832 = vsel %vm672, %v895, %v1173
      %v2833 = vsel %vm672, %v897, %v1175
      %v2834 = vsel %vm672, %v903, %v1177
      %v2835 = vsel %vm672, %v905, %v1179
      %v2836 = vsel %vm672, %v907, %v1181
      %v2837 = vsel %vm672, %v909, %v1183
      %v2838 = vsel %vm672, %v911, %v1185
      %v2839 = vsel %vm672, %v913, %v1187
      %v2840 = vsel %vm672, %v915, %v1189
      %v2841 = vsel %vm672, %v917, %v1191
      %v2842 = vsel %vm672, %v923, %v1193
      %v2843 = vsel %vm672, %v925, %v1195
      %v2844 = vsel %vm672, %v927, %v1197
      %v2845 = vsel %vm672, %v929, %v1199
      %v2846 = vsel %vm672, %v931, %v1201
      %v2847 = vsel %vm672, %v933, %v1203
      %v2848 = vsel %vm672, %v935, %v1205
      %v2849 = vsel %vm672, %v937, %v1207
      %vm2850 = vcmask 64512
      %v2851 = vsel %vm2850, %v2818, %v1338
      %v2852 = vsel %vm2850, %v2819, %v1340
      %v2853 = vsel %vm2850, %v2820, %v1342
      %v2854 = vsel %vm2850, %v2821, %v1344
      %v2855 = vsel %vm2850, %v2822, %v1346
      %v2856 = vsel %vm2850, %v2823, %v1348
      %v2857 = vsel %vm2850, %v2824, %v1350
      %v2858 = vsel %vm2850, %v2825, %v1352
      %v2859 = vsel %vm2850, %v2826, %v1354
      %v2860 = vsel %vm2850, %v2827, %v1356
      %v2861 = vsel %vm2850, %v2828, %v1358
      %v2862 = vsel %vm2850, %v2829, %v1360
      %v2863 = vsel %vm2850, %v2830, %v1362
      %v2864 = vsel %vm2850, %v2831, %v1364
      %v2865 = vsel %vm2850, %v2832, %v1366
      %v2866 = vsel %vm2850, %v2833, %v1368
      %v2867 = vsel %vm2850, %v2834, %v1370
      %v2868 = vsel %vm2850, %v2835, %v1372
      %v2869 = vsel %vm2850, %v2836, %v1374
      %v2870 = vsel %vm2850, %v2837, %v1376
      %v2871 = vsel %vm2850, %v2838, %v1378
      %v2872 = vsel %vm2850, %v2839, %v1380
      %v2873 = vsel %vm2850, %v2840, %v1382
      %v2874 = vsel %vm2850, %v2841, %v1384
      %v2875 = vsel %vm2850, %v2842, %v1386
      %v2876 = vsel %vm2850, %v2843, %v1388
      %v2877 = vsel %vm2850, %v2844, %v1390
      %v2878 = vsel %vm2850, %v2845, %v1392
      %v2879 = vsel %vm2850, %v2846, %v1394
      %v2880 = vsel %vm2850, %v2847, %v1396
      %v2881 = vsel %vm2850, %v2848, %v1398
      %v2882 = vsel %vm2850, %v2849, %v1400
      %vm2883 = vcmask 97280
      %v2884 = vsel %vm2883, %v2851, %v1438
      %v2885 = vsel %vm2883, %v2852, %v1440
      %v2886 = vsel %vm2883, %v2853, %v1442
      %v2887 = vsel %vm2883, %v2854, %v1444
      %v2888 = vsel %vm2883, %v2855, %v1446
      %v2889 = vsel %vm2883, %v2856, %v1448
      %v2890 = vsel %vm2883, %v2857, %v1450
      %v2891 = vsel %vm2883, %v2858, %v1452
      %v2892 = vsel %vm2883, %v2859, %v1454
      %v2893 = vsel %vm2883, %v2860, %v1456
      %v2894 = vsel %vm2883, %v2861, %v1458
      %v2895 = vsel %vm2883, %v2862, %v1460
      %v2896 = vsel %vm2883, %v2863, %v1462
      %v2897 = vsel %vm2883, %v2864, %v1464
      %v2898 = vsel %vm2883, %v2865, %v1466
      %v2899 = vsel %vm2883, %v2866, %v1468
      %v2900 = vsel %vm2883, %v2867, %v1470
      %v2901 = vsel %vm2883, %v2868, %v1472
      %v2902 = vsel %vm2883, %v2869, %v1474
      %v2903 = vsel %vm2883, %v2870, %v1476
      %v2904 = vsel %vm2883, %v2871, %v1478
      %v2905 = vsel %vm2883, %v2872, %v1480
      %v2906 = vsel %vm2883, %v2873, %v1482
      %v2907 = vsel %vm2883, %v2874, %v1484
      %v2908 = vsel %vm2883, %v2875, %v1486
      %v2909 = vsel %vm2883, %v2876, %v1488
      %v2910 = vsel %vm2883, %v2877, %v1490
      %v2911 = vsel %vm2883, %v2878, %v1492
      %v2912 = vsel %vm2883, %v2879, %v1494
      %v2913 = vsel %vm2883, %v2880, %v1496
      %v2914 = vsel %vm2883, %v2881, %v1498
      %v2915 = vsel %vm2883, %v2882, %v1500
      %vm2916 = vcmask 130048
      %v2917 = vsel %vm2916, %v2884, %v1550
      %v2918 = vsel %vm2916, %v2885, %v1552
      %v2919 = vsel %vm2916, %v2886, %v1554
      %v2920 = vsel %vm2916, %v2887, %v1556
      %v2921 = vsel %vm2916, %v2888, %v1558
      %v2922 = vsel %vm2916, %v2889, %v1560
      %v2923 = vsel %vm2916, %v2890, %v1562
      %v2924 = vsel %vm2916, %v2891, %v1564
      %v2925 = vsel %vm2916, %v2892, %v1566
      %v2926 = vsel %vm2916, %v2893, %v1568
      %v2927 = vsel %vm2916, %v2894, %v1570
      %v2928 = vsel %vm2916, %v2895, %v1572
      %v2929 = vsel %vm2916, %v2896, %v1574
      %v2930 = vsel %vm2916, %v2897, %v1576
      %v2931 = vsel %vm2916, %v2898, %v1578
      %v2932 = vsel %vm2916, %v2899, %v1580
      %v2933 = vsel %vm2916, %v2900, %v1582
      %v2934 = vsel %vm2916, %v2901, %v1584
      %v2935 = vsel %vm2916, %v2902, %v1586
      %v2936 = vsel %vm2916, %v2903, %v1588
      %v2937 = vsel %vm2916, %v2904, %v1590
      %v2938 = vsel %vm2916, %v2905, %v1592
      %v2939 = vsel %vm2916, %v2906, %v1594
      %v2940 = vsel %vm2916, %v2907, %v1596
      %v2941 = vsel %vm2916, %v2908, %v1598
      %v2942 = vsel %vm2916, %v2909, %v1600
      %v2943 = vsel %vm2916, %v2910, %v1602
      %v2944 = vsel %vm2916, %v2911, %v1604
      %v2945 = vsel %vm2916, %v2912, %v1606
      %v2946 = vsel %vm2916, %v2913, %v1608
      %v2947 = vsel %vm2916, %v2914, %v1610
      %v2948 = vsel %vm2916, %v2915, %v1612
      %vm2949 = vcmask 162816
      %v2950 = vsel %vm2949, %v2917, %v1658
      %v2951 = vsel %vm2949, %v2918, %v1660
      %v2952 = vsel %vm2949, %v2919, %v1662
      %v2953 = vsel %vm2949, %v2920, %v1664
      %v2954 = vsel %vm2949, %v2921, %v1666
      %v2955 = vsel %vm2949, %v2922, %v1668
      %v2956 = vsel %vm2949, %v2923, %v1670
      %v2957 = vsel %vm2949, %v2924, %v1672
      %v2958 = vsel %vm2949, %v2925, %v1674
      %v2959 = vsel %vm2949, %v2926, %v1676
      %v2960 = vsel %vm2949, %v2927, %v1678
      %v2961 = vsel %vm2949, %v2928, %v1680
      %v2962 = vsel %vm2949, %v2929, %v1682
      %v2963 = vsel %vm2949, %v2930, %v1684
      %v2964 = vsel %vm2949, %v2931, %v1686
      %v2965 = vsel %vm2949, %v2932, %v1688
      %v2966 = vsel %vm2949, %v2933, %v1690
      %v2967 = vsel %vm2949, %v2934, %v1692
      %v2968 = vsel %vm2949, %v2935, %v1694
      %v2969 = vsel %vm2949, %v2936, %v1696
      %v2970 = vsel %vm2949, %v2937, %v1698
      %v2971 = vsel %vm2949, %v2938, %v1700
      %v2972 = vsel %vm2949, %v2939, %v1702
      %v2973 = vsel %vm2949, %v2940, %v1704
      %v2974 = vsel %vm2949, %v2941, %v1706
      %v2975 = vsel %vm2949, %v2942, %v1708
      %v2976 = vsel %vm2949, %v2943, %v1710
      %v2977 = vsel %vm2949, %v2944, %v1712
      %v2978 = vsel %vm2949, %v2945, %v1714
      %v2979 = vsel %vm2949, %v2946, %v1716
      %v2980 = vsel %vm2949, %v2947, %v1718
      %v2981 = vsel %vm2949, %v2948, %v1720
      %vm2982 = vcmask 195584
      %v2983 = vsel %vm2982, %v2950, %v1758
      %v2984 = vsel %vm2982, %v2951, %v1760
      %v2985 = vsel %vm2982, %v2952, %v1762
      %v2986 = vsel %vm2982, %v2953, %v1764
      %v2987 = vsel %vm2982, %v2954, %v1766
      %v2988 = vsel %vm2982, %v2955, %v1768
      %v2989 = vsel %vm2982, %v2956, %v1770
      %v2990 = vsel %vm2982, %v2957, %v1772
      %v2991 = vsel %vm2982, %v2958, %v1774
      %v2992 = vsel %vm2982, %v2959, %v1776
      %v2993 = vsel %vm2982, %v2960, %v1778
      %v2994 = vsel %vm2982, %v2961, %v1780
      %v2995 = vsel %vm2982, %v2962, %v1782
      %v2996 = vsel %vm2982, %v2963, %v1784
      %v2997 = vsel %vm2982, %v2964, %v1786
      %v2998 = vsel %vm2982, %v2965, %v1788
      %v2999 = vsel %vm2982, %v2966, %v1790
      %v3000 = vsel %vm2982, %v2967, %v1792
      %v3001 = vsel %vm2982, %v2968, %v1794
      %v3002 = vsel %vm2982, %v2969, %v1796
      %v3003 = vsel %vm2982, %v2970, %v1798
      %v3004 = vsel %vm2982, %v2971, %v1800
      %v3005 = vsel %vm2982, %v2972, %v1802
      %v3006 = vsel %vm2982, %v2973, %v1804
      %v3007 = vsel %vm2982, %v2974, %v1806
      %v3008 = vsel %vm2982, %v2975, %v1808
      %v3009 = vsel %vm2982, %v2976, %v1810
      %v3010 = vsel %vm2982, %v2977, %v1812
      %v3011 = vsel %vm2982, %v2978, %v1814
      %v3012 = vsel %vm2982, %v2979, %v1816
      %v3013 = vsel %vm2982, %v2980, %v1818
      %v3014 = vsel %vm2982, %v2981, %v1820
      %vm3015 = vcmask 228352
      %v3016 = vsel %vm3015, %v2983, %v1870
      %v3017 = vsel %vm3015, %v2984, %v1872
      %v3018 = vsel %vm3015, %v2985, %v1874
      %v3019 = vsel %vm3015, %v2986, %v1876
      %v3020 = vsel %vm3015, %v2987, %v1878
      %v3021 = vsel %vm3015, %v2988, %v1880
      %v3022 = vsel %vm3015, %v2989, %v1882
      %v3023 = vsel %vm3015, %v2990, %v1884
      %v3024 = vsel %vm3015, %v2991, %v1886
      %v3025 = vsel %vm3015, %v2992, %v1888
      %v3026 = vsel %vm3015, %v2993, %v1890
      %v3027 = vsel %vm3015, %v2994, %v1892
      %v3028 = vsel %vm3015, %v2995, %v1894
      %v3029 = vsel %vm3015, %v2996, %v1896
      %v3030 = vsel %vm3015, %v2997, %v1898
      %v3031 = vsel %vm3015, %v2998, %v1900
      %v3032 = vsel %vm3015, %v2999, %v1902
      %v3033 = vsel %vm3015, %v3000, %v1904
      %v3034 = vsel %vm3015, %v3001, %v1906
      %v3035 = vsel %vm3015, %v3002, %v1908
      %v3036 = vsel %vm3015, %v3003, %v1910
      %v3037 = vsel %vm3015, %v3004, %v1912
      %v3038 = vsel %vm3015, %v3005, %v1914
      %v3039 = vsel %vm3015, %v3006, %v1916
      %v3040 = vsel %vm3015, %v3007, %v1918
      %v3041 = vsel %vm3015, %v3008, %v1920
      %v3042 = vsel %vm3015, %v3009, %v1922
      %v3043 = vsel %vm3015, %v3010, %v1924
      %v3044 = vsel %vm3015, %v3011, %v1926
      %v3045 = vsel %vm3015, %v3012, %v1928
      %v3046 = vsel %vm3015, %v3013, %v1930
      %v3047 = vsel %vm3015, %v3014, %v1932
      %vm3048 = vcmask 261120
      %v3049 = vsel %vm3048, %v3016, %v1978
      %v3050 = vsel %vm3048, %v3017, %v1980
      %v3051 = vsel %vm3048, %v3018, %v1982
      %v3052 = vsel %vm3048, %v3019, %v1984
      %v3053 = vsel %vm3048, %v3020, %v1986
      %v3054 = vsel %vm3048, %v3021, %v1988
      %v3055 = vsel %vm3048, %v3022, %v1990
      %v3056 = vsel %vm3048, %v3023, %v1992
      %v3057 = vsel %vm3048, %v3024, %v1994
      %v3058 = vsel %vm3048, %v3025, %v1996
      %v3059 = vsel %vm3048, %v3026, %v1998
      %v3060 = vsel %vm3048, %v3027, %v2000
      %v3061 = vsel %vm3048, %v3028, %v2002
      %v3062 = vsel %vm3048, %v3029, %v2004
      %v3063 = vsel %vm3048, %v3030, %v2006
      %v3064 = vsel %vm3048, %v3031, %v2008
      %v3065 = vsel %vm3048, %v3032, %v2010
      %v3066 = vsel %vm3048, %v3033, %v2012
      %v3067 = vsel %vm3048, %v3034, %v2014
      %v3068 = vsel %vm3048, %v3035, %v2016
      %v3069 = vsel %vm3048, %v3036, %v2018
      %v3070 = vsel %vm3048, %v3037, %v2020
      %v3071 = vsel %vm3048, %v3038, %v2022
      %v3072 = vsel %vm3048, %v3039, %v2024
      %v3073 = vsel %vm3048, %v3040, %v2026
      %v3074 = vsel %vm3048, %v3041, %v2028
      %v3075 = vsel %vm3048, %v3042, %v2030
      %v3076 = vsel %vm3048, %v3043, %v2032
      %v3077 = vsel %vm3048, %v3044, %v2034
      %v3078 = vsel %vm3048, %v3045, %v2036
      %v3079 = vsel %vm3048, %v3046, %v2038
      %v3080 = vsel %vm3048, %v3047, %v2040
      %vm3081 = vcmask 293888
      %v3082 = vsel %vm3081, %v3049, %v2082
      %v3083 = vsel %vm3081, %v3050, %v2084
      %v3084 = vsel %vm3081, %v3051, %v2086
      %v3085 = vsel %vm3081, %v3052, %v2088
      %v3086 = vsel %vm3081, %v3053, %v2090
      %v3087 = vsel %vm3081, %v3054, %v2092
      %v3088 = vsel %vm3081, %v3055, %v2094
      %v3089 = vsel %vm3081, %v3056, %v2096
      %v3090 = vsel %vm3081, %v3057, %v2098
      %v3091 = vsel %vm3081, %v3058, %v2100
      %v3092 = vsel %vm3081, %v3059, %v2102
      %v3093 = vsel %vm3081, %v3060, %v2104
      %v3094 = vsel %vm3081, %v3061, %v2106
      %v3095 = vsel %vm3081, %v3062, %v2108
      %v3096 = vsel %vm3081, %v3063, %v2110
      %v3097 = vsel %vm3081, %v3064, %v2112
      %v3098 = vsel %vm3081, %v3065, %v2114
      %v3099 = vsel %vm3081, %v3066, %v2116
      %v3100 = vsel %vm3081, %v3067, %v2118
      %v3101 = vsel %vm3081, %v3068, %v2120
      %v3102 = vsel %vm3081, %v3069, %v2122
      %v3103 = vsel %vm3081, %v3070, %v2124
      %v3104 = vsel %vm3081, %v3071, %v2126
      %v3105 = vsel %vm3081, %v3072, %v2128
      %v3106 = vsel %vm3081, %v3073, %v2130
      %v3107 = vsel %vm3081, %v3074, %v2132
      %v3108 = vsel %vm3081, %v3075, %v2134
      %v3109 = vsel %vm3081, %v3076, %v2136
      %v3110 = vsel %vm3081, %v3077, %v2138
      %v3111 = vsel %vm3081, %v3078, %v2140
      %v3112 = vsel %vm3081, %v3079, %v2142
      %v3113 = vsel %vm3081, %v3080, %v2144
      %vm3114 = vcmask 326656
      %v3115 = vsel %vm3114, %v3082, %v2210
      %v3116 = vsel %vm3114, %v3083, %v2212
      %v3117 = vsel %vm3114, %v3084, %v2214
      %v3118 = vsel %vm3114, %v3085, %v2216
      %v3119 = vsel %vm3114, %v3086, %v2218
      %v3120 = vsel %vm3114, %v3087, %v2220
      %v3121 = vsel %vm3114, %v3088, %v2222
      %v3122 = vsel %vm3114, %v3089, %v2224
      %v3123 = vsel %vm3114, %v3090, %v2226
      %v3124 = vsel %vm3114, %v3091, %v2228
      %v3125 = vsel %vm3114, %v3092, %v2230
      %v3126 = vsel %vm3114, %v3093, %v2232
      %v3127 = vsel %vm3114, %v3094, %v2234
      %v3128 = vsel %vm3114, %v3095, %v2236
      %v3129 = vsel %vm3114, %v3096, %v2238
      %v3130 = vsel %vm3114, %v3097, %v2240
      %v3131 = vsel %vm3114, %v3098, %v2242
      %v3132 = vsel %vm3114, %v3099, %v2244
      %v3133 = vsel %vm3114, %v3100, %v2246
      %v3134 = vsel %vm3114, %v3101, %v2248
      %v3135 = vsel %vm3114, %v3102, %v2250
      %v3136 = vsel %vm3114, %v3103, %v2252
      %v3137 = vsel %vm3114, %v3104, %v2254
      %v3138 = vsel %vm3114, %v3105, %v2256
      %v3139 = vsel %vm3114, %v3106, %v2258
      %v3140 = vsel %vm3114, %v3107, %v2260
      %v3141 = vsel %vm3114, %v3108, %v2262
      %v3142 = vsel %vm3114, %v3109, %v2264
      %v3143 = vsel %vm3114, %v3110, %v2266
      %v3144 = vsel %vm3114, %v3111, %v2268
      %v3145 = vsel %vm3114, %v3112, %v2270
      %v3146 = vsel %vm3114, %v3113, %v2272
      %vm3147 = vcmask 359424
      %v3148 = vsel %vm3147, %v3115, %v2330
      %v3149 = vsel %vm3147, %v3116, %v2332
      %v3150 = vsel %vm3147, %v3117, %v2334
      %v3151 = vsel %vm3147, %v3118, %v2336
      %v3152 = vsel %vm3147, %v3119, %v2338
      %v3153 = vsel %vm3147, %v3120, %v2340
      %v3154 = vsel %vm3147, %v3121, %v2342
      %v3155 = vsel %vm3147, %v3122, %v2344
      %v3156 = vsel %vm3147, %v3123, %v2346
      %v3157 = vsel %vm3147, %v3124, %v2348
      %v3158 = vsel %vm3147, %v3125, %v2350
      %v3159 = vsel %vm3147, %v3126, %v2352
      %v3160 = vsel %vm3147, %v3127, %v2354
      %v3161 = vsel %vm3147, %v3128, %v2356
      %v3162 = vsel %vm3147, %v3129, %v2358
      %v3163 = vsel %vm3147, %v3130, %v2360
      %v3164 = vsel %vm3147, %v3131, %v2362
      %v3165 = vsel %vm3147, %v3132, %v2364
      %v3166 = vsel %vm3147, %v3133, %v2366
      %v3167 = vsel %vm3147, %v3134, %v2368
      %v3168 = vsel %vm3147, %v3135, %v2370
      %v3169 = vsel %vm3147, %v3136, %v2372
      %v3170 = vsel %vm3147, %v3137, %v2374
      %v3171 = vsel %vm3147, %v3138, %v2376
      %v3172 = vsel %vm3147, %v3139, %v2378
      %v3173 = vsel %vm3147, %v3140, %v2380
      %v3174 = vsel %vm3147, %v3141, %v2382
      %v3175 = vsel %vm3147, %v3142, %v2384
      %v3176 = vsel %vm3147, %v3143, %v2386
      %v3177 = vsel %vm3147, %v3144, %v2388
      %v3178 = vsel %vm3147, %v3145, %v2390
      %v3179 = vsel %vm3147, %v3146, %v2392
      %vm3180 = vcmask 392192
      %v3181 = vsel %vm3180, %v3148, %v2427
      %v3182 = vsel %vm3180, %v3149, %v2429
      %v3183 = vsel %vm3180, %v3150, %v2431
      %v3184 = vsel %vm3180, %v3151, %v2433
      %v3185 = vsel %vm3180, %v3152, %v2435
      %v3186 = vsel %vm3180, %v3153, %v2437
      %v3187 = vsel %vm3180, %v3154, %v2439
      %v3188 = vsel %vm3180, %v3155, %v2441
      %v3189 = vsel %vm3180, %v3156, %v2443
      %v3190 = vsel %vm3180, %v3157, %v2445
      %v3191 = vsel %vm3180, %v3158, %v2447
      %v3192 = vsel %vm3180, %v3159, %v2449
      %v3193 = vsel %vm3180, %v3160, %v2451
      %v3194 = vsel %vm3180, %v3161, %v2453
      %v3195 = vsel %vm3180, %v3162, %v2455
      %v3196 = vsel %vm3180, %v3163, %v2457
      %v3197 = vsel %vm3180, %v3164, %v2459
      %v3198 = vsel %vm3180, %v3165, %v2461
      %v3199 = vsel %vm3180, %v3166, %v2463
      %v3200 = vsel %vm3180, %v3167, %v2465
      %v3201 = vsel %vm3180, %v3168, %v2467
      %v3202 = vsel %vm3180, %v3169, %v2469
      %v3203 = vsel %vm3180, %v3170, %v2471
      %v3204 = vsel %vm3180, %v3171, %v2473
      %v3205 = vsel %vm3180, %v3172, %v2475
      %v3206 = vsel %vm3180, %v3173, %v2477
      %v3207 = vsel %vm3180, %v3174, %v2479
      %v3208 = vsel %vm3180, %v3175, %v2481
      %v3209 = vsel %vm3180, %v3176, %v2483
      %v3210 = vsel %vm3180, %v3177, %v2485
      %v3211 = vsel %vm3180, %v3178, %v2487
      %v3212 = vsel %vm3180, %v3179, %v2489
      %vm3213 = vcmask 424960
      %v3214 = vsel %vm3213, %v3181, %v2527
      %v3215 = vsel %vm3213, %v3182, %v2529
      %v3216 = vsel %vm3213, %v3183, %v2531
      %v3217 = vsel %vm3213, %v3184, %v2533
      %v3218 = vsel %vm3213, %v3185, %v2535
      %v3219 = vsel %vm3213, %v3186, %v2537
      %v3220 = vsel %vm3213, %v3187, %v2539
      %v3221 = vsel %vm3213, %v3188, %v2541
      %v3222 = vsel %vm3213, %v3189, %v2543
      %v3223 = vsel %vm3213, %v3190, %v2545
      %v3224 = vsel %vm3213, %v3191, %v2547
      %v3225 = vsel %vm3213, %v3192, %v2549
      %v3226 = vsel %vm3213, %v3193, %v2551
      %v3227 = vsel %vm3213, %v3194, %v2553
      %v3228 = vsel %vm3213, %v3195, %v2555
      %v3229 = vsel %vm3213, %v3196, %v2557
      %v3230 = vsel %vm3213, %v3197, %v2559
      %v3231 = vsel %vm3213, %v3198, %v2561
      %v3232 = vsel %vm3213, %v3199, %v2563
      %v3233 = vsel %vm3213, %v3200, %v2565
      %v3234 = vsel %vm3213, %v3201, %v2567
      %v3235 = vsel %vm3213, %v3202, %v2569
      %v3236 = vsel %vm3213, %v3203, %v2571
      %v3237 = vsel %vm3213, %v3204, %v2573
      %v3238 = vsel %vm3213, %v3205, %v2575
      %v3239 = vsel %vm3213, %v3206, %v2577
      %v3240 = vsel %vm3213, %v3207, %v2579
      %v3241 = vsel %vm3213, %v3208, %v2581
      %v3242 = vsel %vm3213, %v3209, %v2583
      %v3243 = vsel %vm3213, %v3210, %v2585
      %v3244 = vsel %vm3213, %v3211, %v2587
      %v3245 = vsel %vm3213, %v3212, %v2589
      %vm3246 = vcmask 457728
      %v3247 = vsel %vm3246, %v3214, %v2626
      %v3248 = vsel %vm3246, %v3215, %v2628
      %v3249 = vsel %vm3246, %v3216, %v2630
      %v3250 = vsel %vm3246, %v3217, %v2632
      %v3251 = vsel %vm3246, %v3218, %v2634
      %v3252 = vsel %vm3246, %v3219, %v2636
      %v3253 = vsel %vm3246, %v3220, %v2638
      %v3254 = vsel %vm3246, %v3221, %v2640
      %v3255 = vsel %vm3246, %v3222, %v2642
      %v3256 = vsel %vm3246, %v3223, %v2644
      %v3257 = vsel %vm3246, %v3224, %v2646
      %v3258 = vsel %vm3246, %v3225, %v2648
      %v3259 = vsel %vm3246, %v3226, %v2650
      %v3260 = vsel %vm3246, %v3227, %v2652
      %v3261 = vsel %vm3246, %v3228, %v2654
      %v3262 = vsel %vm3246, %v3229, %v2656
      %v3263 = vsel %vm3246, %v3230, %v2658
      %v3264 = vsel %vm3246, %v3231, %v2660
      %v3265 = vsel %vm3246, %v3232, %v2662
      %v3266 = vsel %vm3246, %v3233, %v2664
      %v3267 = vsel %vm3246, %v3234, %v2666
      %v3268 = vsel %vm3246, %v3235, %v2668
      %v3269 = vsel %vm3246, %v3236, %v2670
      %v3270 = vsel %vm3246, %v3237, %v2672
      %v3271 = vsel %vm3246, %v3238, %v2674
      %v3272 = vsel %vm3246, %v3239, %v2676
      %v3273 = vsel %vm3246, %v3240, %v2678
      %v3274 = vsel %vm3246, %v3241, %v2680
      %v3275 = vsel %vm3246, %v3242, %v2682
      %v3276 = vsel %vm3246, %v3243, %v2684
      %v3277 = vsel %vm3246, %v3244, %v2686
      %v3278 = vsel %vm3246, %v3245, %v2688
      %vm3279 = vcmask 490496
      %v3280 = vsel %vm3279, %v3247, %v2723
      %v3281 = vsel %vm3279, %v3248, %v2725
      %v3282 = vsel %vm3279, %v3249, %v2727
      %v3283 = vsel %vm3279, %v3250, %v2729
      %v3284 = vsel %vm3279, %v3251, %v2731
      %v3285 = vsel %vm3279, %v3252, %v2733
      %v3286 = vsel %vm3279, %v3253, %v2735
      %v3287 = vsel %vm3279, %v3254, %v2737
      %v3288 = vsel %vm3279, %v3255, %v2739
      %v3289 = vsel %vm3279, %v3256, %v2741
      %v3290 = vsel %vm3279, %v3257, %v2743
      %v3291 = vsel %vm3279, %v3258, %v2745
      %v3292 = vsel %vm3279, %v3259, %v2747
      %v3293 = vsel %vm3279, %v3260, %v2749
      %v3294 = vsel %vm3279, %v3261, %v2751
      %v3295 = vsel %vm3279, %v3262, %v2753
      %v3296 = vsel %vm3279, %v3263, %v2755
      %v3297 = vsel %vm3279, %v3264, %v2757
      %v3298 = vsel %vm3279, %v3265, %v2759
      %v3299 = vsel %vm3279, %v3266, %v2761
      %v3300 = vsel %vm3279, %v3267, %v2763
      %v3301 = vsel %vm3279, %v3268, %v2765
      %v3302 = vsel %vm3279, %v3269, %v2767
      %v3303 = vsel %vm3279, %v3270, %v2769
      %v3304 = vsel %vm3279, %v3271, %v2771
      %v3305 = vsel %vm3279, %v3272, %v2773
      %v3306 = vsel %vm3279, %v3273, %v2775
      %v3307 = vsel %vm3279, %v3274, %v2777
      %v3308 = vsel %vm3279, %v3275, %v2779
      %v3309 = vsel %vm3279, %v3276, %v2781
      %v3310 = vsel %vm3279, %v3277, %v2783
      %v3311 = vsel %vm3279, %v3278, %v2785
      %v3313 = vrot.slane %v961, 1
      %v3314 = vrot.slane %v962, 1
      %v3315 = vsel %vm1047, %v3313, %v3314
      %3316 = vrot.lane.b32.xlu0 %v1079, 4
      %v3317 = vpop.permute.xlu0 %3316
      %3318 = vrot.lane.b32.xlu0 %v1082, 4
      %v3319 = vpop.permute.xlu0 %3318
      %3320 = vrot.lane.b32.xlu0 %v1085, 4
      %v3321 = vpop.permute.xlu0 %3320
      %3322 = vrot.lane.b32.xlu0 %v1088, 4
      %v3323 = vpop.permute.xlu0 %3322
      %3324 = vrot.lane.b32.xlu0 %v1091, 4
      %v3325 = vpop.permute.xlu0 %3324
      %3326 = vrot.lane.b32.xlu0 %v1094, 4
      %v3327 = vpop.permute.xlu0 %3326
      %3328 = vrot.lane.b32.xlu0 %v1542, 4
      %v3329 = vpop.permute.xlu0 %3328
      %3330 = vrot.lane.b32.xlu0 %v1541, 4
      %v3331 = vpop.permute.xlu0 %3330
      %3332 = vrot.lane.b32.xlu0 %v1862, 4
      %v3333 = vpop.permute.xlu0 %3332
      %3334 = vrot.lane.b32.xlu0 %v1861, 4
      %v3335 = vpop.permute.xlu0 %3334
      %3336 = vrot.lane.b32.xlu0 %v1103, 4
      %v3337 = vpop.permute.xlu0 %3336
      %3338 = vrot.lane.b32.xlu0 %v1106, 4
      %v3339 = vpop.permute.xlu0 %3338
      %3340 = vrot.lane.b32.xlu0 %v1109, 4
      %v3341 = vpop.permute.xlu0 %3340
      %3342 = vrot.lane.b32.xlu0 %v1112, 4
      %v3343 = vpop.permute.xlu0 %3342
      %3344 = vrot.lane.b32.xlu0 %v1115, 4
      %v3345 = vpop.permute.xlu0 %3344
      %3346 = vrot.lane.b32.xlu0 %v1118, 4
      %v3347 = vpop.permute.xlu0 %3346
      %3348 = vrot.lane.b32.xlu0 %v1545, 4
      %v3349 = vpop.permute.xlu0 %3348
      %3350 = vrot.lane.b32.xlu0 %v1544, 4
      %v3351 = vpop.permute.xlu0 %3350
      %3352 = vrot.lane.b32.xlu0 %v1865, 4
      %v3353 = vpop.permute.xlu0 %3352
      %3354 = vrot.lane.b32.xlu0 %v1864, 4
      %v3355 = vpop.permute.xlu0 %3354
      %3356 = vrot.lane.b32.xlu0 %v1127, 4
      %v3357 = vpop.permute.xlu0 %3356
      %3358 = vrot.lane.b32.xlu0 %v1130, 4
      %v3359 = vpop.permute.xlu0 %3358
      %3360 = vrot.lane.b32.xlu0 %v1133, 4
      %v3361 = vpop.permute.xlu0 %3360
      %3362 = vrot.lane.b32.xlu0 %v1136, 4
      %v3363 = vpop.permute.xlu0 %3362
      %3364 = vrot.lane.b32.xlu0 %v1139, 4
      %v3365 = vpop.permute.xlu0 %3364
      %3366 = vrot.lane.b32.xlu0 %v1142, 4
      %v3367 = vpop.permute.xlu0 %3366
      %3368 = vrot.lane.b32.xlu0 %v1548, 4
      %v3369 = vpop.permute.xlu0 %3368
      %3370 = vrot.lane.b32.xlu0 %v1547, 4
      %v3371 = vpop.permute.xlu0 %3370
      %3372 = vrot.lane.b32.xlu0 %v1868, 4
      %v3373 = vpop.permute.xlu0 %3372
      %3374 = vrot.lane.b32.xlu0 %v1867, 4
      %v3375 = vpop.permute.xlu0 %3374
      %3376 = vrot.lane.b32.xlu0 %v2193, 4
      %v3377 = vpop.permute.xlu0 %3376
      %3378 = vrot.lane.b32.xlu0 %v2192, 4
      %v3379 = vpop.permute.xlu0 %3378
      %3380 = vrot.lane.b32.xlu0 %v2196, 4
      %v3381 = vpop.permute.xlu0 %3380
      %3382 = vrot.lane.b32.xlu0 %v2195, 4
      %v3383 = vpop.permute.xlu0 %3382
      %3384 = vrot.lane.b32.xlu0 %v2199, 4
      %v3385 = vpop.permute.xlu0 %3384
      %3386 = vrot.lane.b32.xlu0 %v2198, 4
      %v3387 = vpop.permute.xlu0 %3386
      %3388 = vrot.lane.b32.xlu0 %v2202, 4
      %v3389 = vpop.permute.xlu0 %3388
      %3390 = vrot.lane.b32.xlu0 %v2201, 4
      %v3391 = vpop.permute.xlu0 %3390
      %3392 = vrot.lane.b32.xlu0 %v2205, 4
      %v3393 = vpop.permute.xlu0 %3392
      %3394 = vrot.lane.b32.xlu0 %v2204, 4
      %v3395 = vpop.permute.xlu0 %3394
      %3396 = vrot.lane.b32.xlu0 %v2208, 4
      %v3397 = vpop.permute.xlu0 %3396
      %3398 = vrot.lane.b32.xlu0 %v2207, 4
      %v3399 = vpop.permute.xlu0 %3398
      %3400 = vrot.lane.b32.xlu0 %v2525, 4
      %v3401 = vpop.permute.xlu0 %3400
      %3402 = vrot.lane.b32.xlu0 %v2524, 4
      %v3403 = vpop.permute.xlu0 %3402
      %3404 = vrot.lane.b32.xlu0 %v3315, 4
      %v3405 = vpop.permute.xlu0 %3404
      %3406 = vrot.lane.b32.xlu0 %v3314, 4
      %v3407 = vpop.permute.xlu0 %3406
      %v3462 = vrot.slane %v903, 7
      %v3463 = vrot.slane %v905, 7
      %v3464 = vrot.slane %v907, 7
      %v3465 = vrot.slane %v909, 7
      %v3466 = vrot.slane %v911, 7
      %v3467 = vrot.slane %v913, 7
      %v3468 = vrot.slane %v915, 7
      %v3469 = vrot.slane %v917, 7
      %v3470 = vrot.slane %v923, 7
      %v3471 = vrot.slane %v925, 7
      %v3472 = vrot.slane %v927, 7
      %v3473 = vrot.slane %v929, 7
      %v3474 = vrot.slane %v931, 7
      %v3475 = vrot.slane %v933, 7
      %v3476 = vrot.slane %v935, 7
      %v3477 = vrot.slane %v937, 7
      %v3478 = vrot.slane %v943, 7
      %v3479 = vrot.slane %v945, 7
      %v3480 = vrot.slane %v947, 7
      %v3481 = vrot.slane %v949, 7
      %v3482 = vrot.slane %v951, 7
      %v3483 = vrot.slane %v953, 7
      %v3484 = vrot.slane %v955, 7
      %v3485 = vrot.slane %v957, 7
      %v3486 = vrot.slane %v963, 7
      %v3487 = vrot.slane %v965, 7
      %v3488 = vrot.slane %v967, 7
      %v3489 = vrot.slane %v969, 7
      %v3490 = vrot.slane %v971, 7
      %v3491 = vrot.slane %v973, 7
      %v3492 = vrot.slane %v975, 7
      %v3493 = vrot.slane %v977, 7
      %3494 = vrot.lane.b32.xlu0 %v3462, 8
      %v3495 = vpop.permute.xlu0 %3494
      %3496 = vrot.lane.b32.xlu0 %v3463, 8
      %v3497 = vpop.permute.xlu0 %3496
      %3498 = vrot.lane.b32.xlu0 %v3464, 8
      %v3499 = vpop.permute.xlu0 %3498
      %3500 = vrot.lane.b32.xlu0 %v3465, 8
      %v3501 = vpop.permute.xlu0 %3500
      %3502 = vrot.lane.b32.xlu0 %v3466, 8
      %v3503 = vpop.permute.xlu0 %3502
      %3504 = vrot.lane.b32.xlu0 %v3467, 8
      %v3505 = vpop.permute.xlu0 %3504
      %3506 = vrot.lane.b32.xlu0 %v3468, 8
      %v3507 = vpop.permute.xlu0 %3506
      %3508 = vrot.lane.b32.xlu0 %v3469, 8
      %v3509 = vpop.permute.xlu0 %3508
      %3510 = vrot.lane.b32.xlu0 %v3470, 8
      %v3511 = vpop.permute.xlu0 %3510
      %3512 = vrot.lane.b32.xlu0 %v3471, 8
      %v3513 = vpop.permute.xlu0 %3512
      %3514 = vrot.lane.b32.xlu0 %v3472, 8
      %v3515 = vpop.permute.xlu0 %3514
      %3516 = vrot.lane.b32.xlu0 %v3473, 8
      %v3517 = vpop.permute.xlu0 %3516
      %3518 = vrot.lane.b32.xlu0 %v3474, 8
      %v3519 = vpop.permute.xlu0 %3518
      %3520 = vrot.lane.b32.xlu0 %v3475, 8
      %v3521 = vpop.permute.xlu0 %3520
      %3522 = vrot.lane.b32.xlu0 %v3476, 8
      %v3523 = vpop.permute.xlu0 %3522
      %3524 = vrot.lane.b32.xlu0 %v3477, 8
      %v3525 = vpop.permute.xlu0 %3524
      %3526 = vrot.lane.b32.xlu0 %v3478, 8
      %v3527 = vpop.permute.xlu0 %3526
      %3528 = vrot.lane.b32.xlu0 %v3479, 8
      %v3529 = vpop.permute.xlu0 %3528
      %3530 = vrot.lane.b32.xlu0 %v3480, 8
      %v3531 = vpop.permute.xlu0 %3530
      %3532 = vrot.lane.b32.xlu0 %v3481, 8
      %v3533 = vpop.permute.xlu0 %3532
      %3534 = vrot.lane.b32.xlu0 %v3482, 8
      %v3535 = vpop.permute.xlu0 %3534
      %3536 = vrot.lane.b32.xlu0 %v3483, 8
      %v3537 = vpop.permute.xlu0 %3536
      %3538 = vrot.lane.b32.xlu0 %v3484, 8
      %v3539 = vpop.permute.xlu0 %3538
      %3540 = vrot.lane.b32.xlu0 %v3485, 8
      %v3541 = vpop.permute.xlu0 %3540
      %3542 = vrot.lane.b32.xlu0 %v3486, 8
      %v3543 = vpop.permute.xlu0 %3542
      %3544 = vrot.lane.b32.xlu0 %v3487, 8
      %v3545 = vpop.permute.xlu0 %3544
      %3546 = vrot.lane.b32.xlu0 %v3488, 8
      %v3547 = vpop.permute.xlu0 %3546
      %3548 = vrot.lane.b32.xlu0 %v3489, 8
      %v3549 = vpop.permute.xlu0 %3548
      %3550 = vrot.lane.b32.xlu0 %v3490, 8
      %v3551 = vpop.permute.xlu0 %3550
      %3552 = vrot.lane.b32.xlu0 %v3491, 8
      %v3553 = vpop.permute.xlu0 %3552
      %3554 = vrot.lane.b32.xlu0 %v3492, 8
      %v3555 = vpop.permute.xlu0 %3554
      %3556 = vrot.lane.b32.xlu0 %v3493, 8
      %v3557 = vpop.permute.xlu0 %3556
      %3598 = vrot.lane.b32.xlu0 %v903, 12
      %v3599 = vpop.permute.xlu0 %3598
      %3600 = vrot.lane.b32.xlu0 %v904, 12
      %v3601 = vpop.permute.xlu0 %3600
      %3602 = vrot.lane.b32.xlu0 %v906, 12
      %v3603 = vpop.permute.xlu0 %3602
      %3604 = vrot.lane.b32.xlu0 %v908, 12
      %v3605 = vpop.permute.xlu0 %3604
      %3606 = vrot.lane.b32.xlu0 %v910, 12
      %v3607 = vpop.permute.xlu0 %3606
      %3608 = vrot.lane.b32.xlu0 %v912, 12
      %v3609 = vpop.permute.xlu0 %3608
      %3610 = vrot.lane.b32.xlu0 %v914, 12
      %v3611 = vpop.permute.xlu0 %3610
      %3612 = vrot.lane.b32.xlu0 %v916, 12
      %v3613 = vpop.permute.xlu0 %3612
      %3614 = vrot.lane.b32.xlu0 %v918, 12
      %v3615 = vpop.permute.xlu0 %3614
      %3616 = vrot.lane.b32.xlu0 %v923, 12
      %v3617 = vpop.permute.xlu0 %3616
      %3618 = vrot.lane.b32.xlu0 %v924, 12
      %v3619 = vpop.permute.xlu0 %3618
      %3620 = vrot.lane.b32.xlu0 %v926, 12
      %v3621 = vpop.permute.xlu0 %3620
      %3622 = vrot.lane.b32.xlu0 %v928, 12
      %v3623 = vpop.permute.xlu0 %3622
      %3624 = vrot.lane.b32.xlu0 %v930, 12
      %v3625 = vpop.permute.xlu0 %3624
      %3626 = vrot.lane.b32.xlu0 %v932, 12
      %v3627 = vpop.permute.xlu0 %3626
      %3628 = vrot.lane.b32.xlu0 %v934, 12
      %v3629 = vpop.permute.xlu0 %3628
      %3630 = vrot.lane.b32.xlu0 %v936, 12
      %v3631 = vpop.permute.xlu0 %3630
      %3632 = vrot.lane.b32.xlu0 %v938, 12
      %v3633 = vpop.permute.xlu0 %3632
      %3634 = vrot.lane.b32.xlu0 %v943, 12
      %v3635 = vpop.permute.xlu0 %3634
      %3636 = vrot.lane.b32.xlu0 %v944, 12
      %v3637 = vpop.permute.xlu0 %3636
      %3638 = vrot.lane.b32.xlu0 %v945, 12
      %v3639 = vpop.permute.xlu0 %3638
      %3640 = vrot.lane.b32.xlu0 %v946, 12
      %v3641 = vpop.permute.xlu0 %3640
      %3642 = vrot.lane.b32.xlu0 %v947, 12
      %v3643 = vpop.permute.xlu0 %3642
      %3644 = vrot.lane.b32.xlu0 %v948, 12
      %v3645 = vpop.permute.xlu0 %3644
      %3646 = vrot.lane.b32.xlu0 %v949, 12
      %v3647 = vpop.permute.xlu0 %3646
      %3648 = vrot.lane.b32.xlu0 %v950, 12
      %v3649 = vpop.permute.xlu0 %3648
      %3650 = vrot.lane.b32.xlu0 %v951, 12
      %v3651 = vpop.permute.xlu0 %3650
      %3652 = vrot.lane.b32.xlu0 %v952, 12
      %v3653 = vpop.permute.xlu0 %3652
      %3654 = vrot.lane.b32.xlu0 %v953, 12
      %v3655 = vpop.permute.xlu0 %3654
      %3656 = vrot.lane.b32.xlu0 %v954, 12
      %v3657 = vpop.permute.xlu0 %3656
      %3658 = vrot.lane.b32.xlu0 %v955, 12
      %v3659 = vpop.permute.xlu0 %3658
      %3660 = vrot.lane.b32.xlu0 %v956, 12
      %v3661 = vpop.permute.xlu0 %3660
      %3662 = vrot.lane.b32.xlu0 %v957, 12
      %v3663 = vpop.permute.xlu0 %3662
      %3664 = vrot.lane.b32.xlu0 %v958, 12
      %v3665 = vpop.permute.xlu0 %3664
      %3666 = vrot.lane.b32.xlu0 %v963, 12
      %v3667 = vpop.permute.xlu0 %3666
      %3668 = vrot.lane.b32.xlu0 %v964, 12
      %v3669 = vpop.permute.xlu0 %3668
      %3670 = vrot.lane.b32.xlu0 %v965, 12
      %v3671 = vpop.permute.xlu0 %3670
      %3672 = vrot.lane.b32.xlu0 %v966, 12
      %v3673 = vpop.permute.xlu0 %3672
      %3674 = vrot.lane.b32.xlu0 %v967, 12
      %v3675 = vpop.permute.xlu0 %3674
      %3676 = vrot.lane.b32.xlu0 %v968, 12
      %v3677 = vpop.permute.xlu0 %3676
      %3678 = vrot.lane.b32.xlu0 %v969, 12
      %v3679 = vpop.permute.xlu0 %3678
      %3680 = vrot.lane.b32.xlu0 %v970, 12
      %v3681 = vpop.permute.xlu0 %3680
      %3682 = vrot.lane.b32.xlu0 %v971, 12
      %v3683 = vpop.permute.xlu0 %3682
      %3684 = vrot.lane.b32.xlu0 %v972, 12
      %v3685 = vpop.permute.xlu0 %3684
      %3686 = vrot.lane.b32.xlu0 %v973, 12
      %v3687 = vpop.permute.xlu0 %3686
      %3688 = vrot.lane.b32.xlu0 %v974, 12
      %v3689 = vpop.permute.xlu0 %3688
      %3690 = vrot.lane.b32.xlu0 %v975, 12
      %v3691 = vpop.permute.xlu0 %3690
      %3692 = vrot.lane.b32.xlu0 %v976, 12
      %v3693 = vpop.permute.xlu0 %3692
      %3694 = vrot.lane.b32.xlu0 %v977, 12
      %v3695 = vpop.permute.xlu0 %3694
      %3696 = vrot.lane.b32.xlu0 %v978, 12
      %v3697 = vpop.permute.xlu0 %3696
      %v3748 = vrot.slane %v963, 1
      %v3749 = vrot.slane %v964, 1
      %v3750 = vsel %vm1047, %v3748, %v3749
      %v3751 = vrot.slane %v965, 1
      %v3752 = vrot.slane %v966, 1
      %v3753 = vsel %vm1047, %v3751, %v3752
      %v3754 = vrot.slane %v967, 1
      %v3755 = vrot.slane %v968, 1
      %v3756 = vsel %vm1047, %v3754, %v3755
      %v3757 = vrot.slane %v969, 1
      %v3758 = vrot.slane %v970, 1
      %v3759 = vsel %vm1047, %v3757, %v3758
      %v3760 = vrot.slane %v971, 1
      %v3761 = vrot.slane %v972, 1
      %v3762 = vsel %vm1047, %v3760, %v3761
      %v3763 = vrot.slane %v973, 1
      %v3764 = vrot.slane %v974, 1
      %v3765 = vsel %vm1047, %v3763, %v3764
      %v3766 = vrot.slane %v975, 1
      %v3767 = vrot.slane %v976, 1
      %v3768 = vsel %vm1047, %v3766, %v3767
      %v3769 = vrot.slane %v977, 1
      %v3770 = vrot.slane %v978, 1
      %v3771 = vsel %vm1047, %v3769, %v3770
      %3772 = vrot.lane.b32.xlu0 %v1098, 16
      %v3773 = vpop.permute.xlu0 %3772
      %3774 = vrot.lane.b32.xlu0 %v1097, 16
      %v3775 = vpop.permute.xlu0 %3774
      %3776 = vrot.lane.b32.xlu0 %v1100, 16
      %v3777 = vpop.permute.xlu0 %3776
      %3778 = vrot.lane.b32.xlu0 %v1103, 16
      %v3779 = vpop.permute.xlu0 %3778
      %3780 = vrot.lane.b32.xlu0 %v1106, 16
      %v3781 = vpop.permute.xlu0 %3780
      %3782 = vrot.lane.b32.xlu0 %v1109, 16
      %v3783 = vpop.permute.xlu0 %3782
      %3784 = vrot.lane.b32.xlu0 %v1112, 16
      %v3785 = vpop.permute.xlu0 %3784
      %3786 = vrot.lane.b32.xlu0 %v1115, 16
      %v3787 = vpop.permute.xlu0 %3786
      %3788 = vrot.lane.b32.xlu0 %v1118, 16
      %v3789 = vpop.permute.xlu0 %3788
      %3790 = vrot.lane.b32.xlu0 %v1122, 16
      %v3791 = vpop.permute.xlu0 %3790
      %3792 = vrot.lane.b32.xlu0 %v1121, 16
      %v3793 = vpop.permute.xlu0 %3792
      %3794 = vrot.lane.b32.xlu0 %v1124, 16
      %v3795 = vpop.permute.xlu0 %3794
      %3796 = vrot.lane.b32.xlu0 %v1127, 16
      %v3797 = vpop.permute.xlu0 %3796
      %3798 = vrot.lane.b32.xlu0 %v1130, 16
      %v3799 = vpop.permute.xlu0 %3798
      %3800 = vrot.lane.b32.xlu0 %v1133, 16
      %v3801 = vpop.permute.xlu0 %3800
      %3802 = vrot.lane.b32.xlu0 %v1136, 16
      %v3803 = vpop.permute.xlu0 %3802
      %3804 = vrot.lane.b32.xlu0 %v1139, 16
      %v3805 = vpop.permute.xlu0 %3804
      %3806 = vrot.lane.b32.xlu0 %v1142, 16
      %v3807 = vpop.permute.xlu0 %3806
      %3808 = vrot.lane.b32.xlu0 %v2187, 16
      %v3809 = vpop.permute.xlu0 %3808
      %3810 = vrot.lane.b32.xlu0 %v2186, 16
      %v3811 = vpop.permute.xlu0 %3810
      %3812 = vrot.lane.b32.xlu0 %v2190, 16
      %v3813 = vpop.permute.xlu0 %3812
      %3814 = vrot.lane.b32.xlu0 %v2189, 16
      %v3815 = vpop.permute.xlu0 %3814
      %3816 = vrot.lane.b32.xlu0 %v2193, 16
      %v3817 = vpop.permute.xlu0 %3816
      %3818 = vrot.lane.b32.xlu0 %v2192, 16
      %v3819 = vpop.permute.xlu0 %3818
      %3820 = vrot.lane.b32.xlu0 %v2196, 16
      %v3821 = vpop.permute.xlu0 %3820
      %3822 = vrot.lane.b32.xlu0 %v2195, 16
      %v3823 = vpop.permute.xlu0 %3822
      %3824 = vrot.lane.b32.xlu0 %v2199, 16
      %v3825 = vpop.permute.xlu0 %3824
      %3826 = vrot.lane.b32.xlu0 %v2198, 16
      %v3827 = vpop.permute.xlu0 %3826
      %3828 = vrot.lane.b32.xlu0 %v2202, 16
      %v3829 = vpop.permute.xlu0 %3828
      %3830 = vrot.lane.b32.xlu0 %v2201, 16
      %v3831 = vpop.permute.xlu0 %3830
      %3832 = vrot.lane.b32.xlu0 %v2205, 16
      %v3833 = vpop.permute.xlu0 %3832
      %3834 = vrot.lane.b32.xlu0 %v2204, 16
      %v3835 = vpop.permute.xlu0 %3834
      %3836 = vrot.lane.b32.xlu0 %v2208, 16
      %v3837 = vpop.permute.xlu0 %3836
      %3838 = vrot.lane.b32.xlu0 %v2207, 16
      %v3839 = vpop.permute.xlu0 %3838
      %3840 = vrot.lane.b32.xlu0 %v3750, 16
      %v3841 = vpop.permute.xlu0 %3840
      %3842 = vrot.lane.b32.xlu0 %v3749, 16
      %v3843 = vpop.permute.xlu0 %3842
      %3844 = vrot.lane.b32.xlu0 %v3753, 16
      %v3845 = vpop.permute.xlu0 %3844
      %3846 = vrot.lane.b32.xlu0 %v3752, 16
      %v3847 = vpop.permute.xlu0 %3846
      %3848 = vrot.lane.b32.xlu0 %v3756, 16
      %v3849 = vpop.permute.xlu0 %3848
      %3850 = vrot.lane.b32.xlu0 %v3755, 16
      %v3851 = vpop.permute.xlu0 %3850
      %3852 = vrot.lane.b32.xlu0 %v3759, 16
      %v3853 = vpop.permute.xlu0 %3852
      %3854 = vrot.lane.b32.xlu0 %v3758, 16
      %v3855 = vpop.permute.xlu0 %3854
      %3856 = vrot.lane.b32.xlu0 %v3762, 16
      %v3857 = vpop.permute.xlu0 %3856
      %3858 = vrot.lane.b32.xlu0 %v3761, 16
      %v3859 = vpop.permute.xlu0 %3858
      %3860 = vrot.lane.b32.xlu0 %v3765, 16
      %v3861 = vpop.permute.xlu0 %3860
      %3862 = vrot.lane.b32.xlu0 %v3764, 16
      %v3863 = vpop.permute.xlu0 %3862
      %3864 = vrot.lane.b32.xlu0 %v3768, 16
      %v3865 = vpop.permute.xlu0 %3864
      %3866 = vrot.lane.b32.xlu0 %v3767, 16
      %v3867 = vpop.permute.xlu0 %3866
      %3868 = vrot.lane.b32.xlu0 %v3771, 16
      %v3869 = vpop.permute.xlu0 %3868
      %3870 = vrot.lane.b32.xlu0 %v3770, 16
      %v3871 = vpop.permute.xlu0 %3870
      %v3923 = vrot.slane %v919, 7
      %v3924 = vrot.slane %v939, 7
      %v3925 = vrot.slane %v959, 7
      %v3926 = vrot.slane %v979, 7
      %3927 = vrot.lane.b32.xlu0 %v3463, 20
      %v3928 = vpop.permute.xlu0 %3927
      %3929 = vrot.lane.b32.xlu0 %v3464, 20
      %v3930 = vpop.permute.xlu0 %3929
      %3931 = vrot.lane.b32.xlu0 %v3465, 20
      %v3932 = vpop.permute.xlu0 %3931
      %3933 = vrot.lane.b32.xlu0 %v3466, 20
      %v3934 = vpop.permute.xlu0 %3933
      %3935 = vrot.lane.b32.xlu0 %v3467, 20
      %v3936 = vpop.permute.xlu0 %3935
      %3937 = vrot.lane.b32.xlu0 %v3468, 20
      %v3938 = vpop.permute.xlu0 %3937
      %3939 = vrot.lane.b32.xlu0 %v3469, 20
      %v3940 = vpop.permute.xlu0 %3939
      %3941 = vrot.lane.b32.xlu0 %v3923, 20
      %v3942 = vpop.permute.xlu0 %3941
      %3943 = vrot.lane.b32.xlu0 %v3471, 20
      %v3944 = vpop.permute.xlu0 %3943
      %3945 = vrot.lane.b32.xlu0 %v3472, 20
      %v3946 = vpop.permute.xlu0 %3945
      %3947 = vrot.lane.b32.xlu0 %v3473, 20
      %v3948 = vpop.permute.xlu0 %3947
      %3949 = vrot.lane.b32.xlu0 %v3474, 20
      %v3950 = vpop.permute.xlu0 %3949
      %3951 = vrot.lane.b32.xlu0 %v3475, 20
      %v3952 = vpop.permute.xlu0 %3951
      %3953 = vrot.lane.b32.xlu0 %v3476, 20
      %v3954 = vpop.permute.xlu0 %3953
      %3955 = vrot.lane.b32.xlu0 %v3477, 20
      %v3956 = vpop.permute.xlu0 %3955
      %3957 = vrot.lane.b32.xlu0 %v3924, 20
      %v3958 = vpop.permute.xlu0 %3957
      %3959 = vrot.lane.b32.xlu0 %v3479, 20
      %v3960 = vpop.permute.xlu0 %3959
      %3961 = vrot.lane.b32.xlu0 %v3480, 20
      %v3962 = vpop.permute.xlu0 %3961
      %3963 = vrot.lane.b32.xlu0 %v3481, 20
      %v3964 = vpop.permute.xlu0 %3963
      %3965 = vrot.lane.b32.xlu0 %v3482, 20
      %v3966 = vpop.permute.xlu0 %3965
      %3967 = vrot.lane.b32.xlu0 %v3483, 20
      %v3968 = vpop.permute.xlu0 %3967
      %3969 = vrot.lane.b32.xlu0 %v3484, 20
      %v3970 = vpop.permute.xlu0 %3969
      %3971 = vrot.lane.b32.xlu0 %v3485, 20
      %v3972 = vpop.permute.xlu0 %3971
      %3973 = vrot.lane.b32.xlu0 %v3925, 20
      %v3974 = vpop.permute.xlu0 %3973
      %3975 = vrot.lane.b32.xlu0 %v3487, 20
      %v3976 = vpop.permute.xlu0 %3975
      %3977 = vrot.lane.b32.xlu0 %v3488, 20
      %v3978 = vpop.permute.xlu0 %3977
      %3979 = vrot.lane.b32.xlu0 %v3489, 20
      %v3980 = vpop.permute.xlu0 %3979
      %3981 = vrot.lane.b32.xlu0 %v3490, 20
      %v3982 = vpop.permute.xlu0 %3981
      %3983 = vrot.lane.b32.xlu0 %v3491, 20
      %v3984 = vpop.permute.xlu0 %3983
      %3985 = vrot.lane.b32.xlu0 %v3492, 20
      %v3986 = vpop.permute.xlu0 %3985
      %3987 = vrot.lane.b32.xlu0 %v3493, 20
      %v3988 = vpop.permute.xlu0 %3987
      %3989 = vrot.lane.b32.xlu0 %v3926, 20
      %v3990 = vpop.permute.xlu0 %3989
      %4024 = vrot.lane.b32.xlu0 %v905, 24
      %v4025 = vpop.permute.xlu0 %4024
      %4026 = vrot.lane.b32.xlu0 %v906, 24
      %v4027 = vpop.permute.xlu0 %4026
      %4028 = vrot.lane.b32.xlu0 %v908, 24
      %v4029 = vpop.permute.xlu0 %4028
      %4030 = vrot.lane.b32.xlu0 %v910, 24
      %v4031 = vpop.permute.xlu0 %4030
      %4032 = vrot.lane.b32.xlu0 %v912, 24
      %v4033 = vpop.permute.xlu0 %4032
      %4034 = vrot.lane.b32.xlu0 %v914, 24
      %v4035 = vpop.permute.xlu0 %4034
      %4036 = vrot.lane.b32.xlu0 %v916, 24
      %v4037 = vpop.permute.xlu0 %4036
      %4038 = vrot.lane.b32.xlu0 %v918, 24
      %v4039 = vpop.permute.xlu0 %4038
      %4040 = vrot.lane.b32.xlu0 %v920, 24
      %v4041 = vpop.permute.xlu0 %4040
      %4042 = vrot.lane.b32.xlu0 %v925, 24
      %v4043 = vpop.permute.xlu0 %4042
      %4044 = vrot.lane.b32.xlu0 %v926, 24
      %v4045 = vpop.permute.xlu0 %4044
      %4046 = vrot.lane.b32.xlu0 %v928, 24
      %v4047 = vpop.permute.xlu0 %4046
      %4048 = vrot.lane.b32.xlu0 %v930, 24
      %v4049 = vpop.permute.xlu0 %4048
      %4050 = vrot.lane.b32.xlu0 %v932, 24
      %v4051 = vpop.permute.xlu0 %4050
      %4052 = vrot.lane.b32.xlu0 %v934, 24
      %v4053 = vpop.permute.xlu0 %4052
      %4054 = vrot.lane.b32.xlu0 %v936, 24
      %v4055 = vpop.permute.xlu0 %4054
      %4056 = vrot.lane.b32.xlu0 %v938, 24
      %v4057 = vpop.permute.xlu0 %4056
      %4058 = vrot.lane.b32.xlu0 %v940, 24
      %v4059 = vpop.permute.xlu0 %4058
      %4060 = vrot.lane.b32.xlu0 %v945, 24
      %v4061 = vpop.permute.xlu0 %4060
      %4062 = vrot.lane.b32.xlu0 %v946, 24
      %v4063 = vpop.permute.xlu0 %4062
      %4064 = vrot.lane.b32.xlu0 %v947, 24
      %v4065 = vpop.permute.xlu0 %4064
      %4066 = vrot.lane.b32.xlu0 %v948, 24
      %v4067 = vpop.permute.xlu0 %4066
      %4068 = vrot.lane.b32.xlu0 %v949, 24
      %v4069 = vpop.permute.xlu0 %4068
      %4070 = vrot.lane.b32.xlu0 %v950, 24
      %v4071 = vpop.permute.xlu0 %4070
      %4072 = vrot.lane.b32.xlu0 %v951, 24
      %v4073 = vpop.permute.xlu0 %4072
      %4074 = vrot.lane.b32.xlu0 %v952, 24
      %v4075 = vpop.permute.xlu0 %4074
      %4076 = vrot.lane.b32.xlu0 %v953, 24
      %v4077 = vpop.permute.xlu0 %4076
      %4078 = vrot.lane.b32.xlu0 %v954, 24
      %v4079 = vpop.permute.xlu0 %4078
      %4080 = vrot.lane.b32.xlu0 %v955, 24
      %v4081 = vpop.permute.xlu0 %4080
      %4082 = vrot.lane.b32.xlu0 %v956, 24
      %v4083 = vpop.permute.xlu0 %4082
      %4084 = vrot.lane.b32.xlu0 %v957, 24
      %v4085 = vpop.permute.xlu0 %4084
      %4086 = vrot.lane.b32.xlu0 %v958, 24
      %v4087 = vpop.permute.xlu0 %4086
      %4088 = vrot.lane.b32.xlu0 %v959, 24
      %v4089 = vpop.permute.xlu0 %4088
      %4090 = vrot.lane.b32.xlu0 %v960, 24
      %v4091 = vpop.permute.xlu0 %4090
      %4092 = vrot.lane.b32.xlu0 %v965, 24
      %v4093 = vpop.permute.xlu0 %4092
      %4094 = vrot.lane.b32.xlu0 %v966, 24
      %v4095 = vpop.permute.xlu0 %4094
      %4096 = vrot.lane.b32.xlu0 %v967, 24
      %v4097 = vpop.permute.xlu0 %4096
      %4098 = vrot.lane.b32.xlu0 %v968, 24
      %v4099 = vpop.permute.xlu0 %4098
      %4100 = vrot.lane.b32.xlu0 %v969, 24
      %v4101 = vpop.permute.xlu0 %4100
      %4102 = vrot.lane.b32.xlu0 %v970, 24
      %v4103 = vpop.permute.xlu0 %4102
      %4104 = vrot.lane.b32.xlu0 %v971, 24
      %v4105 = vpop.permute.xlu0 %4104
      %4106 = vrot.lane.b32.xlu0 %v972, 24
      %v4107 = vpop.permute.xlu0 %4106
      %4108 = vrot.lane.b32.xlu0 %v973, 24
      %v4109 = vpop.permute.xlu0 %4108
      %4110 = vrot.lane.b32.xlu0 %v974, 24
      %v4111 = vpop.permute.xlu0 %4110
      %4112 = vrot.lane.b32.xlu0 %v975, 24
      %v4113 = vpop.permute.xlu0 %4112
      %4114 = vrot.lane.b32.xlu0 %v976, 24
      %v4115 = vpop.permute.xlu0 %4114
      %4116 = vrot.lane.b32.xlu0 %v977, 24
      %v4117 = vpop.permute.xlu0 %4116
      %4118 = vrot.lane.b32.xlu0 %v978, 24
      %v4119 = vpop.permute.xlu0 %4118
      %4120 = vrot.lane.b32.xlu0 %v979, 24
      %v4121 = vpop.permute.xlu0 %4120
      %4122 = vrot.lane.b32.xlu0 %v980, 24
      %v4123 = vpop.permute.xlu0 %4122
      %v4174 = vrot.slane %v979, 1
      %v4175 = vrot.slane %v980, 1
      %v4176 = vsel %vm1047, %v4174, %v4175
      %4177 = vrot.lane.b32.xlu0 %v1101, 28
      %v4178 = vpop.permute.xlu0 %4177
      %4179 = vrot.lane.b32.xlu0 %v1100, 28
      %v4180 = vpop.permute.xlu0 %4179
      %4181 = vrot.lane.b32.xlu0 %v1103, 28
      %v4182 = vpop.permute.xlu0 %4181
      %4183 = vrot.lane.b32.xlu0 %v1106, 28
      %v4184 = vpop.permute.xlu0 %4183
      %4185 = vrot.lane.b32.xlu0 %v1109, 28
      %v4186 = vpop.permute.xlu0 %4185
      %4187 = vrot.lane.b32.xlu0 %v1112, 28
      %v4188 = vpop.permute.xlu0 %4187
      %4189 = vrot.lane.b32.xlu0 %v1115, 28
      %v4190 = vpop.permute.xlu0 %4189
      %4191 = vrot.lane.b32.xlu0 %v1118, 28
      %v4192 = vpop.permute.xlu0 %4191
      %4193 = vrot.lane.b32.xlu0 %v1544, 28
      %v4194 = vpop.permute.xlu0 %4193
      %4195 = vrot.lane.b32.xlu0 %v1125, 28
      %v4196 = vpop.permute.xlu0 %4195
      %4197 = vrot.lane.b32.xlu0 %v1124, 28
      %v4198 = vpop.permute.xlu0 %4197
      %4199 = vrot.lane.b32.xlu0 %v1127, 28
      %v4200 = vpop.permute.xlu0 %4199
      %4201 = vrot.lane.b32.xlu0 %v1130, 28
      %v4202 = vpop.permute.xlu0 %4201
      %4203 = vrot.lane.b32.xlu0 %v1133, 28
      %v4204 = vpop.permute.xlu0 %4203
      %4205 = vrot.lane.b32.xlu0 %v1136, 28
      %v4206 = vpop.permute.xlu0 %4205
      %4207 = vrot.lane.b32.xlu0 %v1139, 28
      %v4208 = vpop.permute.xlu0 %4207
      %4209 = vrot.lane.b32.xlu0 %v1142, 28
      %v4210 = vpop.permute.xlu0 %4209
      %4211 = vrot.lane.b32.xlu0 %v1547, 28
      %v4212 = vpop.permute.xlu0 %4211
      %4213 = vrot.lane.b32.xlu0 %v2190, 28
      %v4214 = vpop.permute.xlu0 %4213
      %4215 = vrot.lane.b32.xlu0 %v2189, 28
      %v4216 = vpop.permute.xlu0 %4215
      %4217 = vrot.lane.b32.xlu0 %v2193, 28
      %v4218 = vpop.permute.xlu0 %4217
      %4219 = vrot.lane.b32.xlu0 %v2192, 28
      %v4220 = vpop.permute.xlu0 %4219
      %4221 = vrot.lane.b32.xlu0 %v2196, 28
      %v4222 = vpop.permute.xlu0 %4221
      %4223 = vrot.lane.b32.xlu0 %v2195, 28
      %v4224 = vpop.permute.xlu0 %4223
      %4225 = vrot.lane.b32.xlu0 %v2199, 28
      %v4226 = vpop.permute.xlu0 %4225
      %4227 = vrot.lane.b32.xlu0 %v2198, 28
      %v4228 = vpop.permute.xlu0 %4227
      %4229 = vrot.lane.b32.xlu0 %v2202, 28
      %v4230 = vpop.permute.xlu0 %4229
      %4231 = vrot.lane.b32.xlu0 %v2201, 28
      %v4232 = vpop.permute.xlu0 %4231
      %4233 = vrot.lane.b32.xlu0 %v2205, 28
      %v4234 = vpop.permute.xlu0 %4233
      %4235 = vrot.lane.b32.xlu0 %v2204, 28
      %v4236 = vpop.permute.xlu0 %4235
      %4237 = vrot.lane.b32.xlu0 %v2208, 28
      %v4238 = vpop.permute.xlu0 %4237
      %4239 = vrot.lane.b32.xlu0 %v2207, 28
      %v4240 = vpop.permute.xlu0 %4239
      %4241 = vrot.lane.b32.xlu0 %v2525, 28
      %v4242 = vpop.permute.xlu0 %4241
      %4243 = vrot.lane.b32.xlu0 %v2524, 28
      %v4244 = vpop.permute.xlu0 %4243
      %4245 = vrot.lane.b32.xlu0 %v3753, 28
      %v4246 = vpop.permute.xlu0 %4245
      %4247 = vrot.lane.b32.xlu0 %v3752, 28
      %v4248 = vpop.permute.xlu0 %4247
      %4249 = vrot.lane.b32.xlu0 %v3756, 28
      %v4250 = vpop.permute.xlu0 %4249
      %4251 = vrot.lane.b32.xlu0 %v3755, 28
      %v4252 = vpop.permute.xlu0 %4251
      %4253 = vrot.lane.b32.xlu0 %v3759, 28
      %v4254 = vpop.permute.xlu0 %4253
      %4255 = vrot.lane.b32.xlu0 %v3758, 28
      %v4256 = vpop.permute.xlu0 %4255
      %4257 = vrot.lane.b32.xlu0 %v3762, 28
      %v4258 = vpop.permute.xlu0 %4257
      %4259 = vrot.lane.b32.xlu0 %v3761, 28
      %v4260 = vpop.permute.xlu0 %4259
      %4261 = vrot.lane.b32.xlu0 %v3765, 28
      %v4262 = vpop.permute.xlu0 %4261
      %4263 = vrot.lane.b32.xlu0 %v3764, 28
      %v4264 = vpop.permute.xlu0 %4263
      %4265 = vrot.lane.b32.xlu0 %v3768, 28
      %v4266 = vpop.permute.xlu0 %4265
      %4267 = vrot.lane.b32.xlu0 %v3767, 28
      %v4268 = vpop.permute.xlu0 %4267
      %4269 = vrot.lane.b32.xlu0 %v3771, 28
      %v4270 = vpop.permute.xlu0 %4269
      %4271 = vrot.lane.b32.xlu0 %v3770, 28
      %v4272 = vpop.permute.xlu0 %4271
      %4273 = vrot.lane.b32.xlu0 %v4176, 28
      %v4274 = vpop.permute.xlu0 %4273
      %4275 = vrot.lane.b32.xlu0 %v4175, 28
      %v4276 = vpop.permute.xlu0 %4275
      %v4328 = vrot.slane %v921, 7
      %v4329 = vrot.slane %v941, 7
      %v4330 = vrot.slane %v961, 7
      %v4331 = vrot.slane %v981, 7
      %4332 = vrot.lane.b32.xlu0 %v3464, 32
      %v4333 = vpop.permute.xlu0 %4332
      %4334 = vrot.lane.b32.xlu0 %v3465, 32
      %v4335 = vpop.permute.xlu0 %4334
      %4336 = vrot.lane.b32.xlu0 %v3466, 32
      %v4337 = vpop.permute.xlu0 %4336
      %4338 = vrot.lane.b32.xlu0 %v3467, 32
      %v4339 = vpop.permute.xlu0 %4338
      %4340 = vrot.lane.b32.xlu0 %v3468, 32
      %v4341 = vpop.permute.xlu0 %4340
      %4342 = vrot.lane.b32.xlu0 %v3469, 32
      %v4343 = vpop.permute.xlu0 %4342
      %4344 = vrot.lane.b32.xlu0 %v3923, 32
      %v4345 = vpop.permute.xlu0 %4344
      %4346 = vrot.lane.b32.xlu0 %v4328, 32
      %v4347 = vpop.permute.xlu0 %4346
      %4348 = vrot.lane.b32.xlu0 %v3472, 32
      %v4349 = vpop.permute.xlu0 %4348
      %4350 = vrot.lane.b32.xlu0 %v3473, 32
      %v4351 = vpop.permute.xlu0 %4350
      %4352 = vrot.lane.b32.xlu0 %v3474, 32
      %v4353 = vpop.permute.xlu0 %4352
      %4354 = vrot.lane.b32.xlu0 %v3475, 32
      %v4355 = vpop.permute.xlu0 %4354
      %4356 = vrot.lane.b32.xlu0 %v3476, 32
      %v4357 = vpop.permute.xlu0 %4356
      %4358 = vrot.lane.b32.xlu0 %v3477, 32
      %v4359 = vpop.permute.xlu0 %4358
      %4360 = vrot.lane.b32.xlu0 %v3924, 32
      %v4361 = vpop.permute.xlu0 %4360
      %4362 = vrot.lane.b32.xlu0 %v4329, 32
      %v4363 = vpop.permute.xlu0 %4362
      %4364 = vrot.lane.b32.xlu0 %v3480, 32
      %v4365 = vpop.permute.xlu0 %4364
      %4366 = vrot.lane.b32.xlu0 %v3481, 32
      %v4367 = vpop.permute.xlu0 %4366
      %4368 = vrot.lane.b32.xlu0 %v3482, 32
      %v4369 = vpop.permute.xlu0 %4368
      %4370 = vrot.lane.b32.xlu0 %v3483, 32
      %v4371 = vpop.permute.xlu0 %4370
      %4372 = vrot.lane.b32.xlu0 %v3484, 32
      %v4373 = vpop.permute.xlu0 %4372
      %4374 = vrot.lane.b32.xlu0 %v3485, 32
      %v4375 = vpop.permute.xlu0 %4374
      %4376 = vrot.lane.b32.xlu0 %v3925, 32
      %v4377 = vpop.permute.xlu0 %4376
      %4378 = vrot.lane.b32.xlu0 %v4330, 32
      %v4379 = vpop.permute.xlu0 %4378
      %4380 = vrot.lane.b32.xlu0 %v3488, 32
      %v4381 = vpop.permute.xlu0 %4380
      %4382 = vrot.lane.b32.xlu0 %v3489, 32
      %v4383 = vpop.permute.xlu0 %4382
      %4384 = vrot.lane.b32.xlu0 %v3490, 32
      %v4385 = vpop.permute.xlu0 %4384
      %4386 = vrot.lane.b32.xlu0 %v3491, 32
      %v4387 = vpop.permute.xlu0 %4386
      %4388 = vrot.lane.b32.xlu0 %v3492, 32
      %v4389 = vpop.permute.xlu0 %4388
      %4390 = vrot.lane.b32.xlu0 %v3493, 32
      %v4391 = vpop.permute.xlu0 %4390
      %4392 = vrot.lane.b32.xlu0 %v3926, 32
      %v4393 = vpop.permute.xlu0 %4392
      %4394 = vrot.lane.b32.xlu0 %v4331, 32
      %v4395 = vpop.permute.xlu0 %4394
      %4429 = vrot.lane.b32.xlu0 %v908, 36
      %v4430 = vpop.permute.xlu0 %4429
      %4431 = vrot.lane.b32.xlu0 %v910, 36
      %v4432 = vpop.permute.xlu0 %4431
      %4433 = vrot.lane.b32.xlu0 %v912, 36
      %v4434 = vpop.permute.xlu0 %4433
      %4435 = vrot.lane.b32.xlu0 %v914, 36
      %v4436 = vpop.permute.xlu0 %4435
      %4437 = vrot.lane.b32.xlu0 %v916, 36
      %v4438 = vpop.permute.xlu0 %4437
      %4439 = vrot.lane.b32.xlu0 %v918, 36
      %v4440 = vpop.permute.xlu0 %4439
      %4441 = vrot.lane.b32.xlu0 %v919, 36
      %v4442 = vpop.permute.xlu0 %4441
      %4443 = vrot.lane.b32.xlu0 %v920, 36
      %v4444 = vpop.permute.xlu0 %4443
      %4445 = vrot.lane.b32.xlu0 %v921, 36
      %v4446 = vpop.permute.xlu0 %4445
      %4447 = vrot.lane.b32.xlu0 %v922, 36
      %v4448 = vpop.permute.xlu0 %4447
      %4449 = vrot.lane.b32.xlu0 %v928, 36
      %v4450 = vpop.permute.xlu0 %4449
      %4451 = vrot.lane.b32.xlu0 %v930, 36
      %v4452 = vpop.permute.xlu0 %4451
      %4453 = vrot.lane.b32.xlu0 %v932, 36
      %v4454 = vpop.permute.xlu0 %4453
      %4455 = vrot.lane.b32.xlu0 %v934, 36
      %v4456 = vpop.permute.xlu0 %4455
      %4457 = vrot.lane.b32.xlu0 %v936, 36
      %v4458 = vpop.permute.xlu0 %4457
      %4459 = vrot.lane.b32.xlu0 %v938, 36
      %v4460 = vpop.permute.xlu0 %4459
      %4461 = vrot.lane.b32.xlu0 %v939, 36
      %v4462 = vpop.permute.xlu0 %4461
      %4463 = vrot.lane.b32.xlu0 %v940, 36
      %v4464 = vpop.permute.xlu0 %4463
      %4465 = vrot.lane.b32.xlu0 %v941, 36
      %v4466 = vpop.permute.xlu0 %4465
      %4467 = vrot.lane.b32.xlu0 %v942, 36
      %v4468 = vpop.permute.xlu0 %4467
      %4469 = vrot.lane.b32.xlu0 %v948, 36
      %v4470 = vpop.permute.xlu0 %4469
      %4471 = vrot.lane.b32.xlu0 %v950, 36
      %v4472 = vpop.permute.xlu0 %4471
      %4473 = vrot.lane.b32.xlu0 %v952, 36
      %v4474 = vpop.permute.xlu0 %4473
      %4475 = vrot.lane.b32.xlu0 %v954, 36
      %v4476 = vpop.permute.xlu0 %4475
      %4477 = vrot.lane.b32.xlu0 %v956, 36
      %v4478 = vpop.permute.xlu0 %4477
      %4479 = vrot.lane.b32.xlu0 %v958, 36
      %v4480 = vpop.permute.xlu0 %4479
      %4481 = vrot.lane.b32.xlu0 %v959, 36
      %v4482 = vpop.permute.xlu0 %4481
      %4483 = vrot.lane.b32.xlu0 %v960, 36
      %v4484 = vpop.permute.xlu0 %4483
      %4485 = vrot.lane.b32.xlu0 %v961, 36
      %v4486 = vpop.permute.xlu0 %4485
      %4487 = vrot.lane.b32.xlu0 %v962, 36
      %v4488 = vpop.permute.xlu0 %4487
      %4489 = vrot.lane.b32.xlu0 %v967, 36
      %v4490 = vpop.permute.xlu0 %4489
      %4491 = vrot.lane.b32.xlu0 %v968, 36
      %v4492 = vpop.permute.xlu0 %4491
      %4493 = vrot.lane.b32.xlu0 %v969, 36
      %v4494 = vpop.permute.xlu0 %4493
      %4495 = vrot.lane.b32.xlu0 %v970, 36
      %v4496 = vpop.permute.xlu0 %4495
      %4497 = vrot.lane.b32.xlu0 %v971, 36
      %v4498 = vpop.permute.xlu0 %4497
      %4499 = vrot.lane.b32.xlu0 %v972, 36
      %v4500 = vpop.permute.xlu0 %4499
      %4501 = vrot.lane.b32.xlu0 %v973, 36
      %v4502 = vpop.permute.xlu0 %4501
      %4503 = vrot.lane.b32.xlu0 %v974, 36
      %v4504 = vpop.permute.xlu0 %4503
      %4505 = vrot.lane.b32.xlu0 %v975, 36
      %v4506 = vpop.permute.xlu0 %4505
      %4507 = vrot.lane.b32.xlu0 %v976, 36
      %v4508 = vpop.permute.xlu0 %4507
      %4509 = vrot.lane.b32.xlu0 %v977, 36
      %v4510 = vpop.permute.xlu0 %4509
      %4511 = vrot.lane.b32.xlu0 %v978, 36
      %v4512 = vpop.permute.xlu0 %4511
      %4513 = vrot.lane.b32.xlu0 %v979, 36
      %v4514 = vpop.permute.xlu0 %4513
      %4515 = vrot.lane.b32.xlu0 %v980, 36
      %v4516 = vpop.permute.xlu0 %4515
      %4517 = vrot.lane.b32.xlu0 %v981, 36
      %v4518 = vpop.permute.xlu0 %4517
      %4519 = vrot.lane.b32.xlu0 %v982, 36
      %v4520 = vpop.permute.xlu0 %4519
      %v4567 = vrot.slane %v981, 1
      %v4568 = vrot.slane %v982, 1
      %v4569 = vsel %vm1047, %v4567, %v4568
      %4570 = vrot.lane.b32.xlu0 %v1103, 40
      %v4571 = vpop.permute.xlu0 %4570
      %4572 = vrot.lane.b32.xlu0 %v1106, 40
      %v4573 = vpop.permute.xlu0 %4572
      %4574 = vrot.lane.b32.xlu0 %v1109, 40
      %v4575 = vpop.permute.xlu0 %4574
      %4576 = vrot.lane.b32.xlu0 %v1112, 40
      %v4577 = vpop.permute.xlu0 %4576
      %4578 = vrot.lane.b32.xlu0 %v1115, 40
      %v4579 = vpop.permute.xlu0 %4578
      %4580 = vrot.lane.b32.xlu0 %v1118, 40
      %v4581 = vpop.permute.xlu0 %4580
      %4582 = vrot.lane.b32.xlu0 %v1545, 40
      %v4583 = vpop.permute.xlu0 %4582
      %4584 = vrot.lane.b32.xlu0 %v1544, 40
      %v4585 = vpop.permute.xlu0 %4584
      %4586 = vrot.lane.b32.xlu0 %v1865, 40
      %v4587 = vpop.permute.xlu0 %4586
      %4588 = vrot.lane.b32.xlu0 %v1864, 40
      %v4589 = vpop.permute.xlu0 %4588
      %4590 = vrot.lane.b32.xlu0 %v1127, 40
      %v4591 = vpop.permute.xlu0 %4590
      %4592 = vrot.lane.b32.xlu0 %v1130, 40
      %v4593 = vpop.permute.xlu0 %4592
      %4594 = vrot.lane.b32.xlu0 %v1133, 40
      %v4595 = vpop.permute.xlu0 %4594
      %4596 = vrot.lane.b32.xlu0 %v1136, 40
      %v4597 = vpop.permute.xlu0 %4596
      %4598 = vrot.lane.b32.xlu0 %v1139, 40
      %v4599 = vpop.permute.xlu0 %4598
      %4600 = vrot.lane.b32.xlu0 %v1142, 40
      %v4601 = vpop.permute.xlu0 %4600
      %4602 = vrot.lane.b32.xlu0 %v1548, 40
      %v4603 = vpop.permute.xlu0 %4602
      %4604 = vrot.lane.b32.xlu0 %v1547, 40
      %v4605 = vpop.permute.xlu0 %4604
      %4606 = vrot.lane.b32.xlu0 %v1868, 40
      %v4607 = vpop.permute.xlu0 %4606
      %4608 = vrot.lane.b32.xlu0 %v1867, 40
      %v4609 = vpop.permute.xlu0 %4608
      %4610 = vrot.lane.b32.xlu0 %v2192, 40
      %v4611 = vpop.permute.xlu0 %4610
      %4612 = vrot.lane.b32.xlu0 %v2195, 40
      %v4613 = vpop.permute.xlu0 %4612
      %4614 = vrot.lane.b32.xlu0 %v2198, 40
      %v4615 = vpop.permute.xlu0 %4614
      %4616 = vrot.lane.b32.xlu0 %v2201, 40
      %v4617 = vpop.permute.xlu0 %4616
      %4618 = vrot.lane.b32.xlu0 %v2204, 40
      %v4619 = vpop.permute.xlu0 %4618
      %4620 = vrot.lane.b32.xlu0 %v2207, 40
      %v4621 = vpop.permute.xlu0 %4620
      %4622 = vrot.lane.b32.xlu0 %v2525, 40
      %v4623 = vpop.permute.xlu0 %4622
      %4624 = vrot.lane.b32.xlu0 %v2524, 40
      %v4625 = vpop.permute.xlu0 %4624
      %4626 = vrot.lane.b32.xlu0 %v3315, 40
      %v4627 = vpop.permute.xlu0 %4626
      %4628 = vrot.lane.b32.xlu0 %v3314, 40
      %v4629 = vpop.permute.xlu0 %4628
      %4630 = vrot.lane.b32.xlu0 %v3756, 40
      %v4631 = vpop.permute.xlu0 %4630
      %4632 = vrot.lane.b32.xlu0 %v3755, 40
      %v4633 = vpop.permute.xlu0 %4632
      %4634 = vrot.lane.b32.xlu0 %v3759, 40
      %v4635 = vpop.permute.xlu0 %4634
      %4636 = vrot.lane.b32.xlu0 %v3758, 40
      %v4637 = vpop.permute.xlu0 %4636
      %4638 = vrot.lane.b32.xlu0 %v3762, 40
      %v4639 = vpop.permute.xlu0 %4638
      %4640 = vrot.lane.b32.xlu0 %v3761, 40
      %v4641 = vpop.permute.xlu0 %4640
      %4642 = vrot.lane.b32.xlu0 %v3765, 40
      %v4643 = vpop.permute.xlu0 %4642
      %4644 = vrot.lane.b32.xlu0 %v3764, 40
      %v4645 = vpop.permute.xlu0 %4644
      %4646 = vrot.lane.b32.xlu0 %v3768, 40
      %v4647 = vpop.permute.xlu0 %4646
      %4648 = vrot.lane.b32.xlu0 %v3767, 40
      %v4649 = vpop.permute.xlu0 %4648
      %4650 = vrot.lane.b32.xlu0 %v3771, 40
      %v4651 = vpop.permute.xlu0 %4650
      %4652 = vrot.lane.b32.xlu0 %v3770, 40
      %v4653 = vpop.permute.xlu0 %4652
      %4654 = vrot.lane.b32.xlu0 %v4176, 40
      %v4655 = vpop.permute.xlu0 %4654
      %4656 = vrot.lane.b32.xlu0 %v4175, 40
      %v4657 = vpop.permute.xlu0 %4656
      %4658 = vrot.lane.b32.xlu0 %v4569, 40
      %v4659 = vpop.permute.xlu0 %4658
      %4660 = vrot.lane.b32.xlu0 %v4568, 40
      %v4661 = vpop.permute.xlu0 %4660
      %v4708 = vsel %vm672, %v888, %v3317
      %v4709 = vsel %vm672, %v890, %v3319
      %v4710 = vsel %vm672, %v892, %v3321
      %v4711 = vsel %vm672, %v894, %v3323
      %v4712 = vsel %vm672, %v896, %v3325
      %v4713 = vsel %vm672, %v898, %v3327
      %v4714 = vsel %vm672, %v899, %v3329
      %v4715 = vsel %vm672, %v900, %v3331
      %v4716 = vsel %vm672, %v901, %v3333
      %v4717 = vsel %vm672, %v902, %v3335
      %v4718 = vsel %vm672, %v908, %v3337
      %v4719 = vsel %vm672, %v910, %v3339
      %v4720 = vsel %vm672, %v912, %v3341
      %v4721 = vsel %vm672, %v914, %v3343
      %v4722 = vsel %vm672, %v916, %v3345
      %v4723 = vsel %vm672, %v918, %v3347
      %v4724 = vsel %vm672, %v919, %v3349
      %v4725 = vsel %vm672, %v920, %v3351
      %v4726 = vsel %vm672, %v921, %v3353
      %v4727 = vsel %vm672, %v922, %v3355
      %v4728 = vsel %vm672, %v928, %v3357
      %v4729 = vsel %vm672, %v930, %v3359
      %v4730 = vsel %vm672, %v932, %v3361
      %v4731 = vsel %vm672, %v934, %v3363
      %v4732 = vsel %vm672, %v936, %v3365
      %v4733 = vsel %vm672, %v938, %v3367
      %v4734 = vsel %vm672, %v939, %v3369
      %v4735 = vsel %vm672, %v940, %v3371
      %v4736 = vsel %vm672, %v941, %v3373
      %v4737 = vsel %vm672, %v942, %v3375
      %v4738 = vsel %vm672, %v947, %v3377
      %v4739 = vsel %vm672, %v948, %v3379
      %v4740 = vsel %vm672, %v949, %v3381
      %v4741 = vsel %vm672, %v950, %v3383
      %v4742 = vsel %vm672, %v951, %v3385
      %v4743 = vsel %vm672, %v952, %v3387
      %v4744 = vsel %vm672, %v953, %v3389
      %v4745 = vsel %vm672, %v954, %v3391
      %v4746 = vsel %vm672, %v955, %v3393
      %v4747 = vsel %vm672, %v956, %v3395
      %v4748 = vsel %vm672, %v957, %v3397
      %v4749 = vsel %vm672, %v958, %v3399
      %v4750 = vsel %vm672, %v959, %v3401
      %v4751 = vsel %vm672, %v960, %v3403
      %v4752 = vsel %vm672, %v961, %v3405
      %v4753 = vsel %vm672, %v962, %v3407
      %v4754 = vsel %vm2850, %v2828, %v3495
      %v4755 = vsel %vm2850, %v4708, %v3495
      %v4756 = vsel %vm2850, %v2829, %v3497
      %v4757 = vsel %vm2850, %v4709, %v3497
      %v4758 = vsel %vm2850, %v2830, %v3499
      %v4759 = vsel %vm2850, %v4710, %v3499
      %v4760 = vsel %vm2850, %v2831, %v3501
      %v4761 = vsel %vm2850, %v4711, %v3501
      %v4762 = vsel %vm2850, %v2832, %v3503
      %v4763 = vsel %vm2850, %v4712, %v3503
      %v4764 = vsel %vm2850, %v2833, %v3505
      %v4765 = vsel %vm2850, %v4713, %v3505
      %v4766 = vsel %vm2850, %v4714, %v3507
      %v4767 = vsel %vm2850, %v4715, %v3507
      %v4768 = vsel %vm2850, %v4716, %v3509
      %v4769 = vsel %vm2850, %v4717, %v3509
      %v4770 = vsel %vm2850, %v2836, %v3511
      %v4771 = vsel %vm2850, %v4718, %v3511
      %v4772 = vsel %vm2850, %v2837, %v3513
      %v4773 = vsel %vm2850, %v4719, %v3513
      %v4774 = vsel %vm2850, %v2838, %v3515
      %v4775 = vsel %vm2850, %v4720, %v3515
      %v4776 = vsel %vm2850, %v2839, %v3517
      %v4777 = vsel %vm2850, %v4721, %v3517
      %v4778 = vsel %vm2850, %v2840, %v3519
      %v4779 = vsel %vm2850, %v4722, %v3519
      %v4780 = vsel %vm2850, %v2841, %v3521
      %v4781 = vsel %vm2850, %v4723, %v3521
      %v4782 = vsel %vm2850, %v4724, %v3523
      %v4783 = vsel %vm2850, %v4725, %v3523
      %v4784 = vsel %vm2850, %v4726, %v3525
      %v4785 = vsel %vm2850, %v4727, %v3525
      %v4786 = vsel %vm2850, %v2844, %v3527
      %v4787 = vsel %vm2850, %v4728, %v3527
      %v4788 = vsel %vm2850, %v2845, %v3529
      %v4789 = vsel %vm2850, %v4729, %v3529
      %v4790 = vsel %vm2850, %v2846, %v3531
      %v4791 = vsel %vm2850, %v4730, %v3531
      %v4792 = vsel %vm2850, %v2847, %v3533
      %v4793 = vsel %vm2850, %v4731, %v3533
      %v4794 = vsel %vm2850, %v2848, %v3535
      %v4795 = vsel %vm2850, %v4732, %v3535
      %v4796 = vsel %vm2850, %v2849, %v3537
      %v4797 = vsel %vm2850, %v4733, %v3537
      %v4798 = vsel %vm2850, %v4734, %v3539
      %v4799 = vsel %vm2850, %v4735, %v3539
      %v4800 = vsel %vm2850, %v4736, %v3541
      %v4801 = vsel %vm2850, %v4737, %v3541
      %v4802 = vsel %vm2850, %v4738, %v3543
      %v4803 = vsel %vm2850, %v4739, %v3543
      %v4804 = vsel %vm2850, %v4740, %v3545
      %v4805 = vsel %vm2850, %v4741, %v3545
      %v4806 = vsel %vm2850, %v4742, %v3547
      %v4807 = vsel %vm2850, %v4743, %v3547
      %v4808 = vsel %vm2850, %v4744, %v3549
      %v4809 = vsel %vm2850, %v4745, %v3549
      %v4810 = vsel %vm2850, %v4746, %v3551
      %v4811 = vsel %vm2850, %v4747, %v3551
      %v4812 = vsel %vm2850, %v4748, %v3553
      %v4813 = vsel %vm2850, %v4749, %v3553
      %v4814 = vsel %vm2850, %v4750, %v3555
      %v4815 = vsel %vm2850, %v4751, %v3555
      %v4816 = vsel %vm2850, %v4752, %v3557
      %v4817 = vsel %vm2850, %v4753, %v3557
      %v4818 = vsel %vm2883, %v4754, %v3599
      %v4819 = vsel %vm2883, %v4755, %v3601
      %v4820 = vsel %vm2883, %v4756, %v1470
      %v4821 = vsel %vm2883, %v4757, %v3603
      %v4822 = vsel %vm2883, %v4758, %v1472
      %v4823 = vsel %vm2883, %v4759, %v3605
      %v4824 = vsel %vm2883, %v4760, %v1474
      %v4825 = vsel %vm2883, %v4761, %v3607
      %v4826 = vsel %vm2883, %v4762, %v1476
      %v4827 = vsel %vm2883, %v4763, %v3609
      %v4828 = vsel %vm2883, %v4764, %v1478
      %v4829 = vsel %vm2883, %v4765, %v3611
      %v4830 = vsel %vm2883, %v4766, %v1480
      %v4831 = vsel %vm2883, %v4767, %v3613
      %v4832 = vsel %vm2883, %v4768, %v1482
      %v4833 = vsel %vm2883, %v4769, %v3615
      %v4834 = vsel %vm2883, %v4770, %v3617
      %v4835 = vsel %vm2883, %v4771, %v3619
      %v4836 = vsel %vm2883, %v4772, %v1486
      %v4837 = vsel %vm2883, %v4773, %v3621
      %v4838 = vsel %vm2883, %v4774, %v1488
      %v4839 = vsel %vm2883, %v4775, %v3623
      %v4840 = vsel %vm2883, %v4776, %v1490
      %v4841 = vsel %vm2883, %v4777, %v3625
      %v4842 = vsel %vm2883, %v4778, %v1492
      %v4843 = vsel %vm2883, %v4779, %v3627
      %v4844 = vsel %vm2883, %v4780, %v1494
      %v4845 = vsel %vm2883, %v4781, %v3629
      %v4846 = vsel %vm2883, %v4782, %v1496
      %v4847 = vsel %vm2883, %v4783, %v3631
      %v4848 = vsel %vm2883, %v4784, %v1498
      %v4849 = vsel %vm2883, %v4785, %v3633
      %v4850 = vsel %vm2883, %v4786, %v3635
      %v4851 = vsel %vm2883, %v4787, %v3637
      %v4852 = vsel %vm2883, %v4788, %v3639
      %v4853 = vsel %vm2883, %v4789, %v3641
      %v4854 = vsel %vm2883, %v4790, %v3643
      %v4855 = vsel %vm2883, %v4791, %v3645
      %v4856 = vsel %vm2883, %v4792, %v3647
      %v4857 = vsel %vm2883, %v4793, %v3649
      %v4858 = vsel %vm2883, %v4794, %v3651
      %v4859 = vsel %vm2883, %v4795, %v3653
      %v4860 = vsel %vm2883, %v4796, %v3655
      %v4861 = vsel %vm2883, %v4797, %v3657
      %v4862 = vsel %vm2883, %v4798, %v3659
      %v4863 = vsel %vm2883, %v4799, %v3661
      %v4864 = vsel %vm2883, %v4800, %v3663
      %v4865 = vsel %vm2883, %v4801, %v3665
      %v4866 = vsel %vm2883, %v4802, %v3667
      %v4867 = vsel %vm2883, %v4803, %v3669
      %v4868 = vsel %vm2883, %v4804, %v3671
      %v4869 = vsel %vm2883, %v4805, %v3673
      %v4870 = vsel %vm2883, %v4806, %v3675
      %v4871 = vsel %vm2883, %v4807, %v3677
      %v4872 = vsel %vm2883, %v4808, %v3679
      %v4873 = vsel %vm2883, %v4809, %v3681
      %v4874 = vsel %vm2883, %v4810, %v3683
      %v4875 = vsel %vm2883, %v4811, %v3685
      %v4876 = vsel %vm2883, %v4812, %v3687
      %v4877 = vsel %vm2883, %v4813, %v3689
      %v4878 = vsel %vm2883, %v4814, %v3691
      %v4879 = vsel %vm2883, %v4815, %v3693
      %v4880 = vsel %vm2883, %v4816, %v3695
      %v4881 = vsel %vm2883, %v4817, %v3697
      %v4882 = vsel %vm2916, %v4818, %v3773
      %v4883 = vsel %vm2916, %v4819, %v3775
      %v4884 = vsel %vm2916, %v4820, %v1582
      %v4885 = vsel %vm2916, %v4821, %v3777
      %v4886 = vsel %vm2916, %v4822, %v1584
      %v4887 = vsel %vm2916, %v4823, %v3779
      %v4888 = vsel %vm2916, %v4824, %v1586
      %v4889 = vsel %vm2916, %v4825, %v3781
      %v4890 = vsel %vm2916, %v4826, %v1588
      %v4891 = vsel %vm2916, %v4827, %v3783
      %v4892 = vsel %vm2916, %v4828, %v1590
      %v4893 = vsel %vm2916, %v4829, %v3785
      %v4894 = vsel %vm2916, %v4830, %v1592
      %v4895 = vsel %vm2916, %v4831, %v3787
      %v4896 = vsel %vm2916, %v4832, %v1594
      %v4897 = vsel %vm2916, %v4833, %v3789
      %v4898 = vsel %vm2916, %v4834, %v3791
      %v4899 = vsel %vm2916, %v4835, %v3793
      %v4900 = vsel %vm2916, %v4836, %v1598
      %v4901 = vsel %vm2916, %v4837, %v3795
      %v4902 = vsel %vm2916, %v4838, %v1600
      %v4903 = vsel %vm2916, %v4839, %v3797
      %v4904 = vsel %vm2916, %v4840, %v1602
      %v4905 = vsel %vm2916, %v4841, %v3799
      %v4906 = vsel %vm2916, %v4842, %v1604
      %v4907 = vsel %vm2916, %v4843, %v3801
      %v4908 = vsel %vm2916, %v4844, %v1606
      %v4909 = vsel %vm2916, %v4845, %v3803
      %v4910 = vsel %vm2916, %v4846, %v1608
      %v4911 = vsel %vm2916, %v4847, %v3805
      %v4912 = vsel %vm2916, %v4848, %v1610
      %v4913 = vsel %vm2916, %v4849, %v3807
      %v4914 = vsel %vm2916, %v4850, %v3809
      %v4915 = vsel %vm2916, %v4851, %v3811
      %v4916 = vsel %vm2916, %v4852, %v3813
      %v4917 = vsel %vm2916, %v4853, %v3815
      %v4918 = vsel %vm2916, %v4854, %v3817
      %v4919 = vsel %vm2916, %v4855, %v3819
      %v4920 = vsel %vm2916, %v4856, %v3821
      %v4921 = vsel %vm2916, %v4857, %v3823
      %v4922 = vsel %vm2916, %v4858, %v3825
      %v4923 = vsel %vm2916, %v4859, %v3827
      %v4924 = vsel %vm2916, %v4860, %v3829
      %v4925 = vsel %vm2916, %v4861, %v3831
      %v4926 = vsel %vm2916, %v4862, %v3833
      %v4927 = vsel %vm2916, %v4863, %v3835
      %v4928 = vsel %vm2916, %v4864, %v3837
      %v4929 = vsel %vm2916, %v4865, %v3839
      %v4930 = vsel %vm2916, %v4866, %v3841
      %v4931 = vsel %vm2916, %v4867, %v3843
      %v4932 = vsel %vm2916, %v4868, %v3845
      %v4933 = vsel %vm2916, %v4869, %v3847
      %v4934 = vsel %vm2916, %v4870, %v3849
      %v4935 = vsel %vm2916, %v4871, %v3851
      %v4936 = vsel %vm2916, %v4872, %v3853
      %v4937 = vsel %vm2916, %v4873, %v3855
      %v4938 = vsel %vm2916, %v4874, %v3857
      %v4939 = vsel %vm2916, %v4875, %v3859
      %v4940 = vsel %vm2916, %v4876, %v3861
      %v4941 = vsel %vm2916, %v4877, %v3863
      %v4942 = vsel %vm2916, %v4878, %v3865
      %v4943 = vsel %vm2916, %v4879, %v3867
      %v4944 = vsel %vm2916, %v4880, %v3869
      %v4945 = vsel %vm2916, %v4881, %v3871
      %v4946 = vsel %vm2949, %v4882, %v3928
      %v4947 = vsel %vm2949, %v4883, %v3928
      %v4948 = vsel %vm2949, %v4884, %v3930
      %v4949 = vsel %vm2949, %v4885, %v3930
      %v4950 = vsel %vm2949, %v4886, %v3932
      %v4951 = vsel %vm2949, %v4887, %v3932
      %v4952 = vsel %vm2949, %v4888, %v3934
      %v4953 = vsel %vm2949, %v4889, %v3934
      %v4954 = vsel %vm2949, %v4890, %v3936
      %v4955 = vsel %vm2949, %v4891, %v3936
      %v4956 = vsel %vm2949, %v4892, %v3938
      %v4957 = vsel %vm2949, %v4893, %v3938
      %v4958 = vsel %vm2949, %v4894, %v3940
      %v4959 = vsel %vm2949, %v4895, %v3940
      %v4960 = vsel %vm2949, %v4896, %v3942
      %v4961 = vsel %vm2949, %v4897, %v3942
      %v4962 = vsel %vm2949, %v4898, %v3944
      %v4963 = vsel %vm2949, %v4899, %v3944
      %v4964 = vsel %vm2949, %v4900, %v3946
      %v4965 = vsel %vm2949, %v4901, %v3946
      %v4966 = vsel %vm2949, %v4902, %v3948
      %v4967 = vsel %vm2949, %v4903, %v3948
      %v4968 = vsel %vm2949, %v4904, %v3950
      %v4969 = vsel %vm2949, %v4905, %v3950
      %v4970 = vsel %vm2949, %v4906, %v3952
      %v4971 = vsel %vm2949, %v4907, %v3952
      %v4972 = vsel %vm2949, %v4908, %v3954
      %v4973 = vsel %vm2949, %v4909, %v3954
      %v4974 = vsel %vm2949, %v4910, %v3956
      %v4975 = vsel %vm2949, %v4911, %v3956
      %v4976 = vsel %vm2949, %v4912, %v3958
      %v4977 = vsel %vm2949, %v4913, %v3958
      %v4978 = vsel %vm2949, %v4914, %v3960
      %v4979 = vsel %vm2949, %v4915, %v3960
      %v4980 = vsel %vm2949, %v4916, %v3962
      %v4981 = vsel %vm2949, %v4917, %v3962
      %v4982 = vsel %vm2949, %v4918, %v3964
      %v4983 = vsel %vm2949, %v4919, %v3964
      %v4984 = vsel %vm2949, %v4920, %v3966
      %v4985 = vsel %vm2949, %v4921, %v3966
      %v4986 = vsel %vm2949, %v4922, %v3968
      %v4987 = vsel %vm2949, %v4923, %v3968
      %v4988 = vsel %vm2949, %v4924, %v3970
      %v4989 = vsel %vm2949, %v4925, %v3970
      %v4990 = vsel %vm2949, %v4926, %v3972
      %v4991 = vsel %vm2949, %v4927, %v3972
      %v4992 = vsel %vm2949, %v4928, %v3974
      %v4993 = vsel %vm2949, %v4929, %v3974
      %v4994 = vsel %vm2949, %v4930, %v3976
      %v4995 = vsel %vm2949, %v4931, %v3976
      %v4996 = vsel %vm2949, %v4932, %v3978
      %v4997 = vsel %vm2949, %v4933, %v3978
      %v4998 = vsel %vm2949, %v4934, %v3980
      %v4999 = vsel %vm2949, %v4935, %v3980
      %v5000 = vsel %vm2949, %v4936, %v3982
      %v5001 = vsel %vm2949, %v4937, %v3982
      %v5002 = vsel %vm2949, %v4938, %v3984
      %v5003 = vsel %vm2949, %v4939, %v3984
      %v5004 = vsel %vm2949, %v4940, %v3986
      %v5005 = vsel %vm2949, %v4941, %v3986
      %v5006 = vsel %vm2949, %v4942, %v3988
      %v5007 = vsel %vm2949, %v4943, %v3988
      %v5008 = vsel %vm2949, %v4944, %v3990
      %v5009 = vsel %vm2949, %v4945, %v3990
      %v5010 = vsel %vm2982, %v4946, %v4025
      %v5011 = vsel %vm2982, %v4947, %v4027
      %v5012 = vsel %vm2982, %v4948, %v1790
      %v5013 = vsel %vm2982, %v4949, %v4029
      %v5014 = vsel %vm2982, %v4950, %v1792
      %v5015 = vsel %vm2982, %v4951, %v4031
      %v5016 = vsel %vm2982, %v4952, %v1794
      %v5017 = vsel %vm2982, %v4953, %v4033
      %v5018 = vsel %vm2982, %v4954, %v1796
      %v5019 = vsel %vm2982, %v4955, %v4035
      %v5020 = vsel %vm2982, %v4956, %v1798
      %v5021 = vsel %vm2982, %v4957, %v4037
      %v5022 = vsel %vm2982, %v4958, %v1800
      %v5023 = vsel %vm2982, %v4959, %v4039
      %v5024 = vsel %vm2982, %v4960, %v1802
      %v5025 = vsel %vm2982, %v4961, %v4041
      %v5026 = vsel %vm2982, %v4962, %v4043
      %v5027 = vsel %vm2982, %v4963, %v4045
      %v5028 = vsel %vm2982, %v4964, %v1806
      %v5029 = vsel %vm2982, %v4965, %v4047
      %v5030 = vsel %vm2982, %v4966, %v1808
      %v5031 = vsel %vm2982, %v4967, %v4049
      %v5032 = vsel %vm2982, %v4968, %v1810
      %v5033 = vsel %vm2982, %v4969, %v4051
      %v5034 = vsel %vm2982, %v4970, %v1812
      %v5035 = vsel %vm2982, %v4971, %v4053
      %v5036 = vsel %vm2982, %v4972, %v1814
      %v5037 = vsel %vm2982, %v4973, %v4055
      %v5038 = vsel %vm2982, %v4974, %v1816
      %v5039 = vsel %vm2982, %v4975, %v4057
      %v5040 = vsel %vm2982, %v4976, %v1818
      %v5041 = vsel %vm2982, %v4977, %v4059
      %v5042 = vsel %vm2982, %v4978, %v4061
      %v5043 = vsel %vm2982, %v4979, %v4063
      %v5044 = vsel %vm2982, %v4980, %v4065
      %v5045 = vsel %vm2982, %v4981, %v4067
      %v5046 = vsel %vm2982, %v4982, %v4069
      %v5047 = vsel %vm2982, %v4983, %v4071
      %v5048 = vsel %vm2982, %v4984, %v4073
      %v5049 = vsel %vm2982, %v4985, %v4075
      %v5050 = vsel %vm2982, %v4986, %v4077
      %v5051 = vsel %vm2982, %v4987, %v4079
      %v5052 = vsel %vm2982, %v4988, %v4081
      %v5053 = vsel %vm2982, %v4989, %v4083
      %v5054 = vsel %vm2982, %v4990, %v4085
      %v5055 = vsel %vm2982, %v4991, %v4087
      %v5056 = vsel %vm2982, %v4992, %v4089
      %v5057 = vsel %vm2982, %v4993, %v4091
      %v5058 = vsel %vm2982, %v4994, %v4093
      %v5059 = vsel %vm2982, %v4995, %v4095
      %v5060 = vsel %vm2982, %v4996, %v4097
      %v5061 = vsel %vm2982, %v4997, %v4099
      %v5062 = vsel %vm2982, %v4998, %v4101
      %v5063 = vsel %vm2982, %v4999, %v4103
      %v5064 = vsel %vm2982, %v5000, %v4105
      %v5065 = vsel %vm2982, %v5001, %v4107
      %v5066 = vsel %vm2982, %v5002, %v4109
      %v5067 = vsel %vm2982, %v5003, %v4111
      %v5068 = vsel %vm2982, %v5004, %v4113
      %v5069 = vsel %vm2982, %v5005, %v4115
      %v5070 = vsel %vm2982, %v5006, %v4117
      %v5071 = vsel %vm2982, %v5007, %v4119
      %v5072 = vsel %vm2982, %v5008, %v4121
      %v5073 = vsel %vm2982, %v5009, %v4123
      %v5074 = vsel %vm3015, %v5010, %v4178
      %v5075 = vsel %vm3015, %v5011, %v4180
      %v5076 = vsel %vm3015, %v5012, %v1902
      %v5077 = vsel %vm3015, %v5013, %v4182
      %v5078 = vsel %vm3015, %v5014, %v1904
      %v5079 = vsel %vm3015, %v5015, %v4184
      %v5080 = vsel %vm3015, %v5016, %v1906
      %v5081 = vsel %vm3015, %v5017, %v4186
      %v5082 = vsel %vm3015, %v5018, %v1908
      %v5083 = vsel %vm3015, %v5019, %v4188
      %v5084 = vsel %vm3015, %v5020, %v1910
      %v5085 = vsel %vm3015, %v5021, %v4190
      %v5086 = vsel %vm3015, %v5022, %v1912
      %v5087 = vsel %vm3015, %v5023, %v4192
      %v5088 = vsel %vm3015, %v5024, %v1914
      %v5089 = vsel %vm3015, %v5025, %v4194
      %v5090 = vsel %vm3015, %v5026, %v4196
      %v5091 = vsel %vm3015, %v5027, %v4198
      %v5092 = vsel %vm3015, %v5028, %v1918
      %v5093 = vsel %vm3015, %v5029, %v4200
      %v5094 = vsel %vm3015, %v5030, %v1920
      %v5095 = vsel %vm3015, %v5031, %v4202
      %v5096 = vsel %vm3015, %v5032, %v1922
      %v5097 = vsel %vm3015, %v5033, %v4204
      %v5098 = vsel %vm3015, %v5034, %v1924
      %v5099 = vsel %vm3015, %v5035, %v4206
      %v5100 = vsel %vm3015, %v5036, %v1926
      %v5101 = vsel %vm3015, %v5037, %v4208
      %v5102 = vsel %vm3015, %v5038, %v1928
      %v5103 = vsel %vm3015, %v5039, %v4210
      %v5104 = vsel %vm3015, %v5040, %v1930
      %v5105 = vsel %vm3015, %v5041, %v4212
      %v5106 = vsel %vm3015, %v5042, %v4214
      %v5107 = vsel %vm3015, %v5043, %v4216
      %v5108 = vsel %vm3015, %v5044, %v4218
      %v5109 = vsel %vm3015, %v5045, %v4220
      %v5110 = vsel %vm3015, %v5046, %v4222
      %v5111 = vsel %vm3015, %v5047, %v4224
      %v5112 = vsel %vm3015, %v5048, %v4226
      %v5113 = vsel %vm3015, %v5049, %v4228
      %v5114 = vsel %vm3015, %v5050, %v4230
      %v5115 = vsel %vm3015, %v5051, %v4232
      %v5116 = vsel %vm3015, %v5052, %v4234
      %v5117 = vsel %vm3015, %v5053, %v4236
      %v5118 = vsel %vm3015, %v5054, %v4238
      %v5119 = vsel %vm3015, %v5055, %v4240
      %v5120 = vsel %vm3015, %v5056, %v4242
      %v5121 = vsel %vm3015, %v5057, %v4244
      %v5122 = vsel %vm3015, %v5058, %v4246
      %v5123 = vsel %vm3015, %v5059, %v4248
      %v5124 = vsel %vm3015, %v5060, %v4250
      %v5125 = vsel %vm3015, %v5061, %v4252
      %v5126 = vsel %vm3015, %v5062, %v4254
      %v5127 = vsel %vm3015, %v5063, %v4256
      %v5128 = vsel %vm3015, %v5064, %v4258
      %v5129 = vsel %vm3015, %v5065, %v4260
      %v5130 = vsel %vm3015, %v5066, %v4262
      %v5131 = vsel %vm3015, %v5067, %v4264
      %v5132 = vsel %vm3015, %v5068, %v4266
      %v5133 = vsel %vm3015, %v5069, %v4268
      %v5134 = vsel %vm3015, %v5070, %v4270
      %v5135 = vsel %vm3015, %v5071, %v4272
      %v5136 = vsel %vm3015, %v5072, %v4274
      %v5137 = vsel %vm3015, %v5073, %v4276
      %v5138 = vsel %vm3048, %v5074, %v4333
      %v5139 = vsel %vm3048, %v5075, %v4333
      %v5140 = vsel %vm3048, %v5076, %v4335
      %v5141 = vsel %vm3048, %v5077, %v4335
      %v5142 = vsel %vm3048, %v5078, %v4337
      %v5143 = vsel %vm3048, %v5079, %v4337
      %v5144 = vsel %vm3048, %v5080, %v4339
      %v5145 = vsel %vm3048, %v5081, %v4339
      %v5146 = vsel %vm3048, %v5082, %v4341
      %v5147 = vsel %vm3048, %v5083, %v4341
      %v5148 = vsel %vm3048, %v5084, %v4343
      %v5149 = vsel %vm3048, %v5085, %v4343
      %v5150 = vsel %vm3048, %v5086, %v4345
      %v5151 = vsel %vm3048, %v5087, %v4345
      %v5152 = vsel %vm3048, %v5088, %v4347
      %v5153 = vsel %vm3048, %v5089, %v4347
      %v5154 = vsel %vm3048, %v5090, %v4349
      %v5155 = vsel %vm3048, %v5091, %v4349
      %v5156 = vsel %vm3048, %v5092, %v4351
      %v5157 = vsel %vm3048, %v5093, %v4351
      %v5158 = vsel %vm3048, %v5094, %v4353
      %v5159 = vsel %vm3048, %v5095, %v4353
      %v5160 = vsel %vm3048, %v5096, %v4355
      %v5161 = vsel %vm3048, %v5097, %v4355
      %v5162 = vsel %vm3048, %v5098, %v4357
      %v5163 = vsel %vm3048, %v5099, %v4357
      %v5164 = vsel %vm3048, %v5100, %v4359
      %v5165 = vsel %vm3048, %v5101, %v4359
      %v5166 = vsel %vm3048, %v5102, %v4361
      %v5167 = vsel %vm3048, %v5103, %v4361
      %v5168 = vsel %vm3048, %v5104, %v4363
      %v5169 = vsel %vm3048, %v5105, %v4363
      %v5170 = vsel %vm3048, %v5106, %v4365
      %v5171 = vsel %vm3048, %v5107, %v4365
      %v5172 = vsel %vm3048, %v5108, %v4367
      %v5173 = vsel %vm3048, %v5109, %v4367
      %v5174 = vsel %vm3048, %v5110, %v4369
      %v5175 = vsel %vm3048, %v5111, %v4369
      %v5176 = vsel %vm3048, %v5112, %v4371
      %v5177 = vsel %vm3048, %v5113, %v4371
      %v5178 = vsel %vm3048, %v5114, %v4373
      %v5179 = vsel %vm3048, %v5115, %v4373
      %v5180 = vsel %vm3048, %v5116, %v4375
      %v5181 = vsel %vm3048, %v5117, %v4375
      %v5182 = vsel %vm3048, %v5118, %v4377
      %v5183 = vsel %vm3048, %v5119, %v4377
      %v5184 = vsel %vm3048, %v5120, %v4379
      %v5185 = vsel %vm3048, %v5121, %v4379
      %v5186 = vsel %vm3048, %v5122, %v4381
      %v5187 = vsel %vm3048, %v5123, %v4381
      %v5188 = vsel %vm3048, %v5124, %v4383
      %v5189 = vsel %vm3048, %v5125, %v4383
      %v5190 = vsel %vm3048, %v5126, %v4385
      %v5191 = vsel %vm3048, %v5127, %v4385
      %v5192 = vsel %vm3048, %v5128, %v4387
      %v5193 = vsel %vm3048, %v5129, %v4387
      %v5194 = vsel %vm3048, %v5130, %v4389
      %v5195 = vsel %vm3048, %v5131, %v4389
      %v5196 = vsel %vm3048, %v5132, %v4391
      %v5197 = vsel %vm3048, %v5133, %v4391
      %v5198 = vsel %vm3048, %v5134, %v4393
      %v5199 = vsel %vm3048, %v5135, %v4393
      %v5200 = vsel %vm3048, %v5136, %v4395
      %v5201 = vsel %vm3048, %v5137, %v4395
      %v5202 = vsel %vm3081, %v5138, %v2102
      %v5203 = vsel %vm3081, %v5139, %v4430
      %v5204 = vsel %vm3081, %v5140, %v2104
      %v5205 = vsel %vm3081, %v5141, %v4432
      %v5206 = vsel %vm3081, %v5142, %v2106
      %v5207 = vsel %vm3081, %v5143, %v4434
      %v5208 = vsel %vm3081, %v5144, %v2108
      %v5209 = vsel %vm3081, %v5145, %v4436
      %v5210 = vsel %vm3081, %v5146, %v2110
      %v5211 = vsel %vm3081, %v5147, %v4438
      %v5212 = vsel %vm3081, %v5148, %v2112
      %v5213 = vsel %vm3081, %v5149, %v4440
      %v5214 = vsel %vm3081, %v5150, %v4442
      %v5215 = vsel %vm3081, %v5151, %v4444
      %v5216 = vsel %vm3081, %v5152, %v4446
      %v5217 = vsel %vm3081, %v5153, %v4448
      %v5218 = vsel %vm3081, %v5154, %v2118
      %v5219 = vsel %vm3081, %v5155, %v4450
      %v5220 = vsel %vm3081, %v5156, %v2120
      %v5221 = vsel %vm3081, %v5157, %v4452
      %v5222 = vsel %vm3081, %v5158, %v2122
      %v5223 = vsel %vm3081, %v5159, %v4454
      %v5224 = vsel %vm3081, %v5160, %v2124
      %v5225 = vsel %vm3081, %v5161, %v4456
      %v5226 = vsel %vm3081, %v5162, %v2126
      %v5227 = vsel %vm3081, %v5163, %v4458
      %v5228 = vsel %vm3081, %v5164, %v2128
      %v5229 = vsel %vm3081, %v5165, %v4460
      %v5230 = vsel %vm3081, %v5166, %v4462
      %v5231 = vsel %vm3081, %v5167, %v4464
      %v5232 = vsel %vm3081, %v5168, %v4466
      %v5233 = vsel %vm3081, %v5169, %v4468
      %v5234 = vsel %vm3081, %v5170, %v2134
      %v5235 = vsel %vm3081, %v5171, %v4470
      %v5236 = vsel %vm3081, %v5172, %v2136
      %v5237 = vsel %vm3081, %v5173, %v4472
      %v5238 = vsel %vm3081, %v5174, %v2138
      %v5239 = vsel %vm3081, %v5175, %v4474
      %v5240 = vsel %vm3081, %v5176, %v2140
      %v5241 = vsel %vm3081, %v5177, %v4476
      %v5242 = vsel %vm3081, %v5178, %v2142
      %v5243 = vsel %vm3081, %v5179, %v4478
      %v5244 = vsel %vm3081, %v5180, %v2144
      %v5245 = vsel %vm3081, %v5181, %v4480
      %v5246 = vsel %vm3081, %v5182, %v4482
      %v5247 = vsel %vm3081, %v5183, %v4484
      %v5248 = vsel %vm3081, %v5184, %v4486
      %v5249 = vsel %vm3081, %v5185, %v4488
      %v5250 = vsel %vm3081, %v5186, %v4490
      %v5251 = vsel %vm3081, %v5187, %v4492
      %v5252 = vsel %vm3081, %v5188, %v4494
      %v5253 = vsel %vm3081, %v5189, %v4496
      %v5254 = vsel %vm3081, %v5190, %v4498
      %v5255 = vsel %vm3081, %v5191, %v4500
      %v5256 = vsel %vm3081, %v5192, %v4502
      %v5257 = vsel %vm3081, %v5193, %v4504
      %v5258 = vsel %vm3081, %v5194, %v4506
      %v5259 = vsel %vm3081, %v5195, %v4508
      %v5260 = vsel %vm3081, %v5196, %v4510
      %v5261 = vsel %vm3081, %v5197, %v4512
      %v5262 = vsel %vm3081, %v5198, %v4514
      %v5263 = vsel %vm3081, %v5199, %v4516
      %v5264 = vsel %vm3081, %v5200, %v4518
      %v5265 = vsel %vm3081, %v5201, %v4520
      %v5266 = vsel %vm3114, %v5202, %v2230
      %v5267 = vsel %vm3114, %v5203, %v4571
      %v5268 = vsel %vm3114, %v5204, %v2232
      %v5269 = vsel %vm3114, %v5205, %v4573
      %v5270 = vsel %vm3114, %v5206, %v2234
      %v5271 = vsel %vm3114, %v5207, %v4575
      %v5272 = vsel %vm3114, %v5208, %v2236
      %v5273 = vsel %vm3114, %v5209, %v4577
      %v5274 = vsel %vm3114, %v5210, %v2238
      %v5275 = vsel %vm3114, %v5211, %v4579
      %v5276 = vsel %vm3114, %v5212, %v2240
      %v5277 = vsel %vm3114, %v5213, %v4581
      %v5278 = vsel %vm3114, %v5214, %v4583
      %v5279 = vsel %vm3114, %v5215, %v4585
      %v5280 = vsel %vm3114, %v5216, %v4587
      %v5281 = vsel %vm3114, %v5217, %v4589
      %v5282 = vsel %vm3114, %v5218, %v2246
      %v5283 = vsel %vm3114, %v5219, %v4591
      %v5284 = vsel %vm3114, %v5220, %v2248
      %v5285 = vsel %vm3114, %v5221, %v4593
      %v5286 = vsel %vm3114, %v5222, %v2250
      %v5287 = vsel %vm3114, %v5223, %v4595
      %v5288 = vsel %vm3114, %v5224, %v2252
      %v5289 = vsel %vm3114, %v5225, %v4597
      %v5290 = vsel %vm3114, %v5226, %v2254
      %v5291 = vsel %vm3114, %v5227, %v4599
      %v5292 = vsel %vm3114, %v5228, %v2256
      %v5293 = vsel %vm3114, %v5229, %v4601
      %v5294 = vsel %vm3114, %v5230, %v4603
      %v5295 = vsel %vm3114, %v5231, %v4605
      %v5296 = vsel %vm3114, %v5232, %v4607
      %v5297 = vsel %vm3114, %v5233, %v4609
      %v5298 = vsel %vm3114, %v5234, %v2262
      %v5299 = vsel %vm3114, %v5235, %v4611
      %v5300 = vsel %vm3114, %v5236, %v2264
      %v5301 = vsel %vm3114, %v5237, %v4613
      %v5302 = vsel %vm3114, %v5238, %v2266
      %v5303 = vsel %vm3114, %v5239, %v4615
      %v5304 = vsel %vm3114, %v5240, %v2268
      %v5305 = vsel %vm3114, %v5241, %v4617
      %v5306 = vsel %vm3114, %v5242, %v2270
      %v5307 = vsel %vm3114, %v5243, %v4619
      %v5308 = vsel %vm3114, %v5244, %v2272
      %v5309 = vsel %vm3114, %v5245, %v4621
      %v5310 = vsel %vm3114, %v5246, %v4623
      %v5311 = vsel %vm3114, %v5247, %v4625
      %v5312 = vsel %vm3114, %v5248, %v4627
      %v5313 = vsel %vm3114, %v5249, %v4629
      %v5314 = vsel %vm3114, %v5250, %v4631
      %v5315 = vsel %vm3114, %v5251, %v4633
      %v5316 = vsel %vm3114, %v5252, %v4635
      %v5317 = vsel %vm3114, %v5253, %v4637
      %v5318 = vsel %vm3114, %v5254, %v4639
      %v5319 = vsel %vm3114, %v5255, %v4641
      %v5320 = vsel %vm3114, %v5256, %v4643
      %v5321 = vsel %vm3114, %v5257, %v4645
      %v5322 = vsel %vm3114, %v5258, %v4647
      %v5323 = vsel %vm3114, %v5259, %v4649
      %v5324 = vsel %vm3114, %v5260, %v4651
      %v5325 = vsel %vm3114, %v5261, %v4653
      %v5326 = vsel %vm3114, %v5262, %v4655
      %v5327 = vsel %vm3114, %v5263, %v4657
      %v5328 = vsel %vm3114, %v5264, %v4659
      %v5329 = vsel %vm3114, %v5265, %v4661
      %v5394 = vrot.slane %v5266, 1
      %v5395 = vrot.slane %v5267, 1
      %v5396 = vsel %vm1047, %v5394, %v5395
      %v5397 = vrot.slane %v5268, 1
      %v5398 = vrot.slane %v5269, 1
      %v5399 = vsel %vm1047, %v5397, %v5398
      %v5400 = vrot.slane %v5270, 1
      %v5401 = vrot.slane %v5271, 1
      %v5402 = vsel %vm1047, %v5400, %v5401
      %v5403 = vrot.slane %v5272, 1
      %v5404 = vrot.slane %v5273, 1
      %v5405 = vsel %vm1047, %v5403, %v5404
      %v5406 = vrot.slane %v5274, 1
      %v5407 = vrot.slane %v5275, 1
      %v5408 = vsel %vm1047, %v5406, %v5407
      %v5409 = vrot.slane %v5276, 1
      %v5410 = vrot.slane %v5277, 1
      %v5411 = vsel %vm1047, %v5409, %v5410
      %v5412 = vrot.slane %v5278, 1
      %v5413 = vrot.slane %v5279, 1
      %v5414 = vsel %vm1047, %v5412, %v5413
      %v5415 = vrot.slane %v5280, 1
      %v5416 = vrot.slane %v5281, 1
      %v5417 = vsel %vm1047, %v5415, %v5416
      %v5418 = vrot.slane %v5282, 1
      %v5419 = vrot.slane %v5283, 1
      %v5420 = vsel %vm1047, %v5418, %v5419
      %v5421 = vrot.slane %v5284, 1
      %v5422 = vrot.slane %v5285, 1
      %v5423 = vsel %vm1047, %v5421, %v5422
      %v5424 = vrot.slane %v5286, 1
      %v5425 = vrot.slane %v5287, 1
      %v5426 = vsel %vm1047, %v5424, %v5425
      %v5427 = vrot.slane %v5288, 1
      %v5428 = vrot.slane %v5289, 1
      %v5429 = vsel %vm1047, %v5427, %v5428
      %v5430 = vrot.slane %v5290, 1
      %v5431 = vrot.slane %v5291, 1
      %v5432 = vsel %vm1047, %v5430, %v5431
      %v5433 = vrot.slane %v5292, 1
      %v5434 = vrot.slane %v5293, 1
      %v5435 = vsel %vm1047, %v5433, %v5434
      %v5436 = vrot.slane %v5294, 1
      %v5437 = vrot.slane %v5295, 1
      %v5438 = vsel %vm1047, %v5436, %v5437
      %v5439 = vrot.slane %v5296, 1
      %v5440 = vrot.slane %v5297, 1
      %v5441 = vsel %vm1047, %v5439, %v5440
      %v5442 = vrot.slane %v5298, 1
      %v5443 = vrot.slane %v5299, 1
      %v5444 = vsel %vm1047, %v5442, %v5443
      %v5445 = vrot.slane %v5300, 1
      %v5446 = vrot.slane %v5301, 1
      %v5447 = vsel %vm1047, %v5445, %v5446
      %v5448 = vrot.slane %v5302, 1
      %v5449 = vrot.slane %v5303, 1
      %v5450 = vsel %vm1047, %v5448, %v5449
      %v5451 = vrot.slane %v5304, 1
      %v5452 = vrot.slane %v5305, 1
      %v5453 = vsel %vm1047, %v5451, %v5452
      %v5454 = vrot.slane %v5306, 1
      %v5455 = vrot.slane %v5307, 1
      %v5456 = vsel %vm1047, %v5454, %v5455
      %v5457 = vrot.slane %v5308, 1
      %v5458 = vrot.slane %v5309, 1
      %v5459 = vsel %vm1047, %v5457, %v5458
      %v5460 = vrot.slane %v5310, 1
      %v5461 = vrot.slane %v5311, 1
      %v5462 = vsel %vm1047, %v5460, %v5461
      %v5463 = vrot.slane %v5312, 1
      %v5464 = vrot.slane %v5313, 1
      %v5465 = vsel %vm1047, %v5463, %v5464
      %v5466 = vrot.slane %v5314, 1
      %v5467 = vrot.slane %v5315, 1
      %v5468 = vsel %vm1047, %v5466, %v5467
      %v5469 = vrot.slane %v5316, 1
      %v5470 = vrot.slane %v5317, 1
      %v5471 = vsel %vm1047, %v5469, %v5470
      %v5472 = vrot.slane %v5318, 1
      %v5473 = vrot.slane %v5319, 1
      %v5474 = vsel %vm1047, %v5472, %v5473
      %v5475 = vrot.slane %v5320, 1
      %v5476 = vrot.slane %v5321, 1
      %v5477 = vsel %vm1047, %v5475, %v5476
      %v5478 = vrot.slane %v5322, 1
      %v5479 = vrot.slane %v5323, 1
      %v5480 = vsel %vm1047, %v5478, %v5479
      %v5481 = vrot.slane %v5324, 1
      %v5482 = vrot.slane %v5325, 1
      %v5483 = vsel %vm1047, %v5481, %v5482
      %v5484 = vrot.slane %v5326, 1
      %v5485 = vrot.slane %v5327, 1
      %v5486 = vsel %vm1047, %v5484, %v5485
      %v5487 = vrot.slane %v5328, 1
      %v5488 = vrot.slane %v5329, 1
      %v5489 = vsel %vm1047, %v5487, %v5488
      %5490 = vrot.lane.b32.xlu0 %v5396, 64
      %v5491 = vpop.permute.xlu0 %5490
      %5492 = vrot.lane.b32.xlu0 %v5399, 64
      %v5493 = vpop.permute.xlu0 %5492
      %5494 = vrot.lane.b32.xlu0 %v5402, 64
      %v5495 = vpop.permute.xlu0 %5494
      %5496 = vrot.lane.b32.xlu0 %v5405, 64
      %v5497 = vpop.permute.xlu0 %5496
      %5498 = vrot.lane.b32.xlu0 %v5408, 64
      %v5499 = vpop.permute.xlu0 %5498
      %5500 = vrot.lane.b32.xlu0 %v5411, 64
      %v5501 = vpop.permute.xlu0 %5500
      %5502 = vrot.lane.b32.xlu0 %v5414, 64
      %v5503 = vpop.permute.xlu0 %5502
      %5504 = vrot.lane.b32.xlu0 %v5417, 64
      %v5505 = vpop.permute.xlu0 %5504
      %5506 = vrot.lane.b32.xlu0 %v5420, 64
      %v5507 = vpop.permute.xlu0 %5506
      %5508 = vrot.lane.b32.xlu0 %v5423, 64
      %v5509 = vpop.permute.xlu0 %5508
      %5510 = vrot.lane.b32.xlu0 %v5426, 64
      %v5511 = vpop.permute.xlu0 %5510
      %5512 = vrot.lane.b32.xlu0 %v5429, 64
      %v5513 = vpop.permute.xlu0 %5512
      %5514 = vrot.lane.b32.xlu0 %v5432, 64
      %v5515 = vpop.permute.xlu0 %5514
      %5516 = vrot.lane.b32.xlu0 %v5435, 64
      %v5517 = vpop.permute.xlu0 %5516
      %5518 = vrot.lane.b32.xlu0 %v5438, 64
      %v5519 = vpop.permute.xlu0 %5518
      %5520 = vrot.lane.b32.xlu0 %v5441, 64
      %v5521 = vpop.permute.xlu0 %5520
      %5522 = vrot.lane.b32.xlu0 %v5444, 64
      %v5523 = vpop.permute.xlu0 %5522
      %5524 = vrot.lane.b32.xlu0 %v5447, 64
      %v5525 = vpop.permute.xlu0 %5524
      %5526 = vrot.lane.b32.xlu0 %v5450, 64
      %v5527 = vpop.permute.xlu0 %5526
      %5528 = vrot.lane.b32.xlu0 %v5453, 64
      %v5529 = vpop.permute.xlu0 %5528
      %5530 = vrot.lane.b32.xlu0 %v5456, 64
      %v5531 = vpop.permute.xlu0 %5530
      %5532 = vrot.lane.b32.xlu0 %v5459, 64
      %v5533 = vpop.permute.xlu0 %5532
      %5534 = vrot.lane.b32.xlu0 %v5462, 64
      %v5535 = vpop.permute.xlu0 %5534
      %5536 = vrot.lane.b32.xlu0 %v5465, 64
      %v5537 = vpop.permute.xlu0 %5536
      %5538 = vrot.lane.b32.xlu0 %v5468, 64
      %v5539 = vpop.permute.xlu0 %5538
      %5540 = vrot.lane.b32.xlu0 %v5471, 64
      %v5541 = vpop.permute.xlu0 %5540
      %5542 = vrot.lane.b32.xlu0 %v5474, 64
      %v5543 = vpop.permute.xlu0 %5542
      %5544 = vrot.lane.b32.xlu0 %v5477, 64
      %v5545 = vpop.permute.xlu0 %5544
      %5546 = vrot.lane.b32.xlu0 %v5480, 64
      %v5547 = vpop.permute.xlu0 %5546
      %5548 = vrot.lane.b32.xlu0 %v5483, 64
      %v5549 = vpop.permute.xlu0 %5548
      %5550 = vrot.lane.b32.xlu0 %v5486, 64
      %v5551 = vpop.permute.xlu0 %5550
      %5552 = vrot.lane.b32.xlu0 %v5489, 64
      %v5553 = vpop.permute.xlu0 %5552
      %vm5586 = vcmask 523264
      %v5587 = vsel %vm5586, %v3280, %v5491
      %v5588 = vsel %vm5586, %v3281, %v5493
      %v5589 = vsel %vm5586, %v3282, %v5495
      %v5590 = vsel %vm5586, %v3283, %v5497
      %v5591 = vsel %vm5586, %v3284, %v5499
      %v5592 = vsel %vm5586, %v3285, %v5501
      %v5593 = vsel %vm5586, %v3286, %v5503
      %v5594 = vsel %vm5586, %v3287, %v5505
      %v5595 = vsel %vm5586, %v3288, %v5507
      %v5596 = vsel %vm5586, %v3289, %v5509
      %v5597 = vsel %vm5586, %v3290, %v5511
      %v5598 = vsel %vm5586, %v3291, %v5513
      %v5599 = vsel %vm5586, %v3292, %v5515
      %v5600 = vsel %vm5586, %v3293, %v5517
      %v5601 = vsel %vm5586, %v3294, %v5519
      %v5602 = vsel %vm5586, %v3295, %v5521
      %v5603 = vsel %vm5586, %v3296, %v5523
      %v5604 = vsel %vm5586, %v3297, %v5525
      %v5605 = vsel %vm5586, %v3298, %v5527
      %v5606 = vsel %vm5586, %v3299, %v5529
      %v5607 = vsel %vm5586, %v3300, %v5531
      %v5608 = vsel %vm5586, %v3301, %v5533
      %v5609 = vsel %vm5586, %v3302, %v5535
      %v5610 = vsel %vm5586, %v3303, %v5537
      %v5611 = vsel %vm5586, %v3304, %v5539
      %v5612 = vsel %vm5586, %v3305, %v5541
      %v5613 = vsel %vm5586, %v3306, %v5543
      %v5614 = vsel %vm5586, %v3307, %v5545
      %v5615 = vsel %vm5586, %v3308, %v5547
      %v5616 = vsel %vm5586, %v3309, %v5549
      %v5617 = vsel %vm5586, %v3310, %v5551
      %v5618 = vsel %vm5586, %v3311, %v5553
      %v5619 = vld [vmem:[%s3] sm:$0xff]
      %v5620 = vld [vmem:[%s3 + $0x8] sm:$0xff]
      %v5621 = vld [vmem:[%s3 + $0x10] sm:$0xff]
      %v5622 = vld [vmem:[%s3 + $0x18] sm:$0xff]
      %v5623 = vld [vmem:[%s3 + $0x20] sm:$0xff]
      %v5624 = vld [vmem:[%s3 + $0x28] sm:$0xff]
      %v5625 = vld [vmem:[%s3 + $0x30] sm:$0xff]
      %v5626 = vld [vmem:[%s3 + $0x38] sm:$0xff]
      %v5627 = vld [vmem:[%s3 + $0x40] sm:$0xff]
      %v5628 = vld [vmem:[%s3 + $0x48] sm:$0xff]
      %v5629 = vld [vmem:[%s3 + $0x50] sm:$0xff]
      %v5630 = vld [vmem:[%s3 + $0x58] sm:$0xff]
      %v5631 = vld [vmem:[%s3 + $0x60] sm:$0xff]
      %v5632 = vld [vmem:[%s3 + $0x68] sm:$0xf]
      %vm5633 = vcmask 883712
      %v5635 = vsel %vm5633, %v5587, 0
      %v5638 = vsel %vm5633, %v5588, 0
      %v5641 = vsel %vm5633, %v5589, 0
      %v5644 = vsel %vm5633, %v5590, 0
      %v5647 = vsel %vm5633, %v5591, 0
      %v5650 = vsel %vm5633, %v5592, 0
      %v5653 = vsel %vm5633, %v5593, 0
      %v5656 = vsel %vm5633, %v5594, 0
      %v5659 = vsel %vm5633, %v5595, 0
      %v5662 = vsel %vm5633, %v5596, 0
      %v5665 = vsel %vm5633, %v5597, 0
      %v5668 = vsel %vm5633, %v5598, 0
      %v5671 = vsel %vm5633, %v5599, 0
      %v5674 = vsel %vm5633, %v5600, 0
      %v5677 = vsel %vm5633, %v5601, 0
      %v5680 = vsel %vm5633, %v5602, 0
      %v5683 = vsel %vm5633, %v5603, 0
      %v5686 = vsel %vm5633, %v5604, 0
      %v5689 = vsel %vm5633, %v5605, 0
      %v5692 = vsel %vm5633, %v5606, 0
      %v5695 = vsel %vm5633, %v5607, 0
      %v5698 = vsel %vm5633, %v5608, 0
      %v5701 = vsel %vm5633, %v5609, 0
      %v5704 = vsel %vm5633, %v5610, 0
      %v5707 = vsel %vm5633, %v5611, 0
      %v5710 = vsel %vm5633, %v5612, 0
      %v5713 = vsel %vm5633, %v5613, 0
      %v5716 = vsel %vm5633, %v5614, 0
      %v5719 = vsel %vm5633, %v5615, 0
      %v5722 = vsel %vm5633, %v5616, 0
      %v5725 = vsel %vm5633, %v5617, 0
      %v5728 = vsel %vm5633, %v5618, 0
      %vm5730 = vcmask 1043456
      %v5732 = vsel %vm5730, %v5632, 0
      %5734 = vmatpush.msra.mxu0 0.0
      %5735 = vmatpush.msra.mxu0 0.0
      %5736 = vmatpush.msra.mxu0 %v5732
      %5737 = vmatpush.msra.mxu0 %v5631
      %5738 = vmatpush.msra.mxu0 %v5630
      %5739 = vmatpush.msra.mxu0 %v5629
      %5740 = vmatpush.msra.mxu0 %v5628
      %5741 = vmatpush.msra.mxu0 %v5627
      %5742 = vmatpush.msra.mxu0 %v5626
      %5743 = vmatpush.msra.mxu0 %v5625
      %5744 = vmatpush.msra.mxu0 %v5624
      %5745 = vmatpush.msra.mxu0 %v5623
      %5746 = vmatpush.msra.mxu0 %v5622
      %5747 = vmatpush.msra.mxu0 %v5621
      %5748 = vmatpush.msra.mxu0 %v5620
      %5749 = vmatpush.msra.mxu0 %v5619
      %5750 = vmatmul.f32.gmra.mxu0 %v5635
      %v5751 = vpop.f32.mrf.mxu0
      %v5752 = vadd.f32 0.0, %v5751
      %5753 = vmatmul.f32.gmra.mxu0 %v5638
      %v5754 = vpop.f32.mrf.mxu0
      %v5755 = vadd.f32 0.0, %v5754
      %5756 = vmatmul.f32.gmra.mxu0 %v5641
      %v5757 = vpop.f32.mrf.mxu0
      %v5758 = vadd.f32 0.0, %v5757
      %5759 = vmatmul.f32.gmra.mxu0 %v5644
      %v5760 = vpop.f32.mrf.mxu0
      %v5761 = vadd.f32 0.0, %v5760
      %5762 = vmatmul.f32.gmra.mxu0 %v5647
      %v5763 = vpop.f32.mrf.mxu0
      %v5764 = vadd.f32 0.0, %v5763
      %5765 = vmatmul.f32.gmra.mxu0 %v5650
      %v5766 = vpop.f32.mrf.mxu0
      %v5767 = vadd.f32 0.0, %v5766
      %5768 = vmatmul.f32.gmra.mxu0 %v5653
      %v5769 = vpop.f32.mrf.mxu0
      %v5770 = vadd.f32 0.0, %v5769
      %5771 = vmatmul.f32.gmra.mxu0 %v5656
      %v5772 = vpop.f32.mrf.mxu0
      %v5773 = vadd.f32 0.0, %v5772
      %5774 = vmatmul.f32.gmra.mxu0 %v5659
      %v5775 = vpop.f32.mrf.mxu0
      %v5776 = vadd.f32 0.0, %v5775
      %5777 = vmatmul.f32.gmra.mxu0 %v5662
      %v5778 = vpop.f32.mrf.mxu0
      %v5779 = vadd.f32 0.0, %v5778
      %5780 = vmatmul.f32.gmra.mxu0 %v5665
      %v5781 = vpop.f32.mrf.mxu0
      %v5782 = vadd.f32 0.0, %v5781
      %5783 = vmatmul.f32.gmra.mxu0 %v5668
      %v5784 = vpop.f32.mrf.mxu0
      %v5785 = vadd.f32 0.0, %v5784
      %5786 = vmatmul.f32.gmra.mxu0 %v5671
      %v5787 = vpop.f32.mrf.mxu0
      %v5788 = vadd.f32 0.0, %v5787
      %5789 = vmatmul.f32.gmra.mxu0 %v5674
      %v5790 = vpop.f32.mrf.mxu0
      %v5791 = vadd.f32 0.0, %v5790
      %5792 = vmatmul.f32.gmra.mxu0 %v5677
      %v5793 = vpop.f32.mrf.mxu0
      %v5794 = vadd.f32 0.0, %v5793
      %5795 = vmatmul.f32.gmra.mxu0 %v5680
      %v5796 = vpop.f32.mrf.mxu0
      %v5797 = vadd.f32 0.0, %v5796
      %5798 = vmatmul.f32.gmra.mxu0 %v5683
      %v5799 = vpop.f32.mrf.mxu0
      %v5800 = vadd.f32 0.0, %v5799
      %5801 = vmatmul.f32.gmra.mxu0 %v5686
      %v5802 = vpop.f32.mrf.mxu0
      %v5803 = vadd.f32 0.0, %v5802
      %5804 = vmatmul.f32.gmra.mxu0 %v5689
      %v5805 = vpop.f32.mrf.mxu0
      %v5806 = vadd.f32 0.0, %v5805
      %5807 = vmatmul.f32.gmra.mxu0 %v5692
      %v5808 = vpop.f32.mrf.mxu0
      %v5809 = vadd.f32 0.0, %v5808
      %5810 = vmatmul.f32.gmra.mxu0 %v5695
      %v5811 = vpop.f32.mrf.mxu0
      %v5812 = vadd.f32 0.0, %v5811
      %5813 = vmatmul.f32.gmra.mxu0 %v5698
      %v5814 = vpop.f32.mrf.mxu0
      %v5815 = vadd.f32 0.0, %v5814
      %5816 = vmatmul.f32.gmra.mxu0 %v5701
      %v5817 = vpop.f32.mrf.mxu0
      %v5818 = vadd.f32 0.0, %v5817
      %5819 = vmatmul.f32.gmra.mxu0 %v5704
      %v5820 = vpop.f32.mrf.mxu0
      %v5821 = vadd.f32 0.0, %v5820
      %5822 = vmatmul.f32.gmra.mxu0 %v5707
      %v5823 = vpop.f32.mrf.mxu0
      %v5824 = vadd.f32 0.0, %v5823
      %5825 = vmatmul.f32.gmra.mxu0 %v5710
      %v5826 = vpop.f32.mrf.mxu0
      %v5827 = vadd.f32 0.0, %v5826
      %5828 = vmatmul.f32.gmra.mxu0 %v5713
      %v5829 = vpop.f32.mrf.mxu0
      %v5830 = vadd.f32 0.0, %v5829
      %5831 = vmatmul.f32.gmra.mxu0 %v5716
      %v5832 = vpop.f32.mrf.mxu0
      %v5833 = vadd.f32 0.0, %v5832
      %5834 = vmatmul.f32.gmra.mxu0 %v5719
      %v5835 = vpop.f32.mrf.mxu0
      %v5836 = vadd.f32 0.0, %v5835
      %5837 = vmatmul.f32.gmra.mxu0 %v5722
      %v5838 = vpop.f32.mrf.mxu0
      %v5839 = vadd.f32 0.0, %v5838
      %5840 = vmatmul.f32.gmra.mxu0 %v5725
      %v5841 = vpop.f32.mrf.mxu0
      %v5842 = vadd.f32 0.0, %v5841
      %5843 = vmatmul.f32.gmra.mxu0 %v5728
      %v5844 = vpop.f32.mrf.mxu0
      %v5845 = vadd.f32 0.0, %v5844
      %5846 = vdwg.mxu0
      %5847 = vst.msk [vmem:[%s457] sm:$0xff] %vm2850, %v5752
      %5848 = vst.msk [vmem:[%s457 + $0x8] sm:$0xff] %vm2850, %v5755
      %5849 = vst.msk [vmem:[%s457 + $0x10] sm:$0xff] %vm2850, %v5758
      %5850 = vst.msk [vmem:[%s457 + $0x18] sm:$0xff] %vm2850, %v5761
      %5851 = vst.msk [vmem:[%s457 + $0x20] sm:$0xff] %vm2850, %v5764
      %5852 = vst.msk [vmem:[%s457 + $0x28] sm:$0xff] %vm2850, %v5767
      %5853 = vst.msk [vmem:[%s457 + $0x30] sm:$0xff] %vm2850, %v5770
      %5854 = vst.msk [vmem:[%s457 + $0x38] sm:$0xff] %vm2850, %v5773
      %5855 = vst.msk [vmem:[%s457 + $0x40] sm:$0xff] %vm2850, %v5776
      %5856 = vst.msk [vmem:[%s457 + $0x48] sm:$0xff] %vm2850, %v5779
      %5857 = vst.msk [vmem:[%s457 + $0x50] sm:$0xff] %vm2850, %v5782
      %5858 = vst.msk [vmem:[%s457 + $0x58] sm:$0xff] %vm2850, %v5785
      %5859 = vst.msk [vmem:[%s457 + $0x60] sm:$0xff] %vm2850, %v5788
      %5860 = vst.msk [vmem:[%s457 + $0x68] sm:$0xff] %vm2850, %v5791
      %5861 = vst.msk [vmem:[%s457 + $0x70] sm:$0xff] %vm2850, %v5794
      %5862 = vst.msk [vmem:[%s457 + $0x78] sm:$0xff] %vm2850, %v5797
      %5863 = vst.msk [vmem:[%s457 + $0x80] sm:$0xff] %vm2850, %v5800
      %5864 = vst.msk [vmem:[%s457 + $0x88] sm:$0xff] %vm2850, %v5803
      %5865 = vst.msk [vmem:[%s457 + $0x90] sm:$0xff] %vm2850, %v5806
      %5866 = vst.msk [vmem:[%s457 + $0x98] sm:$0xff] %vm2850, %v5809
      %5867 = vst.msk [vmem:[%s457 + $0xa0] sm:$0xff] %vm2850, %v5812
      %5868 = vst.msk [vmem:[%s457 + $0xa8] sm:$0xff] %vm2850, %v5815
      %5869 = vst.msk [vmem:[%s457 + $0xb0] sm:$0xff] %vm2850, %v5818
      %5870 = vst.msk [vmem:[%s457 + $0xb8] sm:$0xff] %vm2850, %v5821
      %5871 = vst.msk [vmem:[%s457 + $0xc0] sm:$0xff] %vm2850, %v5824
      %5872 = vst.msk [vmem:[%s457 + $0xc8] sm:$0xff] %vm2850, %v5827
      %5873 = vst.msk [vmem:[%s457 + $0xd0] sm:$0xff] %vm2850, %v5830
      %5874 = vst.msk [vmem:[%s457 + $0xd8] sm:$0xff] %vm2850, %v5833
      %5875 = vst.msk [vmem:[%s457 + $0xe0] sm:$0xff] %vm2850, %v5836
      %5876 = vst.msk [vmem:[%s457 + $0xe8] sm:$0xff] %vm2850, %v5839
      %5877 = vst.msk [vmem:[%s457 + $0xf0] sm:$0xff] %vm2850, %v5842
      %5878 = vst.msk [vmem:[%s457 + $0xf8] sm:$0xff] %vm2850, %v5845
      %v5879 = vsel %vm2850, %v5752, 0.0
      %v5880 = vsel %vm2850, %v5755, 0.0
      %v5881 = vadd.f32 %v5879, %v5880
      %v5882 = vsel %vm2850, %v5758, 0.0
      %v5883 = vadd.f32 %v5881, %v5882
      %v5884 = vsel %vm2850, %v5761, 0.0
      %v5885 = vadd.f32 %v5883, %v5884
      %v5886 = vsel %vm2850, %v5764, 0.0
      %v5887 = vadd.f32 %v5885, %v5886
      %v5888 = vsel %vm2850, %v5767, 0.0
      %v5889 = vadd.f32 %v5887, %v5888
      %v5890 = vsel %vm2850, %v5770, 0.0
      %v5891 = vadd.f32 %v5889, %v5890
      %v5892 = vsel %vm2850, %v5773, 0.0
      %v5893 = vadd.f32 %v5891, %v5892
      %v5894 = vsel %vm2850, %v5776, 0.0
      %v5895 = vadd.f32 %v5893, %v5894
      %v5896 = vsel %vm2850, %v5779, 0.0
      %v5897 = vadd.f32 %v5895, %v5896
      %v5898 = vsel %vm2850, %v5782, 0.0
      %v5899 = vadd.f32 %v5897, %v5898
      %v5900 = vsel %vm2850, %v5785, 0.0
      %v5901 = vadd.f32 %v5899, %v5900
      %v5902 = vsel %vm2850, %v5788, 0.0
      %v5903 = vadd.f32 %v5901, %v5902
      %v5904 = vsel %vm2850, %v5791, 0.0
      %v5905 = vadd.f32 %v5903, %v5904
      %v5906 = vsel %vm2850, %v5794, 0.0
      %v5907 = vadd.f32 %v5905, %v5906
      %v5908 = vsel %vm2850, %v5797, 0.0
      %v5909 = vadd.f32 %v5907, %v5908
      %v5910 = vsel %vm2850, %v5800, 0.0
      %v5911 = vadd.f32 %v5909, %v5910
      %v5912 = vsel %vm2850, %v5803, 0.0
      %v5913 = vadd.f32 %v5911, %v5912
      %v5914 = vsel %vm2850, %v5806, 0.0
      %v5915 = vadd.f32 %v5913, %v5914
      %v5916 = vsel %vm2850, %v5809, 0.0
      %v5917 = vadd.f32 %v5915, %v5916
      %v5918 = vsel %vm2850, %v5812, 0.0
      %v5919 = vadd.f32 %v5917, %v5918
      %v5920 = vsel %vm2850, %v5815, 0.0
      %v5921 = vadd.f32 %v5919, %v5920
      %v5922 = vsel %vm2850, %v5818, 0.0
      %v5923 = vadd.f32 %v5921, %v5922
      %v5924 = vsel %vm2850, %v5821, 0.0
      %v5925 = vadd.f32 %v5923, %v5924
      %v5926 = vsel %vm2850, %v5824, 0.0
      %v5927 = vadd.f32 %v5925, %v5926
      %v5928 = vsel %vm2850, %v5827, 0.0
      %v5929 = vadd.f32 %v5927, %v5928
      %v5930 = vsel %vm2850, %v5830, 0.0
      %v5931 = vadd.f32 %v5929, %v5930
      %v5932 = vsel %vm2850, %v5833, 0.0
      %v5933 = vadd.f32 %v5931, %v5932
      %v5934 = vsel %vm2850, %v5836, 0.0
      %v5935 = vadd.f32 %v5933, %v5934
      %v5936 = vsel %vm2850, %v5839, 0.0
      %v5937 = vadd.f32 %v5935, %v5936
      %v5938 = vsel %vm2850, %v5842, 0.0
      %v5939 = vadd.f32 %v5937, %v5938
      %v5940 = vsel %vm2850, %v5845, 0.0
      %v5941 = vadd.f32 %v5939, %v5940
      %v5942 = vrot.slane %v5941, 4
      %v5943 = vadd.f32 %v5941, %v5942
      %v5944 = vrot.slane %v5943, 2
      %v5945 = vadd.f32 %v5943, %v5944
      %v5946 = vrot.slane %v5945, 1
      %v5947 = vadd.f32 %v5945, %v5946
      %v5948 = vmul.f32 %v5752, %v5752
      %v5949 = vmul.f32 %v5755, %v5755
      %v5950 = vmul.f32 %v5758, %v5758
      %v5951 = vmul.f32 %v5761, %v5761
      %v5952 = vmul.f32 %v5764, %v5764
      %v5953 = vmul.f32 %v5767, %v5767
      %v5954 = vmul.f32 %v5770, %v5770
      %v5955 = vmul.f32 %v5773, %v5773
      %v5956 = vmul.f32 %v5776, %v5776
      %v5957 = vmul.f32 %v5779, %v5779
      %v5958 = vmul.f32 %v5782, %v5782
      %v5959 = vmul.f32 %v5785, %v5785
      %v5960 = vmul.f32 %v5788, %v5788
      %v5961 = vmul.f32 %v5791, %v5791
      %v5962 = vmul.f32 %v5794, %v5794
      %v5963 = vmul.f32 %v5797, %v5797
      %v5964 = vmul.f32 %v5800, %v5800
      %v5965 = vmul.f32 %v5803, %v5803
      %v5966 = vmul.f32 %v5806, %v5806
      %v5967 = vmul.f32 %v5809, %v5809
      %v5968 = vmul.f32 %v5812, %v5812
      %v5969 = vmul.f32 %v5815, %v5815
      %v5970 = vmul.f32 %v5818, %v5818
      %v5971 = vmul.f32 %v5821, %v5821
      %v5972 = vmul.f32 %v5824, %v5824
      %v5973 = vmul.f32 %v5827, %v5827
      %v5974 = vmul.f32 %v5830, %v5830
      %v5975 = vmul.f32 %v5833, %v5833
      %v5976 = vmul.f32 %v5836, %v5836
      %v5977 = vmul.f32 %v5839, %v5839
      %v5978 = vmul.f32 %v5842, %v5842
      %v5979 = vmul.f32 %v5845, %v5845
      %v5980 = vsel %vm2850, %v5948, 0.0
      %v5981 = vsel %vm2850, %v5949, 0.0
      %v5982 = vadd.f32 %v5980, %v5981
      %v5983 = vsel %vm2850, %v5950, 0.0
      %v5984 = vadd.f32 %v5982, %v5983
      %v5985 = vsel %vm2850, %v5951, 0.0
      %v5986 = vadd.f32 %v5984, %v5985
      %v5987 = vsel %vm2850, %v5952, 0.0
      %v5988 = vadd.f32 %v5986, %v5987
      %v5989 = vsel %vm2850, %v5953, 0.0
      %v5990 = vadd.f32 %v5988, %v5989
      %v5991 = vsel %vm2850, %v5954, 0.0
      %v5992 = vadd.f32 %v5990, %v5991
      %v5993 = vsel %vm2850, %v5955, 0.0
      %v5994 = vadd.f32 %v5992, %v5993
      %v5995 = vsel %vm2850, %v5956, 0.0
      %v5996 = vadd.f32 %v5994, %v5995
      %v5997 = vsel %vm2850, %v5957, 0.0
      %v5998 = vadd.f32 %v5996, %v5997
      %v5999 = vsel %vm2850, %v5958, 0.0
      %v6000 = vadd.f32 %v5998, %v5999
      %v6001 = vsel %vm2850, %v5959, 0.0
      %v6002 = vadd.f32 %v6000, %v6001
      %v6003 = vsel %vm2850, %v5960, 0.0
      %v6004 = vadd.f32 %v6002, %v6003
      %v6005 = vsel %vm2850, %v5961, 0.0
      %v6006 = vadd.f32 %v6004, %v6005
      %v6007 = vsel %vm2850, %v5962, 0.0
      %v6008 = vadd.f32 %v6006, %v6007
      %v6009 = vsel %vm2850, %v5963, 0.0
      %v6010 = vadd.f32 %v6008, %v6009
      %v6011 = vsel %vm2850, %v5964, 0.0
      %v6012 = vadd.f32 %v6010, %v6011
      %v6013 = vsel %vm2850, %v5965, 0.0
      %v6014 = vadd.f32 %v6012, %v6013
      %v6015 = vsel %vm2850, %v5966, 0.0
      %v6016 = vadd.f32 %v6014, %v6015
      %v6017 = vsel %vm2850, %v5967, 0.0
      %v6018 = vadd.f32 %v6016, %v6017
      %v6019 = vsel %vm2850, %v5968, 0.0
      %v6020 = vadd.f32 %v6018, %v6019
      %v6021 = vsel %vm2850, %v5969, 0.0
      %v6022 = vadd.f32 %v6020, %v6021
      %v6023 = vsel %vm2850, %v5970, 0.0
      %v6024 = vadd.f32 %v6022, %v6023
      %v6025 = vsel %vm2850, %v5971, 0.0
      %v6026 = vadd.f32 %v6024, %v6025
      %v6027 = vsel %vm2850, %v5972, 0.0
      %v6028 = vadd.f32 %v6026, %v6027
      %v6029 = vsel %vm2850, %v5973, 0.0
      %v6030 = vadd.f32 %v6028, %v6029
      %v6031 = vsel %vm2850, %v5974, 0.0
      %v6032 = vadd.f32 %v6030, %v6031
      %v6033 = vsel %vm2850, %v5975, 0.0
      %v6034 = vadd.f32 %v6032, %v6033
      %v6035 = vsel %vm2850, %v5976, 0.0
      %v6036 = vadd.f32 %v6034, %v6035
      %v6037 = vsel %vm2850, %v5977, 0.0
      %v6038 = vadd.f32 %v6036, %v6037
      %v6039 = vsel %vm2850, %v5978, 0.0
      %v6040 = vadd.f32 %v6038, %v6039
      %v6041 = vsel %vm2850, %v5979, 0.0
      %v6042 = vadd.f32 %v6040, %v6041
      %v6043 = vrot.slane %v6042, 4
      %v6044 = vadd.f32 %v6042, %v6043
      %v6045 = vrot.slane %v6044, 2
      %v6046 = vadd.f32 %v6044, %v6045
      %v6047 = vrot.slane %v6046, 1
      %v6048 = vadd.f32 %v6046, %v6047
      %vm6049 = vcmask 1040384
      %v6050 = vsel %vm6049, %v5947, %v6048
      %vm6051 = vcmask 58368
      %6052 = vst.msk [vmem:[%s465] sm:$0x3] %vm6051, %v6050
      %s6053 = smul.u32 4, %s24
      %p6054 = scmp.lt.s32.totalorder %s23, 1
      %s6055 = scalar_select %p6054, %s23, 1
      %p6056 = scmp.lt.s32.totalorder %s6053, 3
      %s6057 = scalar_select %p6056, %s6053, 3
      %s6058 = smul.addr %s6057, 8
      %s6059 = smul.addr %s6055, 32
      %s6060 = sadd.s32 %s6058, %s6059
      %s6061 = smul.addr %s6060, 8
      %s6062 = scalar_lea.vmem %s6, %s6061
      %p6063 = scmp.lt.s32.totalorder %s23, 1
      %s6064 = scalar_select %p6063, %s23, 1
      %p6065 = scmp.lt.s32.totalorder %s24, 0
      %s6066 = scalar_select %p6065, %s24, 0
      %s6067 = sadd.s32 %s6066, %s6064
      %s6068 = smul.addr %s6067, 2
      %s6069 = scalar_lea.vmem %s7, %s6068
      // Predicated region
      $region45: #{down_double_3d_conv.4} parent=43 // pred_check
        %p6070 = pneg %p214
      $region46: #{down_double_3d_conv.4} parent=43 // pred_check_branch
        %6072 = sbr.rel (%p6070) target = $region48
      $region47: #{down_double_3d_conv.4} parent=43 // pred_region
        %s6073 = smul.u32 4, %s24
      $region48: #{down_double_3d_conv.4} parent=43 // pred_fallthru
        _
      // Predicated region
      $region49: #{down_double_3d_conv.4} parent=43 // pred_check
        %p6074 = pneg %p242
      $region50: #{down_double_3d_conv.4} parent=43 // pred_check_branch
        %6076 = sbr.rel (%p6074) target = $region52
      $region51: #{down_double_3d_conv.4} parent=43 // pred_region
        _
      $region52: #{down_double_3d_conv.4} parent=43 // pred_fallthru
        _
    $region44: #{down_double_3d_conv.4} parent=5 // pred_fallthru
      _
    %p6077 = scmp.le.s32.totalorder 2, %s14
    // Predicated region
    $region53: #{down_double_3d_conv.4} parent=5 // pred_check
      %p6078 = pneg %p6077
    $region54: #{down_double_3d_conv.4} parent=5 // pred_check_branch
      %6080 = sbr.rel (%p6078) target = $region56
    $region55: #{down_double_3d_conv.4} parent=5 // pred_region
      %s6081 = ssub.s32 %s14, 2
      // Predicated region
      $region57: #{down_double_3d_conv.4} parent=55 // pred_check
        %p6082 = pneg %p220
      $region58: #{down_double_3d_conv.4} parent=55 // pred_check_branch
        %6084 = sbr.rel (%p6082) target = $region60
      $region59: #{down_double_3d_conv.4} parent=55 // pred_region
        %s6085 = smul.u32 4, %s26
        %p6086 = scmp.lt.s32.totalorder %s25, 1
        %s6087 = scalar_select %p6086, %s25, 1
        %p6088 = scmp.lt.s32.totalorder %s6085, 3
        %s6089 = scalar_select %p6088, %s6085, 3
        %s6090 = smul.addr %s6089, 8
        %s6091 = smul.addr %s6087, 32
        %s6092 = sadd.s32 %s6090, %s6091
        %s6093 = smul.addr %s6092, 8
        %s6094 = scalar_lea.vmem %s6, %s6093
      $region60: #{down_double_3d_conv.4} parent=55 // pred_fallthru
        _
      // Predicated region
      $region61: #{down_double_3d_conv.4} parent=55 // pred_check
        %p6095 = pneg %p248
      $region62: #{down_double_3d_conv.4} parent=55 // pred_check_branch
        %6097 = sbr.rel (%p6095) target = $region64
      $region63: #{down_double_3d_conv.4} parent=55 // pred_region
        %p6098 = scmp.lt.s32.totalorder %s25, 1
        %s6099 = scalar_select %p6098, %s25, 1
        %p6100 = scmp.lt.s32.totalorder %s26, 0
        %s6101 = scalar_select %p6100, %s26, 0
        %s6102 = sadd.s32 %s6101, %s6099
        %s6103 = smul.addr %s6102, 2
        %s6104 = scalar_lea.vmem %s7, %s6103
      $region64: #{down_double_3d_conv.4} parent=55 // pred_fallthru
        _
    $region56: #{down_double_3d_conv.4} parent=5 // pred_fallthru
      _
  $region6: #{down_double_3d_conv.4} parent=0 // loop_footer
    %s18 = sadd.s32 1, %s14
  $region7: #{down_double_3d_conv.4} parent=0 // loop_footer_branch
    %13 = sbr.rel target = $region3
  $region8: #{down_double_3d_conv.4} parent=0 // loop_exit
    _

// kernel: down_double_3d_conv.3
$region0: #{down_double_3d_conv.3}
  #allocation0 [shape = 'u32[]', space=smem, size = 0x4, offset = 0x4, fixed_abs, tag = 'smem constant byte address 0x4 - core index']
  #allocation1 [shape = 'u32[72,128]{1,0:T(1,128)}', space=vmem, size = 0x9000, scoped, tag = 'internal scratch']
  #allocation2 [shape = 'f32[6,10,10,4]{3,2,1,0:T(8,128)}', space=vmem, size = 0x78000, scoped, tag = 'scratch operand']
  %s0 = inlined_call_operand.vmem [shape: f32[2,4,8,8,4], index: 0, kind: input, shape index: {}, may-alias: {0,1,2}]
  %s1 = inlined_call_operand.vmem [shape: f32[2,4,8,8,4], index: 1, kind: input, shape index: {}, may-alias: {0,1,2}]
  %s2 = inlined_call_operand.vmem [shape: f32[2,4,8,8,4], index: 2, kind: input, shape index: {}, may-alias: {0,1,2}]
  %s3 = inlined_call_operand.vmem [shape: f32[108,128], index: 3, kind: input, shape index: {}]
  %s4 = inlined_call_operand.vmem [shape: f32[2,4,8,8,4], index: 4, kind: output, shape index: {0}]
  %s5 = inlined_call_operand.vmem [shape: f32[2,1,2,4], index: 5, kind: output, shape index: {1}]
  %6 = xla_tuple %s4, %s5
  %s7 = sld [smem:[#allocation0]]
  $region57: #{down_double_3d_conv.3} parent=0
    _
  %s9 = ssub.s32 1, %s7
  %s10 = scalar_select 0, %s9, %s7
  loop: start=0, step=1, limit=4
  $region2: #{down_double_3d_conv.3} parent=0 // loop_pre_header
    _
  $region3: #{down_double_3d_conv.3} parent=0 // loop_header
    %s12 = sphi 0, %s16
    %p13 = scmp.ge.s32.totalorder %s12, 4
    %s19 = sphi 0, %s31
    %s20 = sphi 0, %s27
    %s21 = sphi 0, %s19
    %s22 = sphi 0, %s20
    %s23 = sphi 0, %s21
    %s24 = sphi 0, %s22
    %s44 = sphi 0, %s46
    %s47 = sphi 0, %s44
    %s48 = sphi 0, %s47
    %s64 = sphi 0, %s48
    %s72 = sphi 0, %s74
    %s75 = sphi 0, %s72
    %s76 = sphi 0, %s75
    %s92 = sphi 0, %s76
    %s108 = sphi 0, %s110
    %s111 = sphi 0, %s108
    %s112 = sphi 0, %s111
    %s128 = sphi 0, %s112
    %s132 = sphi 0, %s132
    %s134 = sphi 0, %s132
    %s135 = sphi 0, %s134
    %s149 = sphi 0, %s135
    %s157 = sphi 0, %s159
    %s160 = sphi 0, %s157
    %s161 = sphi 0, %s160
    %s177 = sphi 0, %s161
    %s185 = sphi 0, %s187
    %s188 = sphi 0, %s185
    %s189 = sphi 0, %s188
    %s205 = sphi 0, %s189
  $region4: #{down_double_3d_conv.3} parent=0 // loop_header_branch
    %15 = sbr.rel (%p13) target = $region8
  $region5: #{down_double_3d_conv.3} parent=0 // loop_body
    %s17 = ssub.s32 %s12, 1
    %s18 = ssub.s32 %s12, 2
    %s25 = sadd.s32 1, %s20
    %p26 = scmp.ge.s32.totalorder %s25, 1
    %s27 = scalar_select %p26, 0, %s25
    %s28 = sadd.s32 1, %s19
    %s29 = scalar_select %p26, %s28, %s19
    %p30 = scmp.ge.s32.totalorder %s29, 2
    %s31 = scalar_select %p30, 0, %s29
    %s32 = smul.u32 %s20, 4
    %s33 = ssub.s32 %s32, 1
    %p34 = scmp.gt.s32.totalorder %s33, 0
    %s35 = scalar_select %p34, %s33, 0
    %s36 = smul.u32 %s27, 4
    %s37 = ssub.s32 %s36, 1
    %p38 = scmp.gt.s32.totalorder %s37, 0
    %s39 = scalar_select %p38, %s37, 0
    %s40 = ssub.s32 %s19, %s31
    %s41 = ssub.s32 %s35, %s39
    %s42 = sor.u32 %s40, %s41
    %p43 = scmp.eq.s32.totalorder %s42, 0
    %s45 = sadd.s32 %s44, 1
    %s46 = scalar_select %p43, %s44, %s45
    %p49 = pneg %p43
    %p50 = scmp.eq.s32.totalorder %s12, 1
    %p51 = por %p49, %p50
    %p52 = scmp.ne.s32.totalorder %s44, %s47
    %p53 = scmp.eq.s32.totalorder %s12, 0
    %p54 = por %p52, %p53
    %p55 = scmp.ne.s32.totalorder %s44, %s47
    %p56 = scmp.eq.s32.totalorder %s17, 1
    %p57 = por %p55, %p56
    %p58 = scmp.ne.s32.totalorder %s47, %s48
    %p59 = scmp.eq.s32.totalorder %s17, 0
    %p60 = por %p58, %p59
    %p61 = scmp.ne.s32.totalorder %s47, %s48
    %p62 = scmp.eq.s32.totalorder %s18, 1
    %p63 = por %p61, %p62
    %p65 = scmp.ne.s32.totalorder %s48, %s64
    %p66 = scmp.eq.s32.totalorder %s18, 0
    %p67 = por %p65, %p66
    %s68 = ssub.s32 %s19, %s31
    %s69 = ssub.s32 %s20, %s27
    %s70 = sor.u32 %s68, %s69
    %p71 = scmp.eq.s32.totalorder %s70, 0
    %s73 = sadd.s32 %s72, 1
    %s74 = scalar_select %p71, %s72, %s73
    %p77 = pneg %p71
    %p78 = scmp.eq.s32.totalorder %s12, 1
    %p79 = por %p77, %p78
    %p80 = scmp.ne.s32.totalorder %s72, %s75
    %p81 = scmp.eq.s32.totalorder %s12, 0
    %p82 = por %p80, %p81
    %p83 = scmp.ne.s32.totalorder %s72, %s75
    %p84 = scmp.eq.s32.totalorder %s17, 1
    %p85 = por %p83, %p84
    %p86 = scmp.ne.s32.totalorder %s75, %s76
    %p87 = scmp.eq.s32.totalorder %s17, 0
    %p88 = por %p86, %p87
    %p89 = scmp.ne.s32.totalorder %s75, %s76
    %p90 = scmp.eq.s32.totalorder %s18, 1
    %p91 = por %p89, %p90
    %p93 = scmp.ne.s32.totalorder %s76, %s92
    %p94 = scmp.eq.s32.totalorder %s18, 0
    %p95 = por %p93, %p94
    %s96 = sadd.s32 %s20, 1
    %s97 = smul.u32 %s96, 4
    %p98 = scmp.lt.s32.totalorder %s97, 3
    %s99 = scalar_select %p98, %s97, 3
    %s100 = sadd.s32 %s27, 1
    %s101 = smul.u32 %s100, 4
    %p102 = scmp.lt.s32.totalorder %s101, 3
    %s103 = scalar_select %p102, %s101, 3
    %s104 = ssub.s32 %s19, %s31
    %s105 = ssub.s32 %s99, %s103
    %s106 = sor.u32 %s104, %s105
    %p107 = scmp.eq.s32.totalorder %s106, 0
    %s109 = sadd.s32 %s108, 1
    %s110 = scalar_select %p107, %s108, %s109
    %p113 = pneg %p107
    %p114 = scmp.eq.s32.totalorder %s12, 1
    %p115 = por %p113, %p114
    %p116 = scmp.ne.s32.totalorder %s108, %s111
    %p117 = scmp.eq.s32.totalorder %s12, 0
    %p118 = por %p116, %p117
    %p119 = scmp.ne.s32.totalorder %s108, %s111
    %p120 = scmp.eq.s32.totalorder %s17, 1
    %p121 = por %p119, %p120
    %p122 = scmp.ne.s32.totalorder %s111, %s112
    %p123 = scmp.eq.s32.totalorder %s17, 0
    %p124 = por %p122, %p123
    %p125 = scmp.ne.s32.totalorder %s111, %s112
    %p126 = scmp.eq.s32.totalorder %s18, 1
    %p127 = por %p125, %p126
    %p129 = scmp.ne.s32.totalorder %s112, %s128
    %p130 = scmp.eq.s32.totalorder %s18, 0
    %p131 = por %p129, %p130
    %s133 = sadd.s32 %s132, 1
    %p136 = scmp.eq.s32.totalorder %s12, 1
    %p137 = scmp.ne.s32.totalorder %s132, %s134
    %p138 = scmp.eq.s32.totalorder %s12, 0
    %p139 = por %p137, %p138
    %p140 = scmp.ne.s32.totalorder %s132, %s134
    %p141 = scmp.eq.s32.totalorder %s17, 1
    %p142 = por %p140, %p141
    %p143 = scmp.ne.s32.totalorder %s134, %s135
    %p144 = scmp.eq.s32.totalorder %s17, 0
    %p145 = por %p143, %p144
    %p146 = scmp.ne.s32.totalorder %s134, %s135
    %p147 = scmp.eq.s32.totalorder %s18, 1
    %p148 = por %p146, %p147
    %p150 = scmp.ne.s32.totalorder %s135, %s149
    %p151 = scmp.eq.s32.totalorder %s18, 0
    %p152 = por %p150, %p151
    %s153 = ssub.s32 %s19, %s31
    %s154 = ssub.s32 %s20, %s27
    %s155 = sor.u32 %s153, %s154
    %p156 = scmp.eq.s32.totalorder %s155, 0
    %s158 = sadd.s32 %s157, 1
    %s159 = scalar_select %p156, %s157, %s158
    %p162 = pneg %p156
    %p163 = scmp.eq.s32.totalorder %s12, 1
    %p164 = por %p162, %p163
    %p165 = scmp.ne.s32.totalorder %s157, %s160
    %p166 = scmp.eq.s32.totalorder %s12, 0
    %p167 = por %p165, %p166
    %p168 = scmp.ne.s32.totalorder %s157, %s160
    %p169 = scmp.eq.s32.totalorder %s17, 1
    %p170 = por %p168, %p169
    %p171 = scmp.ne.s32.totalorder %s160, %s161
    %p172 = scmp.eq.s32.totalorder %s17, 0
    %p173 = por %p171, %p172
    %p174 = scmp.ne.s32.totalorder %s160, %s161
    %p175 = scmp.eq.s32.totalorder %s18, 1
    %p176 = por %p174, %p175
    %p178 = scmp.ne.s32.totalorder %s161, %s177
    %p179 = scmp.eq.s32.totalorder %s18, 0
    %p180 = por %p178, %p179
    %s181 = ssub.s32 %s19, %s31
    %s182 = ssub.s32 %s20, %s27
    %s183 = sor.u32 %s181, %s182
    %p184 = scmp.eq.s32.totalorder %s183, 0
    %s186 = sadd.s32 %s185, 1
    %s187 = scalar_select %p184, %s185, %s186
    %p190 = pneg %p184
    %p191 = scmp.eq.s32.totalorder %s12, 1
    %p192 = por %p190, %p191
    %p193 = scmp.ne.s32.totalorder %s185, %s188
    %p194 = scmp.eq.s32.totalorder %s12, 0
    %p195 = por %p193, %p194
    %p196 = scmp.ne.s32.totalorder %s185, %s188
    %p197 = scmp.eq.s32.totalorder %s17, 1
    %p198 = por %p196, %p197
    %p199 = scmp.ne.s32.totalorder %s188, %s189
    %p200 = scmp.eq.s32.totalorder %s17, 0
    %p201 = por %p199, %p200
    %p202 = scmp.ne.s32.totalorder %s188, %s189
    %p203 = scmp.eq.s32.totalorder %s18, 1
    %p204 = por %p202, %p203
    %p206 = scmp.ne.s32.totalorder %s189, %s205
    %p207 = scmp.eq.s32.totalorder %s18, 0
    %p208 = por %p206, %p207
    %p209 = scmp.le.s32.totalorder 1, %s12
    %p210 = scmp.lt.s32.totalorder %s12, 3
    %p211 = pnand %p209, %p210
    %p212 = pneg %p211
    // Predicated region
    $region9: #{down_double_3d_conv.3} parent=5 // pred_check
      _
    $region10: #{down_double_3d_conv.3} parent=5 // pred_check_branch
      %214 = sbr.rel (%p211) target = $region12
    $region11: #{down_double_3d_conv.3} parent=5 // pred_region
      %s215 = ssub.s32 %s12, 1
      // Predicated region
      $region13: #{down_double_3d_conv.3} parent=11 // pred_check
        %p216 = pneg %p145
      $region14: #{down_double_3d_conv.3} parent=11 // pred_check_branch
        %218 = sbr.rel (%p216) target = $region16
      $region15: #{down_double_3d_conv.3} parent=11 // pred_region
        _
      $region16: #{down_double_3d_conv.3} parent=11 // pred_fallthru
        _
    $region12: #{down_double_3d_conv.3} parent=5 // pred_fallthru
      _
    %p219 = scmp.lt.s32.totalorder %s12, 2
    // Predicated region
    $region17: #{down_double_3d_conv.3} parent=5 // pred_check
      %p220 = pneg %p219
    $region18: #{down_double_3d_conv.3} parent=5 // pred_check_branch
      %222 = sbr.rel (%p220) target = $region20
    $region19: #{down_double_3d_conv.3} parent=5 // pred_region
      // Predicated region
      $region21: #{down_double_3d_conv.3} parent=19 // pred_check
        %p223 = pneg %p54
      $region22: #{down_double_3d_conv.3} parent=19 // pred_check_branch
        %225 = sbr.rel (%p223) target = $region24
      $region23: #{down_double_3d_conv.3} parent=19 // pred_region
        %s226 = smul.u32 %s20, 4
        %s227 = ssub.s32 %s226, 1
        %p228 = scmp.gt.s32.totalorder %s227, 0
        %s229 = scalar_select %p228, %s227, 0
        %p230 = scmp.lt.s32.totalorder %s19, 1
        %s231 = scalar_select %p230, %s19, 1
        %p232 = scmp.lt.s32.totalorder %s229, 3
        %s233 = scalar_select %p232, %s229, 3
        %s234 = smul.addr %s233, 8
        %s235 = smul.addr %s231, 32
        %s236 = sadd.s32 %s234, %s235
        %s237 = smul.addr %s236, 8
        %s238 = scalar_lea.vmem %s0, %s237
        %s239 = smul.u32 %s20, 4
        %s240 = ssub.s32 %s239, 1
        %p241 = scmp.gt.s32.totalorder %s240, 0
        %s242 = scalar_select %p241, %s240, 0
      $region24: #{down_double_3d_conv.3} parent=19 // pred_fallthru
        _
      // Predicated region
      $region25: #{down_double_3d_conv.3} parent=19 // pred_check
        %p243 = pneg %p82
      $region26: #{down_double_3d_conv.3} parent=19 // pred_check_branch
        %245 = sbr.rel (%p243) target = $region28
      $region27: #{down_double_3d_conv.3} parent=19 // pred_region
        %s246 = smul.u32 4, %s20
        %p247 = scmp.lt.s32.totalorder %s19, 1
        %s248 = scalar_select %p247, %s19, 1
        %p249 = scmp.lt.s32.totalorder %s246, 3
        %s250 = scalar_select %p249, %s246, 3
        %s251 = smul.addr %s250, 8
        %s252 = smul.addr %s248, 32
        %s253 = sadd.s32 %s251, %s252
        %s254 = smul.addr %s253, 8
        %s255 = scalar_lea.vmem %s1, %s254
        %s256 = smul.u32 4, %s20
      $region28: #{down_double_3d_conv.3} parent=19 // pred_fallthru
        _
      // Predicated region
      $region29: #{down_double_3d_conv.3} parent=19 // pred_check
        %p257 = pneg %p118
      $region30: #{down_double_3d_conv.3} parent=19 // pred_check_branch
        %259 = sbr.rel (%p257) target = $region32
      $region31: #{down_double_3d_conv.3} parent=19 // pred_region
        %s260 = sadd.s32 %s20, 1
        %s261 = smul.u32 %s260, 4
        %p262 = scmp.lt.s32.totalorder %s261, 3
        %s263 = scalar_select %p262, %s261, 3
        %p264 = scmp.lt.s32.totalorder %s19, 1
        %s265 = scalar_select %p264, %s19, 1
        %p266 = scmp.lt.s32.totalorder %s263, 3
        %s267 = scalar_select %p266, %s263, 3
        %s268 = smul.addr %s267, 8
        %s269 = smul.addr %s265, 32
        %s270 = sadd.s32 %s268, %s269
        %s271 = smul.addr %s270, 8
        %s272 = scalar_lea.vmem %s2, %s271
        %s273 = sadd.s32 %s20, 1
        %s274 = smul.u32 %s273, 4
        %p275 = scmp.lt.s32.totalorder %s274, 3
        %s276 = scalar_select %p275, %s274, 3
      $region32: #{down_double_3d_conv.3} parent=19 // pred_fallthru
        _
    $region20: #{down_double_3d_conv.3} parent=5 // pred_fallthru
      _
    %p277 = scmp.le.s32.totalorder 1, %s12
    %p278 = scmp.lt.s32.totalorder %s12, 3
    %p279 = pnand %p277, %p278
    %p280 = pneg %p279
    // Predicated region
    $region33: #{down_double_3d_conv.3} parent=5 // pred_check
      _
    $region34: #{down_double_3d_conv.3} parent=5 // pred_check_branch
      %282 = sbr.rel (%p279) target = $region36
    $region35: #{down_double_3d_conv.3} parent=5 // pred_region
      %s283 = ssub.s32 %s12, 1
      %s284 = smul.u32 %s22, 4
      %s285 = ssub.s32 %s284, 1
      %p286 = scmp.gt.s32.totalorder %s285, 0
      %s287 = scalar_select %p286, %s285, 0
      %p288 = scmp.lt.s32.totalorder %s21, 1
      %s289 = scalar_select %p288, %s21, 1
      %p290 = scmp.lt.s32.totalorder %s287, 3
      %s291 = scalar_select %p290, %s287, 3
      %s292 = smul.addr %s291, 8
      %s293 = smul.addr %s289, 32
      %s294 = sadd.s32 %s292, %s293
      %s295 = smul.addr %s294, 8
      %s296 = scalar_lea.vmem %s0, %s295
      %p297 = pneg %p60
      %p298 = pneg %p57
      %s299 = smul.u32 4, %s22
      %p300 = scmp.lt.s32.totalorder %s21, 1
      %s301 = scalar_select %p300, %s21, 1
      %p302 = scmp.lt.s32.totalorder %s299, 3
      %s303 = scalar_select %p302, %s299, 3
      %s304 = smul.addr %s303, 8
      %s305 = smul.addr %s301, 32
      %s306 = sadd.s32 %s304, %s305
      %s307 = smul.addr %s306, 8
      %s308 = scalar_lea.vmem %s1, %s307
      %p309 = pneg %p88
      %p310 = pneg %p85
      %s311 = sadd.s32 %s22, 1
      %s312 = smul.u32 %s311, 4
      %p313 = scmp.lt.s32.totalorder %s312, 3
      %s314 = scalar_select %p313, %s312, 3
      %p315 = scmp.lt.s32.totalorder %s21, 1
      %s316 = scalar_select %p315, %s21, 1
      %p317 = scmp.lt.s32.totalorder %s314, 3
      %s318 = scalar_select %p317, %s314, 3
      %s319 = smul.addr %s318, 8
      %s320 = smul.addr %s316, 32
      %s321 = sadd.s32 %s319, %s320
      %s322 = smul.addr %s321, 8
      %s323 = scalar_lea.vmem %s2, %s322
      %p324 = pneg %p124
      %p325 = pneg %p121
      %p326 = pneg %p145
      %p327 = pneg %p142
      %p328 = pneg %p173
      %p329 = pneg %p170
      %s330 = smul.u32 4, %s22
      %p331 = scmp.lt.s32.totalorder %s21, 1
      %s332 = scalar_select %p331, %s21, 1
      %p333 = scmp.lt.s32.totalorder %s330, 3
      %s334 = scalar_select %p333, %s330, 3
      %s335 = smul.addr %s334, 8
      %s336 = smul.addr %s332, 32
      %s337 = sadd.s32 %s335, %s336
      %s338 = smul.addr %s337, 8
      %s339 = scalar_lea.vmem %s4, %s338
      %p340 = pneg %p201
      %p341 = pneg %p198
      %p342 = scmp.lt.s32.totalorder %s21, 1
      %s343 = scalar_select %p342, %s21, 1
      %p344 = scmp.lt.s32.totalorder %s22, 0
      %s345 = scalar_select %p344, %s22, 0
      %s346 = sadd.s32 %s345, %s343
      %s347 = smul.addr %s346, 2
      %s348 = scalar_lea.vmem %s5, %s347
      %s349 = smul.u32 %s22, 4
      %s350 = ssub.s32 %s349, 1
      %p351 = scmp.gt.s32.totalorder %s350, 0
      %s352 = scalar_select %p351, %s350, 0
      %p353 = scmp.lt.s32.totalorder %s21, 1
      %s354 = scalar_select %p353, %s21, 1
      %p355 = scmp.lt.s32.totalorder %s352, 3
      %s356 = scalar_select %p355, %s352, 3
      %s357 = smul.addr %s356, 8
      %s358 = smul.addr %s354, 32
      %s359 = sadd.s32 %s357, %s358
      %s360 = smul.addr %s359, 8
      %s361 = scalar_lea.vmem %s0, %s360
      %s362 = smul.u32 %s22, 4
      %s363 = ssub.s32 %s362, 1
      %p364 = scmp.gt.s32.totalorder %s363, 0
      %s365 = scalar_select %p364, %s363, 0
      %s366 = smul.u32 4, %s22
      %p367 = scmp.lt.s32.totalorder %s21, 1
      %s368 = scalar_select %p367, %s21, 1
      %p369 = scmp.lt.s32.totalorder %s366, 3
      %s370 = scalar_select %p369, %s366, 3
      %s371 = smul.addr %s370, 8
      %s372 = smul.addr %s368, 32
      %s373 = sadd.s32 %s371, %s372
      %s374 = smul.addr %s373, 8
      %s375 = scalar_lea.vmem %s1, %s374
      %s376 = smul.u32 4, %s22
      %s377 = sadd.s32 %s22, 1
      %s378 = smul.u32 %s377, 4
      %p379 = scmp.lt.s32.totalorder %s378, 3
      %s380 = scalar_select %p379, %s378, 3
      %p381 = scmp.lt.s32.totalorder %s21, 1
      %s382 = scalar_select %p381, %s21, 1
      %p383 = scmp.lt.s32.totalorder %s380, 3
      %s384 = scalar_select %p383, %s380, 3
      %s385 = smul.addr %s384, 8
      %s386 = smul.addr %s382, 32
      %s387 = sadd.s32 %s385, %s386
      %s388 = smul.addr %s387, 8
      %s389 = scalar_lea.vmem %s2, %s388
      %s390 = sadd.s32 %s22, 1
      %s391 = smul.u32 %s390, 4
      %p392 = scmp.lt.s32.totalorder %s391, 3
      %s393 = scalar_select %p392, %s391, 3
      %s394 = smul.u32 4, %s22
      %p395 = scmp.lt.s32.totalorder %s21, 1
      %s396 = scalar_select %p395, %s21, 1
      %p397 = scmp.lt.s32.totalorder %s394, 3
      %s398 = scalar_select %p397, %s394, 3
      %s399 = smul.addr %s398, 8
      %s400 = smul.addr %s396, 32
      %s401 = sadd.s32 %s399, %s400
      %s402 = smul.addr %s401, 8
      %s403 = scalar_lea.vmem %s4, %s402
      %s404 = smul.u32 4, %s22
      %p405 = scmp.lt.s32.totalorder %s21, 1
      %s406 = scalar_select %p405, %s21, 1
      %p407 = scmp.lt.s32.totalorder %s22, 0
      %s408 = scalar_select %p407, %s22, 0
      %s409 = sadd.s32 %s408, %s406
      %s410 = smul.addr %s409, 2
      %s411 = scalar_lea.vmem %s5, %s410
      %p412 = scmp.gt.s32.totalorder %s22, 0
      %s413 = scalar_select %p412, 1, 0
      %s414 = scvt.s32.f32 %s413
      %p415 = scmp.lt.s32.totalorder %s22, 0
      %s416 = scalar_select %p415, 1, 0
      %s417 = scvt.s32.f32 %s416
      %v418 = vld [vmem:[%s361] sm:$0xff]
      %v419 = vld [vmem:[%s361 + $0x8] sm:$0xff]
      %v420 = vld [vmem:[%s361 + $0x10] sm:$0xff]
      %v421 = vld [vmem:[%s361 + $0x18] sm:$0xff]
      %v422 = vld [vmem:[%s361 + $0x20] sm:$0xff]
      %v423 = vld [vmem:[%s361 + $0x28] sm:$0xff]
      %v424 = vld [vmem:[%s361 + $0x30] sm:$0xff]
      %v425 = vld [vmem:[%s361 + $0x38] sm:$0xff]
      %v426 = vld [vmem:[%s375] sm:$0xff]
      %v427 = vld [vmem:[%s375 + $0x8] sm:$0xff]
      %v428 = vld [vmem:[%s375 + $0x10] sm:$0xff]
      %v429 = vld [vmem:[%s375 + $0x18] sm:$0xff]
      %v430 = vld [vmem:[%s375 + $0x20] sm:$0xff]
      %v431 = vld [vmem:[%s375 + $0x28] sm:$0xff]
      %v432 = vld [vmem:[%s375 + $0x30] sm:$0xff]
      %v433 = vld [vmem:[%s375 + $0x38] sm:$0xff]
      %v434 = vld [vmem:[%s375 + $0x40] sm:$0xff]
      %v435 = vld [vmem:[%s375 + $0x48] sm:$0xff]
      %v436 = vld [vmem:[%s375 + $0x50] sm:$0xff]
      %v437 = vld [vmem:[%s375 + $0x58] sm:$0xff]
      %v438 = vld [vmem:[%s375 + $0x60] sm:$0xff]
      %v439 = vld [vmem:[%s375 + $0x68] sm:$0xff]
      %v440 = vld [vmem:[%s375 + $0x70] sm:$0xff]
      %v441 = vld [vmem:[%s375 + $0x78] sm:$0xff]
      %v442 = vld [vmem:[%s375 + $0x80] sm:$0xff]
      %v443 = vld [vmem:[%s375 + $0x88] sm:$0xff]
      %v444 = vld [vmem:[%s375 + $0x90] sm:$0xff]
      %v445 = vld [vmem:[%s375 + $0x98] sm:$0xff]
      %v446 = vld [vmem:[%s375 + $0xa0] sm:$0xff]
      %v447 = vld [vmem:[%s375 + $0xa8] sm:$0xff]
      %v448 = vld [vmem:[%s375 + $0xb0] sm:$0xff]
      %v449 = vld [vmem:[%s375 + $0xb8] sm:$0xff]
      %v450 = vld [vmem:[%s375 + $0xc0] sm:$0xff]
      %v451 = vld [vmem:[%s375 + $0xc8] sm:$0xff]
      %v452 = vld [vmem:[%s375 + $0xd0] sm:$0xff]
      %v453 = vld [vmem:[%s375 + $0xd8] sm:$0xff]
      %v454 = vld [vmem:[%s375 + $0xe0] sm:$0xff]
      %v455 = vld [vmem:[%s375 + $0xe8] sm:$0xff]
      %v456 = vld [vmem:[%s375 + $0xf0] sm:$0xff]
      %v457 = vld [vmem:[%s375 + $0xf8] sm:$0xff]
      %v458 = vld [vmem:[%s389] sm:$0xff]
      %v459 = vld [vmem:[%s389 + $0x8] sm:$0xff]
      %v460 = vld [vmem:[%s389 + $0x10] sm:$0xff]
      %v461 = vld [vmem:[%s389 + $0x18] sm:$0xff]
      %v462 = vld [vmem:[%s389 + $0x20] sm:$0xff]
      %v463 = vld [vmem:[%s389 + $0x28] sm:$0xff]
      %v464 = vld [vmem:[%s389 + $0x30] sm:$0xff]
      %v465 = vld [vmem:[%s389 + $0x38] sm:$0xff]
      %vm466 = vcmask 31744
      %467 = vst.msk [vmem:[#allocation2] sm:$0xff] %vm466, 0.0
      %vm468 = vcmask 25600
      %469 = vst.msk [vmem:[#allocation2 + $0x8] sm:$0x3] %vm468, 0.0
      %470 = vst.msk [vmem:[#allocation2 + $0x10] sm:$0xff] %vm466, 0.0
      %471 = vst.msk [vmem:[#allocation2 + $0x18] sm:$0x3] %vm468, 0.0
      %472 = vst.msk [vmem:[#allocation2 + $0x20] sm:$0xff] %vm466, 0.0
      %473 = vst.msk [vmem:[#allocation2 + $0x28] sm:$0x3] %vm468, 0.0
      %474 = vst.msk [vmem:[#allocation2 + $0x30] sm:$0xff] %vm466, 0.0
      %475 = vst.msk [vmem:[#allocation2 + $0x38] sm:$0x3] %vm468, 0.0
      %476 = vst.msk [vmem:[#allocation2 + $0x40] sm:$0xff] %vm466, 0.0
      %477 = vst.msk [vmem:[#allocation2 + $0x48] sm:$0x3] %vm468, 0.0
      %478 = vst.msk [vmem:[#allocation2 + $0x50] sm:$0xff] %vm466, 0.0
      %479 = vst.msk [vmem:[#allocation2 + $0x58] sm:$0x3] %vm468, 0.0
      %480 = vst.msk [vmem:[#allocation2 + $0x60] sm:$0xff] %vm466, 0.0
      %481 = vst.msk [vmem:[#allocation2 + $0x68] sm:$0x3] %vm468, 0.0
      %482 = vst.msk [vmem:[#allocation2 + $0x70] sm:$0xff] %vm466, 0.0
      %483 = vst.msk [vmem:[#allocation2 + $0x78] sm:$0x3] %vm468, 0.0
      %484 = vst.msk [vmem:[#allocation2 + $0x80] sm:$0xff] %vm466, 0.0
      %485 = vst.msk [vmem:[#allocation2 + $0x88] sm:$0x3] %vm468, 0.0
      %486 = vst.msk [vmem:[#allocation2 + $0x90] sm:$0xff] %vm466, 0.0
      %487 = vst.msk [vmem:[#allocation2 + $0x98] sm:$0x3] %vm468, 0.0
      %488 = vst.msk [vmem:[#allocation2 + $0xa0] sm:$0xff] %vm466, 0.0
      %489 = vst.msk [vmem:[#allocation2 + $0xa8] sm:$0x3] %vm468, 0.0
      %490 = vst.msk [vmem:[#allocation2 + $0xb0] sm:$0xff] %vm466, 0.0
      %491 = vst.msk [vmem:[#allocation2 + $0xb8] sm:$0x3] %vm468, 0.0
      %492 = vst.msk [vmem:[#allocation2 + $0xc0] sm:$0xff] %vm466, 0.0
      %493 = vst.msk [vmem:[#allocation2 + $0xc8] sm:$0x3] %vm468, 0.0
      %494 = vst.msk [vmem:[#allocation2 + $0xd0] sm:$0xff] %vm466, 0.0
      %495 = vst.msk [vmem:[#allocation2 + $0xd8] sm:$0x3] %vm468, 0.0
      %496 = vst.msk [vmem:[#allocation2 + $0xe0] sm:$0xff] %vm466, 0.0
      %497 = vst.msk [vmem:[#allocation2 + $0xe8] sm:$0x3] %vm468, 0.0
      %498 = vst.msk [vmem:[#allocation2 + $0xf0] sm:$0xff] %vm466, 0.0
      %499 = vst.msk [vmem:[#allocation2 + $0xf8] sm:$0x3] %vm468, 0.0
      %500 = vst.msk [vmem:[#allocation2 + $0x100] sm:$0xff] %vm466, 0.0
      %501 = vst.msk [vmem:[#allocation2 + $0x108] sm:$0x3] %vm468, 0.0
      %502 = vst.msk [vmem:[#allocation2 + $0x110] sm:$0xff] %vm466, 0.0
      %503 = vst.msk [vmem:[#allocation2 + $0x118] sm:$0x3] %vm468, 0.0
      %504 = vst.msk [vmem:[#allocation2 + $0x120] sm:$0xff] %vm466, 0.0
      %505 = vst.msk [vmem:[#allocation2 + $0x128] sm:$0x3] %vm468, 0.0
      %506 = vst.msk [vmem:[#allocation2 + $0x130] sm:$0xff] %vm466, 0.0
      %507 = vst.msk [vmem:[#allocation2 + $0x138] sm:$0x3] %vm468, 0.0
      %508 = vst.msk [vmem:[#allocation2 + $0x140] sm:$0xff] %vm466, 0.0
      %509 = vst.msk [vmem:[#allocation2 + $0x148] sm:$0x3] %vm468, 0.0
      %510 = vst.msk [vmem:[#allocation2 + $0x150] sm:$0xff] %vm466, 0.0
      %511 = vst.msk [vmem:[#allocation2 + $0x158] sm:$0x3] %vm468, 0.0
      %512 = vst.msk [vmem:[#allocation2 + $0x160] sm:$0xff] %vm466, 0.0
      %513 = vst.msk [vmem:[#allocation2 + $0x168] sm:$0x3] %vm468, 0.0
      %514 = vst.msk [vmem:[#allocation2 + $0x170] sm:$0xff] %vm466, 0.0
      %515 = vst.msk [vmem:[#allocation2 + $0x178] sm:$0x3] %vm468, 0.0
      %516 = vst.msk [vmem:[#allocation2 + $0x180] sm:$0xff] %vm466, 0.0
      %517 = vst.msk [vmem:[#allocation2 + $0x188] sm:$0x3] %vm468, 0.0
      %518 = vst.msk [vmem:[#allocation2 + $0x190] sm:$0xff] %vm466, 0.0
      %519 = vst.msk [vmem:[#allocation2 + $0x198] sm:$0x3] %vm468, 0.0
      %520 = vst.msk [vmem:[#allocation2 + $0x1a0] sm:$0xff] %vm466, 0.0
      %521 = vst.msk [vmem:[#allocation2 + $0x1a8] sm:$0x3] %vm468, 0.0
      %522 = vst.msk [vmem:[#allocation2 + $0x1b0] sm:$0xff] %vm466, 0.0
      %523 = vst.msk [vmem:[#allocation2 + $0x1b8] sm:$0x3] %vm468, 0.0
      %524 = vst.msk [vmem:[#allocation2 + $0x1c0] sm:$0xff] %vm466, 0.0
      %525 = vst.msk [vmem:[#allocation2 + $0x1c8] sm:$0x3] %vm468, 0.0
      %526 = vst.msk [vmem:[#allocation2 + $0x1d0] sm:$0xff] %vm466, 0.0
      %527 = vst.msk [vmem:[#allocation2 + $0x1d8] sm:$0x3] %vm468, 0.0
      %528 = vst.msk [vmem:[#allocation2 + $0x1e0] sm:$0xff] %vm466, 0.0
      %529 = vst.msk [vmem:[#allocation2 + $0x1e8] sm:$0x3] %vm468, 0.0
      %530 = vst.msk [vmem:[#allocation2 + $0x1f0] sm:$0xff] %vm466, 0.0
      %531 = vst.msk [vmem:[#allocation2 + $0x1f8] sm:$0x3] %vm468, 0.0
      %532 = vst.msk [vmem:[#allocation2 + $0x200] sm:$0xff] %vm466, 0.0
      %533 = vst.msk [vmem:[#allocation2 + $0x208] sm:$0x3] %vm468, 0.0
      %534 = vst.msk [vmem:[#allocation2 + $0x210] sm:$0xff] %vm466, 0.0
      %535 = vst.msk [vmem:[#allocation2 + $0x218] sm:$0x3] %vm468, 0.0
      %536 = vst.msk [vmem:[#allocation2 + $0x220] sm:$0xff] %vm466, 0.0
      %537 = vst.msk [vmem:[#allocation2 + $0x228] sm:$0x3] %vm468, 0.0
      %538 = vst.msk [vmem:[#allocation2 + $0x230] sm:$0xff] %vm466, 0.0
      %539 = vst.msk [vmem:[#allocation2 + $0x238] sm:$0x3] %vm468, 0.0
      %540 = vst.msk [vmem:[#allocation2 + $0x240] sm:$0xff] %vm466, 0.0
      %541 = vst.msk [vmem:[#allocation2 + $0x248] sm:$0x3] %vm468, 0.0
      %542 = vst.msk [vmem:[#allocation2 + $0x250] sm:$0xff] %vm466, 0.0
      %543 = vst.msk [vmem:[#allocation2 + $0x258] sm:$0x3] %vm468, 0.0
      %544 = vst.msk [vmem:[#allocation2 + $0x260] sm:$0xff] %vm466, 0.0
      %545 = vst.msk [vmem:[#allocation2 + $0x268] sm:$0x3] %vm468, 0.0
      %546 = vst.msk [vmem:[#allocation2 + $0x270] sm:$0xff] %vm466, 0.0
      %547 = vst.msk [vmem:[#allocation2 + $0x278] sm:$0x3] %vm468, 0.0
      %548 = vst.msk [vmem:[#allocation2 + $0x280] sm:$0xff] %vm466, 0.0
      %549 = vst.msk [vmem:[#allocation2 + $0x288] sm:$0x3] %vm468, 0.0
      %550 = vst.msk [vmem:[#allocation2 + $0x290] sm:$0xff] %vm466, 0.0
      %551 = vst.msk [vmem:[#allocation2 + $0x298] sm:$0x3] %vm468, 0.0
      %552 = vst.msk [vmem:[#allocation2 + $0x2a0] sm:$0xff] %vm466, 0.0
      %553 = vst.msk [vmem:[#allocation2 + $0x2a8] sm:$0x3] %vm468, 0.0
      %554 = vst.msk [vmem:[#allocation2 + $0x2b0] sm:$0xff] %vm466, 0.0
      %555 = vst.msk [vmem:[#allocation2 + $0x2b8] sm:$0x3] %vm468, 0.0
      %556 = vst.msk [vmem:[#allocation2 + $0x2c0] sm:$0xff] %vm466, 0.0
      %557 = vst.msk [vmem:[#allocation2 + $0x2c8] sm:$0x3] %vm468, 0.0
      %558 = vst.msk [vmem:[#allocation2 + $0x2d0] sm:$0xff] %vm466, 0.0
      %559 = vst.msk [vmem:[#allocation2 + $0x2d8] sm:$0x3] %vm468, 0.0
      %560 = vst.msk [vmem:[#allocation2 + $0x2e0] sm:$0xff] %vm466, 0.0
      %561 = vst.msk [vmem:[#allocation2 + $0x2e8] sm:$0x3] %vm468, 0.0
      %562 = vst.msk [vmem:[#allocation2 + $0x2f0] sm:$0xff] %vm466, 0.0
      %563 = vst.msk [vmem:[#allocation2 + $0x2f8] sm:$0x3] %vm468, 0.0
      %564 = vst.msk [vmem:[#allocation2 + $0x300] sm:$0xff] %vm466, 0.0
      %565 = vst.msk [vmem:[#allocation2 + $0x308] sm:$0x3] %vm468, 0.0
      %566 = vst.msk [vmem:[#allocation2 + $0x310] sm:$0xff] %vm466, 0.0
      %567 = vst.msk [vmem:[#allocation2 + $0x318] sm:$0x3] %vm468, 0.0
      %568 = vst.msk [vmem:[#allocation2 + $0x320] sm:$0xff] %vm466, 0.0
      %569 = vst.msk [vmem:[#allocation2 + $0x328] sm:$0x3] %vm468, 0.0
      %570 = vst.msk [vmem:[#allocation2 + $0x330] sm:$0xff] %vm466, 0.0
      %571 = vst.msk [vmem:[#allocation2 + $0x338] sm:$0x3] %vm468, 0.0
      %572 = vst.msk [vmem:[#allocation2 + $0x340] sm:$0xff] %vm466, 0.0
      %573 = vst.msk [vmem:[#allocation2 + $0x348] sm:$0x3] %vm468, 0.0
      %574 = vst.msk [vmem:[#allocation2 + $0x350] sm:$0xff] %vm466, 0.0
      %575 = vst.msk [vmem:[#allocation2 + $0x358] sm:$0x3] %vm468, 0.0
      %576 = vst.msk [vmem:[#allocation2 + $0x360] sm:$0xff] %vm466, 0.0
      %577 = vst.msk [vmem:[#allocation2 + $0x368] sm:$0x3] %vm468, 0.0
      %578 = vst.msk [vmem:[#allocation2 + $0x370] sm:$0xff] %vm466, 0.0
      %579 = vst.msk [vmem:[#allocation2 + $0x378] sm:$0x3] %vm468, 0.0
      %580 = vst.msk [vmem:[#allocation2 + $0x380] sm:$0xff] %vm466, 0.0
      %581 = vst.msk [vmem:[#allocation2 + $0x388] sm:$0x3] %vm468, 0.0
      %582 = vst.msk [vmem:[#allocation2 + $0x390] sm:$0xff] %vm466, 0.0
      %583 = vst.msk [vmem:[#allocation2 + $0x398] sm:$0x3] %vm468, 0.0
      %584 = vst.msk [vmem:[#allocation2 + $0x3a0] sm:$0xff] %vm466, 0.0
      %585 = vst.msk [vmem:[#allocation2 + $0x3a8] sm:$0x3] %vm468, 0.0
      %586 = vst.msk [vmem:[#allocation2 + $0x3b0] sm:$0xff] %vm466, 0.0
      %587 = vst.msk [vmem:[#allocation2 + $0x3b8] sm:$0x3] %vm468, 0.0
      %v588 = vstv %s414
      %v589 = vmul.f32 %v418, %v588
      %v590 = vmul.f32 %v419, %v588
      %v591 = vmul.f32 %v420, %v588
      %v592 = vmul.f32 %v421, %v588
      %v593 = vmul.f32 %v422, %v588
      %v594 = vmul.f32 %v423, %v588
      %v595 = vmul.f32 %v424, %v588
      %v596 = vmul.f32 %v425, %v588
      %s597 = scalar_lea.vmem [#allocation2], 16
      %598 = vst.msk [vmem:[%s597 + $0x1] sm:$0xff] %vm466, %v589
      %599 = vst.msk [vmem:[%s597 + $0x11] sm:$0xff] %vm466, %v590
      %600 = vst.msk [vmem:[%s597 + $0x21] sm:$0xff] %vm466, %v591
      %601 = vst.msk [vmem:[%s597 + $0x31] sm:$0xff] %vm466, %v592
      %602 = vst.msk [vmem:[%s597 + $0x41] sm:$0xff] %vm466, %v593
      %603 = vst.msk [vmem:[%s597 + $0x51] sm:$0xff] %vm466, %v594
      %604 = vst.msk [vmem:[%s597 + $0x61] sm:$0xff] %vm466, %v595
      %605 = vst.msk [vmem:[%s597 + $0x71] sm:$0xff] %vm466, %v596
      %s606 = scalar_lea.vmem [#allocation2], 176
      %607 = vst.msk [vmem:[%s606 + $0x1] sm:$0xff] %vm466, %v426
      %608 = vst.msk [vmem:[%s606 + $0x11] sm:$0xff] %vm466, %v427
      %609 = vst.msk [vmem:[%s606 + $0x21] sm:$0xff] %vm466, %v428
      %610 = vst.msk [vmem:[%s606 + $0x31] sm:$0xff] %vm466, %v429
      %611 = vst.msk [vmem:[%s606 + $0x41] sm:$0xff] %vm466, %v430
      %612 = vst.msk [vmem:[%s606 + $0x51] sm:$0xff] %vm466, %v431
      %613 = vst.msk [vmem:[%s606 + $0x61] sm:$0xff] %vm466, %v432
      %614 = vst.msk [vmem:[%s606 + $0x71] sm:$0xff] %vm466, %v433
      %615 = vst.msk [vmem:[%s606 + $0xa1] sm:$0xff] %vm466, %v434
      %616 = vst.msk [vmem:[%s606 + $0xb1] sm:$0xff] %vm466, %v435
      %617 = vst.msk [vmem:[%s606 + $0xc1] sm:$0xff] %vm466, %v436
      %618 = vst.msk [vmem:[%s606 + $0xd1] sm:$0xff] %vm466, %v437
      %619 = vst.msk [vmem:[%s606 + $0xe1] sm:$0xff] %vm466, %v438
      %620 = vst.msk [vmem:[%s606 + $0xf1] sm:$0xff] %vm466, %v439
      %621 = vst.msk [vmem:[%s606 + $0x101] sm:$0xff] %vm466, %v440
      %622 = vst.msk [vmem:[%s606 + $0x111] sm:$0xff] %vm466, %v441
      %623 = vst.msk [vmem:[%s606 + $0x141] sm:$0xff] %vm466, %v442
      %624 = vst.msk [vmem:[%s606 + $0x151] sm:$0xff] %vm466, %v443
      %625 = vst.msk [vmem:[%s606 + $0x161] sm:$0xff] %vm466, %v444
      %626 = vst.msk [vmem:[%s606 + $0x171] sm:$0xff] %vm466, %v445
      %627 = vst.msk [vmem:[%s606 + $0x181] sm:$0xff] %vm466, %v446
      %628 = vst.msk [vmem:[%s606 + $0x191] sm:$0xff] %vm466, %v447
      %629 = vst.msk [vmem:[%s606 + $0x1a1] sm:$0xff] %vm466, %v448
      %630 = vst.msk [vmem:[%s606 + $0x1b1] sm:$0xff] %vm466, %v449
      %631 = vst.msk [vmem:[%s606 + $0x1e1] sm:$0xff] %vm466, %v450
      %632 = vst.msk [vmem:[%s606 + $0x1f1] sm:$0xff] %vm466, %v451
      %633 = vst.msk [vmem:[%s606 + $0x201] sm:$0xff] %vm466, %v452
      %634 = vst.msk [vmem:[%s606 + $0x211] sm:$0xff] %vm466, %v453
      %635 = vst.msk [vmem:[%s606 + $0x221] sm:$0xff] %vm466, %v454
      %636 = vst.msk [vmem:[%s606 + $0x231] sm:$0xff] %vm466, %v455
      %637 = vst.msk [vmem:[%s606 + $0x241] sm:$0xff] %vm466, %v456
      %638 = vst.msk [vmem:[%s606 + $0x251] sm:$0xff] %vm466, %v457
      %v639 = vstv %s417
      %v640 = vmul.f32 %v458, %v639
      %v641 = vmul.f32 %v459, %v639
      %v642 = vmul.f32 %v460, %v639
      %v643 = vmul.f32 %v461, %v639
      %v644 = vmul.f32 %v462, %v639
      %v645 = vmul.f32 %v463, %v639
      %v646 = vmul.f32 %v464, %v639
      %v647 = vmul.f32 %v465, %v639
      %s648 = scalar_lea.vmem [#allocation2], 816
      %649 = vst.msk [vmem:[%s648 + $0x1] sm:$0xff] %vm466, %v640
      %650 = vst.msk [vmem:[%s648 + $0x11] sm:$0xff] %vm466, %v641
      %651 = vst.msk [vmem:[%s648 + $0x21] sm:$0xff] %vm466, %v642
      %652 = vst.msk [vmem:[%s648 + $0x31] sm:$0xff] %vm466, %v643
      %653 = vst.msk [vmem:[%s648 + $0x41] sm:$0xff] %vm466, %v644
      %654 = vst.msk [vmem:[%s648 + $0x51] sm:$0xff] %vm466, %v645
      %655 = vst.msk [vmem:[%s648 + $0x61] sm:$0xff] %vm466, %v646
      %656 = vst.msk [vmem:[%s648 + $0x71] sm:$0xff] %vm466, %v647
      %v657 = vld [vmem:[#allocation2] sm:$0xff]
      %v658 = vld [vmem:[#allocation2 + $0x8] sm:$0x3]
      %v659 = vld [vmem:[#allocation2 + $0x10] sm:$0xff]
      %v660 = vld [vmem:[#allocation2 + $0x18] sm:$0x3]
      %v661 = vld [vmem:[#allocation2 + $0x20] sm:$0xff]
      %v662 = vld [vmem:[#allocation2 + $0x28] sm:$0x3]
      %v663 = vld [vmem:[#allocation2 + $0x30] sm:$0xff]
      %v664 = vld [vmem:[#allocation2 + $0x38] sm:$0x3]
      %v665 = vld [vmem:[#allocation2 + $0x40] sm:$0xff]
      %v666 = vld [vmem:[#allocation2 + $0x48] sm:$0x3]
      %v667 = vld [vmem:[#allocation2 + $0x50] sm:$0xff]
      %v668 = vld [vmem:[#allocation2 + $0x58] sm:$0x3]
      %v669 = vld [vmem:[#allocation2 + $0x60] sm:$0xff]
      %v670 = vld [vmem:[#allocation2 + $0x68] sm:$0x3]
      %v671 = vld [vmem:[#allocation2 + $0x70] sm:$0xff]
      %v672 = vld [vmem:[#allocation2 + $0x78] sm:$0x3]
      %v673 = vld [vmem:[#allocation2 + $0x80] sm:$0xff]
      %v674 = vld [vmem:[#allocation2 + $0x88] sm:$0x3]
      %v675 = vld [vmem:[#allocation2 + $0x90] sm:$0xff]
      %v676 = vld [vmem:[#allocation2 + $0x98] sm:$0x3]
      %v677 = vld [vmem:[#allocation2 + $0xa0] sm:$0xff]
      %v678 = vld [vmem:[#allocation2 + $0xa8] sm:$0x3]
      %v679 = vld [vmem:[#allocation2 + $0xb0] sm:$0xff]
      %v680 = vld [vmem:[#allocation2 + $0xb8] sm:$0x3]
      %v681 = vld [vmem:[#allocation2 + $0xc0] sm:$0xff]
      %v682 = vld [vmem:[#allocation2 + $0xc8] sm:$0x3]
      %v683 = vld [vmem:[#allocation2 + $0xd0] sm:$0xff]
      %v684 = vld [vmem:[#allocation2 + $0xd8] sm:$0x3]
      %v685 = vld [vmem:[#allocation2 + $0xe0] sm:$0xff]
      %v686 = vld [vmem:[#allocation2 + $0xe8] sm:$0x3]
      %v687 = vld [vmem:[#allocation2 + $0xf0] sm:$0xff]
      %v688 = vld [vmem:[#allocation2 + $0xf8] sm:$0x3]
      %v689 = vld [vmem:[#allocation2 + $0x100] sm:$0xff]
      %v690 = vld [vmem:[#allocation2 + $0x108] sm:$0x3]
      %v691 = vld [vmem:[#allocation2 + $0x110] sm:$0xff]
      %v692 = vld [vmem:[#allocation2 + $0x118] sm:$0x3]
      %v693 = vld [vmem:[#allocation2 + $0x120] sm:$0xff]
      %v694 = vld [vmem:[#allocation2 + $0x128] sm:$0x3]
      %v695 = vld [vmem:[#allocation2 + $0x130] sm:$0xff]
      %v696 = vld [vmem:[#allocation2 + $0x138] sm:$0x3]
      %v697 = vld [vmem:[#allocation2 + $0x140] sm:$0xff]
      %v698 = vld [vmem:[#allocation2 + $0x148] sm:$0x3]
      %v699 = vld [vmem:[#allocation2 + $0x150] sm:$0xff]
      %v700 = vld [vmem:[#allocation2 + $0x158] sm:$0x3]
      %v701 = vld [vmem:[#allocation2 + $0x160] sm:$0xff]
      %v702 = vld [vmem:[#allocation2 + $0x168] sm:$0x3]
      %v703 = vld [vmem:[#allocation2 + $0x170] sm:$0xff]
      %v704 = vld [vmem:[#allocation2 + $0x178] sm:$0x3]
      %v705 = vld [vmem:[#allocation2 + $0x180] sm:$0xff]
      %v706 = vld [vmem:[#allocation2 + $0x188] sm:$0x3]
      %v707 = vld [vmem:[#allocation2 + $0x190] sm:$0xff]
      %v708 = vld [vmem:[#allocation2 + $0x198] sm:$0x3]
      %v709 = vld [vmem:[#allocation2 + $0x1a0] sm:$0xff]
      %v710 = vld [vmem:[#allocation2 + $0x1a8] sm:$0x3]
      %v711 = vld [vmem:[#allocation2 + $0x1b0] sm:$0xff]
      %v712 = vld [vmem:[#allocation2 + $0x1b8] sm:$0x3]
      %v713 = vld [vmem:[#allocation2 + $0x1c0] sm:$0xff]
      %v714 = vld [vmem:[#allocation2 + $0x1c8] sm:$0x3]
      %v715 = vld [vmem:[#allocation2 + $0x1d0] sm:$0xff]
      %v716 = vld [vmem:[#allocation2 + $0x1d8] sm:$0x3]
      %v717 = vld [vmem:[#allocation2 + $0x1e0] sm:$0xff]
      %v718 = vld [vmem:[#allocation2 + $0x1e8] sm:$0x3]
      %v719 = vld [vmem:[#allocation2 + $0x1f0] sm:$0xff]
      %v720 = vld [vmem:[#allocation2 + $0x1f8] sm:$0x3]
      %v721 = vld [vmem:[#allocation2 + $0x200] sm:$0xff]
      %v722 = vld [vmem:[#allocation2 + $0x208] sm:$0x3]
      %v723 = vld [vmem:[#allocation2 + $0x210] sm:$0xff]
      %v724 = vld [vmem:[#allocation2 + $0x218] sm:$0x3]
      %v725 = vld [vmem:[#allocation2 + $0x220] sm:$0xff]
      %v726 = vld [vmem:[#allocation2 + $0x228] sm:$0x3]
      %v727 = vld [vmem:[#allocation2 + $0x230] sm:$0xff]
      %v728 = vld [vmem:[#allocation2 + $0x238] sm:$0x3]
      %v729 = vld [vmem:[#allocation2 + $0x240] sm:$0xff]
      %v730 = vld [vmem:[#allocation2 + $0x248] sm:$0x3]
      %v731 = vld [vmem:[#allocation2 + $0x250] sm:$0xff]
      %v732 = vld [vmem:[#allocation2 + $0x258] sm:$0x3]
      %v733 = vld [vmem:[#allocation2 + $0x260] sm:$0xff]
      %v734 = vld [vmem:[#allocation2 + $0x268] sm:$0x3]
      %v735 = vld [vmem:[#allocation2 + $0x270] sm:$0xff]
      %v736 = vld [vmem:[#allocation2 + $0x278] sm:$0x3]
      %v737 = vld [vmem:[#allocation2 + $0x280] sm:$0xff]
      %v738 = vld [vmem:[#allocation2 + $0x288] sm:$0x3]
      %v739 = vld [vmem:[#allocation2 + $0x290] sm:$0xff]
      %v740 = vld [vmem:[#allocation2 + $0x298] sm:$0x3]
      %v741 = vld [vmem:[#allocation2 + $0x2a0] sm:$0xff]
      %v742 = vld [vmem:[#allocation2 + $0x2a8] sm:$0x3]
      %v743 = vld [vmem:[#allocation2 + $0x2b0] sm:$0xff]
      %v744 = vld [vmem:[#allocation2 + $0x2b8] sm:$0x3]
      %v745 = vld [vmem:[#allocation2 + $0x2c0] sm:$0xff]
      %v746 = vld [vmem:[#allocation2 + $0x2c8] sm:$0x3]
      %v747 = vld [vmem:[#allocation2 + $0x2d0] sm:$0xff]
      %v748 = vld [vmem:[#allocation2 + $0x2d8] sm:$0x3]
      %v749 = vld [vmem:[#allocation2 + $0x2e0] sm:$0xff]
      %v750 = vld [vmem:[#allocation2 + $0x2e8] sm:$0x3]
      %v751 = vld [vmem:[#allocation2 + $0x2f0] sm:$0xff]
      %v752 = vld [vmem:[#allocation2 + $0x2f8] sm:$0x3]
      %v753 = vld [vmem:[#allocation2 + $0x300] sm:$0xff]
      %v754 = vld [vmem:[#allocation2 + $0x308] sm:$0x3]
      %v755 = vld [vmem:[#allocation2 + $0x310] sm:$0xff]
      %v756 = vld [vmem:[#allocation2 + $0x318] sm:$0x3]
      %v757 = vld [vmem:[#allocation2 + $0x320] sm:$0xff]
      %v758 = vld [vmem:[#allocation2 + $0x328] sm:$0x3]
      %v759 = vld [vmem:[#allocation2 + $0x330] sm:$0xff]
      %v760 = vld [vmem:[#allocation2 + $0x338] sm:$0x3]
      %v761 = vld [vmem:[#allocation2 + $0x340] sm:$0xff]
      %v762 = vld [vmem:[#allocation2 + $0x348] sm:$0x3]
      %v763 = vld [vmem:[#allocation2 + $0x350] sm:$0xff]
      %v764 = vld [vmem:[#allocation2 + $0x358] sm:$0x3]
      %v765 = vld [vmem:[#allocation2 + $0x360] sm:$0xff]
      %v766 = vld [vmem:[#allocation2 + $0x368] sm:$0x3]
      %v767 = vld [vmem:[#allocation2 + $0x370] sm:$0xff]
      %v768 = vld [vmem:[#allocation2 + $0x378] sm:$0x3]
      %v769 = vld [vmem:[#allocation2 + $0x380] sm:$0xff]
      %v770 = vld [vmem:[#allocation2 + $0x388] sm:$0x3]
      %v771 = vld [vmem:[#allocation2 + $0x390] sm:$0xff]
      %v772 = vld [vmem:[#allocation2 + $0x398] sm:$0x3]
      %v773 = vld [vmem:[#allocation2 + $0x3a0] sm:$0xff]
      %v774 = vld [vmem:[#allocation2 + $0x3a8] sm:$0x3]
      %v775 = vld [vmem:[#allocation2 + $0x3b0] sm:$0xff]
      %v776 = vld [vmem:[#allocation2 + $0x3b8] sm:$0x3]
      %vm841 = vcmask 1046528
      %v842 = vrot.slane %v657, 1
      %v843 = vrot.slane %v658, 1
      %v844 = vsel %vm841, %v842, %v843
      %v845 = vrot.slane %v659, 1
      %v846 = vrot.slane %v660, 1
      %v847 = vsel %vm841, %v845, %v846
      %v848 = vrot.slane %v661, 1
      %v849 = vrot.slane %v662, 1
      %v850 = vsel %vm841, %v848, %v849
      %v851 = vrot.slane %v663, 1
      %v852 = vrot.slane %v664, 1
      %v853 = vsel %vm841, %v851, %v852
      %v854 = vrot.slane %v665, 1
      %v855 = vrot.slane %v666, 1
      %v856 = vsel %vm841, %v854, %v855
      %v857 = vrot.slane %v667, 1
      %v858 = vrot.slane %v668, 1
      %v859 = vsel %vm841, %v857, %v858
      %v860 = vrot.slane %v669, 1
      %v861 = vrot.slane %v670, 1
      %v862 = vsel %vm841, %v860, %v861
      %v863 = vrot.slane %v671, 1
      %v864 = vrot.slane %v672, 1
      %v865 = vsel %vm841, %v863, %v864
      %v866 = vrot.slane %v677, 1
      %v867 = vrot.slane %v678, 1
      %v868 = vsel %vm841, %v866, %v867
      %v869 = vrot.slane %v679, 1
      %v870 = vrot.slane %v680, 1
      %v871 = vsel %vm841, %v869, %v870
      %v872 = vrot.slane %v681, 1
      %v873 = vrot.slane %v682, 1
      %v874 = vsel %vm841, %v872, %v873
      %v875 = vrot.slane %v683, 1
      %v876 = vrot.slane %v684, 1
      %v877 = vsel %vm841, %v875, %v876
      %v878 = vrot.slane %v685, 1
      %v879 = vrot.slane %v686, 1
      %v880 = vsel %vm841, %v878, %v879
      %v881 = vrot.slane %v687, 1
      %v882 = vrot.slane %v688, 1
      %v883 = vsel %vm841, %v881, %v882
      %v884 = vrot.slane %v689, 1
      %v885 = vrot.slane %v690, 1
      %v886 = vsel %vm841, %v884, %v885
      %v887 = vrot.slane %v691, 1
      %v888 = vrot.slane %v692, 1
      %v889 = vsel %vm841, %v887, %v888
      %v890 = vrot.slane %v697, 1
      %v891 = vrot.slane %v698, 1
      %v892 = vsel %vm841, %v890, %v891
      %v893 = vrot.slane %v699, 1
      %v894 = vrot.slane %v700, 1
      %v895 = vsel %vm841, %v893, %v894
      %v896 = vrot.slane %v701, 1
      %v897 = vrot.slane %v702, 1
      %v898 = vsel %vm841, %v896, %v897
      %v899 = vrot.slane %v703, 1
      %v900 = vrot.slane %v704, 1
      %v901 = vsel %vm841, %v899, %v900
      %v902 = vrot.slane %v705, 1
      %v903 = vrot.slane %v706, 1
      %v904 = vsel %vm841, %v902, %v903
      %v905 = vrot.slane %v707, 1
      %v906 = vrot.slane %v708, 1
      %v907 = vsel %vm841, %v905, %v906
      %v908 = vrot.slane %v709, 1
      %v909 = vrot.slane %v710, 1
      %v910 = vsel %vm841, %v908, %v909
      %v911 = vrot.slane %v711, 1
      %v912 = vrot.slane %v712, 1
      %v913 = vsel %vm841, %v911, %v912
      %v914 = vrot.slane %v717, 1
      %v915 = vrot.slane %v718, 1
      %v916 = vsel %vm841, %v914, %v915
      %v917 = vrot.slane %v719, 1
      %v918 = vrot.slane %v720, 1
      %v919 = vsel %vm841, %v917, %v918
      %v920 = vrot.slane %v721, 1
      %v921 = vrot.slane %v722, 1
      %v922 = vsel %vm841, %v920, %v921
      %v923 = vrot.slane %v723, 1
      %v924 = vrot.slane %v724, 1
      %v925 = vsel %vm841, %v923, %v924
      %v926 = vrot.slane %v725, 1
      %v927 = vrot.slane %v726, 1
      %v928 = vsel %vm841, %v926, %v927
      %v929 = vrot.slane %v727, 1
      %v930 = vrot.slane %v728, 1
      %v931 = vsel %vm841, %v929, %v930
      %v932 = vrot.slane %v729, 1
      %v933 = vrot.slane %v730, 1
      %v934 = vsel %vm841, %v932, %v933
      %v935 = vrot.slane %v731, 1
      %v936 = vrot.slane %v732, 1
      %v937 = vsel %vm841, %v935, %v936
      %938 = vrot.lane.b32.xlu0 %v844, 4
      %v939 = vpop.permute.xlu0 %938
      %940 = vrot.lane.b32.xlu0 %v847, 4
      %v941 = vpop.permute.xlu0 %940
      %942 = vrot.lane.b32.xlu0 %v850, 4
      %v943 = vpop.permute.xlu0 %942
      %944 = vrot.lane.b32.xlu0 %v853, 4
      %v945 = vpop.permute.xlu0 %944
      %946 = vrot.lane.b32.xlu0 %v856, 4
      %v947 = vpop.permute.xlu0 %946
      %948 = vrot.lane.b32.xlu0 %v859, 4
      %v949 = vpop.permute.xlu0 %948
      %950 = vrot.lane.b32.xlu0 %v862, 4
      %v951 = vpop.permute.xlu0 %950
      %952 = vrot.lane.b32.xlu0 %v865, 4
      %v953 = vpop.permute.xlu0 %952
      %954 = vrot.lane.b32.xlu0 %v868, 4
      %v955 = vpop.permute.xlu0 %954
      %956 = vrot.lane.b32.xlu0 %v871, 4
      %v957 = vpop.permute.xlu0 %956
      %958 = vrot.lane.b32.xlu0 %v874, 4
      %v959 = vpop.permute.xlu0 %958
      %960 = vrot.lane.b32.xlu0 %v877, 4
      %v961 = vpop.permute.xlu0 %960
      %962 = vrot.lane.b32.xlu0 %v880, 4
      %v963 = vpop.permute.xlu0 %962
      %964 = vrot.lane.b32.xlu0 %v883, 4
      %v965 = vpop.permute.xlu0 %964
      %966 = vrot.lane.b32.xlu0 %v886, 4
      %v967 = vpop.permute.xlu0 %966
      %968 = vrot.lane.b32.xlu0 %v889, 4
      %v969 = vpop.permute.xlu0 %968
      %970 = vrot.lane.b32.xlu0 %v892, 4
      %v971 = vpop.permute.xlu0 %970
      %972 = vrot.lane.b32.xlu0 %v895, 4
      %v973 = vpop.permute.xlu0 %972
      %974 = vrot.lane.b32.xlu0 %v898, 4
      %v975 = vpop.permute.xlu0 %974
      %976 = vrot.lane.b32.xlu0 %v901, 4
      %v977 = vpop.permute.xlu0 %976
      %978 = vrot.lane.b32.xlu0 %v904, 4
      %v979 = vpop.permute.xlu0 %978
      %980 = vrot.lane.b32.xlu0 %v907, 4
      %v981 = vpop.permute.xlu0 %980
      %982 = vrot.lane.b32.xlu0 %v910, 4
      %v983 = vpop.permute.xlu0 %982
      %984 = vrot.lane.b32.xlu0 %v913, 4
      %v985 = vpop.permute.xlu0 %984
      %986 = vrot.lane.b32.xlu0 %v916, 4
      %v987 = vpop.permute.xlu0 %986
      %988 = vrot.lane.b32.xlu0 %v919, 4
      %v989 = vpop.permute.xlu0 %988
      %990 = vrot.lane.b32.xlu0 %v922, 4
      %v991 = vpop.permute.xlu0 %990
      %992 = vrot.lane.b32.xlu0 %v925, 4
      %v993 = vpop.permute.xlu0 %992
      %994 = vrot.lane.b32.xlu0 %v928, 4
      %v995 = vpop.permute.xlu0 %994
      %996 = vrot.lane.b32.xlu0 %v931, 4
      %v997 = vpop.permute.xlu0 %996
      %998 = vrot.lane.b32.xlu0 %v934, 4
      %v999 = vpop.permute.xlu0 %998
      %1000 = vrot.lane.b32.xlu0 %v937, 4
      %v1001 = vpop.permute.xlu0 %1000
      %vm1034 = vcmask 1045504
      %v1035 = vrot.slane %v657, 2
      %v1036 = vrot.slane %v658, 2
      %v1037 = vsel %vm1034, %v1035, %v1036
      %v1038 = vrot.slane %v659, 2
      %v1039 = vrot.slane %v660, 2
      %v1040 = vsel %vm1034, %v1038, %v1039
      %v1041 = vrot.slane %v661, 2
      %v1042 = vrot.slane %v662, 2
      %v1043 = vsel %vm1034, %v1041, %v1042
      %v1044 = vrot.slane %v663, 2
      %v1045 = vrot.slane %v664, 2
      %v1046 = vsel %vm1034, %v1044, %v1045
      %v1047 = vrot.slane %v665, 2
      %v1048 = vrot.slane %v666, 2
      %v1049 = vsel %vm1034, %v1047, %v1048
      %v1050 = vrot.slane %v667, 2
      %v1051 = vrot.slane %v668, 2
      %v1052 = vsel %vm1034, %v1050, %v1051
      %v1053 = vrot.slane %v669, 2
      %v1054 = vrot.slane %v670, 2
      %v1055 = vsel %vm1034, %v1053, %v1054
      %v1056 = vrot.slane %v671, 2
      %v1057 = vrot.slane %v672, 2
      %v1058 = vsel %vm1034, %v1056, %v1057
      %v1059 = vrot.slane %v677, 2
      %v1060 = vrot.slane %v678, 2
      %v1061 = vsel %vm1034, %v1059, %v1060
      %v1062 = vrot.slane %v679, 2
      %v1063 = vrot.slane %v680, 2
      %v1064 = vsel %vm1034, %v1062, %v1063
      %v1065 = vrot.slane %v681, 2
      %v1066 = vrot.slane %v682, 2
      %v1067 = vsel %vm1034, %v1065, %v1066
      %v1068 = vrot.slane %v683, 2
      %v1069 = vrot.slane %v684, 2
      %v1070 = vsel %vm1034, %v1068, %v1069
      %v1071 = vrot.slane %v685, 2
      %v1072 = vrot.slane %v686, 2
      %v1073 = vsel %vm1034, %v1071, %v1072
      %v1074 = vrot.slane %v687, 2
      %v1075 = vrot.slane %v688, 2
      %v1076 = vsel %vm1034, %v1074, %v1075
      %v1077 = vrot.slane %v689, 2
      %v1078 = vrot.slane %v690, 2
      %v1079 = vsel %vm1034, %v1077, %v1078
      %v1080 = vrot.slane %v691, 2
      %v1081 = vrot.slane %v692, 2
      %v1082 = vsel %vm1034, %v1080, %v1081
      %v1083 = vrot.slane %v697, 2
      %v1084 = vrot.slane %v698, 2
      %v1085 = vsel %vm1034, %v1083, %v1084
      %v1086 = vrot.slane %v699, 2
      %v1087 = vrot.slane %v700, 2
      %v1088 = vsel %vm1034, %v1086, %v1087
      %v1089 = vrot.slane %v701, 2
      %v1090 = vrot.slane %v702, 2
      %v1091 = vsel %vm1034, %v1089, %v1090
      %v1092 = vrot.slane %v703, 2
      %v1093 = vrot.slane %v704, 2
      %v1094 = vsel %vm1034, %v1092, %v1093
      %v1095 = vrot.slane %v705, 2
      %v1096 = vrot.slane %v706, 2
      %v1097 = vsel %vm1034, %v1095, %v1096
      %v1098 = vrot.slane %v707, 2
      %v1099 = vrot.slane %v708, 2
      %v1100 = vsel %vm1034, %v1098, %v1099
      %v1101 = vrot.slane %v709, 2
      %v1102 = vrot.slane %v710, 2
      %v1103 = vsel %vm1034, %v1101, %v1102
      %v1104 = vrot.slane %v711, 2
      %v1105 = vrot.slane %v712, 2
      %v1106 = vsel %vm1034, %v1104, %v1105
      %v1107 = vrot.slane %v717, 2
      %v1108 = vrot.slane %v718, 2
      %v1109 = vsel %vm1034, %v1107, %v1108
      %v1110 = vrot.slane %v719, 2
      %v1111 = vrot.slane %v720, 2
      %v1112 = vsel %vm1034, %v1110, %v1111
      %v1113 = vrot.slane %v721, 2
      %v1114 = vrot.slane %v722, 2
      %v1115 = vsel %vm1034, %v1113, %v1114
      %v1116 = vrot.slane %v723, 2
      %v1117 = vrot.slane %v724, 2
      %v1118 = vsel %vm1034, %v1116, %v1117
      %v1119 = vrot.slane %v725, 2
      %v1120 = vrot.slane %v726, 2
      %v1121 = vsel %vm1034, %v1119, %v1120
      %v1122 = vrot.slane %v727, 2
      %v1123 = vrot.slane %v728, 2
      %v1124 = vsel %vm1034, %v1122, %v1123
      %v1125 = vrot.slane %v729, 2
      %v1126 = vrot.slane %v730, 2
      %v1127 = vsel %vm1034, %v1125, %v1126
      %v1128 = vrot.slane %v731, 2
      %v1129 = vrot.slane %v732, 2
      %v1130 = vsel %vm1034, %v1128, %v1129
      %1131 = vrot.lane.b32.xlu0 %v1037, 8
      %v1132 = vpop.permute.xlu0 %1131
      %1133 = vrot.lane.b32.xlu0 %v1040, 8
      %v1134 = vpop.permute.xlu0 %1133
      %1135 = vrot.lane.b32.xlu0 %v1043, 8
      %v1136 = vpop.permute.xlu0 %1135
      %1137 = vrot.lane.b32.xlu0 %v1046, 8
      %v1138 = vpop.permute.xlu0 %1137
      %1139 = vrot.lane.b32.xlu0 %v1049, 8
      %v1140 = vpop.permute.xlu0 %1139
      %1141 = vrot.lane.b32.xlu0 %v1052, 8
      %v1142 = vpop.permute.xlu0 %1141
      %1143 = vrot.lane.b32.xlu0 %v1055, 8
      %v1144 = vpop.permute.xlu0 %1143
      %1145 = vrot.lane.b32.xlu0 %v1058, 8
      %v1146 = vpop.permute.xlu0 %1145
      %1147 = vrot.lane.b32.xlu0 %v1061, 8
      %v1148 = vpop.permute.xlu0 %1147
      %1149 = vrot.lane.b32.xlu0 %v1064, 8
      %v1150 = vpop.permute.xlu0 %1149
      %1151 = vrot.lane.b32.xlu0 %v1067, 8
      %v1152 = vpop.permute.xlu0 %1151
      %1153 = vrot.lane.b32.xlu0 %v1070, 8
      %v1154 = vpop.permute.xlu0 %1153
      %1155 = vrot.lane.b32.xlu0 %v1073, 8
      %v1156 = vpop.permute.xlu0 %1155
      %1157 = vrot.lane.b32.xlu0 %v1076, 8
      %v1158 = vpop.permute.xlu0 %1157
      %1159 = vrot.lane.b32.xlu0 %v1079, 8
      %v1160 = vpop.permute.xlu0 %1159
      %1161 = vrot.lane.b32.xlu0 %v1082, 8
      %v1162 = vpop.permute.xlu0 %1161
      %1163 = vrot.lane.b32.xlu0 %v1085, 8
      %v1164 = vpop.permute.xlu0 %1163
      %1165 = vrot.lane.b32.xlu0 %v1088, 8
      %v1166 = vpop.permute.xlu0 %1165
      %1167 = vrot.lane.b32.xlu0 %v1091, 8
      %v1168 = vpop.permute.xlu0 %1167
      %1169 = vrot.lane.b32.xlu0 %v1094, 8
      %v1170 = vpop.permute.xlu0 %1169
      %1171 = vrot.lane.b32.xlu0 %v1097, 8
      %v1172 = vpop.permute.xlu0 %1171
      %1173 = vrot.lane.b32.xlu0 %v1100, 8
      %v1174 = vpop.permute.xlu0 %1173
      %1175 = vrot.lane.b32.xlu0 %v1103, 8
      %v1176 = vpop.permute.xlu0 %1175
      %1177 = vrot.lane.b32.xlu0 %v1106, 8
      %v1178 = vpop.permute.xlu0 %1177
      %1179 = vrot.lane.b32.xlu0 %v1109, 8
      %v1180 = vpop.permute.xlu0 %1179
      %1181 = vrot.lane.b32.xlu0 %v1112, 8
      %v1182 = vpop.permute.xlu0 %1181
      %1183 = vrot.lane.b32.xlu0 %v1115, 8
      %v1184 = vpop.permute.xlu0 %1183
      %1185 = vrot.lane.b32.xlu0 %v1118, 8
      %v1186 = vpop.permute.xlu0 %1185
      %1187 = vrot.lane.b32.xlu0 %v1121, 8
      %v1188 = vpop.permute.xlu0 %1187
      %1189 = vrot.lane.b32.xlu0 %v1124, 8
      %v1190 = vpop.permute.xlu0 %1189
      %1191 = vrot.lane.b32.xlu0 %v1127, 8
      %v1192 = vpop.permute.xlu0 %1191
      %1193 = vrot.lane.b32.xlu0 %v1130, 8
      %v1194 = vpop.permute.xlu0 %1193
      %1231 = vrot.lane.b32.xlu0 %v659, 12
      %v1232 = vpop.permute.xlu0 %1231
      %1233 = vrot.lane.b32.xlu0 %v661, 12
      %v1234 = vpop.permute.xlu0 %1233
      %1235 = vrot.lane.b32.xlu0 %v663, 12
      %v1236 = vpop.permute.xlu0 %1235
      %1237 = vrot.lane.b32.xlu0 %v665, 12
      %v1238 = vpop.permute.xlu0 %1237
      %1239 = vrot.lane.b32.xlu0 %v667, 12
      %v1240 = vpop.permute.xlu0 %1239
      %1241 = vrot.lane.b32.xlu0 %v669, 12
      %v1242 = vpop.permute.xlu0 %1241
      %1243 = vrot.lane.b32.xlu0 %v671, 12
      %v1244 = vpop.permute.xlu0 %1243
      %1245 = vrot.lane.b32.xlu0 %v673, 12
      %v1246 = vpop.permute.xlu0 %1245
      %1247 = vrot.lane.b32.xlu0 %v679, 12
      %v1248 = vpop.permute.xlu0 %1247
      %1249 = vrot.lane.b32.xlu0 %v681, 12
      %v1250 = vpop.permute.xlu0 %1249
      %1251 = vrot.lane.b32.xlu0 %v683, 12
      %v1252 = vpop.permute.xlu0 %1251
      %1253 = vrot.lane.b32.xlu0 %v685, 12
      %v1254 = vpop.permute.xlu0 %1253
      %1255 = vrot.lane.b32.xlu0 %v687, 12
      %v1256 = vpop.permute.xlu0 %1255
      %1257 = vrot.lane.b32.xlu0 %v689, 12
      %v1258 = vpop.permute.xlu0 %1257
      %1259 = vrot.lane.b32.xlu0 %v691, 12
      %v1260 = vpop.permute.xlu0 %1259
      %1261 = vrot.lane.b32.xlu0 %v693, 12
      %v1262 = vpop.permute.xlu0 %1261
      %1263 = vrot.lane.b32.xlu0 %v699, 12
      %v1264 = vpop.permute.xlu0 %1263
      %1265 = vrot.lane.b32.xlu0 %v701, 12
      %v1266 = vpop.permute.xlu0 %1265
      %1267 = vrot.lane.b32.xlu0 %v703, 12
      %v1268 = vpop.permute.xlu0 %1267
      %1269 = vrot.lane.b32.xlu0 %v705, 12
      %v1270 = vpop.permute.xlu0 %1269
      %1271 = vrot.lane.b32.xlu0 %v707, 12
      %v1272 = vpop.permute.xlu0 %1271
      %1273 = vrot.lane.b32.xlu0 %v709, 12
      %v1274 = vpop.permute.xlu0 %1273
      %1275 = vrot.lane.b32.xlu0 %v711, 12
      %v1276 = vpop.permute.xlu0 %1275
      %1277 = vrot.lane.b32.xlu0 %v713, 12
      %v1278 = vpop.permute.xlu0 %1277
      %1279 = vrot.lane.b32.xlu0 %v719, 12
      %v1280 = vpop.permute.xlu0 %1279
      %1281 = vrot.lane.b32.xlu0 %v721, 12
      %v1282 = vpop.permute.xlu0 %1281
      %1283 = vrot.lane.b32.xlu0 %v723, 12
      %v1284 = vpop.permute.xlu0 %1283
      %1285 = vrot.lane.b32.xlu0 %v725, 12
      %v1286 = vpop.permute.xlu0 %1285
      %1287 = vrot.lane.b32.xlu0 %v727, 12
      %v1288 = vpop.permute.xlu0 %1287
      %1289 = vrot.lane.b32.xlu0 %v729, 12
      %v1290 = vpop.permute.xlu0 %1289
      %1291 = vrot.lane.b32.xlu0 %v731, 12
      %v1292 = vpop.permute.xlu0 %1291
      %1293 = vrot.lane.b32.xlu0 %v733, 12
      %v1294 = vpop.permute.xlu0 %1293
      %v1331 = vrot.slane %v673, 1
      %v1332 = vrot.slane %v674, 1
      %v1333 = vsel %vm841, %v1331, %v1332
      %v1334 = vrot.slane %v693, 1
      %v1335 = vrot.slane %v694, 1
      %v1336 = vsel %vm841, %v1334, %v1335
      %v1337 = vrot.slane %v713, 1
      %v1338 = vrot.slane %v714, 1
      %v1339 = vsel %vm841, %v1337, %v1338
      %v1340 = vrot.slane %v733, 1
      %v1341 = vrot.slane %v734, 1
      %v1342 = vsel %vm841, %v1340, %v1341
      %1343 = vrot.lane.b32.xlu0 %v847, 16
      %v1344 = vpop.permute.xlu0 %1343
      %1345 = vrot.lane.b32.xlu0 %v850, 16
      %v1346 = vpop.permute.xlu0 %1345
      %1347 = vrot.lane.b32.xlu0 %v853, 16
      %v1348 = vpop.permute.xlu0 %1347
      %1349 = vrot.lane.b32.xlu0 %v856, 16
      %v1350 = vpop.permute.xlu0 %1349
      %1351 = vrot.lane.b32.xlu0 %v859, 16
      %v1352 = vpop.permute.xlu0 %1351
      %1353 = vrot.lane.b32.xlu0 %v862, 16
      %v1354 = vpop.permute.xlu0 %1353
      %1355 = vrot.lane.b32.xlu0 %v865, 16
      %v1356 = vpop.permute.xlu0 %1355
      %1357 = vrot.lane.b32.xlu0 %v1333, 16
      %v1358 = vpop.permute.xlu0 %1357
      %1359 = vrot.lane.b32.xlu0 %v871, 16
      %v1360 = vpop.permute.xlu0 %1359
      %1361 = vrot.lane.b32.xlu0 %v874, 16
      %v1362 = vpop.permute.xlu0 %1361
      %1363 = vrot.lane.b32.xlu0 %v877, 16
      %v1364 = vpop.permute.xlu0 %1363
      %1365 = vrot.lane.b32.xlu0 %v880, 16
      %v1366 = vpop.permute.xlu0 %1365
      %1367 = vrot.lane.b32.xlu0 %v883, 16
      %v1368 = vpop.permute.xlu0 %1367
      %1369 = vrot.lane.b32.xlu0 %v886, 16
      %v1370 = vpop.permute.xlu0 %1369
      %1371 = vrot.lane.b32.xlu0 %v889, 16
      %v1372 = vpop.permute.xlu0 %1371
      %1373 = vrot.lane.b32.xlu0 %v1336, 16
      %v1374 = vpop.permute.xlu0 %1373
      %1375 = vrot.lane.b32.xlu0 %v895, 16
      %v1376 = vpop.permute.xlu0 %1375
      %1377 = vrot.lane.b32.xlu0 %v898, 16
      %v1378 = vpop.permute.xlu0 %1377
      %1379 = vrot.lane.b32.xlu0 %v901, 16
      %v1380 = vpop.permute.xlu0 %1379
      %1381 = vrot.lane.b32.xlu0 %v904, 16
      %v1382 = vpop.permute.xlu0 %1381
      %1383 = vrot.lane.b32.xlu0 %v907, 16
      %v1384 = vpop.permute.xlu0 %1383
      %1385 = vrot.lane.b32.xlu0 %v910, 16
      %v1386 = vpop.permute.xlu0 %1385
      %1387 = vrot.lane.b32.xlu0 %v913, 16
      %v1388 = vpop.permute.xlu0 %1387
      %1389 = vrot.lane.b32.xlu0 %v1339, 16
      %v1390 = vpop.permute.xlu0 %1389
      %1391 = vrot.lane.b32.xlu0 %v919, 16
      %v1392 = vpop.permute.xlu0 %1391
      %1393 = vrot.lane.b32.xlu0 %v922, 16
      %v1394 = vpop.permute.xlu0 %1393
      %1395 = vrot.lane.b32.xlu0 %v925, 16
      %v1396 = vpop.permute.xlu0 %1395
      %1397 = vrot.lane.b32.xlu0 %v928, 16
      %v1398 = vpop.permute.xlu0 %1397
      %1399 = vrot.lane.b32.xlu0 %v931, 16
      %v1400 = vpop.permute.xlu0 %1399
      %1401 = vrot.lane.b32.xlu0 %v934, 16
      %v1402 = vpop.permute.xlu0 %1401
      %1403 = vrot.lane.b32.xlu0 %v937, 16
      %v1404 = vpop.permute.xlu0 %1403
      %1405 = vrot.lane.b32.xlu0 %v1342, 16
      %v1406 = vpop.permute.xlu0 %1405
      %v1439 = vrot.slane %v673, 2
      %v1440 = vrot.slane %v674, 2
      %v1441 = vsel %vm1034, %v1439, %v1440
      %v1442 = vrot.slane %v693, 2
      %v1443 = vrot.slane %v694, 2
      %v1444 = vsel %vm1034, %v1442, %v1443
      %v1445 = vrot.slane %v713, 2
      %v1446 = vrot.slane %v714, 2
      %v1447 = vsel %vm1034, %v1445, %v1446
      %v1448 = vrot.slane %v733, 2
      %v1449 = vrot.slane %v734, 2
      %v1450 = vsel %vm1034, %v1448, %v1449
      %1451 = vrot.lane.b32.xlu0 %v1040, 20
      %v1452 = vpop.permute.xlu0 %1451
      %1453 = vrot.lane.b32.xlu0 %v1043, 20
      %v1454 = vpop.permute.xlu0 %1453
      %1455 = vrot.lane.b32.xlu0 %v1046, 20
      %v1456 = vpop.permute.xlu0 %1455
      %1457 = vrot.lane.b32.xlu0 %v1049, 20
      %v1458 = vpop.permute.xlu0 %1457
      %1459 = vrot.lane.b32.xlu0 %v1052, 20
      %v1460 = vpop.permute.xlu0 %1459
      %1461 = vrot.lane.b32.xlu0 %v1055, 20
      %v1462 = vpop.permute.xlu0 %1461
      %1463 = vrot.lane.b32.xlu0 %v1058, 20
      %v1464 = vpop.permute.xlu0 %1463
      %1465 = vrot.lane.b32.xlu0 %v1441, 20
      %v1466 = vpop.permute.xlu0 %1465
      %1467 = vrot.lane.b32.xlu0 %v1064, 20
      %v1468 = vpop.permute.xlu0 %1467
      %1469 = vrot.lane.b32.xlu0 %v1067, 20
      %v1470 = vpop.permute.xlu0 %1469
      %1471 = vrot.lane.b32.xlu0 %v1070, 20
      %v1472 = vpop.permute.xlu0 %1471
      %1473 = vrot.lane.b32.xlu0 %v1073, 20
      %v1474 = vpop.permute.xlu0 %1473
      %1475 = vrot.lane.b32.xlu0 %v1076, 20
      %v1476 = vpop.permute.xlu0 %1475
      %1477 = vrot.lane.b32.xlu0 %v1079, 20
      %v1478 = vpop.permute.xlu0 %1477
      %1479 = vrot.lane.b32.xlu0 %v1082, 20
      %v1480 = vpop.permute.xlu0 %1479
      %1481 = vrot.lane.b32.xlu0 %v1444, 20
      %v1482 = vpop.permute.xlu0 %1481
      %1483 = vrot.lane.b32.xlu0 %v1088, 20
      %v1484 = vpop.permute.xlu0 %1483
      %1485 = vrot.lane.b32.xlu0 %v1091, 20
      %v1486 = vpop.permute.xlu0 %1485
      %1487 = vrot.lane.b32.xlu0 %v1094, 20
      %v1488 = vpop.permute.xlu0 %1487
      %1489 = vrot.lane.b32.xlu0 %v1097, 20
      %v1490 = vpop.permute.xlu0 %1489
      %1491 = vrot.lane.b32.xlu0 %v1100, 20
      %v1492 = vpop.permute.xlu0 %1491
      %1493 = vrot.lane.b32.xlu0 %v1103, 20
      %v1494 = vpop.permute.xlu0 %1493
      %1495 = vrot.lane.b32.xlu0 %v1106, 20
      %v1496 = vpop.permute.xlu0 %1495
      %1497 = vrot.lane.b32.xlu0 %v1447, 20
      %v1498 = vpop.permute.xlu0 %1497
      %1499 = vrot.lane.b32.xlu0 %v1112, 20
      %v1500 = vpop.permute.xlu0 %1499
      %1501 = vrot.lane.b32.xlu0 %v1115, 20
      %v1502 = vpop.permute.xlu0 %1501
      %1503 = vrot.lane.b32.xlu0 %v1118, 20
      %v1504 = vpop.permute.xlu0 %1503
      %1505 = vrot.lane.b32.xlu0 %v1121, 20
      %v1506 = vpop.permute.xlu0 %1505
      %1507 = vrot.lane.b32.xlu0 %v1124, 20
      %v1508 = vpop.permute.xlu0 %1507
      %1509 = vrot.lane.b32.xlu0 %v1127, 20
      %v1510 = vpop.permute.xlu0 %1509
      %1511 = vrot.lane.b32.xlu0 %v1130, 20
      %v1512 = vpop.permute.xlu0 %1511
      %1513 = vrot.lane.b32.xlu0 %v1450, 20
      %v1514 = vpop.permute.xlu0 %1513
      %1551 = vrot.lane.b32.xlu0 %v661, 24
      %v1552 = vpop.permute.xlu0 %1551
      %1553 = vrot.lane.b32.xlu0 %v663, 24
      %v1554 = vpop.permute.xlu0 %1553
      %1555 = vrot.lane.b32.xlu0 %v665, 24
      %v1556 = vpop.permute.xlu0 %1555
      %1557 = vrot.lane.b32.xlu0 %v667, 24
      %v1558 = vpop.permute.xlu0 %1557
      %1559 = vrot.lane.b32.xlu0 %v669, 24
      %v1560 = vpop.permute.xlu0 %1559
      %1561 = vrot.lane.b32.xlu0 %v671, 24
      %v1562 = vpop.permute.xlu0 %1561
      %1563 = vrot.lane.b32.xlu0 %v673, 24
      %v1564 = vpop.permute.xlu0 %1563
      %1565 = vrot.lane.b32.xlu0 %v675, 24
      %v1566 = vpop.permute.xlu0 %1565
      %1567 = vrot.lane.b32.xlu0 %v681, 24
      %v1568 = vpop.permute.xlu0 %1567
      %1569 = vrot.lane.b32.xlu0 %v683, 24
      %v1570 = vpop.permute.xlu0 %1569
      %1571 = vrot.lane.b32.xlu0 %v685, 24
      %v1572 = vpop.permute.xlu0 %1571
      %1573 = vrot.lane.b32.xlu0 %v687, 24
      %v1574 = vpop.permute.xlu0 %1573
      %1575 = vrot.lane.b32.xlu0 %v689, 24
      %v1576 = vpop.permute.xlu0 %1575
      %1577 = vrot.lane.b32.xlu0 %v691, 24
      %v1578 = vpop.permute.xlu0 %1577
      %1579 = vrot.lane.b32.xlu0 %v693, 24
      %v1580 = vpop.permute.xlu0 %1579
      %1581 = vrot.lane.b32.xlu0 %v695, 24
      %v1582 = vpop.permute.xlu0 %1581
      %1583 = vrot.lane.b32.xlu0 %v701, 24
      %v1584 = vpop.permute.xlu0 %1583
      %1585 = vrot.lane.b32.xlu0 %v703, 24
      %v1586 = vpop.permute.xlu0 %1585
      %1587 = vrot.lane.b32.xlu0 %v705, 24
      %v1588 = vpop.permute.xlu0 %1587
      %1589 = vrot.lane.b32.xlu0 %v707, 24
      %v1590 = vpop.permute.xlu0 %1589
      %1591 = vrot.lane.b32.xlu0 %v709, 24
      %v1592 = vpop.permute.xlu0 %1591
      %1593 = vrot.lane.b32.xlu0 %v711, 24
      %v1594 = vpop.permute.xlu0 %1593
      %1595 = vrot.lane.b32.xlu0 %v713, 24
      %v1596 = vpop.permute.xlu0 %1595
      %1597 = vrot.lane.b32.xlu0 %v715, 24
      %v1598 = vpop.permute.xlu0 %1597
      %1599 = vrot.lane.b32.xlu0 %v721, 24
      %v1600 = vpop.permute.xlu0 %1599
      %1601 = vrot.lane.b32.xlu0 %v723, 24
      %v1602 = vpop.permute.xlu0 %1601
      %1603 = vrot.lane.b32.xlu0 %v725, 24
      %v1604 = vpop.permute.xlu0 %1603
      %1605 = vrot.lane.b32.xlu0 %v727, 24
      %v1606 = vpop.permute.xlu0 %1605
      %1607 = vrot.lane.b32.xlu0 %v729, 24
      %v1608 = vpop.permute.xlu0 %1607
      %1609 = vrot.lane.b32.xlu0 %v731, 24
      %v1610 = vpop.permute.xlu0 %1609
      %1611 = vrot.lane.b32.xlu0 %v733, 24
      %v1612 = vpop.permute.xlu0 %1611
      %1613 = vrot.lane.b32.xlu0 %v735, 24
      %v1614 = vpop.permute.xlu0 %1613
      %v1651 = vrot.slane %v675, 1
      %v1652 = vrot.slane %v676, 1
      %v1653 = vsel %vm841, %v1651, %v1652
      %v1654 = vrot.slane %v695, 1
      %v1655 = vrot.slane %v696, 1
      %v1656 = vsel %vm841, %v1654, %v1655
      %v1657 = vrot.slane %v715, 1
      %v1658 = vrot.slane %v716, 1
      %v1659 = vsel %vm841, %v1657, %v1658
      %v1660 = vrot.slane %v735, 1
      %v1661 = vrot.slane %v736, 1
      %v1662 = vsel %vm841, %v1660, %v1661
      %1663 = vrot.lane.b32.xlu0 %v850, 28
      %v1664 = vpop.permute.xlu0 %1663
      %1665 = vrot.lane.b32.xlu0 %v853, 28
      %v1666 = vpop.permute.xlu0 %1665
      %1667 = vrot.lane.b32.xlu0 %v856, 28
      %v1668 = vpop.permute.xlu0 %1667
      %1669 = vrot.lane.b32.xlu0 %v859, 28
      %v1670 = vpop.permute.xlu0 %1669
      %1671 = vrot.lane.b32.xlu0 %v862, 28
      %v1672 = vpop.permute.xlu0 %1671
      %1673 = vrot.lane.b32.xlu0 %v865, 28
      %v1674 = vpop.permute.xlu0 %1673
      %1675 = vrot.lane.b32.xlu0 %v1333, 28
      %v1676 = vpop.permute.xlu0 %1675
      %1677 = vrot.lane.b32.xlu0 %v1653, 28
      %v1678 = vpop.permute.xlu0 %1677
      %1679 = vrot.lane.b32.xlu0 %v874, 28
      %v1680 = vpop.permute.xlu0 %1679
      %1681 = vrot.lane.b32.xlu0 %v877, 28
      %v1682 = vpop.permute.xlu0 %1681
      %1683 = vrot.lane.b32.xlu0 %v880, 28
      %v1684 = vpop.permute.xlu0 %1683
      %1685 = vrot.lane.b32.xlu0 %v883, 28
      %v1686 = vpop.permute.xlu0 %1685
      %1687 = vrot.lane.b32.xlu0 %v886, 28
      %v1688 = vpop.permute.xlu0 %1687
      %1689 = vrot.lane.b32.xlu0 %v889, 28
      %v1690 = vpop.permute.xlu0 %1689
      %1691 = vrot.lane.b32.xlu0 %v1336, 28
      %v1692 = vpop.permute.xlu0 %1691
      %1693 = vrot.lane.b32.xlu0 %v1656, 28
      %v1694 = vpop.permute.xlu0 %1693
      %1695 = vrot.lane.b32.xlu0 %v898, 28
      %v1696 = vpop.permute.xlu0 %1695
      %1697 = vrot.lane.b32.xlu0 %v901, 28
      %v1698 = vpop.permute.xlu0 %1697
      %1699 = vrot.lane.b32.xlu0 %v904, 28
      %v1700 = vpop.permute.xlu0 %1699
      %1701 = vrot.lane.b32.xlu0 %v907, 28
      %v1702 = vpop.permute.xlu0 %1701
      %1703 = vrot.lane.b32.xlu0 %v910, 28
      %v1704 = vpop.permute.xlu0 %1703
      %1705 = vrot.lane.b32.xlu0 %v913, 28
      %v1706 = vpop.permute.xlu0 %1705
      %1707 = vrot.lane.b32.xlu0 %v1339, 28
      %v1708 = vpop.permute.xlu0 %1707
      %1709 = vrot.lane.b32.xlu0 %v1659, 28
      %v1710 = vpop.permute.xlu0 %1709
      %1711 = vrot.lane.b32.xlu0 %v922, 28
      %v1712 = vpop.permute.xlu0 %1711
      %1713 = vrot.lane.b32.xlu0 %v925, 28
      %v1714 = vpop.permute.xlu0 %1713
      %1715 = vrot.lane.b32.xlu0 %v928, 28
      %v1716 = vpop.permute.xlu0 %1715
      %1717 = vrot.lane.b32.xlu0 %v931, 28
      %v1718 = vpop.permute.xlu0 %1717
      %1719 = vrot.lane.b32.xlu0 %v934, 28
      %v1720 = vpop.permute.xlu0 %1719
      %1721 = vrot.lane.b32.xlu0 %v937, 28
      %v1722 = vpop.permute.xlu0 %1721
      %1723 = vrot.lane.b32.xlu0 %v1342, 28
      %v1724 = vpop.permute.xlu0 %1723
      %1725 = vrot.lane.b32.xlu0 %v1662, 28
      %v1726 = vpop.permute.xlu0 %1725
      %v1759 = vrot.slane %v675, 2
      %v1760 = vrot.slane %v676, 2
      %v1761 = vsel %vm1034, %v1759, %v1760
      %v1762 = vrot.slane %v695, 2
      %v1763 = vrot.slane %v696, 2
      %v1764 = vsel %vm1034, %v1762, %v1763
      %v1765 = vrot.slane %v715, 2
      %v1766 = vrot.slane %v716, 2
      %v1767 = vsel %vm1034, %v1765, %v1766
      %v1768 = vrot.slane %v735, 2
      %v1769 = vrot.slane %v736, 2
      %v1770 = vsel %vm1034, %v1768, %v1769
      %1771 = vrot.lane.b32.xlu0 %v1043, 32
      %v1772 = vpop.permute.xlu0 %1771
      %1773 = vrot.lane.b32.xlu0 %v1046, 32
      %v1774 = vpop.permute.xlu0 %1773
      %1775 = vrot.lane.b32.xlu0 %v1049, 32
      %v1776 = vpop.permute.xlu0 %1775
      %1777 = vrot.lane.b32.xlu0 %v1052, 32
      %v1778 = vpop.permute.xlu0 %1777
      %1779 = vrot.lane.b32.xlu0 %v1055, 32
      %v1780 = vpop.permute.xlu0 %1779
      %1781 = vrot.lane.b32.xlu0 %v1058, 32
      %v1782 = vpop.permute.xlu0 %1781
      %1783 = vrot.lane.b32.xlu0 %v1441, 32
      %v1784 = vpop.permute.xlu0 %1783
      %1785 = vrot.lane.b32.xlu0 %v1761, 32
      %v1786 = vpop.permute.xlu0 %1785
      %1787 = vrot.lane.b32.xlu0 %v1067, 32
      %v1788 = vpop.permute.xlu0 %1787
      %1789 = vrot.lane.b32.xlu0 %v1070, 32
      %v1790 = vpop.permute.xlu0 %1789
      %1791 = vrot.lane.b32.xlu0 %v1073, 32
      %v1792 = vpop.permute.xlu0 %1791
      %1793 = vrot.lane.b32.xlu0 %v1076, 32
      %v1794 = vpop.permute.xlu0 %1793
      %1795 = vrot.lane.b32.xlu0 %v1079, 32
      %v1796 = vpop.permute.xlu0 %1795
      %1797 = vrot.lane.b32.xlu0 %v1082, 32
      %v1798 = vpop.permute.xlu0 %1797
      %1799 = vrot.lane.b32.xlu0 %v1444, 32
      %v1800 = vpop.permute.xlu0 %1799
      %1801 = vrot.lane.b32.xlu0 %v1764, 32
      %v1802 = vpop.permute.xlu0 %1801
      %1803 = vrot.lane.b32.xlu0 %v1091, 32
      %v1804 = vpop.permute.xlu0 %1803
      %1805 = vrot.lane.b32.xlu0 %v1094, 32
      %v1806 = vpop.permute.xlu0 %1805
      %1807 = vrot.lane.b32.xlu0 %v1097, 32
      %v1808 = vpop.permute.xlu0 %1807
      %1809 = vrot.lane.b32.xlu0 %v1100, 32
      %v1810 = vpop.permute.xlu0 %1809
      %1811 = vrot.lane.b32.xlu0 %v1103, 32
      %v1812 = vpop.permute.xlu0 %1811
      %1813 = vrot.lane.b32.xlu0 %v1106, 32
      %v1814 = vpop.permute.xlu0 %1813
      %1815 = vrot.lane.b32.xlu0 %v1447, 32
      %v1816 = vpop.permute.xlu0 %1815
      %1817 = vrot.lane.b32.xlu0 %v1767, 32
      %v1818 = vpop.permute.xlu0 %1817
      %1819 = vrot.lane.b32.xlu0 %v1115, 32
      %v1820 = vpop.permute.xlu0 %1819
      %1821 = vrot.lane.b32.xlu0 %v1118, 32
      %v1822 = vpop.permute.xlu0 %1821
      %1823 = vrot.lane.b32.xlu0 %v1121, 32
      %v1824 = vpop.permute.xlu0 %1823
      %1825 = vrot.lane.b32.xlu0 %v1124, 32
      %v1826 = vpop.permute.xlu0 %1825
      %1827 = vrot.lane.b32.xlu0 %v1127, 32
      %v1828 = vpop.permute.xlu0 %1827
      %1829 = vrot.lane.b32.xlu0 %v1130, 32
      %v1830 = vpop.permute.xlu0 %1829
      %1831 = vrot.lane.b32.xlu0 %v1450, 32
      %v1832 = vpop.permute.xlu0 %1831
      %1833 = vrot.lane.b32.xlu0 %v1770, 32
      %v1834 = vpop.permute.xlu0 %1833
      %1875 = vrot.lane.b32.xlu0 %v677, 36
      %v1876 = vpop.permute.xlu0 %1875
      %1877 = vrot.lane.b32.xlu0 %v679, 36
      %v1878 = vpop.permute.xlu0 %1877
      %1879 = vrot.lane.b32.xlu0 %v681, 36
      %v1880 = vpop.permute.xlu0 %1879
      %1881 = vrot.lane.b32.xlu0 %v683, 36
      %v1882 = vpop.permute.xlu0 %1881
      %1883 = vrot.lane.b32.xlu0 %v685, 36
      %v1884 = vpop.permute.xlu0 %1883
      %1885 = vrot.lane.b32.xlu0 %v687, 36
      %v1886 = vpop.permute.xlu0 %1885
      %1887 = vrot.lane.b32.xlu0 %v689, 36
      %v1888 = vpop.permute.xlu0 %1887
      %1889 = vrot.lane.b32.xlu0 %v691, 36
      %v1890 = vpop.permute.xlu0 %1889
      %1891 = vrot.lane.b32.xlu0 %v697, 36
      %v1892 = vpop.permute.xlu0 %1891
      %1893 = vrot.lane.b32.xlu0 %v699, 36
      %v1894 = vpop.permute.xlu0 %1893
      %1895 = vrot.lane.b32.xlu0 %v701, 36
      %v1896 = vpop.permute.xlu0 %1895
      %1897 = vrot.lane.b32.xlu0 %v703, 36
      %v1898 = vpop.permute.xlu0 %1897
      %1899 = vrot.lane.b32.xlu0 %v705, 36
      %v1900 = vpop.permute.xlu0 %1899
      %1901 = vrot.lane.b32.xlu0 %v707, 36
      %v1902 = vpop.permute.xlu0 %1901
      %1903 = vrot.lane.b32.xlu0 %v709, 36
      %v1904 = vpop.permute.xlu0 %1903
      %1905 = vrot.lane.b32.xlu0 %v711, 36
      %v1906 = vpop.permute.xlu0 %1905
      %1907 = vrot.lane.b32.xlu0 %v717, 36
      %v1908 = vpop.permute.xlu0 %1907
      %1909 = vrot.lane.b32.xlu0 %v719, 36
      %v1910 = vpop.permute.xlu0 %1909
      %1911 = vrot.lane.b32.xlu0 %v721, 36
      %v1912 = vpop.permute.xlu0 %1911
      %1913 = vrot.lane.b32.xlu0 %v723, 36
      %v1914 = vpop.permute.xlu0 %1913
      %1915 = vrot.lane.b32.xlu0 %v725, 36
      %v1916 = vpop.permute.xlu0 %1915
      %1917 = vrot.lane.b32.xlu0 %v727, 36
      %v1918 = vpop.permute.xlu0 %1917
      %1919 = vrot.lane.b32.xlu0 %v729, 36
      %v1920 = vpop.permute.xlu0 %1919
      %1921 = vrot.lane.b32.xlu0 %v731, 36
      %v1922 = vpop.permute.xlu0 %1921
      %1923 = vrot.lane.b32.xlu0 %v737, 36
      %v1924 = vpop.permute.xlu0 %1923
      %1925 = vrot.lane.b32.xlu0 %v739, 36
      %v1926 = vpop.permute.xlu0 %1925
      %1927 = vrot.lane.b32.xlu0 %v741, 36
      %v1928 = vpop.permute.xlu0 %1927
      %1929 = vrot.lane.b32.xlu0 %v743, 36
      %v1930 = vpop.permute.xlu0 %1929
      %1931 = vrot.lane.b32.xlu0 %v745, 36
      %v1932 = vpop.permute.xlu0 %1931
      %1933 = vrot.lane.b32.xlu0 %v747, 36
      %v1934 = vpop.permute.xlu0 %1933
      %1935 = vrot.lane.b32.xlu0 %v749, 36
      %v1936 = vpop.permute.xlu0 %1935
      %1937 = vrot.lane.b32.xlu0 %v751, 36
      %v1938 = vpop.permute.xlu0 %1937
      %v1979 = vrot.slane %v737, 1
      %v1980 = vrot.slane %v738, 1
      %v1981 = vsel %vm841, %v1979, %v1980
      %v1982 = vrot.slane %v739, 1
      %v1983 = vrot.slane %v740, 1
      %v1984 = vsel %vm841, %v1982, %v1983
      %v1985 = vrot.slane %v741, 1
      %v1986 = vrot.slane %v742, 1
      %v1987 = vsel %vm841, %v1985, %v1986
      %v1988 = vrot.slane %v743, 1
      %v1989 = vrot.slane %v744, 1
      %v1990 = vsel %vm841, %v1988, %v1989
      %v1991 = vrot.slane %v745, 1
      %v1992 = vrot.slane %v746, 1
      %v1993 = vsel %vm841, %v1991, %v1992
      %v1994 = vrot.slane %v747, 1
      %v1995 = vrot.slane %v748, 1
      %v1996 = vsel %vm841, %v1994, %v1995
      %v1997 = vrot.slane %v749, 1
      %v1998 = vrot.slane %v750, 1
      %v1999 = vsel %vm841, %v1997, %v1998
      %v2000 = vrot.slane %v751, 1
      %v2001 = vrot.slane %v752, 1
      %v2002 = vsel %vm841, %v2000, %v2001
      %2003 = vrot.lane.b32.xlu0 %v868, 40
      %v2004 = vpop.permute.xlu0 %2003
      %2005 = vrot.lane.b32.xlu0 %v871, 40
      %v2006 = vpop.permute.xlu0 %2005
      %2007 = vrot.lane.b32.xlu0 %v874, 40
      %v2008 = vpop.permute.xlu0 %2007
      %2009 = vrot.lane.b32.xlu0 %v877, 40
      %v2010 = vpop.permute.xlu0 %2009
      %2011 = vrot.lane.b32.xlu0 %v880, 40
      %v2012 = vpop.permute.xlu0 %2011
      %2013 = vrot.lane.b32.xlu0 %v883, 40
      %v2014 = vpop.permute.xlu0 %2013
      %2015 = vrot.lane.b32.xlu0 %v886, 40
      %v2016 = vpop.permute.xlu0 %2015
      %2017 = vrot.lane.b32.xlu0 %v889, 40
      %v2018 = vpop.permute.xlu0 %2017
      %2019 = vrot.lane.b32.xlu0 %v892, 40
      %v2020 = vpop.permute.xlu0 %2019
      %2021 = vrot.lane.b32.xlu0 %v895, 40
      %v2022 = vpop.permute.xlu0 %2021
      %2023 = vrot.lane.b32.xlu0 %v898, 40
      %v2024 = vpop.permute.xlu0 %2023
      %2025 = vrot.lane.b32.xlu0 %v901, 40
      %v2026 = vpop.permute.xlu0 %2025
      %2027 = vrot.lane.b32.xlu0 %v904, 40
      %v2028 = vpop.permute.xlu0 %2027
      %2029 = vrot.lane.b32.xlu0 %v907, 40
      %v2030 = vpop.permute.xlu0 %2029
      %2031 = vrot.lane.b32.xlu0 %v910, 40
      %v2032 = vpop.permute.xlu0 %2031
      %2033 = vrot.lane.b32.xlu0 %v913, 40
      %v2034 = vpop.permute.xlu0 %2033
      %2035 = vrot.lane.b32.xlu0 %v916, 40
      %v2036 = vpop.permute.xlu0 %2035
      %2037 = vrot.lane.b32.xlu0 %v919, 40
      %v2038 = vpop.permute.xlu0 %2037
      %2039 = vrot.lane.b32.xlu0 %v922, 40
      %v2040 = vpop.permute.xlu0 %2039
      %2041 = vrot.lane.b32.xlu0 %v925, 40
      %v2042 = vpop.permute.xlu0 %2041
      %2043 = vrot.lane.b32.xlu0 %v928, 40
      %v2044 = vpop.permute.xlu0 %2043
      %2045 = vrot.lane.b32.xlu0 %v931, 40
      %v2046 = vpop.permute.xlu0 %2045
      %2047 = vrot.lane.b32.xlu0 %v934, 40
      %v2048 = vpop.permute.xlu0 %2047
      %2049 = vrot.lane.b32.xlu0 %v937, 40
      %v2050 = vpop.permute.xlu0 %2049
      %2051 = vrot.lane.b32.xlu0 %v1981, 40
      %v2052 = vpop.permute.xlu0 %2051
      %2053 = vrot.lane.b32.xlu0 %v1984, 40
      %v2054 = vpop.permute.xlu0 %2053
      %2055 = vrot.lane.b32.xlu0 %v1987, 40
      %v2056 = vpop.permute.xlu0 %2055
      %2057 = vrot.lane.b32.xlu0 %v1990, 40
      %v2058 = vpop.permute.xlu0 %2057
      %2059 = vrot.lane.b32.xlu0 %v1993, 40
      %v2060 = vpop.permute.xlu0 %2059
      %2061 = vrot.lane.b32.xlu0 %v1996, 40
      %v2062 = vpop.permute.xlu0 %2061
      %2063 = vrot.lane.b32.xlu0 %v1999, 40
      %v2064 = vpop.permute.xlu0 %2063
      %2065 = vrot.lane.b32.xlu0 %v2002, 40
      %v2066 = vpop.permute.xlu0 %2065
      %v2099 = vrot.slane %v737, 2
      %v2100 = vrot.slane %v738, 2
      %v2101 = vsel %vm1034, %v2099, %v2100
      %v2102 = vrot.slane %v739, 2
      %v2103 = vrot.slane %v740, 2
      %v2104 = vsel %vm1034, %v2102, %v2103
      %v2105 = vrot.slane %v741, 2
      %v2106 = vrot.slane %v742, 2
      %v2107 = vsel %vm1034, %v2105, %v2106
      %v2108 = vrot.slane %v743, 2
      %v2109 = vrot.slane %v744, 2
      %v2110 = vsel %vm1034, %v2108, %v2109
      %v2111 = vrot.slane %v745, 2
      %v2112 = vrot.slane %v746, 2
      %v2113 = vsel %vm1034, %v2111, %v2112
      %v2114 = vrot.slane %v747, 2
      %v2115 = vrot.slane %v748, 2
      %v2116 = vsel %vm1034, %v2114, %v2115
      %v2117 = vrot.slane %v749, 2
      %v2118 = vrot.slane %v750, 2
      %v2119 = vsel %vm1034, %v2117, %v2118
      %v2120 = vrot.slane %v751, 2
      %v2121 = vrot.slane %v752, 2
      %v2122 = vsel %vm1034, %v2120, %v2121
      %2123 = vrot.lane.b32.xlu0 %v1061, 44
      %v2124 = vpop.permute.xlu0 %2123
      %2125 = vrot.lane.b32.xlu0 %v1064, 44
      %v2126 = vpop.permute.xlu0 %2125
      %2127 = vrot.lane.b32.xlu0 %v1067, 44
      %v2128 = vpop.permute.xlu0 %2127
      %2129 = vrot.lane.b32.xlu0 %v1070, 44
      %v2130 = vpop.permute.xlu0 %2129
      %2131 = vrot.lane.b32.xlu0 %v1073, 44
      %v2132 = vpop.permute.xlu0 %2131
      %2133 = vrot.lane.b32.xlu0 %v1076, 44
      %v2134 = vpop.permute.xlu0 %2133
      %2135 = vrot.lane.b32.xlu0 %v1079, 44
      %v2136 = vpop.permute.xlu0 %2135
      %2137 = vrot.lane.b32.xlu0 %v1082, 44
      %v2138 = vpop.permute.xlu0 %2137
      %2139 = vrot.lane.b32.xlu0 %v1085, 44
      %v2140 = vpop.permute.xlu0 %2139
      %2141 = vrot.lane.b32.xlu0 %v1088, 44
      %v2142 = vpop.permute.xlu0 %2141
      %2143 = vrot.lane.b32.xlu0 %v1091, 44
      %v2144 = vpop.permute.xlu0 %2143
      %2145 = vrot.lane.b32.xlu0 %v1094, 44
      %v2146 = vpop.permute.xlu0 %2145
      %2147 = vrot.lane.b32.xlu0 %v1097, 44
      %v2148 = vpop.permute.xlu0 %2147
      %2149 = vrot.lane.b32.xlu0 %v1100, 44
      %v2150 = vpop.permute.xlu0 %2149
      %2151 = vrot.lane.b32.xlu0 %v1103, 44
      %v2152 = vpop.permute.xlu0 %2151
      %2153 = vrot.lane.b32.xlu0 %v1106, 44
      %v2154 = vpop.permute.xlu0 %2153
      %2155 = vrot.lane.b32.xlu0 %v1109, 44
      %v2156 = vpop.permute.xlu0 %2155
      %2157 = vrot.lane.b32.xlu0 %v1112, 44
      %v2158 = vpop.permute.xlu0 %2157
      %2159 = vrot.lane.b32.xlu0 %v1115, 44
      %v2160 = vpop.permute.xlu0 %2159
      %2161 = vrot.lane.b32.xlu0 %v1118, 44
      %v2162 = vpop.permute.xlu0 %2161
      %2163 = vrot.lane.b32.xlu0 %v1121, 44
      %v2164 = vpop.permute.xlu0 %2163
      %2165 = vrot.lane.b32.xlu0 %v1124, 44
      %v2166 = vpop.permute.xlu0 %2165
      %2167 = vrot.lane.b32.xlu0 %v1127, 44
      %v2168 = vpop.permute.xlu0 %2167
      %2169 = vrot.lane.b32.xlu0 %v1130, 44
      %v2170 = vpop.permute.xlu0 %2169
      %2171 = vrot.lane.b32.xlu0 %v2101, 44
      %v2172 = vpop.permute.xlu0 %2171
      %2173 = vrot.lane.b32.xlu0 %v2104, 44
      %v2174 = vpop.permute.xlu0 %2173
      %2175 = vrot.lane.b32.xlu0 %v2107, 44
      %v2176 = vpop.permute.xlu0 %2175
      %2177 = vrot.lane.b32.xlu0 %v2110, 44
      %v2178 = vpop.permute.xlu0 %2177
      %2179 = vrot.lane.b32.xlu0 %v2113, 44
      %v2180 = vpop.permute.xlu0 %2179
      %2181 = vrot.lane.b32.xlu0 %v2116, 44
      %v2182 = vpop.permute.xlu0 %2181
      %2183 = vrot.lane.b32.xlu0 %v2119, 44
      %v2184 = vpop.permute.xlu0 %2183
      %2185 = vrot.lane.b32.xlu0 %v2122, 44
      %v2186 = vpop.permute.xlu0 %2185
      %2220 = vrot.lane.b32.xlu0 %v679, 48
      %v2221 = vpop.permute.xlu0 %2220
      %2222 = vrot.lane.b32.xlu0 %v681, 48
      %v2223 = vpop.permute.xlu0 %2222
      %2224 = vrot.lane.b32.xlu0 %v683, 48
      %v2225 = vpop.permute.xlu0 %2224
      %2226 = vrot.lane.b32.xlu0 %v685, 48
      %v2227 = vpop.permute.xlu0 %2226
      %2228 = vrot.lane.b32.xlu0 %v687, 48
      %v2229 = vpop.permute.xlu0 %2228
      %2230 = vrot.lane.b32.xlu0 %v689, 48
      %v2231 = vpop.permute.xlu0 %2230
      %2232 = vrot.lane.b32.xlu0 %v691, 48
      %v2233 = vpop.permute.xlu0 %2232
      %2234 = vrot.lane.b32.xlu0 %v693, 48
      %v2235 = vpop.permute.xlu0 %2234
      %2236 = vrot.lane.b32.xlu0 %v699, 48
      %v2237 = vpop.permute.xlu0 %2236
      %2238 = vrot.lane.b32.xlu0 %v701, 48
      %v2239 = vpop.permute.xlu0 %2238
      %2240 = vrot.lane.b32.xlu0 %v703, 48
      %v2241 = vpop.permute.xlu0 %2240
      %2242 = vrot.lane.b32.xlu0 %v705, 48
      %v2243 = vpop.permute.xlu0 %2242
      %2244 = vrot.lane.b32.xlu0 %v707, 48
      %v2245 = vpop.permute.xlu0 %2244
      %2246 = vrot.lane.b32.xlu0 %v709, 48
      %v2247 = vpop.permute.xlu0 %2246
      %2248 = vrot.lane.b32.xlu0 %v711, 48
      %v2249 = vpop.permute.xlu0 %2248
      %2250 = vrot.lane.b32.xlu0 %v713, 48
      %v2251 = vpop.permute.xlu0 %2250
      %2252 = vrot.lane.b32.xlu0 %v719, 48
      %v2253 = vpop.permute.xlu0 %2252
      %2254 = vrot.lane.b32.xlu0 %v721, 48
      %v2255 = vpop.permute.xlu0 %2254
      %2256 = vrot.lane.b32.xlu0 %v723, 48
      %v2257 = vpop.permute.xlu0 %2256
      %2258 = vrot.lane.b32.xlu0 %v725, 48
      %v2259 = vpop.permute.xlu0 %2258
      %2260 = vrot.lane.b32.xlu0 %v727, 48
      %v2261 = vpop.permute.xlu0 %2260
      %2262 = vrot.lane.b32.xlu0 %v729, 48
      %v2263 = vpop.permute.xlu0 %2262
      %2264 = vrot.lane.b32.xlu0 %v731, 48
      %v2265 = vpop.permute.xlu0 %2264
      %2266 = vrot.lane.b32.xlu0 %v733, 48
      %v2267 = vpop.permute.xlu0 %2266
      %2268 = vrot.lane.b32.xlu0 %v739, 48
      %v2269 = vpop.permute.xlu0 %2268
      %2270 = vrot.lane.b32.xlu0 %v741, 48
      %v2271 = vpop.permute.xlu0 %2270
      %2272 = vrot.lane.b32.xlu0 %v743, 48
      %v2273 = vpop.permute.xlu0 %2272
      %2274 = vrot.lane.b32.xlu0 %v745, 48
      %v2275 = vpop.permute.xlu0 %2274
      %2276 = vrot.lane.b32.xlu0 %v747, 48
      %v2277 = vpop.permute.xlu0 %2276
      %2278 = vrot.lane.b32.xlu0 %v749, 48
      %v2279 = vpop.permute.xlu0 %2278
      %2280 = vrot.lane.b32.xlu0 %v751, 48
      %v2281 = vpop.permute.xlu0 %2280
      %2282 = vrot.lane.b32.xlu0 %v753, 48
      %v2283 = vpop.permute.xlu0 %2282
      %v2317 = vrot.slane %v753, 1
      %v2318 = vrot.slane %v754, 1
      %v2319 = vsel %vm841, %v2317, %v2318
      %2320 = vrot.lane.b32.xlu0 %v871, 52
      %v2321 = vpop.permute.xlu0 %2320
      %2322 = vrot.lane.b32.xlu0 %v874, 52
      %v2323 = vpop.permute.xlu0 %2322
      %2324 = vrot.lane.b32.xlu0 %v877, 52
      %v2325 = vpop.permute.xlu0 %2324
      %2326 = vrot.lane.b32.xlu0 %v880, 52
      %v2327 = vpop.permute.xlu0 %2326
      %2328 = vrot.lane.b32.xlu0 %v883, 52
      %v2329 = vpop.permute.xlu0 %2328
      %2330 = vrot.lane.b32.xlu0 %v886, 52
      %v2331 = vpop.permute.xlu0 %2330
      %2332 = vrot.lane.b32.xlu0 %v889, 52
      %v2333 = vpop.permute.xlu0 %2332
      %2334 = vrot.lane.b32.xlu0 %v1336, 52
      %v2335 = vpop.permute.xlu0 %2334
      %2336 = vrot.lane.b32.xlu0 %v895, 52
      %v2337 = vpop.permute.xlu0 %2336
      %2338 = vrot.lane.b32.xlu0 %v898, 52
      %v2339 = vpop.permute.xlu0 %2338
      %2340 = vrot.lane.b32.xlu0 %v901, 52
      %v2341 = vpop.permute.xlu0 %2340
      %2342 = vrot.lane.b32.xlu0 %v904, 52
      %v2343 = vpop.permute.xlu0 %2342
      %2344 = vrot.lane.b32.xlu0 %v907, 52
      %v2345 = vpop.permute.xlu0 %2344
      %2346 = vrot.lane.b32.xlu0 %v910, 52
      %v2347 = vpop.permute.xlu0 %2346
      %2348 = vrot.lane.b32.xlu0 %v913, 52
      %v2349 = vpop.permute.xlu0 %2348
      %2350 = vrot.lane.b32.xlu0 %v1339, 52
      %v2351 = vpop.permute.xlu0 %2350
      %2352 = vrot.lane.b32.xlu0 %v919, 52
      %v2353 = vpop.permute.xlu0 %2352
      %2354 = vrot.lane.b32.xlu0 %v922, 52
      %v2355 = vpop.permute.xlu0 %2354
      %2356 = vrot.lane.b32.xlu0 %v925, 52
      %v2357 = vpop.permute.xlu0 %2356
      %2358 = vrot.lane.b32.xlu0 %v928, 52
      %v2359 = vpop.permute.xlu0 %2358
      %2360 = vrot.lane.b32.xlu0 %v931, 52
      %v2361 = vpop.permute.xlu0 %2360
      %2362 = vrot.lane.b32.xlu0 %v934, 52
      %v2363 = vpop.permute.xlu0 %2362
      %2364 = vrot.lane.b32.xlu0 %v937, 52
      %v2365 = vpop.permute.xlu0 %2364
      %2366 = vrot.lane.b32.xlu0 %v1342, 52
      %v2367 = vpop.permute.xlu0 %2366
      %2368 = vrot.lane.b32.xlu0 %v1984, 52
      %v2369 = vpop.permute.xlu0 %2368
      %2370 = vrot.lane.b32.xlu0 %v1987, 52
      %v2371 = vpop.permute.xlu0 %2370
      %2372 = vrot.lane.b32.xlu0 %v1990, 52
      %v2373 = vpop.permute.xlu0 %2372
      %2374 = vrot.lane.b32.xlu0 %v1993, 52
      %v2375 = vpop.permute.xlu0 %2374
      %2376 = vrot.lane.b32.xlu0 %v1996, 52
      %v2377 = vpop.permute.xlu0 %2376
      %2378 = vrot.lane.b32.xlu0 %v1999, 52
      %v2379 = vpop.permute.xlu0 %2378
      %2380 = vrot.lane.b32.xlu0 %v2002, 52
      %v2381 = vpop.permute.xlu0 %2380
      %2382 = vrot.lane.b32.xlu0 %v2319, 52
      %v2383 = vpop.permute.xlu0 %2382
      %v2416 = vrot.slane %v753, 2
      %v2417 = vrot.slane %v754, 2
      %v2418 = vsel %vm1034, %v2416, %v2417
      %2419 = vrot.lane.b32.xlu0 %v1064, 56
      %v2420 = vpop.permute.xlu0 %2419
      %2421 = vrot.lane.b32.xlu0 %v1067, 56
      %v2422 = vpop.permute.xlu0 %2421
      %2423 = vrot.lane.b32.xlu0 %v1070, 56
      %v2424 = vpop.permute.xlu0 %2423
      %2425 = vrot.lane.b32.xlu0 %v1073, 56
      %v2426 = vpop.permute.xlu0 %2425
      %2427 = vrot.lane.b32.xlu0 %v1076, 56
      %v2428 = vpop.permute.xlu0 %2427
      %2429 = vrot.lane.b32.xlu0 %v1079, 56
      %v2430 = vpop.permute.xlu0 %2429
      %2431 = vrot.lane.b32.xlu0 %v1082, 56
      %v2432 = vpop.permute.xlu0 %2431
      %2433 = vrot.lane.b32.xlu0 %v1444, 56
      %v2434 = vpop.permute.xlu0 %2433
      %2435 = vrot.lane.b32.xlu0 %v1088, 56
      %v2436 = vpop.permute.xlu0 %2435
      %2437 = vrot.lane.b32.xlu0 %v1091, 56
      %v2438 = vpop.permute.xlu0 %2437
      %2439 = vrot.lane.b32.xlu0 %v1094, 56
      %v2440 = vpop.permute.xlu0 %2439
      %2441 = vrot.lane.b32.xlu0 %v1097, 56
      %v2442 = vpop.permute.xlu0 %2441
      %2443 = vrot.lane.b32.xlu0 %v1100, 56
      %v2444 = vpop.permute.xlu0 %2443
      %2445 = vrot.lane.b32.xlu0 %v1103, 56
      %v2446 = vpop.permute.xlu0 %2445
      %2447 = vrot.lane.b32.xlu0 %v1106, 56
      %v2448 = vpop.permute.xlu0 %2447
      %2449 = vrot.lane.b32.xlu0 %v1447, 56
      %v2450 = vpop.permute.xlu0 %2449
      %2451 = vrot.lane.b32.xlu0 %v1112, 56
      %v2452 = vpop.permute.xlu0 %2451
      %2453 = vrot.lane.b32.xlu0 %v1115, 56
      %v2454 = vpop.permute.xlu0 %2453
      %2455 = vrot.lane.b32.xlu0 %v1118, 56
      %v2456 = vpop.permute.xlu0 %2455
      %2457 = vrot.lane.b32.xlu0 %v1121, 56
      %v2458 = vpop.permute.xlu0 %2457
      %2459 = vrot.lane.b32.xlu0 %v1124, 56
      %v2460 = vpop.permute.xlu0 %2459
      %2461 = vrot.lane.b32.xlu0 %v1127, 56
      %v2462 = vpop.permute.xlu0 %2461
      %2463 = vrot.lane.b32.xlu0 %v1130, 56
      %v2464 = vpop.permute.xlu0 %2463
      %2465 = vrot.lane.b32.xlu0 %v1450, 56
      %v2466 = vpop.permute.xlu0 %2465
      %2467 = vrot.lane.b32.xlu0 %v2104, 56
      %v2468 = vpop.permute.xlu0 %2467
      %2469 = vrot.lane.b32.xlu0 %v2107, 56
      %v2470 = vpop.permute.xlu0 %2469
      %2471 = vrot.lane.b32.xlu0 %v2110, 56
      %v2472 = vpop.permute.xlu0 %2471
      %2473 = vrot.lane.b32.xlu0 %v2113, 56
      %v2474 = vpop.permute.xlu0 %2473
      %2475 = vrot.lane.b32.xlu0 %v2116, 56
      %v2476 = vpop.permute.xlu0 %2475
      %2477 = vrot.lane.b32.xlu0 %v2119, 56
      %v2478 = vpop.permute.xlu0 %2477
      %2479 = vrot.lane.b32.xlu0 %v2122, 56
      %v2480 = vpop.permute.xlu0 %2479
      %2481 = vrot.lane.b32.xlu0 %v2418, 56
      %v2482 = vpop.permute.xlu0 %2481
      %2516 = vrot.lane.b32.xlu0 %v681, 60
      %v2517 = vpop.permute.xlu0 %2516
      %2518 = vrot.lane.b32.xlu0 %v683, 60
      %v2519 = vpop.permute.xlu0 %2518
      %2520 = vrot.lane.b32.xlu0 %v685, 60
      %v2521 = vpop.permute.xlu0 %2520
      %2522 = vrot.lane.b32.xlu0 %v687, 60
      %v2523 = vpop.permute.xlu0 %2522
      %2524 = vrot.lane.b32.xlu0 %v689, 60
      %v2525 = vpop.permute.xlu0 %2524
      %2526 = vrot.lane.b32.xlu0 %v691, 60
      %v2527 = vpop.permute.xlu0 %2526
      %2528 = vrot.lane.b32.xlu0 %v693, 60
      %v2529 = vpop.permute.xlu0 %2528
      %2530 = vrot.lane.b32.xlu0 %v695, 60
      %v2531 = vpop.permute.xlu0 %2530
      %2532 = vrot.lane.b32.xlu0 %v701, 60
      %v2533 = vpop.permute.xlu0 %2532
      %2534 = vrot.lane.b32.xlu0 %v703, 60
      %v2535 = vpop.permute.xlu0 %2534
      %2536 = vrot.lane.b32.xlu0 %v705, 60
      %v2537 = vpop.permute.xlu0 %2536
      %2538 = vrot.lane.b32.xlu0 %v707, 60
      %v2539 = vpop.permute.xlu0 %2538
      %2540 = vrot.lane.b32.xlu0 %v709, 60
      %v2541 = vpop.permute.xlu0 %2540
      %2542 = vrot.lane.b32.xlu0 %v711, 60
      %v2543 = vpop.permute.xlu0 %2542
      %2544 = vrot.lane.b32.xlu0 %v713, 60
      %v2545 = vpop.permute.xlu0 %2544
      %2546 = vrot.lane.b32.xlu0 %v715, 60
      %v2547 = vpop.permute.xlu0 %2546
      %2548 = vrot.lane.b32.xlu0 %v721, 60
      %v2549 = vpop.permute.xlu0 %2548
      %2550 = vrot.lane.b32.xlu0 %v723, 60
      %v2551 = vpop.permute.xlu0 %2550
      %2552 = vrot.lane.b32.xlu0 %v725, 60
      %v2553 = vpop.permute.xlu0 %2552
      %2554 = vrot.lane.b32.xlu0 %v727, 60
      %v2555 = vpop.permute.xlu0 %2554
      %2556 = vrot.lane.b32.xlu0 %v729, 60
      %v2557 = vpop.permute.xlu0 %2556
      %2558 = vrot.lane.b32.xlu0 %v731, 60
      %v2559 = vpop.permute.xlu0 %2558
      %2560 = vrot.lane.b32.xlu0 %v733, 60
      %v2561 = vpop.permute.xlu0 %2560
      %2562 = vrot.lane.b32.xlu0 %v735, 60
      %v2563 = vpop.permute.xlu0 %2562
      %2564 = vrot.lane.b32.xlu0 %v741, 60
      %v2565 = vpop.permute.xlu0 %2564
      %2566 = vrot.lane.b32.xlu0 %v743, 60
      %v2567 = vpop.permute.xlu0 %2566
      %2568 = vrot.lane.b32.xlu0 %v745, 60
      %v2569 = vpop.permute.xlu0 %2568
      %2570 = vrot.lane.b32.xlu0 %v747, 60
      %v2571 = vpop.permute.xlu0 %2570
      %2572 = vrot.lane.b32.xlu0 %v749, 60
      %v2573 = vpop.permute.xlu0 %2572
      %2574 = vrot.lane.b32.xlu0 %v751, 60
      %v2575 = vpop.permute.xlu0 %2574
      %2576 = vrot.lane.b32.xlu0 %v753, 60
      %v2577 = vpop.permute.xlu0 %2576
      %2578 = vrot.lane.b32.xlu0 %v755, 60
      %v2579 = vpop.permute.xlu0 %2578
      %v2612 = vsel %vm466, %v657, %v939
      %v2613 = vsel %vm466, %v659, %v941
      %v2614 = vsel %vm466, %v661, %v943
      %v2615 = vsel %vm466, %v663, %v945
      %v2616 = vsel %vm466, %v665, %v947
      %v2617 = vsel %vm466, %v667, %v949
      %v2618 = vsel %vm466, %v669, %v951
      %v2619 = vsel %vm466, %v671, %v953
      %v2620 = vsel %vm466, %v677, %v955
      %v2621 = vsel %vm466, %v679, %v957
      %v2622 = vsel %vm466, %v681, %v959
      %v2623 = vsel %vm466, %v683, %v961
      %v2624 = vsel %vm466, %v685, %v963
      %v2625 = vsel %vm466, %v687, %v965
      %v2626 = vsel %vm466, %v689, %v967
      %v2627 = vsel %vm466, %v691, %v969
      %v2628 = vsel %vm466, %v697, %v971
      %v2629 = vsel %vm466, %v699, %v973
      %v2630 = vsel %vm466, %v701, %v975
      %v2631 = vsel %vm466, %v703, %v977
      %v2632 = vsel %vm466, %v705, %v979
      %v2633 = vsel %vm466, %v707, %v981
      %v2634 = vsel %vm466, %v709, %v983
      %v2635 = vsel %vm466, %v711, %v985
      %v2636 = vsel %vm466, %v717, %v987
      %v2637 = vsel %vm466, %v719, %v989
      %v2638 = vsel %vm466, %v721, %v991
      %v2639 = vsel %vm466, %v723, %v993
      %v2640 = vsel %vm466, %v725, %v995
      %v2641 = vsel %vm466, %v727, %v997
      %v2642 = vsel %vm466, %v729, %v999
      %v2643 = vsel %vm466, %v731, %v1001
      %vm2644 = vcmask 64512
      %v2645 = vsel %vm2644, %v2612, %v1132
      %v2646 = vsel %vm2644, %v2613, %v1134
      %v2647 = vsel %vm2644, %v2614, %v1136
      %v2648 = vsel %vm2644, %v2615, %v1138
      %v2649 = vsel %vm2644, %v2616, %v1140
      %v2650 = vsel %vm2644, %v2617, %v1142
      %v2651 = vsel %vm2644, %v2618, %v1144
      %v2652 = vsel %vm2644, %v2619, %v1146
      %v2653 = vsel %vm2644, %v2620, %v1148
      %v2654 = vsel %vm2644, %v2621, %v1150
      %v2655 = vsel %vm2644, %v2622, %v1152
      %v2656 = vsel %vm2644, %v2623, %v1154
      %v2657 = vsel %vm2644, %v2624, %v1156
      %v2658 = vsel %vm2644, %v2625, %v1158
      %v2659 = vsel %vm2644, %v2626, %v1160
      %v2660 = vsel %vm2644, %v2627, %v1162
      %v2661 = vsel %vm2644, %v2628, %v1164
      %v2662 = vsel %vm2644, %v2629, %v1166
      %v2663 = vsel %vm2644, %v2630, %v1168
      %v2664 = vsel %vm2644, %v2631, %v1170
      %v2665 = vsel %vm2644, %v2632, %v1172
      %v2666 = vsel %vm2644, %v2633, %v1174
      %v2667 = vsel %vm2644, %v2634, %v1176
      %v2668 = vsel %vm2644, %v2635, %v1178
      %v2669 = vsel %vm2644, %v2636, %v1180
      %v2670 = vsel %vm2644, %v2637, %v1182
      %v2671 = vsel %vm2644, %v2638, %v1184
      %v2672 = vsel %vm2644, %v2639, %v1186
      %v2673 = vsel %vm2644, %v2640, %v1188
      %v2674 = vsel %vm2644, %v2641, %v1190
      %v2675 = vsel %vm2644, %v2642, %v1192
      %v2676 = vsel %vm2644, %v2643, %v1194
      %vm2677 = vcmask 97280
      %v2678 = vsel %vm2677, %v2645, %v1232
      %v2679 = vsel %vm2677, %v2646, %v1234
      %v2680 = vsel %vm2677, %v2647, %v1236
      %v2681 = vsel %vm2677, %v2648, %v1238
      %v2682 = vsel %vm2677, %v2649, %v1240
      %v2683 = vsel %vm2677, %v2650, %v1242
      %v2684 = vsel %vm2677, %v2651, %v1244
      %v2685 = vsel %vm2677, %v2652, %v1246
      %v2686 = vsel %vm2677, %v2653, %v1248
      %v2687 = vsel %vm2677, %v2654, %v1250
      %v2688 = vsel %vm2677, %v2655, %v1252
      %v2689 = vsel %vm2677, %v2656, %v1254
      %v2690 = vsel %vm2677, %v2657, %v1256
      %v2691 = vsel %vm2677, %v2658, %v1258
      %v2692 = vsel %vm2677, %v2659, %v1260
      %v2693 = vsel %vm2677, %v2660, %v1262
      %v2694 = vsel %vm2677, %v2661, %v1264
      %v2695 = vsel %vm2677, %v2662, %v1266
      %v2696 = vsel %vm2677, %v2663, %v1268
      %v2697 = vsel %vm2677, %v2664, %v1270
      %v2698 = vsel %vm2677, %v2665, %v1272
      %v2699 = vsel %vm2677, %v2666, %v1274
      %v2700 = vsel %vm2677, %v2667, %v1276
      %v2701 = vsel %vm2677, %v2668, %v1278
      %v2702 = vsel %vm2677, %v2669, %v1280
      %v2703 = vsel %vm2677, %v2670, %v1282
      %v2704 = vsel %vm2677, %v2671, %v1284
      %v2705 = vsel %vm2677, %v2672, %v1286
      %v2706 = vsel %vm2677, %v2673, %v1288
      %v2707 = vsel %vm2677, %v2674, %v1290
      %v2708 = vsel %vm2677, %v2675, %v1292
      %v2709 = vsel %vm2677, %v2676, %v1294
      %vm2710 = vcmask 130048
      %v2711 = vsel %vm2710, %v2678, %v1344
      %v2712 = vsel %vm2710, %v2679, %v1346
      %v2713 = vsel %vm2710, %v2680, %v1348
      %v2714 = vsel %vm2710, %v2681, %v1350
      %v2715 = vsel %vm2710, %v2682, %v1352
      %v2716 = vsel %vm2710, %v2683, %v1354
      %v2717 = vsel %vm2710, %v2684, %v1356
      %v2718 = vsel %vm2710, %v2685, %v1358
      %v2719 = vsel %vm2710, %v2686, %v1360
      %v2720 = vsel %vm2710, %v2687, %v1362
      %v2721 = vsel %vm2710, %v2688, %v1364
      %v2722 = vsel %vm2710, %v2689, %v1366
      %v2723 = vsel %vm2710, %v2690, %v1368
      %v2724 = vsel %vm2710, %v2691, %v1370
      %v2725 = vsel %vm2710, %v2692, %v1372
      %v2726 = vsel %vm2710, %v2693, %v1374
      %v2727 = vsel %vm2710, %v2694, %v1376
      %v2728 = vsel %vm2710, %v2695, %v1378
      %v2729 = vsel %vm2710, %v2696, %v1380
      %v2730 = vsel %vm2710, %v2697, %v1382
      %v2731 = vsel %vm2710, %v2698, %v1384
      %v2732 = vsel %vm2710, %v2699, %v1386
      %v2733 = vsel %vm2710, %v2700, %v1388
      %v2734 = vsel %vm2710, %v2701, %v1390
      %v2735 = vsel %vm2710, %v2702, %v1392
      %v2736 = vsel %vm2710, %v2703, %v1394
      %v2737 = vsel %vm2710, %v2704, %v1396
      %v2738 = vsel %vm2710, %v2705, %v1398
      %v2739 = vsel %vm2710, %v2706, %v1400
      %v2740 = vsel %vm2710, %v2707, %v1402
      %v2741 = vsel %vm2710, %v2708, %v1404
      %v2742 = vsel %vm2710, %v2709, %v1406
      %vm2743 = vcmask 162816
      %v2744 = vsel %vm2743, %v2711, %v1452
      %v2745 = vsel %vm2743, %v2712, %v1454
      %v2746 = vsel %vm2743, %v2713, %v1456
      %v2747 = vsel %vm2743, %v2714, %v1458
      %v2748 = vsel %vm2743, %v2715, %v1460
      %v2749 = vsel %vm2743, %v2716, %v1462
      %v2750 = vsel %vm2743, %v2717, %v1464
      %v2751 = vsel %vm2743, %v2718, %v1466
      %v2752 = vsel %vm2743, %v2719, %v1468
      %v2753 = vsel %vm2743, %v2720, %v1470
      %v2754 = vsel %vm2743, %v2721, %v1472
      %v2755 = vsel %vm2743, %v2722, %v1474
      %v2756 = vsel %vm2743, %v2723, %v1476
      %v2757 = vsel %vm2743, %v2724, %v1478
      %v2758 = vsel %vm2743, %v2725, %v1480
      %v2759 = vsel %vm2743, %v2726, %v1482
      %v2760 = vsel %vm2743, %v2727, %v1484
      %v2761 = vsel %vm2743, %v2728, %v1486
      %v2762 = vsel %vm2743, %v2729, %v1488
      %v2763 = vsel %vm2743, %v2730, %v1490
      %v2764 = vsel %vm2743, %v2731, %v1492
      %v2765 = vsel %vm2743, %v2732, %v1494
      %v2766 = vsel %vm2743, %v2733, %v1496
      %v2767 = vsel %vm2743, %v2734, %v1498
      %v2768 = vsel %vm2743, %v2735, %v1500
      %v2769 = vsel %vm2743, %v2736, %v1502
      %v2770 = vsel %vm2743, %v2737, %v1504
      %v2771 = vsel %vm2743, %v2738, %v1506
      %v2772 = vsel %vm2743, %v2739, %v1508
      %v2773 = vsel %vm2743, %v2740, %v1510
      %v2774 = vsel %vm2743, %v2741, %v1512
      %v2775 = vsel %vm2743, %v2742, %v1514
      %vm2776 = vcmask 195584
      %v2777 = vsel %vm2776, %v2744, %v1552
      %v2778 = vsel %vm2776, %v2745, %v1554
      %v2779 = vsel %vm2776, %v2746, %v1556
      %v2780 = vsel %vm2776, %v2747, %v1558
      %v2781 = vsel %vm2776, %v2748, %v1560
      %v2782 = vsel %vm2776, %v2749, %v1562
      %v2783 = vsel %vm2776, %v2750, %v1564
      %v2784 = vsel %vm2776, %v2751, %v1566
      %v2785 = vsel %vm2776, %v2752, %v1568
      %v2786 = vsel %vm2776, %v2753, %v1570
      %v2787 = vsel %vm2776, %v2754, %v1572
      %v2788 = vsel %vm2776, %v2755, %v1574
      %v2789 = vsel %vm2776, %v2756, %v1576
      %v2790 = vsel %vm2776, %v2757, %v1578
      %v2791 = vsel %vm2776, %v2758, %v1580
      %v2792 = vsel %vm2776, %v2759, %v1582
      %v2793 = vsel %vm2776, %v2760, %v1584
      %v2794 = vsel %vm2776, %v2761, %v1586
      %v2795 = vsel %vm2776, %v2762, %v1588
      %v2796 = vsel %vm2776, %v2763, %v1590
      %v2797 = vsel %vm2776, %v2764, %v1592
      %v2798 = vsel %vm2776, %v2765, %v1594
      %v2799 = vsel %vm2776, %v2766, %v1596
      %v2800 = vsel %vm2776, %v2767, %v1598
      %v2801 = vsel %vm2776, %v2768, %v1600
      %v2802 = vsel %vm2776, %v2769, %v1602
      %v2803 = vsel %vm2776, %v2770, %v1604
      %v2804 = vsel %vm2776, %v2771, %v1606
      %v2805 = vsel %vm2776, %v2772, %v1608
      %v2806 = vsel %vm2776, %v2773, %v1610
      %v2807 = vsel %vm2776, %v2774, %v1612
      %v2808 = vsel %vm2776, %v2775, %v1614
      %vm2809 = vcmask 228352
      %v2810 = vsel %vm2809, %v2777, %v1664
      %v2811 = vsel %vm2809, %v2778, %v1666
      %v2812 = vsel %vm2809, %v2779, %v1668
      %v2813 = vsel %vm2809, %v2780, %v1670
      %v2814 = vsel %vm2809, %v2781, %v1672
      %v2815 = vsel %vm2809, %v2782, %v1674
      %v2816 = vsel %vm2809, %v2783, %v1676
      %v2817 = vsel %vm2809, %v2784, %v1678
      %v2818 = vsel %vm2809, %v2785, %v1680
      %v2819 = vsel %vm2809, %v2786, %v1682
      %v2820 = vsel %vm2809, %v2787, %v1684
      %v2821 = vsel %vm2809, %v2788, %v1686
      %v2822 = vsel %vm2809, %v2789, %v1688
      %v2823 = vsel %vm2809, %v2790, %v1690
      %v2824 = vsel %vm2809, %v2791, %v1692
      %v2825 = vsel %vm2809, %v2792, %v1694
      %v2826 = vsel %vm2809, %v2793, %v1696
      %v2827 = vsel %vm2809, %v2794, %v1698
      %v2828 = vsel %vm2809, %v2795, %v1700
      %v2829 = vsel %vm2809, %v2796, %v1702
      %v2830 = vsel %vm2809, %v2797, %v1704
      %v2831 = vsel %vm2809, %v2798, %v1706
      %v2832 = vsel %vm2809, %v2799, %v1708
      %v2833 = vsel %vm2809, %v2800, %v1710
      %v2834 = vsel %vm2809, %v2801, %v1712
      %v2835 = vsel %vm2809, %v2802, %v1714
      %v2836 = vsel %vm2809, %v2803, %v1716
      %v2837 = vsel %vm2809, %v2804, %v1718
      %v2838 = vsel %vm2809, %v2805, %v1720
      %v2839 = vsel %vm2809, %v2806, %v1722
      %v2840 = vsel %vm2809, %v2807, %v1724
      %v2841 = vsel %vm2809, %v2808, %v1726
      %vm2842 = vcmask 261120
      %v2843 = vsel %vm2842, %v2810, %v1772
      %v2844 = vsel %vm2842, %v2811, %v1774
      %v2845 = vsel %vm2842, %v2812, %v1776
      %v2846 = vsel %vm2842, %v2813, %v1778
      %v2847 = vsel %vm2842, %v2814, %v1780
      %v2848 = vsel %vm2842, %v2815, %v1782
      %v2849 = vsel %vm2842, %v2816, %v1784
      %v2850 = vsel %vm2842, %v2817, %v1786
      %v2851 = vsel %vm2842, %v2818, %v1788
      %v2852 = vsel %vm2842, %v2819, %v1790
      %v2853 = vsel %vm2842, %v2820, %v1792
      %v2854 = vsel %vm2842, %v2821, %v1794
      %v2855 = vsel %vm2842, %v2822, %v1796
      %v2856 = vsel %vm2842, %v2823, %v1798
      %v2857 = vsel %vm2842, %v2824, %v1800
      %v2858 = vsel %vm2842, %v2825, %v1802
      %v2859 = vsel %vm2842, %v2826, %v1804
      %v2860 = vsel %vm2842, %v2827, %v1806
      %v2861 = vsel %vm2842, %v2828, %v1808
      %v2862 = vsel %vm2842, %v2829, %v1810
      %v2863 = vsel %vm2842, %v2830, %v1812
      %v2864 = vsel %vm2842, %v2831, %v1814
      %v2865 = vsel %vm2842, %v2832, %v1816
      %v2866 = vsel %vm2842, %v2833, %v1818
      %v2867 = vsel %vm2842, %v2834, %v1820
      %v2868 = vsel %vm2842, %v2835, %v1822
      %v2869 = vsel %vm2842, %v2836, %v1824
      %v2870 = vsel %vm2842, %v2837, %v1826
      %v2871 = vsel %vm2842, %v2838, %v1828
      %v2872 = vsel %vm2842, %v2839, %v1830
      %v2873 = vsel %vm2842, %v2840, %v1832
      %v2874 = vsel %vm2842, %v2841, %v1834
      %vm2875 = vcmask 293888
      %v2876 = vsel %vm2875, %v2843, %v1876
      %v2877 = vsel %vm2875, %v2844, %v1878
      %v2878 = vsel %vm2875, %v2845, %v1880
      %v2879 = vsel %vm2875, %v2846, %v1882
      %v2880 = vsel %vm2875, %v2847, %v1884
      %v2881 = vsel %vm2875, %v2848, %v1886
      %v2882 = vsel %vm2875, %v2849, %v1888
      %v2883 = vsel %vm2875, %v2850, %v1890
      %v2884 = vsel %vm2875, %v2851, %v1892
      %v2885 = vsel %vm2875, %v2852, %v1894
      %v2886 = vsel %vm2875, %v2853, %v1896
      %v2887 = vsel %vm2875, %v2854, %v1898
      %v2888 = vsel %vm2875, %v2855, %v1900
      %v2889 = vsel %vm2875, %v2856, %v1902
      %v2890 = vsel %vm2875, %v2857, %v1904
      %v2891 = vsel %vm2875, %v2858, %v1906
      %v2892 = vsel %vm2875, %v2859, %v1908
      %v2893 = vsel %vm2875, %v2860, %v1910
      %v2894 = vsel %vm2875, %v2861, %v1912
      %v2895 = vsel %vm2875, %v2862, %v1914
      %v2896 = vsel %vm2875, %v2863, %v1916
      %v2897 = vsel %vm2875, %v2864, %v1918
      %v2898 = vsel %vm2875, %v2865, %v1920
      %v2899 = vsel %vm2875, %v2866, %v1922
      %v2900 = vsel %vm2875, %v2867, %v1924
      %v2901 = vsel %vm2875, %v2868, %v1926
      %v2902 = vsel %vm2875, %v2869, %v1928
      %v2903 = vsel %vm2875, %v2870, %v1930
      %v2904 = vsel %vm2875, %v2871, %v1932
      %v2905 = vsel %vm2875, %v2872, %v1934
      %v2906 = vsel %vm2875, %v2873, %v1936
      %v2907 = vsel %vm2875, %v2874, %v1938
      %vm2908 = vcmask 326656
      %v2909 = vsel %vm2908, %v2876, %v2004
      %v2910 = vsel %vm2908, %v2877, %v2006
      %v2911 = vsel %vm2908, %v2878, %v2008
      %v2912 = vsel %vm2908, %v2879, %v2010
      %v2913 = vsel %vm2908, %v2880, %v2012
      %v2914 = vsel %vm2908, %v2881, %v2014
      %v2915 = vsel %vm2908, %v2882, %v2016
      %v2916 = vsel %vm2908, %v2883, %v2018
      %v2917 = vsel %vm2908, %v2884, %v2020
      %v2918 = vsel %vm2908, %v2885, %v2022
      %v2919 = vsel %vm2908, %v2886, %v2024
      %v2920 = vsel %vm2908, %v2887, %v2026
      %v2921 = vsel %vm2908, %v2888, %v2028
      %v2922 = vsel %vm2908, %v2889, %v2030
      %v2923 = vsel %vm2908, %v2890, %v2032
      %v2924 = vsel %vm2908, %v2891, %v2034
      %v2925 = vsel %vm2908, %v2892, %v2036
      %v2926 = vsel %vm2908, %v2893, %v2038
      %v2927 = vsel %vm2908, %v2894, %v2040
      %v2928 = vsel %vm2908, %v2895, %v2042
      %v2929 = vsel %vm2908, %v2896, %v2044
      %v2930 = vsel %vm2908, %v2897, %v2046
      %v2931 = vsel %vm2908, %v2898, %v2048
      %v2932 = vsel %vm2908, %v2899, %v2050
      %v2933 = vsel %vm2908, %v2900, %v2052
      %v2934 = vsel %vm2908, %v2901, %v2054
      %v2935 = vsel %vm2908, %v2902, %v2056
      %v2936 = vsel %vm2908, %v2903, %v2058
      %v2937 = vsel %vm2908, %v2904, %v2060
      %v2938 = vsel %vm2908, %v2905, %v2062
      %v2939 = vsel %vm2908, %v2906, %v2064
      %v2940 = vsel %vm2908, %v2907, %v2066
      %vm2941 = vcmask 359424
      %v2942 = vsel %vm2941, %v2909, %v2124
      %v2943 = vsel %vm2941, %v2910, %v2126
      %v2944 = vsel %vm2941, %v2911, %v2128
      %v2945 = vsel %vm2941, %v2912, %v2130
      %v2946 = vsel %vm2941, %v2913, %v2132
      %v2947 = vsel %vm2941, %v2914, %v2134
      %v2948 = vsel %vm2941, %v2915, %v2136
      %v2949 = vsel %vm2941, %v2916, %v2138
      %v2950 = vsel %vm2941, %v2917, %v2140
      %v2951 = vsel %vm2941, %v2918, %v2142
      %v2952 = vsel %vm2941, %v2919, %v2144
      %v2953 = vsel %vm2941, %v2920, %v2146
      %v2954 = vsel %vm2941, %v2921, %v2148
      %v2955 = vsel %vm2941, %v2922, %v2150
      %v2956 = vsel %vm2941, %v2923, %v2152
      %v2957 = vsel %vm2941, %v2924, %v2154
      %v2958 = vsel %vm2941, %v2925, %v2156
      %v2959 = vsel %vm2941, %v2926, %v2158
      %v2960 = vsel %vm2941, %v2927, %v2160
      %v2961 = vsel %vm2941, %v2928, %v2162
      %v2962 = vsel %vm2941, %v2929, %v2164
      %v2963 = vsel %vm2941, %v2930, %v2166
      %v2964 = vsel %vm2941, %v2931, %v2168
      %v2965 = vsel %vm2941, %v2932, %v2170
      %v2966 = vsel %vm2941, %v2933, %v2172
      %v2967 = vsel %vm2941, %v2934, %v2174
      %v2968 = vsel %vm2941, %v2935, %v2176
      %v2969 = vsel %vm2941, %v2936, %v2178
      %v2970 = vsel %vm2941, %v2937, %v2180
      %v2971 = vsel %vm2941, %v2938, %v2182
      %v2972 = vsel %vm2941, %v2939, %v2184
      %v2973 = vsel %vm2941, %v2940, %v2186
      %vm2974 = vcmask 392192
      %v2975 = vsel %vm2974, %v2942, %v2221
      %v2976 = vsel %vm2974, %v2943, %v2223
      %v2977 = vsel %vm2974, %v2944, %v2225
      %v2978 = vsel %vm2974, %v2945, %v2227
      %v2979 = vsel %vm2974, %v2946, %v2229
      %v2980 = vsel %vm2974, %v2947, %v2231
      %v2981 = vsel %vm2974, %v2948, %v2233
      %v2982 = vsel %vm2974, %v2949, %v2235
      %v2983 = vsel %vm2974, %v2950, %v2237
      %v2984 = vsel %vm2974, %v2951, %v2239
      %v2985 = vsel %vm2974, %v2952, %v2241
      %v2986 = vsel %vm2974, %v2953, %v2243
      %v2987 = vsel %vm2974, %v2954, %v2245
      %v2988 = vsel %vm2974, %v2955, %v2247
      %v2989 = vsel %vm2974, %v2956, %v2249
      %v2990 = vsel %vm2974, %v2957, %v2251
      %v2991 = vsel %vm2974, %v2958, %v2253
      %v2992 = vsel %vm2974, %v2959, %v2255
      %v2993 = vsel %vm2974, %v2960, %v2257
      %v2994 = vsel %vm2974, %v2961, %v2259
      %v2995 = vsel %vm2974, %v2962, %v2261
      %v2996 = vsel %vm2974, %v2963, %v2263
      %v2997 = vsel %vm2974, %v2964, %v2265
      %v2998 = vsel %vm2974, %v2965, %v2267
      %v2999 = vsel %vm2974, %v2966, %v2269
      %v3000 = vsel %vm2974, %v2967, %v2271
      %v3001 = vsel %vm2974, %v2968, %v2273
      %v3002 = vsel %vm2974, %v2969, %v2275
      %v3003 = vsel %vm2974, %v2970, %v2277
      %v3004 = vsel %vm2974, %v2971, %v2279
      %v3005 = vsel %vm2974, %v2972, %v2281
      %v3006 = vsel %vm2974, %v2973, %v2283
      %vm3007 = vcmask 424960
      %v3008 = vsel %vm3007, %v2975, %v2321
      %v3009 = vsel %vm3007, %v2976, %v2323
      %v3010 = vsel %vm3007, %v2977, %v2325
      %v3011 = vsel %vm3007, %v2978, %v2327
      %v3012 = vsel %vm3007, %v2979, %v2329
      %v3013 = vsel %vm3007, %v2980, %v2331
      %v3014 = vsel %vm3007, %v2981, %v2333
      %v3015 = vsel %vm3007, %v2982, %v2335
      %v3016 = vsel %vm3007, %v2983, %v2337
      %v3017 = vsel %vm3007, %v2984, %v2339
      %v3018 = vsel %vm3007, %v2985, %v2341
      %v3019 = vsel %vm3007, %v2986, %v2343
      %v3020 = vsel %vm3007, %v2987, %v2345
      %v3021 = vsel %vm3007, %v2988, %v2347
      %v3022 = vsel %vm3007, %v2989, %v2349
      %v3023 = vsel %vm3007, %v2990, %v2351
      %v3024 = vsel %vm3007, %v2991, %v2353
      %v3025 = vsel %vm3007, %v2992, %v2355
      %v3026 = vsel %vm3007, %v2993, %v2357
      %v3027 = vsel %vm3007, %v2994, %v2359
      %v3028 = vsel %vm3007, %v2995, %v2361
      %v3029 = vsel %vm3007, %v2996, %v2363
      %v3030 = vsel %vm3007, %v2997, %v2365
      %v3031 = vsel %vm3007, %v2998, %v2367
      %v3032 = vsel %vm3007, %v2999, %v2369
      %v3033 = vsel %vm3007, %v3000, %v2371
      %v3034 = vsel %vm3007, %v3001, %v2373
      %v3035 = vsel %vm3007, %v3002, %v2375
      %v3036 = vsel %vm3007, %v3003, %v2377
      %v3037 = vsel %vm3007, %v3004, %v2379
      %v3038 = vsel %vm3007, %v3005, %v2381
      %v3039 = vsel %vm3007, %v3006, %v2383
      %vm3040 = vcmask 457728
      %v3041 = vsel %vm3040, %v3008, %v2420
      %v3042 = vsel %vm3040, %v3009, %v2422
      %v3043 = vsel %vm3040, %v3010, %v2424
      %v3044 = vsel %vm3040, %v3011, %v2426
      %v3045 = vsel %vm3040, %v3012, %v2428
      %v3046 = vsel %vm3040, %v3013, %v2430
      %v3047 = vsel %vm3040, %v3014, %v2432
      %v3048 = vsel %vm3040, %v3015, %v2434
      %v3049 = vsel %vm3040, %v3016, %v2436
      %v3050 = vsel %vm3040, %v3017, %v2438
      %v3051 = vsel %vm3040, %v3018, %v2440
      %v3052 = vsel %vm3040, %v3019, %v2442
      %v3053 = vsel %vm3040, %v3020, %v2444
      %v3054 = vsel %vm3040, %v3021, %v2446
      %v3055 = vsel %vm3040, %v3022, %v2448
      %v3056 = vsel %vm3040, %v3023, %v2450
      %v3057 = vsel %vm3040, %v3024, %v2452
      %v3058 = vsel %vm3040, %v3025, %v2454
      %v3059 = vsel %vm3040, %v3026, %v2456
      %v3060 = vsel %vm3040, %v3027, %v2458
      %v3061 = vsel %vm3040, %v3028, %v2460
      %v3062 = vsel %vm3040, %v3029, %v2462
      %v3063 = vsel %vm3040, %v3030, %v2464
      %v3064 = vsel %vm3040, %v3031, %v2466
      %v3065 = vsel %vm3040, %v3032, %v2468
      %v3066 = vsel %vm3040, %v3033, %v2470
      %v3067 = vsel %vm3040, %v3034, %v2472
      %v3068 = vsel %vm3040, %v3035, %v2474
      %v3069 = vsel %vm3040, %v3036, %v2476
      %v3070 = vsel %vm3040, %v3037, %v2478
      %v3071 = vsel %vm3040, %v3038, %v2480
      %v3072 = vsel %vm3040, %v3039, %v2482
      %vm3073 = vcmask 490496
      %v3074 = vsel %vm3073, %v3041, %v2517
      %v3075 = vsel %vm3073, %v3042, %v2519
      %v3076 = vsel %vm3073, %v3043, %v2521
      %v3077 = vsel %vm3073, %v3044, %v2523
      %v3078 = vsel %vm3073, %v3045, %v2525
      %v3079 = vsel %vm3073, %v3046, %v2527
      %v3080 = vsel %vm3073, %v3047, %v2529
      %v3081 = vsel %vm3073, %v3048, %v2531
      %v3082 = vsel %vm3073, %v3049, %v2533
      %v3083 = vsel %vm3073, %v3050, %v2535
      %v3084 = vsel %vm3073, %v3051, %v2537
      %v3085 = vsel %vm3073, %v3052, %v2539
      %v3086 = vsel %vm3073, %v3053, %v2541
      %v3087 = vsel %vm3073, %v3054, %v2543
      %v3088 = vsel %vm3073, %v3055, %v2545
      %v3089 = vsel %vm3073, %v3056, %v2547
      %v3090 = vsel %vm3073, %v3057, %v2549
      %v3091 = vsel %vm3073, %v3058, %v2551
      %v3092 = vsel %vm3073, %v3059, %v2553
      %v3093 = vsel %vm3073, %v3060, %v2555
      %v3094 = vsel %vm3073, %v3061, %v2557
      %v3095 = vsel %vm3073, %v3062, %v2559
      %v3096 = vsel %vm3073, %v3063, %v2561
      %v3097 = vsel %vm3073, %v3064, %v2563
      %v3098 = vsel %vm3073, %v3065, %v2565
      %v3099 = vsel %vm3073, %v3066, %v2567
      %v3100 = vsel %vm3073, %v3067, %v2569
      %v3101 = vsel %vm3073, %v3068, %v2571
      %v3102 = vsel %vm3073, %v3069, %v2573
      %v3103 = vsel %vm3073, %v3070, %v2575
      %v3104 = vsel %vm3073, %v3071, %v2577
      %v3105 = vsel %vm3073, %v3072, %v2579
      %v3107 = vrot.slane %v755, 1
      %v3108 = vrot.slane %v756, 1
      %v3109 = vsel %vm841, %v3107, %v3108
      %3110 = vrot.lane.b32.xlu0 %v873, 4
      %v3111 = vpop.permute.xlu0 %3110
      %3112 = vrot.lane.b32.xlu0 %v876, 4
      %v3113 = vpop.permute.xlu0 %3112
      %3114 = vrot.lane.b32.xlu0 %v879, 4
      %v3115 = vpop.permute.xlu0 %3114
      %3116 = vrot.lane.b32.xlu0 %v882, 4
      %v3117 = vpop.permute.xlu0 %3116
      %3118 = vrot.lane.b32.xlu0 %v885, 4
      %v3119 = vpop.permute.xlu0 %3118
      %3120 = vrot.lane.b32.xlu0 %v888, 4
      %v3121 = vpop.permute.xlu0 %3120
      %3122 = vrot.lane.b32.xlu0 %v1336, 4
      %v3123 = vpop.permute.xlu0 %3122
      %3124 = vrot.lane.b32.xlu0 %v1335, 4
      %v3125 = vpop.permute.xlu0 %3124
      %3126 = vrot.lane.b32.xlu0 %v1656, 4
      %v3127 = vpop.permute.xlu0 %3126
      %3128 = vrot.lane.b32.xlu0 %v1655, 4
      %v3129 = vpop.permute.xlu0 %3128
      %3130 = vrot.lane.b32.xlu0 %v897, 4
      %v3131 = vpop.permute.xlu0 %3130
      %3132 = vrot.lane.b32.xlu0 %v900, 4
      %v3133 = vpop.permute.xlu0 %3132
      %3134 = vrot.lane.b32.xlu0 %v903, 4
      %v3135 = vpop.permute.xlu0 %3134
      %3136 = vrot.lane.b32.xlu0 %v906, 4
      %v3137 = vpop.permute.xlu0 %3136
      %3138 = vrot.lane.b32.xlu0 %v909, 4
      %v3139 = vpop.permute.xlu0 %3138
      %3140 = vrot.lane.b32.xlu0 %v912, 4
      %v3141 = vpop.permute.xlu0 %3140
      %3142 = vrot.lane.b32.xlu0 %v1339, 4
      %v3143 = vpop.permute.xlu0 %3142
      %3144 = vrot.lane.b32.xlu0 %v1338, 4
      %v3145 = vpop.permute.xlu0 %3144
      %3146 = vrot.lane.b32.xlu0 %v1659, 4
      %v3147 = vpop.permute.xlu0 %3146
      %3148 = vrot.lane.b32.xlu0 %v1658, 4
      %v3149 = vpop.permute.xlu0 %3148
      %3150 = vrot.lane.b32.xlu0 %v921, 4
      %v3151 = vpop.permute.xlu0 %3150
      %3152 = vrot.lane.b32.xlu0 %v924, 4
      %v3153 = vpop.permute.xlu0 %3152
      %3154 = vrot.lane.b32.xlu0 %v927, 4
      %v3155 = vpop.permute.xlu0 %3154
      %3156 = vrot.lane.b32.xlu0 %v930, 4
      %v3157 = vpop.permute.xlu0 %3156
      %3158 = vrot.lane.b32.xlu0 %v933, 4
      %v3159 = vpop.permute.xlu0 %3158
      %3160 = vrot.lane.b32.xlu0 %v936, 4
      %v3161 = vpop.permute.xlu0 %3160
      %3162 = vrot.lane.b32.xlu0 %v1342, 4
      %v3163 = vpop.permute.xlu0 %3162
      %3164 = vrot.lane.b32.xlu0 %v1341, 4
      %v3165 = vpop.permute.xlu0 %3164
      %3166 = vrot.lane.b32.xlu0 %v1662, 4
      %v3167 = vpop.permute.xlu0 %3166
      %3168 = vrot.lane.b32.xlu0 %v1661, 4
      %v3169 = vpop.permute.xlu0 %3168
      %3170 = vrot.lane.b32.xlu0 %v1987, 4
      %v3171 = vpop.permute.xlu0 %3170
      %3172 = vrot.lane.b32.xlu0 %v1986, 4
      %v3173 = vpop.permute.xlu0 %3172
      %3174 = vrot.lane.b32.xlu0 %v1990, 4
      %v3175 = vpop.permute.xlu0 %3174
      %3176 = vrot.lane.b32.xlu0 %v1989, 4
      %v3177 = vpop.permute.xlu0 %3176
      %3178 = vrot.lane.b32.xlu0 %v1993, 4
      %v3179 = vpop.permute.xlu0 %3178
      %3180 = vrot.lane.b32.xlu0 %v1992, 4
      %v3181 = vpop.permute.xlu0 %3180
      %3182 = vrot.lane.b32.xlu0 %v1996, 4
      %v3183 = vpop.permute.xlu0 %3182
      %3184 = vrot.lane.b32.xlu0 %v1995, 4
      %v3185 = vpop.permute.xlu0 %3184
      %3186 = vrot.lane.b32.xlu0 %v1999, 4
      %v3187 = vpop.permute.xlu0 %3186
      %3188 = vrot.lane.b32.xlu0 %v1998, 4
      %v3189 = vpop.permute.xlu0 %3188
      %3190 = vrot.lane.b32.xlu0 %v2002, 4
      %v3191 = vpop.permute.xlu0 %3190
      %3192 = vrot.lane.b32.xlu0 %v2001, 4
      %v3193 = vpop.permute.xlu0 %3192
      %3194 = vrot.lane.b32.xlu0 %v2319, 4
      %v3195 = vpop.permute.xlu0 %3194
      %3196 = vrot.lane.b32.xlu0 %v2318, 4
      %v3197 = vpop.permute.xlu0 %3196
      %3198 = vrot.lane.b32.xlu0 %v3109, 4
      %v3199 = vpop.permute.xlu0 %3198
      %3200 = vrot.lane.b32.xlu0 %v3108, 4
      %v3201 = vpop.permute.xlu0 %3200
      %v3256 = vrot.slane %v697, 7
      %v3257 = vrot.slane %v699, 7
      %v3258 = vrot.slane %v701, 7
      %v3259 = vrot.slane %v703, 7
      %v3260 = vrot.slane %v705, 7
      %v3261 = vrot.slane %v707, 7
      %v3262 = vrot.slane %v709, 7
      %v3263 = vrot.slane %v711, 7
      %v3264 = vrot.slane %v717, 7
      %v3265 = vrot.slane %v719, 7
      %v3266 = vrot.slane %v721, 7
      %v3267 = vrot.slane %v723, 7
      %v3268 = vrot.slane %v725, 7
      %v3269 = vrot.slane %v727, 7
      %v3270 = vrot.slane %v729, 7
      %v3271 = vrot.slane %v731, 7
      %v3272 = vrot.slane %v737, 7
      %v3273 = vrot.slane %v739, 7
      %v3274 = vrot.slane %v741, 7
      %v3275 = vrot.slane %v743, 7
      %v3276 = vrot.slane %v745, 7
      %v3277 = vrot.slane %v747, 7
      %v3278 = vrot.slane %v749, 7
      %v3279 = vrot.slane %v751, 7
      %v3280 = vrot.slane %v757, 7
      %v3281 = vrot.slane %v759, 7
      %v3282 = vrot.slane %v761, 7
      %v3283 = vrot.slane %v763, 7
      %v3284 = vrot.slane %v765, 7
      %v3285 = vrot.slane %v767, 7
      %v3286 = vrot.slane %v769, 7
      %v3287 = vrot.slane %v771, 7
      %3288 = vrot.lane.b32.xlu0 %v3256, 8
      %v3289 = vpop.permute.xlu0 %3288
      %3290 = vrot.lane.b32.xlu0 %v3257, 8
      %v3291 = vpop.permute.xlu0 %3290
      %3292 = vrot.lane.b32.xlu0 %v3258, 8
      %v3293 = vpop.permute.xlu0 %3292
      %3294 = vrot.lane.b32.xlu0 %v3259, 8
      %v3295 = vpop.permute.xlu0 %3294
      %3296 = vrot.lane.b32.xlu0 %v3260, 8
      %v3297 = vpop.permute.xlu0 %3296
      %3298 = vrot.lane.b32.xlu0 %v3261, 8
      %v3299 = vpop.permute.xlu0 %3298
      %3300 = vrot.lane.b32.xlu0 %v3262, 8
      %v3301 = vpop.permute.xlu0 %3300
      %3302 = vrot.lane.b32.xlu0 %v3263, 8
      %v3303 = vpop.permute.xlu0 %3302
      %3304 = vrot.lane.b32.xlu0 %v3264, 8
      %v3305 = vpop.permute.xlu0 %3304
      %3306 = vrot.lane.b32.xlu0 %v3265, 8
      %v3307 = vpop.permute.xlu0 %3306
      %3308 = vrot.lane.b32.xlu0 %v3266, 8
      %v3309 = vpop.permute.xlu0 %3308
      %3310 = vrot.lane.b32.xlu0 %v3267, 8
      %v3311 = vpop.permute.xlu0 %3310
      %3312 = vrot.lane.b32.xlu0 %v3268, 8
      %v3313 = vpop.permute.xlu0 %3312
      %3314 = vrot.lane.b32.xlu0 %v3269, 8
      %v3315 = vpop.permute.xlu0 %3314
      %3316 = vrot.lane.b32.xlu0 %v3270, 8
      %v3317 = vpop.permute.xlu0 %3316
      %3318 = vrot.lane.b32.xlu0 %v3271, 8
      %v3319 = vpop.permute.xlu0 %3318
      %3320 = vrot.lane.b32.xlu0 %v3272, 8
      %v3321 = vpop.permute.xlu0 %3320
      %3322 = vrot.lane.b32.xlu0 %v3273, 8
      %v3323 = vpop.permute.xlu0 %3322
      %3324 = vrot.lane.b32.xlu0 %v3274, 8
      %v3325 = vpop.permute.xlu0 %3324
      %3326 = vrot.lane.b32.xlu0 %v3275, 8
      %v3327 = vpop.permute.xlu0 %3326
      %3328 = vrot.lane.b32.xlu0 %v3276, 8
      %v3329 = vpop.permute.xlu0 %3328
      %3330 = vrot.lane.b32.xlu0 %v3277, 8
      %v3331 = vpop.permute.xlu0 %3330
      %3332 = vrot.lane.b32.xlu0 %v3278, 8
      %v3333 = vpop.permute.xlu0 %3332
      %3334 = vrot.lane.b32.xlu0 %v3279, 8
      %v3335 = vpop.permute.xlu0 %3334
      %3336 = vrot.lane.b32.xlu0 %v3280, 8
      %v3337 = vpop.permute.xlu0 %3336
      %3338 = vrot.lane.b32.xlu0 %v3281, 8
      %v3339 = vpop.permute.xlu0 %3338
      %3340 = vrot.lane.b32.xlu0 %v3282, 8
      %v3341 = vpop.permute.xlu0 %3340
      %3342 = vrot.lane.b32.xlu0 %v3283, 8
      %v3343 = vpop.permute.xlu0 %3342
      %3344 = vrot.lane.b32.xlu0 %v3284, 8
      %v3345 = vpop.permute.xlu0 %3344
      %3346 = vrot.lane.b32.xlu0 %v3285, 8
      %v3347 = vpop.permute.xlu0 %3346
      %3348 = vrot.lane.b32.xlu0 %v3286, 8
      %v3349 = vpop.permute.xlu0 %3348
      %3350 = vrot.lane.b32.xlu0 %v3287, 8
      %v3351 = vpop.permute.xlu0 %3350
      %3392 = vrot.lane.b32.xlu0 %v697, 12
      %v3393 = vpop.permute.xlu0 %3392
      %3394 = vrot.lane.b32.xlu0 %v698, 12
      %v3395 = vpop.permute.xlu0 %3394
      %3396 = vrot.lane.b32.xlu0 %v700, 12
      %v3397 = vpop.permute.xlu0 %3396
      %3398 = vrot.lane.b32.xlu0 %v702, 12
      %v3399 = vpop.permute.xlu0 %3398
      %3400 = vrot.lane.b32.xlu0 %v704, 12
      %v3401 = vpop.permute.xlu0 %3400
      %3402 = vrot.lane.b32.xlu0 %v706, 12
      %v3403 = vpop.permute.xlu0 %3402
      %3404 = vrot.lane.b32.xlu0 %v708, 12
      %v3405 = vpop.permute.xlu0 %3404
      %3406 = vrot.lane.b32.xlu0 %v710, 12
      %v3407 = vpop.permute.xlu0 %3406
      %3408 = vrot.lane.b32.xlu0 %v712, 12
      %v3409 = vpop.permute.xlu0 %3408
      %3410 = vrot.lane.b32.xlu0 %v717, 12
      %v3411 = vpop.permute.xlu0 %3410
      %3412 = vrot.lane.b32.xlu0 %v718, 12
      %v3413 = vpop.permute.xlu0 %3412
      %3414 = vrot.lane.b32.xlu0 %v720, 12
      %v3415 = vpop.permute.xlu0 %3414
      %3416 = vrot.lane.b32.xlu0 %v722, 12
      %v3417 = vpop.permute.xlu0 %3416
      %3418 = vrot.lane.b32.xlu0 %v724, 12
      %v3419 = vpop.permute.xlu0 %3418
      %3420 = vrot.lane.b32.xlu0 %v726, 12
      %v3421 = vpop.permute.xlu0 %3420
      %3422 = vrot.lane.b32.xlu0 %v728, 12
      %v3423 = vpop.permute.xlu0 %3422
      %3424 = vrot.lane.b32.xlu0 %v730, 12
      %v3425 = vpop.permute.xlu0 %3424
      %3426 = vrot.lane.b32.xlu0 %v732, 12
      %v3427 = vpop.permute.xlu0 %3426
      %3428 = vrot.lane.b32.xlu0 %v737, 12
      %v3429 = vpop.permute.xlu0 %3428
      %3430 = vrot.lane.b32.xlu0 %v738, 12
      %v3431 = vpop.permute.xlu0 %3430
      %3432 = vrot.lane.b32.xlu0 %v739, 12
      %v3433 = vpop.permute.xlu0 %3432
      %3434 = vrot.lane.b32.xlu0 %v740, 12
      %v3435 = vpop.permute.xlu0 %3434
      %3436 = vrot.lane.b32.xlu0 %v741, 12
      %v3437 = vpop.permute.xlu0 %3436
      %3438 = vrot.lane.b32.xlu0 %v742, 12
      %v3439 = vpop.permute.xlu0 %3438
      %3440 = vrot.lane.b32.xlu0 %v743, 12
      %v3441 = vpop.permute.xlu0 %3440
      %3442 = vrot.lane.b32.xlu0 %v744, 12
      %v3443 = vpop.permute.xlu0 %3442
      %3444 = vrot.lane.b32.xlu0 %v745, 12
      %v3445 = vpop.permute.xlu0 %3444
      %3446 = vrot.lane.b32.xlu0 %v746, 12
      %v3447 = vpop.permute.xlu0 %3446
      %3448 = vrot.lane.b32.xlu0 %v747, 12
      %v3449 = vpop.permute.xlu0 %3448
      %3450 = vrot.lane.b32.xlu0 %v748, 12
      %v3451 = vpop.permute.xlu0 %3450
      %3452 = vrot.lane.b32.xlu0 %v749, 12
      %v3453 = vpop.permute.xlu0 %3452
      %3454 = vrot.lane.b32.xlu0 %v750, 12
      %v3455 = vpop.permute.xlu0 %3454
      %3456 = vrot.lane.b32.xlu0 %v751, 12
      %v3457 = vpop.permute.xlu0 %3456
      %3458 = vrot.lane.b32.xlu0 %v752, 12
      %v3459 = vpop.permute.xlu0 %3458
      %3460 = vrot.lane.b32.xlu0 %v757, 12
      %v3461 = vpop.permute.xlu0 %3460
      %3462 = vrot.lane.b32.xlu0 %v758, 12
      %v3463 = vpop.permute.xlu0 %3462
      %3464 = vrot.lane.b32.xlu0 %v759, 12
      %v3465 = vpop.permute.xlu0 %3464
      %3466 = vrot.lane.b32.xlu0 %v760, 12
      %v3467 = vpop.permute.xlu0 %3466
      %3468 = vrot.lane.b32.xlu0 %v761, 12
      %v3469 = vpop.permute.xlu0 %3468
      %3470 = vrot.lane.b32.xlu0 %v762, 12
      %v3471 = vpop.permute.xlu0 %3470
      %3472 = vrot.lane.b32.xlu0 %v763, 12
      %v3473 = vpop.permute.xlu0 %3472
      %3474 = vrot.lane.b32.xlu0 %v764, 12
      %v3475 = vpop.permute.xlu0 %3474
      %3476 = vrot.lane.b32.xlu0 %v765, 12
      %v3477 = vpop.permute.xlu0 %3476
      %3478 = vrot.lane.b32.xlu0 %v766, 12
      %v3479 = vpop.permute.xlu0 %3478
      %3480 = vrot.lane.b32.xlu0 %v767, 12
      %v3481 = vpop.permute.xlu0 %3480
      %3482 = vrot.lane.b32.xlu0 %v768, 12
      %v3483 = vpop.permute.xlu0 %3482
      %3484 = vrot.lane.b32.xlu0 %v769, 12
      %v3485 = vpop.permute.xlu0 %3484
      %3486 = vrot.lane.b32.xlu0 %v770, 12
      %v3487 = vpop.permute.xlu0 %3486
      %3488 = vrot.lane.b32.xlu0 %v771, 12
      %v3489 = vpop.permute.xlu0 %3488
      %3490 = vrot.lane.b32.xlu0 %v772, 12
      %v3491 = vpop.permute.xlu0 %3490
      %v3542 = vrot.slane %v757, 1
      %v3543 = vrot.slane %v758, 1
      %v3544 = vsel %vm841, %v3542, %v3543
      %v3545 = vrot.slane %v759, 1
      %v3546 = vrot.slane %v760, 1
      %v3547 = vsel %vm841, %v3545, %v3546
      %v3548 = vrot.slane %v761, 1
      %v3549 = vrot.slane %v762, 1
      %v3550 = vsel %vm841, %v3548, %v3549
      %v3551 = vrot.slane %v763, 1
      %v3552 = vrot.slane %v764, 1
      %v3553 = vsel %vm841, %v3551, %v3552
      %v3554 = vrot.slane %v765, 1
      %v3555 = vrot.slane %v766, 1
      %v3556 = vsel %vm841, %v3554, %v3555
      %v3557 = vrot.slane %v767, 1
      %v3558 = vrot.slane %v768, 1
      %v3559 = vsel %vm841, %v3557, %v3558
      %v3560 = vrot.slane %v769, 1
      %v3561 = vrot.slane %v770, 1
      %v3562 = vsel %vm841, %v3560, %v3561
      %v3563 = vrot.slane %v771, 1
      %v3564 = vrot.slane %v772, 1
      %v3565 = vsel %vm841, %v3563, %v3564
      %3566 = vrot.lane.b32.xlu0 %v892, 16
      %v3567 = vpop.permute.xlu0 %3566
      %3568 = vrot.lane.b32.xlu0 %v891, 16
      %v3569 = vpop.permute.xlu0 %3568
      %3570 = vrot.lane.b32.xlu0 %v894, 16
      %v3571 = vpop.permute.xlu0 %3570
      %3572 = vrot.lane.b32.xlu0 %v897, 16
      %v3573 = vpop.permute.xlu0 %3572
      %3574 = vrot.lane.b32.xlu0 %v900, 16
      %v3575 = vpop.permute.xlu0 %3574
      %3576 = vrot.lane.b32.xlu0 %v903, 16
      %v3577 = vpop.permute.xlu0 %3576
      %3578 = vrot.lane.b32.xlu0 %v906, 16
      %v3579 = vpop.permute.xlu0 %3578
      %3580 = vrot.lane.b32.xlu0 %v909, 16
      %v3581 = vpop.permute.xlu0 %3580
      %3582 = vrot.lane.b32.xlu0 %v912, 16
      %v3583 = vpop.permute.xlu0 %3582
      %3584 = vrot.lane.b32.xlu0 %v916, 16
      %v3585 = vpop.permute.xlu0 %3584
      %3586 = vrot.lane.b32.xlu0 %v915, 16
      %v3587 = vpop.permute.xlu0 %3586
      %3588 = vrot.lane.b32.xlu0 %v918, 16
      %v3589 = vpop.permute.xlu0 %3588
      %3590 = vrot.lane.b32.xlu0 %v921, 16
      %v3591 = vpop.permute.xlu0 %3590
      %3592 = vrot.lane.b32.xlu0 %v924, 16
      %v3593 = vpop.permute.xlu0 %3592
      %3594 = vrot.lane.b32.xlu0 %v927, 16
      %v3595 = vpop.permute.xlu0 %3594
      %3596 = vrot.lane.b32.xlu0 %v930, 16
      %v3597 = vpop.permute.xlu0 %3596
      %3598 = vrot.lane.b32.xlu0 %v933, 16
      %v3599 = vpop.permute.xlu0 %3598
      %3600 = vrot.lane.b32.xlu0 %v936, 16
      %v3601 = vpop.permute.xlu0 %3600
      %3602 = vrot.lane.b32.xlu0 %v1981, 16
      %v3603 = vpop.permute.xlu0 %3602
      %3604 = vrot.lane.b32.xlu0 %v1980, 16
      %v3605 = vpop.permute.xlu0 %3604
      %3606 = vrot.lane.b32.xlu0 %v1984, 16
      %v3607 = vpop.permute.xlu0 %3606
      %3608 = vrot.lane.b32.xlu0 %v1983, 16
      %v3609 = vpop.permute.xlu0 %3608
      %3610 = vrot.lane.b32.xlu0 %v1987, 16
      %v3611 = vpop.permute.xlu0 %3610
      %3612 = vrot.lane.b32.xlu0 %v1986, 16
      %v3613 = vpop.permute.xlu0 %3612
      %3614 = vrot.lane.b32.xlu0 %v1990, 16
      %v3615 = vpop.permute.xlu0 %3614
      %3616 = vrot.lane.b32.xlu0 %v1989, 16
      %v3617 = vpop.permute.xlu0 %3616
      %3618 = vrot.lane.b32.xlu0 %v1993, 16
      %v3619 = vpop.permute.xlu0 %3618
      %3620 = vrot.lane.b32.xlu0 %v1992, 16
      %v3621 = vpop.permute.xlu0 %3620
      %3622 = vrot.lane.b32.xlu0 %v1996, 16
      %v3623 = vpop.permute.xlu0 %3622
      %3624 = vrot.lane.b32.xlu0 %v1995, 16
      %v3625 = vpop.permute.xlu0 %3624
      %3626 = vrot.lane.b32.xlu0 %v1999, 16
      %v3627 = vpop.permute.xlu0 %3626
      %3628 = vrot.lane.b32.xlu0 %v1998, 16
      %v3629 = vpop.permute.xlu0 %3628
      %3630 = vrot.lane.b32.xlu0 %v2002, 16
      %v3631 = vpop.permute.xlu0 %3630
      %3632 = vrot.lane.b32.xlu0 %v2001, 16
      %v3633 = vpop.permute.xlu0 %3632
      %3634 = vrot.lane.b32.xlu0 %v3544, 16
      %v3635 = vpop.permute.xlu0 %3634
      %3636 = vrot.lane.b32.xlu0 %v3543, 16
      %v3637 = vpop.permute.xlu0 %3636
      %3638 = vrot.lane.b32.xlu0 %v3547, 16
      %v3639 = vpop.permute.xlu0 %3638
      %3640 = vrot.lane.b32.xlu0 %v3546, 16
      %v3641 = vpop.permute.xlu0 %3640
      %3642 = vrot.lane.b32.xlu0 %v3550, 16
      %v3643 = vpop.permute.xlu0 %3642
      %3644 = vrot.lane.b32.xlu0 %v3549, 16
      %v3645 = vpop.permute.xlu0 %3644
      %3646 = vrot.lane.b32.xlu0 %v3553, 16
      %v3647 = vpop.permute.xlu0 %3646
      %3648 = vrot.lane.b32.xlu0 %v3552, 16
      %v3649 = vpop.permute.xlu0 %3648
      %3650 = vrot.lane.b32.xlu0 %v3556, 16
      %v3651 = vpop.permute.xlu0 %3650
      %3652 = vrot.lane.b32.xlu0 %v3555, 16
      %v3653 = vpop.permute.xlu0 %3652
      %3654 = vrot.lane.b32.xlu0 %v3559, 16
      %v3655 = vpop.permute.xlu0 %3654
      %3656 = vrot.lane.b32.xlu0 %v3558, 16
      %v3657 = vpop.permute.xlu0 %3656
      %3658 = vrot.lane.b32.xlu0 %v3562, 16
      %v3659 = vpop.permute.xlu0 %3658
      %3660 = vrot.lane.b32.xlu0 %v3561, 16
      %v3661 = vpop.permute.xlu0 %3660
      %3662 = vrot.lane.b32.xlu0 %v3565, 16
      %v3663 = vpop.permute.xlu0 %3662
      %3664 = vrot.lane.b32.xlu0 %v3564, 16
      %v3665 = vpop.permute.xlu0 %3664
      %v3717 = vrot.slane %v713, 7
      %v3718 = vrot.slane %v733, 7
      %v3719 = vrot.slane %v753, 7
      %v3720 = vrot.slane %v773, 7
      %3721 = vrot.lane.b32.xlu0 %v3257, 20
      %v3722 = vpop.permute.xlu0 %3721
      %3723 = vrot.lane.b32.xlu0 %v3258, 20
      %v3724 = vpop.permute.xlu0 %3723
      %3725 = vrot.lane.b32.xlu0 %v3259, 20
      %v3726 = vpop.permute.xlu0 %3725
      %3727 = vrot.lane.b32.xlu0 %v3260, 20
      %v3728 = vpop.permute.xlu0 %3727
      %3729 = vrot.lane.b32.xlu0 %v3261, 20
      %v3730 = vpop.permute.xlu0 %3729
      %3731 = vrot.lane.b32.xlu0 %v3262, 20
      %v3732 = vpop.permute.xlu0 %3731
      %3733 = vrot.lane.b32.xlu0 %v3263, 20
      %v3734 = vpop.permute.xlu0 %3733
      %3735 = vrot.lane.b32.xlu0 %v3717, 20
      %v3736 = vpop.permute.xlu0 %3735
      %3737 = vrot.lane.b32.xlu0 %v3265, 20
      %v3738 = vpop.permute.xlu0 %3737
      %3739 = vrot.lane.b32.xlu0 %v3266, 20
      %v3740 = vpop.permute.xlu0 %3739
      %3741 = vrot.lane.b32.xlu0 %v3267, 20
      %v3742 = vpop.permute.xlu0 %3741
      %3743 = vrot.lane.b32.xlu0 %v3268, 20
      %v3744 = vpop.permute.xlu0 %3743
      %3745 = vrot.lane.b32.xlu0 %v3269, 20
      %v3746 = vpop.permute.xlu0 %3745
      %3747 = vrot.lane.b32.xlu0 %v3270, 20
      %v3748 = vpop.permute.xlu0 %3747
      %3749 = vrot.lane.b32.xlu0 %v3271, 20
      %v3750 = vpop.permute.xlu0 %3749
      %3751 = vrot.lane.b32.xlu0 %v3718, 20
      %v3752 = vpop.permute.xlu0 %3751
      %3753 = vrot.lane.b32.xlu0 %v3273, 20
      %v3754 = vpop.permute.xlu0 %3753
      %3755 = vrot.lane.b32.xlu0 %v3274, 20
      %v3756 = vpop.permute.xlu0 %3755
      %3757 = vrot.lane.b32.xlu0 %v3275, 20
      %v3758 = vpop.permute.xlu0 %3757
      %3759 = vrot.lane.b32.xlu0 %v3276, 20
      %v3760 = vpop.permute.xlu0 %3759
      %3761 = vrot.lane.b32.xlu0 %v3277, 20
      %v3762 = vpop.permute.xlu0 %3761
      %3763 = vrot.lane.b32.xlu0 %v3278, 20
      %v3764 = vpop.permute.xlu0 %3763
      %3765 = vrot.lane.b32.xlu0 %v3279, 20
      %v3766 = vpop.permute.xlu0 %3765
      %3767 = vrot.lane.b32.xlu0 %v3719, 20
      %v3768 = vpop.permute.xlu0 %3767
      %3769 = vrot.lane.b32.xlu0 %v3281, 20
      %v3770 = vpop.permute.xlu0 %3769
      %3771 = vrot.lane.b32.xlu0 %v3282, 20
      %v3772 = vpop.permute.xlu0 %3771
      %3773 = vrot.lane.b32.xlu0 %v3283, 20
      %v3774 = vpop.permute.xlu0 %3773
      %3775 = vrot.lane.b32.xlu0 %v3284, 20
      %v3776 = vpop.permute.xlu0 %3775
      %3777 = vrot.lane.b32.xlu0 %v3285, 20
      %v3778 = vpop.permute.xlu0 %3777
      %3779 = vrot.lane.b32.xlu0 %v3286, 20
      %v3780 = vpop.permute.xlu0 %3779
      %3781 = vrot.lane.b32.xlu0 %v3287, 20
      %v3782 = vpop.permute.xlu0 %3781
      %3783 = vrot.lane.b32.xlu0 %v3720, 20
      %v3784 = vpop.permute.xlu0 %3783
      %3818 = vrot.lane.b32.xlu0 %v699, 24
      %v3819 = vpop.permute.xlu0 %3818
      %3820 = vrot.lane.b32.xlu0 %v700, 24
      %v3821 = vpop.permute.xlu0 %3820
      %3822 = vrot.lane.b32.xlu0 %v702, 24
      %v3823 = vpop.permute.xlu0 %3822
      %3824 = vrot.lane.b32.xlu0 %v704, 24
      %v3825 = vpop.permute.xlu0 %3824
      %3826 = vrot.lane.b32.xlu0 %v706, 24
      %v3827 = vpop.permute.xlu0 %3826
      %3828 = vrot.lane.b32.xlu0 %v708, 24
      %v3829 = vpop.permute.xlu0 %3828
      %3830 = vrot.lane.b32.xlu0 %v710, 24
      %v3831 = vpop.permute.xlu0 %3830
      %3832 = vrot.lane.b32.xlu0 %v712, 24
      %v3833 = vpop.permute.xlu0 %3832
      %3834 = vrot.lane.b32.xlu0 %v714, 24
      %v3835 = vpop.permute.xlu0 %3834
      %3836 = vrot.lane.b32.xlu0 %v719, 24
      %v3837 = vpop.permute.xlu0 %3836
      %3838 = vrot.lane.b32.xlu0 %v720, 24
      %v3839 = vpop.permute.xlu0 %3838
      %3840 = vrot.lane.b32.xlu0 %v722, 24
      %v3841 = vpop.permute.xlu0 %3840
      %3842 = vrot.lane.b32.xlu0 %v724, 24
      %v3843 = vpop.permute.xlu0 %3842
      %3844 = vrot.lane.b32.xlu0 %v726, 24
      %v3845 = vpop.permute.xlu0 %3844
      %3846 = vrot.lane.b32.xlu0 %v728, 24
      %v3847 = vpop.permute.xlu0 %3846
      %3848 = vrot.lane.b32.xlu0 %v730, 24
      %v3849 = vpop.permute.xlu0 %3848
      %3850 = vrot.lane.b32.xlu0 %v732, 24
      %v3851 = vpop.permute.xlu0 %3850
      %3852 = vrot.lane.b32.xlu0 %v734, 24
      %v3853 = vpop.permute.xlu0 %3852
      %3854 = vrot.lane.b32.xlu0 %v739, 24
      %v3855 = vpop.permute.xlu0 %3854
      %3856 = vrot.lane.b32.xlu0 %v740, 24
      %v3857 = vpop.permute.xlu0 %3856
      %3858 = vrot.lane.b32.xlu0 %v741, 24
      %v3859 = vpop.permute.xlu0 %3858
      %3860 = vrot.lane.b32.xlu0 %v742, 24
      %v3861 = vpop.permute.xlu0 %3860
      %3862 = vrot.lane.b32.xlu0 %v743, 24
      %v3863 = vpop.permute.xlu0 %3862
      %3864 = vrot.lane.b32.xlu0 %v744, 24
      %v3865 = vpop.permute.xlu0 %3864
      %3866 = vrot.lane.b32.xlu0 %v745, 24
      %v3867 = vpop.permute.xlu0 %3866
      %3868 = vrot.lane.b32.xlu0 %v746, 24
      %v3869 = vpop.permute.xlu0 %3868
      %3870 = vrot.lane.b32.xlu0 %v747, 24
      %v3871 = vpop.permute.xlu0 %3870
      %3872 = vrot.lane.b32.xlu0 %v748, 24
      %v3873 = vpop.permute.xlu0 %3872
      %3874 = vrot.lane.b32.xlu0 %v749, 24
      %v3875 = vpop.permute.xlu0 %3874
      %3876 = vrot.lane.b32.xlu0 %v750, 24
      %v3877 = vpop.permute.xlu0 %3876
      %3878 = vrot.lane.b32.xlu0 %v751, 24
      %v3879 = vpop.permute.xlu0 %3878
      %3880 = vrot.lane.b32.xlu0 %v752, 24
      %v3881 = vpop.permute.xlu0 %3880
      %3882 = vrot.lane.b32.xlu0 %v753, 24
      %v3883 = vpop.permute.xlu0 %3882
      %3884 = vrot.lane.b32.xlu0 %v754, 24
      %v3885 = vpop.permute.xlu0 %3884
      %3886 = vrot.lane.b32.xlu0 %v759, 24
      %v3887 = vpop.permute.xlu0 %3886
      %3888 = vrot.lane.b32.xlu0 %v760, 24
      %v3889 = vpop.permute.xlu0 %3888
      %3890 = vrot.lane.b32.xlu0 %v761, 24
      %v3891 = vpop.permute.xlu0 %3890
      %3892 = vrot.lane.b32.xlu0 %v762, 24
      %v3893 = vpop.permute.xlu0 %3892
      %3894 = vrot.lane.b32.xlu0 %v763, 24
      %v3895 = vpop.permute.xlu0 %3894
      %3896 = vrot.lane.b32.xlu0 %v764, 24
      %v3897 = vpop.permute.xlu0 %3896
      %3898 = vrot.lane.b32.xlu0 %v765, 24
      %v3899 = vpop.permute.xlu0 %3898
      %3900 = vrot.lane.b32.xlu0 %v766, 24
      %v3901 = vpop.permute.xlu0 %3900
      %3902 = vrot.lane.b32.xlu0 %v767, 24
      %v3903 = vpop.permute.xlu0 %3902
      %3904 = vrot.lane.b32.xlu0 %v768, 24
      %v3905 = vpop.permute.xlu0 %3904
      %3906 = vrot.lane.b32.xlu0 %v769, 24
      %v3907 = vpop.permute.xlu0 %3906
      %3908 = vrot.lane.b32.xlu0 %v770, 24
      %v3909 = vpop.permute.xlu0 %3908
      %3910 = vrot.lane.b32.xlu0 %v771, 24
      %v3911 = vpop.permute.xlu0 %3910
      %3912 = vrot.lane.b32.xlu0 %v772, 24
      %v3913 = vpop.permute.xlu0 %3912
      %3914 = vrot.lane.b32.xlu0 %v773, 24
      %v3915 = vpop.permute.xlu0 %3914
      %3916 = vrot.lane.b32.xlu0 %v774, 24
      %v3917 = vpop.permute.xlu0 %3916
      %v3968 = vrot.slane %v773, 1
      %v3969 = vrot.slane %v774, 1
      %v3970 = vsel %vm841, %v3968, %v3969
      %3971 = vrot.lane.b32.xlu0 %v895, 28
      %v3972 = vpop.permute.xlu0 %3971
      %3973 = vrot.lane.b32.xlu0 %v894, 28
      %v3974 = vpop.permute.xlu0 %3973
      %3975 = vrot.lane.b32.xlu0 %v897, 28
      %v3976 = vpop.permute.xlu0 %3975
      %3977 = vrot.lane.b32.xlu0 %v900, 28
      %v3978 = vpop.permute.xlu0 %3977
      %3979 = vrot.lane.b32.xlu0 %v903, 28
      %v3980 = vpop.permute.xlu0 %3979
      %3981 = vrot.lane.b32.xlu0 %v906, 28
      %v3982 = vpop.permute.xlu0 %3981
      %3983 = vrot.lane.b32.xlu0 %v909, 28
      %v3984 = vpop.permute.xlu0 %3983
      %3985 = vrot.lane.b32.xlu0 %v912, 28
      %v3986 = vpop.permute.xlu0 %3985
      %3987 = vrot.lane.b32.xlu0 %v1338, 28
      %v3988 = vpop.permute.xlu0 %3987
      %3989 = vrot.lane.b32.xlu0 %v919, 28
      %v3990 = vpop.permute.xlu0 %3989
      %3991 = vrot.lane.b32.xlu0 %v918, 28
      %v3992 = vpop.permute.xlu0 %3991
      %3993 = vrot.lane.b32.xlu0 %v921, 28
      %v3994 = vpop.permute.xlu0 %3993
      %3995 = vrot.lane.b32.xlu0 %v924, 28
      %v3996 = vpop.permute.xlu0 %3995
      %3997 = vrot.lane.b32.xlu0 %v927, 28
      %v3998 = vpop.permute.xlu0 %3997
      %3999 = vrot.lane.b32.xlu0 %v930, 28
      %v4000 = vpop.permute.xlu0 %3999
      %4001 = vrot.lane.b32.xlu0 %v933, 28
      %v4002 = vpop.permute.xlu0 %4001
      %4003 = vrot.lane.b32.xlu0 %v936, 28
      %v4004 = vpop.permute.xlu0 %4003
      %4005 = vrot.lane.b32.xlu0 %v1341, 28
      %v4006 = vpop.permute.xlu0 %4005
      %4007 = vrot.lane.b32.xlu0 %v1984, 28
      %v4008 = vpop.permute.xlu0 %4007
      %4009 = vrot.lane.b32.xlu0 %v1983, 28
      %v4010 = vpop.permute.xlu0 %4009
      %4011 = vrot.lane.b32.xlu0 %v1987, 28
      %v4012 = vpop.permute.xlu0 %4011
      %4013 = vrot.lane.b32.xlu0 %v1986, 28
      %v4014 = vpop.permute.xlu0 %4013
      %4015 = vrot.lane.b32.xlu0 %v1990, 28
      %v4016 = vpop.permute.xlu0 %4015
      %4017 = vrot.lane.b32.xlu0 %v1989, 28
      %v4018 = vpop.permute.xlu0 %4017
      %4019 = vrot.lane.b32.xlu0 %v1993, 28
      %v4020 = vpop.permute.xlu0 %4019
      %4021 = vrot.lane.b32.xlu0 %v1992, 28
      %v4022 = vpop.permute.xlu0 %4021
      %4023 = vrot.lane.b32.xlu0 %v1996, 28
      %v4024 = vpop.permute.xlu0 %4023
      %4025 = vrot.lane.b32.xlu0 %v1995, 28
      %v4026 = vpop.permute.xlu0 %4025
      %4027 = vrot.lane.b32.xlu0 %v1999, 28
      %v4028 = vpop.permute.xlu0 %4027
      %4029 = vrot.lane.b32.xlu0 %v1998, 28
      %v4030 = vpop.permute.xlu0 %4029
      %4031 = vrot.lane.b32.xlu0 %v2002, 28
      %v4032 = vpop.permute.xlu0 %4031
      %4033 = vrot.lane.b32.xlu0 %v2001, 28
      %v4034 = vpop.permute.xlu0 %4033
      %4035 = vrot.lane.b32.xlu0 %v2319, 28
      %v4036 = vpop.permute.xlu0 %4035
      %4037 = vrot.lane.b32.xlu0 %v2318, 28
      %v4038 = vpop.permute.xlu0 %4037
      %4039 = vrot.lane.b32.xlu0 %v3547, 28
      %v4040 = vpop.permute.xlu0 %4039
      %4041 = vrot.lane.b32.xlu0 %v3546, 28
      %v4042 = vpop.permute.xlu0 %4041
      %4043 = vrot.lane.b32.xlu0 %v3550, 28
      %v4044 = vpop.permute.xlu0 %4043
      %4045 = vrot.lane.b32.xlu0 %v3549, 28
      %v4046 = vpop.permute.xlu0 %4045
      %4047 = vrot.lane.b32.xlu0 %v3553, 28
      %v4048 = vpop.permute.xlu0 %4047
      %4049 = vrot.lane.b32.xlu0 %v3552, 28
      %v4050 = vpop.permute.xlu0 %4049
      %4051 = vrot.lane.b32.xlu0 %v3556, 28
      %v4052 = vpop.permute.xlu0 %4051
      %4053 = vrot.lane.b32.xlu0 %v3555, 28
      %v4054 = vpop.permute.xlu0 %4053
      %4055 = vrot.lane.b32.xlu0 %v3559, 28
      %v4056 = vpop.permute.xlu0 %4055
      %4057 = vrot.lane.b32.xlu0 %v3558, 28
      %v4058 = vpop.permute.xlu0 %4057
      %4059 = vrot.lane.b32.xlu0 %v3562, 28
      %v4060 = vpop.permute.xlu0 %4059
      %4061 = vrot.lane.b32.xlu0 %v3561, 28
      %v4062 = vpop.permute.xlu0 %4061
      %4063 = vrot.lane.b32.xlu0 %v3565, 28
      %v4064 = vpop.permute.xlu0 %4063
      %4065 = vrot.lane.b32.xlu0 %v3564, 28
      %v4066 = vpop.permute.xlu0 %4065
      %4067 = vrot.lane.b32.xlu0 %v3970, 28
      %v4068 = vpop.permute.xlu0 %4067
      %4069 = vrot.lane.b32.xlu0 %v3969, 28
      %v4070 = vpop.permute.xlu0 %4069
      %v4122 = vrot.slane %v715, 7
      %v4123 = vrot.slane %v735, 7
      %v4124 = vrot.slane %v755, 7
      %v4125 = vrot.slane %v775, 7
      %4126 = vrot.lane.b32.xlu0 %v3258, 32
      %v4127 = vpop.permute.xlu0 %4126
      %4128 = vrot.lane.b32.xlu0 %v3259, 32
      %v4129 = vpop.permute.xlu0 %4128
      %4130 = vrot.lane.b32.xlu0 %v3260, 32
      %v4131 = vpop.permute.xlu0 %4130
      %4132 = vrot.lane.b32.xlu0 %v3261, 32
      %v4133 = vpop.permute.xlu0 %4132
      %4134 = vrot.lane.b32.xlu0 %v3262, 32
      %v4135 = vpop.permute.xlu0 %4134
      %4136 = vrot.lane.b32.xlu0 %v3263, 32
      %v4137 = vpop.permute.xlu0 %4136
      %4138 = vrot.lane.b32.xlu0 %v3717, 32
      %v4139 = vpop.permute.xlu0 %4138
      %4140 = vrot.lane.b32.xlu0 %v4122, 32
      %v4141 = vpop.permute.xlu0 %4140
      %4142 = vrot.lane.b32.xlu0 %v3266, 32
      %v4143 = vpop.permute.xlu0 %4142
      %4144 = vrot.lane.b32.xlu0 %v3267, 32
      %v4145 = vpop.permute.xlu0 %4144
      %4146 = vrot.lane.b32.xlu0 %v3268, 32
      %v4147 = vpop.permute.xlu0 %4146
      %4148 = vrot.lane.b32.xlu0 %v3269, 32
      %v4149 = vpop.permute.xlu0 %4148
      %4150 = vrot.lane.b32.xlu0 %v3270, 32
      %v4151 = vpop.permute.xlu0 %4150
      %4152 = vrot.lane.b32.xlu0 %v3271, 32
      %v4153 = vpop.permute.xlu0 %4152
      %4154 = vrot.lane.b32.xlu0 %v3718, 32
      %v4155 = vpop.permute.xlu0 %4154
      %4156 = vrot.lane.b32.xlu0 %v4123, 32
      %v4157 = vpop.permute.xlu0 %4156
      %4158 = vrot.lane.b32.xlu0 %v3274, 32
      %v4159 = vpop.permute.xlu0 %4158
      %4160 = vrot.lane.b32.xlu0 %v3275, 32
      %v4161 = vpop.permute.xlu0 %4160
      %4162 = vrot.lane.b32.xlu0 %v3276, 32
      %v4163 = vpop.permute.xlu0 %4162
      %4164 = vrot.lane.b32.xlu0 %v3277, 32
      %v4165 = vpop.permute.xlu0 %4164
      %4166 = vrot.lane.b32.xlu0 %v3278, 32
      %v4167 = vpop.permute.xlu0 %4166
      %4168 = vrot.lane.b32.xlu0 %v3279, 32
      %v4169 = vpop.permute.xlu0 %4168
      %4170 = vrot.lane.b32.xlu0 %v3719, 32
      %v4171 = vpop.permute.xlu0 %4170
      %4172 = vrot.lane.b32.xlu0 %v4124, 32
      %v4173 = vpop.permute.xlu0 %4172
      %4174 = vrot.lane.b32.xlu0 %v3282, 32
      %v4175 = vpop.permute.xlu0 %4174
      %4176 = vrot.lane.b32.xlu0 %v3283, 32
      %v4177 = vpop.permute.xlu0 %4176
      %4178 = vrot.lane.b32.xlu0 %v3284, 32
      %v4179 = vpop.permute.xlu0 %4178
      %4180 = vrot.lane.b32.xlu0 %v3285, 32
      %v4181 = vpop.permute.xlu0 %4180
      %4182 = vrot.lane.b32.xlu0 %v3286, 32
      %v4183 = vpop.permute.xlu0 %4182
      %4184 = vrot.lane.b32.xlu0 %v3287, 32
      %v4185 = vpop.permute.xlu0 %4184
      %4186 = vrot.lane.b32.xlu0 %v3720, 32
      %v4187 = vpop.permute.xlu0 %4186
      %4188 = vrot.lane.b32.xlu0 %v4125, 32
      %v4189 = vpop.permute.xlu0 %4188
      %4223 = vrot.lane.b32.xlu0 %v702, 36
      %v4224 = vpop.permute.xlu0 %4223
      %4225 = vrot.lane.b32.xlu0 %v704, 36
      %v4226 = vpop.permute.xlu0 %4225
      %4227 = vrot.lane.b32.xlu0 %v706, 36
      %v4228 = vpop.permute.xlu0 %4227
      %4229 = vrot.lane.b32.xlu0 %v708, 36
      %v4230 = vpop.permute.xlu0 %4229
      %4231 = vrot.lane.b32.xlu0 %v710, 36
      %v4232 = vpop.permute.xlu0 %4231
      %4233 = vrot.lane.b32.xlu0 %v712, 36
      %v4234 = vpop.permute.xlu0 %4233
      %4235 = vrot.lane.b32.xlu0 %v713, 36
      %v4236 = vpop.permute.xlu0 %4235
      %4237 = vrot.lane.b32.xlu0 %v714, 36
      %v4238 = vpop.permute.xlu0 %4237
      %4239 = vrot.lane.b32.xlu0 %v715, 36
      %v4240 = vpop.permute.xlu0 %4239
      %4241 = vrot.lane.b32.xlu0 %v716, 36
      %v4242 = vpop.permute.xlu0 %4241
      %4243 = vrot.lane.b32.xlu0 %v722, 36
      %v4244 = vpop.permute.xlu0 %4243
      %4245 = vrot.lane.b32.xlu0 %v724, 36
      %v4246 = vpop.permute.xlu0 %4245
      %4247 = vrot.lane.b32.xlu0 %v726, 36
      %v4248 = vpop.permute.xlu0 %4247
      %4249 = vrot.lane.b32.xlu0 %v728, 36
      %v4250 = vpop.permute.xlu0 %4249
      %4251 = vrot.lane.b32.xlu0 %v730, 36
      %v4252 = vpop.permute.xlu0 %4251
      %4253 = vrot.lane.b32.xlu0 %v732, 36
      %v4254 = vpop.permute.xlu0 %4253
      %4255 = vrot.lane.b32.xlu0 %v733, 36
      %v4256 = vpop.permute.xlu0 %4255
      %4257 = vrot.lane.b32.xlu0 %v734, 36
      %v4258 = vpop.permute.xlu0 %4257
      %4259 = vrot.lane.b32.xlu0 %v735, 36
      %v4260 = vpop.permute.xlu0 %4259
      %4261 = vrot.lane.b32.xlu0 %v736, 36
      %v4262 = vpop.permute.xlu0 %4261
      %4263 = vrot.lane.b32.xlu0 %v742, 36
      %v4264 = vpop.permute.xlu0 %4263
      %4265 = vrot.lane.b32.xlu0 %v744, 36
      %v4266 = vpop.permute.xlu0 %4265
      %4267 = vrot.lane.b32.xlu0 %v746, 36
      %v4268 = vpop.permute.xlu0 %4267
      %4269 = vrot.lane.b32.xlu0 %v748, 36
      %v4270 = vpop.permute.xlu0 %4269
      %4271 = vrot.lane.b32.xlu0 %v750, 36
      %v4272 = vpop.permute.xlu0 %4271
      %4273 = vrot.lane.b32.xlu0 %v752, 36
      %v4274 = vpop.permute.xlu0 %4273
      %4275 = vrot.lane.b32.xlu0 %v753, 36
      %v4276 = vpop.permute.xlu0 %4275
      %4277 = vrot.lane.b32.xlu0 %v754, 36
      %v4278 = vpop.permute.xlu0 %4277
      %4279 = vrot.lane.b32.xlu0 %v755, 36
      %v4280 = vpop.permute.xlu0 %4279
      %4281 = vrot.lane.b32.xlu0 %v756, 36
      %v4282 = vpop.permute.xlu0 %4281
      %4283 = vrot.lane.b32.xlu0 %v761, 36
      %v4284 = vpop.permute.xlu0 %4283
      %4285 = vrot.lane.b32.xlu0 %v762, 36
      %v4286 = vpop.permute.xlu0 %4285
      %4287 = vrot.lane.b32.xlu0 %v763, 36
      %v4288 = vpop.permute.xlu0 %4287
      %4289 = vrot.lane.b32.xlu0 %v764, 36
      %v4290 = vpop.permute.xlu0 %4289
      %4291 = vrot.lane.b32.xlu0 %v765, 36
      %v4292 = vpop.permute.xlu0 %4291
      %4293 = vrot.lane.b32.xlu0 %v766, 36
      %v4294 = vpop.permute.xlu0 %4293
      %4295 = vrot.lane.b32.xlu0 %v767, 36
      %v4296 = vpop.permute.xlu0 %4295
      %4297 = vrot.lane.b32.xlu0 %v768, 36
      %v4298 = vpop.permute.xlu0 %4297
      %4299 = vrot.lane.b32.xlu0 %v769, 36
      %v4300 = vpop.permute.xlu0 %4299
      %4301 = vrot.lane.b32.xlu0 %v770, 36
      %v4302 = vpop.permute.xlu0 %4301
      %4303 = vrot.lane.b32.xlu0 %v771, 36
      %v4304 = vpop.permute.xlu0 %4303
      %4305 = vrot.lane.b32.xlu0 %v772, 36
      %v4306 = vpop.permute.xlu0 %4305
      %4307 = vrot.lane.b32.xlu0 %v773, 36
      %v4308 = vpop.permute.xlu0 %4307
      %4309 = vrot.lane.b32.xlu0 %v774, 36
      %v4310 = vpop.permute.xlu0 %4309
      %4311 = vrot.lane.b32.xlu0 %v775, 36
      %v4312 = vpop.permute.xlu0 %4311
      %4313 = vrot.lane.b32.xlu0 %v776, 36
      %v4314 = vpop.permute.xlu0 %4313
      %v4361 = vrot.slane %v775, 1
      %v4362 = vrot.slane %v776, 1
      %v4363 = vsel %vm841, %v4361, %v4362
      %4364 = vrot.lane.b32.xlu0 %v897, 40
      %v4365 = vpop.permute.xlu0 %4364
      %4366 = vrot.lane.b32.xlu0 %v900, 40
      %v4367 = vpop.permute.xlu0 %4366
      %4368 = vrot.lane.b32.xlu0 %v903, 40
      %v4369 = vpop.permute.xlu0 %4368
      %4370 = vrot.lane.b32.xlu0 %v906, 40
      %v4371 = vpop.permute.xlu0 %4370
      %4372 = vrot.lane.b32.xlu0 %v909, 40
      %v4373 = vpop.permute.xlu0 %4372
      %4374 = vrot.lane.b32.xlu0 %v912, 40
      %v4375 = vpop.permute.xlu0 %4374
      %4376 = vrot.lane.b32.xlu0 %v1339, 40
      %v4377 = vpop.permute.xlu0 %4376
      %4378 = vrot.lane.b32.xlu0 %v1338, 40
      %v4379 = vpop.permute.xlu0 %4378
      %4380 = vrot.lane.b32.xlu0 %v1659, 40
      %v4381 = vpop.permute.xlu0 %4380
      %4382 = vrot.lane.b32.xlu0 %v1658, 40
      %v4383 = vpop.permute.xlu0 %4382
      %4384 = vrot.lane.b32.xlu0 %v921, 40
      %v4385 = vpop.permute.xlu0 %4384
      %4386 = vrot.lane.b32.xlu0 %v924, 40
      %v4387 = vpop.permute.xlu0 %4386
      %4388 = vrot.lane.b32.xlu0 %v927, 40
      %v4389 = vpop.permute.xlu0 %4388
      %4390 = vrot.lane.b32.xlu0 %v930, 40
      %v4391 = vpop.permute.xlu0 %4390
      %4392 = vrot.lane.b32.xlu0 %v933, 40
      %v4393 = vpop.permute.xlu0 %4392
      %4394 = vrot.lane.b32.xlu0 %v936, 40
      %v4395 = vpop.permute.xlu0 %4394
      %4396 = vrot.lane.b32.xlu0 %v1342, 40
      %v4397 = vpop.permute.xlu0 %4396
      %4398 = vrot.lane.b32.xlu0 %v1341, 40
      %v4399 = vpop.permute.xlu0 %4398
      %4400 = vrot.lane.b32.xlu0 %v1662, 40
      %v4401 = vpop.permute.xlu0 %4400
      %4402 = vrot.lane.b32.xlu0 %v1661, 40
      %v4403 = vpop.permute.xlu0 %4402
      %4404 = vrot.lane.b32.xlu0 %v1986, 40
      %v4405 = vpop.permute.xlu0 %4404
      %4406 = vrot.lane.b32.xlu0 %v1989, 40
      %v4407 = vpop.permute.xlu0 %4406
      %4408 = vrot.lane.b32.xlu0 %v1992, 40
      %v4409 = vpop.permute.xlu0 %4408
      %4410 = vrot.lane.b32.xlu0 %v1995, 40
      %v4411 = vpop.permute.xlu0 %4410
      %4412 = vrot.lane.b32.xlu0 %v1998, 40
      %v4413 = vpop.permute.xlu0 %4412
      %4414 = vrot.lane.b32.xlu0 %v2001, 40
      %v4415 = vpop.permute.xlu0 %4414
      %4416 = vrot.lane.b32.xlu0 %v2319, 40
      %v4417 = vpop.permute.xlu0 %4416
      %4418 = vrot.lane.b32.xlu0 %v2318, 40
      %v4419 = vpop.permute.xlu0 %4418
      %4420 = vrot.lane.b32.xlu0 %v3109, 40
      %v4421 = vpop.permute.xlu0 %4420
      %4422 = vrot.lane.b32.xlu0 %v3108, 40
      %v4423 = vpop.permute.xlu0 %4422
      %4424 = vrot.lane.b32.xlu0 %v3550, 40
      %v4425 = vpop.permute.xlu0 %4424
      %4426 = vrot.lane.b32.xlu0 %v3549, 40
      %v4427 = vpop.permute.xlu0 %4426
      %4428 = vrot.lane.b32.xlu0 %v3553, 40
      %v4429 = vpop.permute.xlu0 %4428
      %4430 = vrot.lane.b32.xlu0 %v3552, 40
      %v4431 = vpop.permute.xlu0 %4430
      %4432 = vrot.lane.b32.xlu0 %v3556, 40
      %v4433 = vpop.permute.xlu0 %4432
      %4434 = vrot.lane.b32.xlu0 %v3555, 40
      %v4435 = vpop.permute.xlu0 %4434
      %4436 = vrot.lane.b32.xlu0 %v3559, 40
      %v4437 = vpop.permute.xlu0 %4436
      %4438 = vrot.lane.b32.xlu0 %v3558, 40
      %v4439 = vpop.permute.xlu0 %4438
      %4440 = vrot.lane.b32.xlu0 %v3562, 40
      %v4441 = vpop.permute.xlu0 %4440
      %4442 = vrot.lane.b32.xlu0 %v3561, 40
      %v4443 = vpop.permute.xlu0 %4442
      %4444 = vrot.lane.b32.xlu0 %v3565, 40
      %v4445 = vpop.permute.xlu0 %4444
      %4446 = vrot.lane.b32.xlu0 %v3564, 40
      %v4447 = vpop.permute.xlu0 %4446
      %4448 = vrot.lane.b32.xlu0 %v3970, 40
      %v4449 = vpop.permute.xlu0 %4448
      %4450 = vrot.lane.b32.xlu0 %v3969, 40
      %v4451 = vpop.permute.xlu0 %4450
      %4452 = vrot.lane.b32.xlu0 %v4363, 40
      %v4453 = vpop.permute.xlu0 %4452
      %4454 = vrot.lane.b32.xlu0 %v4362, 40
      %v4455 = vpop.permute.xlu0 %4454
      %v4502 = vsel %vm466, %v682, %v3111
      %v4503 = vsel %vm466, %v684, %v3113
      %v4504 = vsel %vm466, %v686, %v3115
      %v4505 = vsel %vm466, %v688, %v3117
      %v4506 = vsel %vm466, %v690, %v3119
      %v4507 = vsel %vm466, %v692, %v3121
      %v4508 = vsel %vm466, %v693, %v3123
      %v4509 = vsel %vm466, %v694, %v3125
      %v4510 = vsel %vm466, %v695, %v3127
      %v4511 = vsel %vm466, %v696, %v3129
      %v4512 = vsel %vm466, %v702, %v3131
      %v4513 = vsel %vm466, %v704, %v3133
      %v4514 = vsel %vm466, %v706, %v3135
      %v4515 = vsel %vm466, %v708, %v3137
      %v4516 = vsel %vm466, %v710, %v3139
      %v4517 = vsel %vm466, %v712, %v3141
      %v4518 = vsel %vm466, %v713, %v3143
      %v4519 = vsel %vm466, %v714, %v3145
      %v4520 = vsel %vm466, %v715, %v3147
      %v4521 = vsel %vm466, %v716, %v3149
      %v4522 = vsel %vm466, %v722, %v3151
      %v4523 = vsel %vm466, %v724, %v3153
      %v4524 = vsel %vm466, %v726, %v3155
      %v4525 = vsel %vm466, %v728, %v3157
      %v4526 = vsel %vm466, %v730, %v3159
      %v4527 = vsel %vm466, %v732, %v3161
      %v4528 = vsel %vm466, %v733, %v3163
      %v4529 = vsel %vm466, %v734, %v3165
      %v4530 = vsel %vm466, %v735, %v3167
      %v4531 = vsel %vm466, %v736, %v3169
      %v4532 = vsel %vm466, %v741, %v3171
      %v4533 = vsel %vm466, %v742, %v3173
      %v4534 = vsel %vm466, %v743, %v3175
      %v4535 = vsel %vm466, %v744, %v3177
      %v4536 = vsel %vm466, %v745, %v3179
      %v4537 = vsel %vm466, %v746, %v3181
      %v4538 = vsel %vm466, %v747, %v3183
      %v4539 = vsel %vm466, %v748, %v3185
      %v4540 = vsel %vm466, %v749, %v3187
      %v4541 = vsel %vm466, %v750, %v3189
      %v4542 = vsel %vm466, %v751, %v3191
      %v4543 = vsel %vm466, %v752, %v3193
      %v4544 = vsel %vm466, %v753, %v3195
      %v4545 = vsel %vm466, %v754, %v3197
      %v4546 = vsel %vm466, %v755, %v3199
      %v4547 = vsel %vm466, %v756, %v3201
      %v4548 = vsel %vm2644, %v2622, %v3289
      %v4549 = vsel %vm2644, %v4502, %v3289
      %v4550 = vsel %vm2644, %v2623, %v3291
      %v4551 = vsel %vm2644, %v4503, %v3291
      %v4552 = vsel %vm2644, %v2624, %v3293
      %v4553 = vsel %vm2644, %v4504, %v3293
      %v4554 = vsel %vm2644, %v2625, %v3295
      %v4555 = vsel %vm2644, %v4505, %v3295
      %v4556 = vsel %vm2644, %v2626, %v3297
      %v4557 = vsel %vm2644, %v4506, %v3297
      %v4558 = vsel %vm2644, %v2627, %v3299
      %v4559 = vsel %vm2644, %v4507, %v3299
      %v4560 = vsel %vm2644, %v4508, %v3301
      %v4561 = vsel %vm2644, %v4509, %v3301
      %v4562 = vsel %vm2644, %v4510, %v3303
      %v4563 = vsel %vm2644, %v4511, %v3303
      %v4564 = vsel %vm2644, %v2630, %v3305
      %v4565 = vsel %vm2644, %v4512, %v3305
      %v4566 = vsel %vm2644, %v2631, %v3307
      %v4567 = vsel %vm2644, %v4513, %v3307
      %v4568 = vsel %vm2644, %v2632, %v3309
      %v4569 = vsel %vm2644, %v4514, %v3309
      %v4570 = vsel %vm2644, %v2633, %v3311
      %v4571 = vsel %vm2644, %v4515, %v3311
      %v4572 = vsel %vm2644, %v2634, %v3313
      %v4573 = vsel %vm2644, %v4516, %v3313
      %v4574 = vsel %vm2644, %v2635, %v3315
      %v4575 = vsel %vm2644, %v4517, %v3315
      %v4576 = vsel %vm2644, %v4518, %v3317
      %v4577 = vsel %vm2644, %v4519, %v3317
      %v4578 = vsel %vm2644, %v4520, %v3319
      %v4579 = vsel %vm2644, %v4521, %v3319
      %v4580 = vsel %vm2644, %v2638, %v3321
      %v4581 = vsel %vm2644, %v4522, %v3321
      %v4582 = vsel %vm2644, %v2639, %v3323
      %v4583 = vsel %vm2644, %v4523, %v3323
      %v4584 = vsel %vm2644, %v2640, %v3325
      %v4585 = vsel %vm2644, %v4524, %v3325
      %v4586 = vsel %vm2644, %v2641, %v3327
      %v4587 = vsel %vm2644, %v4525, %v3327
      %v4588 = vsel %vm2644, %v2642, %v3329
      %v4589 = vsel %vm2644, %v4526, %v3329
      %v4590 = vsel %vm2644, %v2643, %v3331
      %v4591 = vsel %vm2644, %v4527, %v3331
      %v4592 = vsel %vm2644, %v4528, %v3333
      %v4593 = vsel %vm2644, %v4529, %v3333
      %v4594 = vsel %vm2644, %v4530, %v3335
      %v4595 = vsel %vm2644, %v4531, %v3335
      %v4596 = vsel %vm2644, %v4532, %v3337
      %v4597 = vsel %vm2644, %v4533, %v3337
      %v4598 = vsel %vm2644, %v4534, %v3339
      %v4599 = vsel %vm2644, %v4535, %v3339
      %v4600 = vsel %vm2644, %v4536, %v3341
      %v4601 = vsel %vm2644, %v4537, %v3341
      %v4602 = vsel %vm2644, %v4538, %v3343
      %v4603 = vsel %vm2644, %v4539, %v3343
      %v4604 = vsel %vm2644, %v4540, %v3345
      %v4605 = vsel %vm2644, %v4541, %v3345
      %v4606 = vsel %vm2644, %v4542, %v3347
      %v4607 = vsel %vm2644, %v4543, %v3347
      %v4608 = vsel %vm2644, %v4544, %v3349
      %v4609 = vsel %vm2644, %v4545, %v3349
      %v4610 = vsel %vm2644, %v4546, %v3351
      %v4611 = vsel %vm2644, %v4547, %v3351
      %v4612 = vsel %vm2677, %v4548, %v3393
      %v4613 = vsel %vm2677, %v4549, %v3395
      %v4614 = vsel %vm2677, %v4550, %v1264
      %v4615 = vsel %vm2677, %v4551, %v3397
      %v4616 = vsel %vm2677, %v4552, %v1266
      %v4617 = vsel %vm2677, %v4553, %v3399
      %v4618 = vsel %vm2677, %v4554, %v1268
      %v4619 = vsel %vm2677, %v4555, %v3401
      %v4620 = vsel %vm2677, %v4556, %v1270
      %v4621 = vsel %vm2677, %v4557, %v3403
      %v4622 = vsel %vm2677, %v4558, %v1272
      %v4623 = vsel %vm2677, %v4559, %v3405
      %v4624 = vsel %vm2677, %v4560, %v1274
      %v4625 = vsel %vm2677, %v4561, %v3407
      %v4626 = vsel %vm2677, %v4562, %v1276
      %v4627 = vsel %vm2677, %v4563, %v3409
      %v4628 = vsel %vm2677, %v4564, %v3411
      %v4629 = vsel %vm2677, %v4565, %v3413
      %v4630 = vsel %vm2677, %v4566, %v1280
      %v4631 = vsel %vm2677, %v4567, %v3415
      %v4632 = vsel %vm2677, %v4568, %v1282
      %v4633 = vsel %vm2677, %v4569, %v3417
      %v4634 = vsel %vm2677, %v4570, %v1284
      %v4635 = vsel %vm2677, %v4571, %v3419
      %v4636 = vsel %vm2677, %v4572, %v1286
      %v4637 = vsel %vm2677, %v4573, %v3421
      %v4638 = vsel %vm2677, %v4574, %v1288
      %v4639 = vsel %vm2677, %v4575, %v3423
      %v4640 = vsel %vm2677, %v4576, %v1290
      %v4641 = vsel %vm2677, %v4577, %v3425
      %v4642 = vsel %vm2677, %v4578, %v1292
      %v4643 = vsel %vm2677, %v4579, %v3427
      %v4644 = vsel %vm2677, %v4580, %v3429
      %v4645 = vsel %vm2677, %v4581, %v3431
      %v4646 = vsel %vm2677, %v4582, %v3433
      %v4647 = vsel %vm2677, %v4583, %v3435
      %v4648 = vsel %vm2677, %v4584, %v3437
      %v4649 = vsel %vm2677, %v4585, %v3439
      %v4650 = vsel %vm2677, %v4586, %v3441
      %v4651 = vsel %vm2677, %v4587, %v3443
      %v4652 = vsel %vm2677, %v4588, %v3445
      %v4653 = vsel %vm2677, %v4589, %v3447
      %v4654 = vsel %vm2677, %v4590, %v3449
      %v4655 = vsel %vm2677, %v4591, %v3451
      %v4656 = vsel %vm2677, %v4592, %v3453
      %v4657 = vsel %vm2677, %v4593, %v3455
      %v4658 = vsel %vm2677, %v4594, %v3457
      %v4659 = vsel %vm2677, %v4595, %v3459
      %v4660 = vsel %vm2677, %v4596, %v3461
      %v4661 = vsel %vm2677, %v4597, %v3463
      %v4662 = vsel %vm2677, %v4598, %v3465
      %v4663 = vsel %vm2677, %v4599, %v3467
      %v4664 = vsel %vm2677, %v4600, %v3469
      %v4665 = vsel %vm2677, %v4601, %v3471
      %v4666 = vsel %vm2677, %v4602, %v3473
      %v4667 = vsel %vm2677, %v4603, %v3475
      %v4668 = vsel %vm2677, %v4604, %v3477
      %v4669 = vsel %vm2677, %v4605, %v3479
      %v4670 = vsel %vm2677, %v4606, %v3481
      %v4671 = vsel %vm2677, %v4607, %v3483
      %v4672 = vsel %vm2677, %v4608, %v3485
      %v4673 = vsel %vm2677, %v4609, %v3487
      %v4674 = vsel %vm2677, %v4610, %v3489
      %v4675 = vsel %vm2677, %v4611, %v3491
      %v4676 = vsel %vm2710, %v4612, %v3567
      %v4677 = vsel %vm2710, %v4613, %v3569
      %v4678 = vsel %vm2710, %v4614, %v1376
      %v4679 = vsel %vm2710, %v4615, %v3571
      %v4680 = vsel %vm2710, %v4616, %v1378
      %v4681 = vsel %vm2710, %v4617, %v3573
      %v4682 = vsel %vm2710, %v4618, %v1380
      %v4683 = vsel %vm2710, %v4619, %v3575
      %v4684 = vsel %vm2710, %v4620, %v1382
      %v4685 = vsel %vm2710, %v4621, %v3577
      %v4686 = vsel %vm2710, %v4622, %v1384
      %v4687 = vsel %vm2710, %v4623, %v3579
      %v4688 = vsel %vm2710, %v4624, %v1386
      %v4689 = vsel %vm2710, %v4625, %v3581
      %v4690 = vsel %vm2710, %v4626, %v1388
      %v4691 = vsel %vm2710, %v4627, %v3583
      %v4692 = vsel %vm2710, %v4628, %v3585
      %v4693 = vsel %vm2710, %v4629, %v3587
      %v4694 = vsel %vm2710, %v4630, %v1392
      %v4695 = vsel %vm2710, %v4631, %v3589
      %v4696 = vsel %vm2710, %v4632, %v1394
      %v4697 = vsel %vm2710, %v4633, %v3591
      %v4698 = vsel %vm2710, %v4634, %v1396
      %v4699 = vsel %vm2710, %v4635, %v3593
      %v4700 = vsel %vm2710, %v4636, %v1398
      %v4701 = vsel %vm2710, %v4637, %v3595
      %v4702 = vsel %vm2710, %v4638, %v1400
      %v4703 = vsel %vm2710, %v4639, %v3597
      %v4704 = vsel %vm2710, %v4640, %v1402
      %v4705 = vsel %vm2710, %v4641, %v3599
      %v4706 = vsel %vm2710, %v4642, %v1404
      %v4707 = vsel %vm2710, %v4643, %v3601
      %v4708 = vsel %vm2710, %v4644, %v3603
      %v4709 = vsel %vm2710, %v4645, %v3605
      %v4710 = vsel %vm2710, %v4646, %v3607
      %v4711 = vsel %vm2710, %v4647, %v3609
      %v4712 = vsel %vm2710, %v4648, %v3611
      %v4713 = vsel %vm2710, %v4649, %v3613
      %v4714 = vsel %vm2710, %v4650, %v3615
      %v4715 = vsel %vm2710, %v4651, %v3617
      %v4716 = vsel %vm2710, %v4652, %v3619
      %v4717 = vsel %vm2710, %v4653, %v3621
      %v4718 = vsel %vm2710, %v4654, %v3623
      %v4719 = vsel %vm2710, %v4655, %v3625
      %v4720 = vsel %vm2710, %v4656, %v3627
      %v4721 = vsel %vm2710, %v4657, %v3629
      %v4722 = vsel %vm2710, %v4658, %v3631
      %v4723 = vsel %vm2710, %v4659, %v3633
      %v4724 = vsel %vm2710, %v4660, %v3635
      %v4725 = vsel %vm2710, %v4661, %v3637
      %v4726 = vsel %vm2710, %v4662, %v3639
      %v4727 = vsel %vm2710, %v4663, %v3641
      %v4728 = vsel %vm2710, %v4664, %v3643
      %v4729 = vsel %vm2710, %v4665, %v3645
      %v4730 = vsel %vm2710, %v4666, %v3647
      %v4731 = vsel %vm2710, %v4667, %v3649
      %v4732 = vsel %vm2710, %v4668, %v3651
      %v4733 = vsel %vm2710, %v4669, %v3653
      %v4734 = vsel %vm2710, %v4670, %v3655
      %v4735 = vsel %vm2710, %v4671, %v3657
      %v4736 = vsel %vm2710, %v4672, %v3659
      %v4737 = vsel %vm2710, %v4673, %v3661
      %v4738 = vsel %vm2710, %v4674, %v3663
      %v4739 = vsel %vm2710, %v4675, %v3665
      %v4740 = vsel %vm2743, %v4676, %v3722
      %v4741 = vsel %vm2743, %v4677, %v3722
      %v4742 = vsel %vm2743, %v4678, %v3724
      %v4743 = vsel %vm2743, %v4679, %v3724
      %v4744 = vsel %vm2743, %v4680, %v3726
      %v4745 = vsel %vm2743, %v4681, %v3726
      %v4746 = vsel %vm2743, %v4682, %v3728
      %v4747 = vsel %vm2743, %v4683, %v3728
      %v4748 = vsel %vm2743, %v4684, %v3730
      %v4749 = vsel %vm2743, %v4685, %v3730
      %v4750 = vsel %vm2743, %v4686, %v3732
      %v4751 = vsel %vm2743, %v4687, %v3732
      %v4752 = vsel %vm2743, %v4688, %v3734
      %v4753 = vsel %vm2743, %v4689, %v3734
      %v4754 = vsel %vm2743, %v4690, %v3736
      %v4755 = vsel %vm2743, %v4691, %v3736
      %v4756 = vsel %vm2743, %v4692, %v3738
      %v4757 = vsel %vm2743, %v4693, %v3738
      %v4758 = vsel %vm2743, %v4694, %v3740
      %v4759 = vsel %vm2743, %v4695, %v3740
      %v4760 = vsel %vm2743, %v4696, %v3742
      %v4761 = vsel %vm2743, %v4697, %v3742
      %v4762 = vsel %vm2743, %v4698, %v3744
      %v4763 = vsel %vm2743, %v4699, %v3744
      %v4764 = vsel %vm2743, %v4700, %v3746
      %v4765 = vsel %vm2743, %v4701, %v3746
      %v4766 = vsel %vm2743, %v4702, %v3748
      %v4767 = vsel %vm2743, %v4703, %v3748
      %v4768 = vsel %vm2743, %v4704, %v3750
      %v4769 = vsel %vm2743, %v4705, %v3750
      %v4770 = vsel %vm2743, %v4706, %v3752
      %v4771 = vsel %vm2743, %v4707, %v3752
      %v4772 = vsel %vm2743, %v4708, %v3754
      %v4773 = vsel %vm2743, %v4709, %v3754
      %v4774 = vsel %vm2743, %v4710, %v3756
      %v4775 = vsel %vm2743, %v4711, %v3756
      %v4776 = vsel %vm2743, %v4712, %v3758
      %v4777 = vsel %vm2743, %v4713, %v3758
      %v4778 = vsel %vm2743, %v4714, %v3760
      %v4779 = vsel %vm2743, %v4715, %v3760
      %v4780 = vsel %vm2743, %v4716, %v3762
      %v4781 = vsel %vm2743, %v4717, %v3762
      %v4782 = vsel %vm2743, %v4718, %v3764
      %v4783 = vsel %vm2743, %v4719, %v3764
      %v4784 = vsel %vm2743, %v4720, %v3766
      %v4785 = vsel %vm2743, %v4721, %v3766
      %v4786 = vsel %vm2743, %v4722, %v3768
      %v4787 = vsel %vm2743, %v4723, %v3768
      %v4788 = vsel %vm2743, %v4724, %v3770
      %v4789 = vsel %vm2743, %v4725, %v3770
      %v4790 = vsel %vm2743, %v4726, %v3772
      %v4791 = vsel %vm2743, %v4727, %v3772
      %v4792 = vsel %vm2743, %v4728, %v3774
      %v4793 = vsel %vm2743, %v4729, %v3774
      %v4794 = vsel %vm2743, %v4730, %v3776
      %v4795 = vsel %vm2743, %v4731, %v3776
      %v4796 = vsel %vm2743, %v4732, %v3778
      %v4797 = vsel %vm2743, %v4733, %v3778
      %v4798 = vsel %vm2743, %v4734, %v3780
      %v4799 = vsel %vm2743, %v4735, %v3780
      %v4800 = vsel %vm2743, %v4736, %v3782
      %v4801 = vsel %vm2743, %v4737, %v3782
      %v4802 = vsel %vm2743, %v4738, %v3784
      %v4803 = vsel %vm2743, %v4739, %v3784
      %v4804 = vsel %vm2776, %v4740, %v3819
      %v4805 = vsel %vm2776, %v4741, %v3821
      %v4806 = vsel %vm2776, %v4742, %v1584
      %v4807 = vsel %vm2776, %v4743, %v3823
      %v4808 = vsel %vm2776, %v4744, %v1586
      %v4809 = vsel %vm2776, %v4745, %v3825
      %v4810 = vsel %vm2776, %v4746, %v1588
      %v4811 = vsel %vm2776, %v4747, %v3827
      %v4812 = vsel %vm2776, %v4748, %v1590
      %v4813 = vsel %vm2776, %v4749, %v3829
      %v4814 = vsel %vm2776, %v4750, %v1592
      %v4815 = vsel %vm2776, %v4751, %v3831
      %v4816 = vsel %vm2776, %v4752, %v1594
      %v4817 = vsel %vm2776, %v4753, %v3833
      %v4818 = vsel %vm2776, %v4754, %v1596
      %v4819 = vsel %vm2776, %v4755, %v3835
      %v4820 = vsel %vm2776, %v4756, %v3837
      %v4821 = vsel %vm2776, %v4757, %v3839
      %v4822 = vsel %vm2776, %v4758, %v1600
      %v4823 = vsel %vm2776, %v4759, %v3841
      %v4824 = vsel %vm2776, %v4760, %v1602
      %v4825 = vsel %vm2776, %v4761, %v3843
      %v4826 = vsel %vm2776, %v4762, %v1604
      %v4827 = vsel %vm2776, %v4763, %v3845
      %v4828 = vsel %vm2776, %v4764, %v1606
      %v4829 = vsel %vm2776, %v4765, %v3847
      %v4830 = vsel %vm2776, %v4766, %v1608
      %v4831 = vsel %vm2776, %v4767, %v3849
      %v4832 = vsel %vm2776, %v4768, %v1610
      %v4833 = vsel %vm2776, %v4769, %v3851
      %v4834 = vsel %vm2776, %v4770, %v1612
      %v4835 = vsel %vm2776, %v4771, %v3853
      %v4836 = vsel %vm2776, %v4772, %v3855
      %v4837 = vsel %vm2776, %v4773, %v3857
      %v4838 = vsel %vm2776, %v4774, %v3859
      %v4839 = vsel %vm2776, %v4775, %v3861
      %v4840 = vsel %vm2776, %v4776, %v3863
      %v4841 = vsel %vm2776, %v4777, %v3865
      %v4842 = vsel %vm2776, %v4778, %v3867
      %v4843 = vsel %vm2776, %v4779, %v3869
      %v4844 = vsel %vm2776, %v4780, %v3871
      %v4845 = vsel %vm2776, %v4781, %v3873
      %v4846 = vsel %vm2776, %v4782, %v3875
      %v4847 = vsel %vm2776, %v4783, %v3877
      %v4848 = vsel %vm2776, %v4784, %v3879
      %v4849 = vsel %vm2776, %v4785, %v3881
      %v4850 = vsel %vm2776, %v4786, %v3883
      %v4851 = vsel %vm2776, %v4787, %v3885
      %v4852 = vsel %vm2776, %v4788, %v3887
      %v4853 = vsel %vm2776, %v4789, %v3889
      %v4854 = vsel %vm2776, %v4790, %v3891
      %v4855 = vsel %vm2776, %v4791, %v3893
      %v4856 = vsel %vm2776, %v4792, %v3895
      %v4857 = vsel %vm2776, %v4793, %v3897
      %v4858 = vsel %vm2776, %v4794, %v3899
      %v4859 = vsel %vm2776, %v4795, %v3901
      %v4860 = vsel %vm2776, %v4796, %v3903
      %v4861 = vsel %vm2776, %v4797, %v3905
      %v4862 = vsel %vm2776, %v4798, %v3907
      %v4863 = vsel %vm2776, %v4799, %v3909
      %v4864 = vsel %vm2776, %v4800, %v3911
      %v4865 = vsel %vm2776, %v4801, %v3913
      %v4866 = vsel %vm2776, %v4802, %v3915
      %v4867 = vsel %vm2776, %v4803, %v3917
      %v4868 = vsel %vm2809, %v4804, %v3972
      %v4869 = vsel %vm2809, %v4805, %v3974
      %v4870 = vsel %vm2809, %v4806, %v1696
      %v4871 = vsel %vm2809, %v4807, %v3976
      %v4872 = vsel %vm2809, %v4808, %v1698
      %v4873 = vsel %vm2809, %v4809, %v3978
      %v4874 = vsel %vm2809, %v4810, %v1700
      %v4875 = vsel %vm2809, %v4811, %v3980
      %v4876 = vsel %vm2809, %v4812, %v1702
      %v4877 = vsel %vm2809, %v4813, %v3982
      %v4878 = vsel %vm2809, %v4814, %v1704
      %v4879 = vsel %vm2809, %v4815, %v3984
      %v4880 = vsel %vm2809, %v4816, %v1706
      %v4881 = vsel %vm2809, %v4817, %v3986
      %v4882 = vsel %vm2809, %v4818, %v1708
      %v4883 = vsel %vm2809, %v4819, %v3988
      %v4884 = vsel %vm2809, %v4820, %v3990
      %v4885 = vsel %vm2809, %v4821, %v3992
      %v4886 = vsel %vm2809, %v4822, %v1712
      %v4887 = vsel %vm2809, %v4823, %v3994
      %v4888 = vsel %vm2809, %v4824, %v1714
      %v4889 = vsel %vm2809, %v4825, %v3996
      %v4890 = vsel %vm2809, %v4826, %v1716
      %v4891 = vsel %vm2809, %v4827, %v3998
      %v4892 = vsel %vm2809, %v4828, %v1718
      %v4893 = vsel %vm2809, %v4829, %v4000
      %v4894 = vsel %vm2809, %v4830, %v1720
      %v4895 = vsel %vm2809, %v4831, %v4002
      %v4896 = vsel %vm2809, %v4832, %v1722
      %v4897 = vsel %vm2809, %v4833, %v4004
      %v4898 = vsel %vm2809, %v4834, %v1724
      %v4899 = vsel %vm2809, %v4835, %v4006
      %v4900 = vsel %vm2809, %v4836, %v4008
      %v4901 = vsel %vm2809, %v4837, %v4010
      %v4902 = vsel %vm2809, %v4838, %v4012
      %v4903 = vsel %vm2809, %v4839, %v4014
      %v4904 = vsel %vm2809, %v4840, %v4016
      %v4905 = vsel %vm2809, %v4841, %v4018
      %v4906 = vsel %vm2809, %v4842, %v4020
      %v4907 = vsel %vm2809, %v4843, %v4022
      %v4908 = vsel %vm2809, %v4844, %v4024
      %v4909 = vsel %vm2809, %v4845, %v4026
      %v4910 = vsel %vm2809, %v4846, %v4028
      %v4911 = vsel %vm2809, %v4847, %v4030
      %v4912 = vsel %vm2809, %v4848, %v4032
      %v4913 = vsel %vm2809, %v4849, %v4034
      %v4914 = vsel %vm2809, %v4850, %v4036
      %v4915 = vsel %vm2809, %v4851, %v4038
      %v4916 = vsel %vm2809, %v4852, %v4040
      %v4917 = vsel %vm2809, %v4853, %v4042
      %v4918 = vsel %vm2809, %v4854, %v4044
      %v4919 = vsel %vm2809, %v4855, %v4046
      %v4920 = vsel %vm2809, %v4856, %v4048
      %v4921 = vsel %vm2809, %v4857, %v4050
      %v4922 = vsel %vm2809, %v4858, %v4052
      %v4923 = vsel %vm2809, %v4859, %v4054
      %v4924 = vsel %vm2809, %v4860, %v4056
      %v4925 = vsel %vm2809, %v4861, %v4058
      %v4926 = vsel %vm2809, %v4862, %v4060
      %v4927 = vsel %vm2809, %v4863, %v4062
      %v4928 = vsel %vm2809, %v4864, %v4064
      %v4929 = vsel %vm2809, %v4865, %v4066
      %v4930 = vsel %vm2809, %v4866, %v4068
      %v4931 = vsel %vm2809, %v4867, %v4070
      %v4932 = vsel %vm2842, %v4868, %v4127
      %v4933 = vsel %vm2842, %v4869, %v4127
      %v4934 = vsel %vm2842, %v4870, %v4129
      %v4935 = vsel %vm2842, %v4871, %v4129
      %v4936 = vsel %vm2842, %v4872, %v4131
      %v4937 = vsel %vm2842, %v4873, %v4131
      %v4938 = vsel %vm2842, %v4874, %v4133
      %v4939 = vsel %vm2842, %v4875, %v4133
      %v4940 = vsel %vm2842, %v4876, %v4135
      %v4941 = vsel %vm2842, %v4877, %v4135
      %v4942 = vsel %vm2842, %v4878, %v4137
      %v4943 = vsel %vm2842, %v4879, %v4137
      %v4944 = vsel %vm2842, %v4880, %v4139
      %v4945 = vsel %vm2842, %v4881, %v4139
      %v4946 = vsel %vm2842, %v4882, %v4141
      %v4947 = vsel %vm2842, %v4883, %v4141
      %v4948 = vsel %vm2842, %v4884, %v4143
      %v4949 = vsel %vm2842, %v4885, %v4143
      %v4950 = vsel %vm2842, %v4886, %v4145
      %v4951 = vsel %vm2842, %v4887, %v4145
      %v4952 = vsel %vm2842, %v4888, %v4147
      %v4953 = vsel %vm2842, %v4889, %v4147
      %v4954 = vsel %vm2842, %v4890, %v4149
      %v4955 = vsel %vm2842, %v4891, %v4149
      %v4956 = vsel %vm2842, %v4892, %v4151
      %v4957 = vsel %vm2842, %v4893, %v4151
      %v4958 = vsel %vm2842, %v4894, %v4153
      %v4959 = vsel %vm2842, %v4895, %v4153
      %v4960 = vsel %vm2842, %v4896, %v4155
      %v4961 = vsel %vm2842, %v4897, %v4155
      %v4962 = vsel %vm2842, %v4898, %v4157
      %v4963 = vsel %vm2842, %v4899, %v4157
      %v4964 = vsel %vm2842, %v4900, %v4159
      %v4965 = vsel %vm2842, %v4901, %v4159
      %v4966 = vsel %vm2842, %v4902, %v4161
      %v4967 = vsel %vm2842, %v4903, %v4161
      %v4968 = vsel %vm2842, %v4904, %v4163
      %v4969 = vsel %vm2842, %v4905, %v4163
      %v4970 = vsel %vm2842, %v4906, %v4165
      %v4971 = vsel %vm2842, %v4907, %v4165
      %v4972 = vsel %vm2842, %v4908, %v4167
      %v4973 = vsel %vm2842, %v4909, %v4167
      %v4974 = vsel %vm2842, %v4910, %v4169
      %v4975 = vsel %vm2842, %v4911, %v4169
      %v4976 = vsel %vm2842, %v4912, %v4171
      %v4977 = vsel %vm2842, %v4913, %v4171
      %v4978 = vsel %vm2842, %v4914, %v4173
      %v4979 = vsel %vm2842, %v4915, %v4173
      %v4980 = vsel %vm2842, %v4916, %v4175
      %v4981 = vsel %vm2842, %v4917, %v4175
      %v4982 = vsel %vm2842, %v4918, %v4177
      %v4983 = vsel %vm2842, %v4919, %v4177
      %v4984 = vsel %vm2842, %v4920, %v4179
      %v4985 = vsel %vm2842, %v4921, %v4179
      %v4986 = vsel %vm2842, %v4922, %v4181
      %v4987 = vsel %vm2842, %v4923, %v4181
      %v4988 = vsel %vm2842, %v4924, %v4183
      %v4989 = vsel %vm2842, %v4925, %v4183
      %v4990 = vsel %vm2842, %v4926, %v4185
      %v4991 = vsel %vm2842, %v4927, %v4185
      %v4992 = vsel %vm2842, %v4928, %v4187
      %v4993 = vsel %vm2842, %v4929, %v4187
      %v4994 = vsel %vm2842, %v4930, %v4189
      %v4995 = vsel %vm2842, %v4931, %v4189
      %v4996 = vsel %vm2875, %v4932, %v1896
      %v4997 = vsel %vm2875, %v4933, %v4224
      %v4998 = vsel %vm2875, %v4934, %v1898
      %v4999 = vsel %vm2875, %v4935, %v4226
      %v5000 = vsel %vm2875, %v4936, %v1900
      %v5001 = vsel %vm2875, %v4937, %v4228
      %v5002 = vsel %vm2875, %v4938, %v1902
      %v5003 = vsel %vm2875, %v4939, %v4230
      %v5004 = vsel %vm2875, %v4940, %v1904
      %v5005 = vsel %vm2875, %v4941, %v4232
      %v5006 = vsel %vm2875, %v4942, %v1906
      %v5007 = vsel %vm2875, %v4943, %v4234
      %v5008 = vsel %vm2875, %v4944, %v4236
      %v5009 = vsel %vm2875, %v4945, %v4238
      %v5010 = vsel %vm2875, %v4946, %v4240
      %v5011 = vsel %vm2875, %v4947, %v4242
      %v5012 = vsel %vm2875, %v4948, %v1912
      %v5013 = vsel %vm2875, %v4949, %v4244
      %v5014 = vsel %vm2875, %v4950, %v1914
      %v5015 = vsel %vm2875, %v4951, %v4246
      %v5016 = vsel %vm2875, %v4952, %v1916
      %v5017 = vsel %vm2875, %v4953, %v4248
      %v5018 = vsel %vm2875, %v4954, %v1918
      %v5019 = vsel %vm2875, %v4955, %v4250
      %v5020 = vsel %vm2875, %v4956, %v1920
      %v5021 = vsel %vm2875, %v4957, %v4252
      %v5022 = vsel %vm2875, %v4958, %v1922
      %v5023 = vsel %vm2875, %v4959, %v4254
      %v5024 = vsel %vm2875, %v4960, %v4256
      %v5025 = vsel %vm2875, %v4961, %v4258
      %v5026 = vsel %vm2875, %v4962, %v4260
      %v5027 = vsel %vm2875, %v4963, %v4262
      %v5028 = vsel %vm2875, %v4964, %v1928
      %v5029 = vsel %vm2875, %v4965, %v4264
      %v5030 = vsel %vm2875, %v4966, %v1930
      %v5031 = vsel %vm2875, %v4967, %v4266
      %v5032 = vsel %vm2875, %v4968, %v1932
      %v5033 = vsel %vm2875, %v4969, %v4268
      %v5034 = vsel %vm2875, %v4970, %v1934
      %v5035 = vsel %vm2875, %v4971, %v4270
      %v5036 = vsel %vm2875, %v4972, %v1936
      %v5037 = vsel %vm2875, %v4973, %v4272
      %v5038 = vsel %vm2875, %v4974, %v1938
      %v5039 = vsel %vm2875, %v4975, %v4274
      %v5040 = vsel %vm2875, %v4976, %v4276
      %v5041 = vsel %vm2875, %v4977, %v4278
      %v5042 = vsel %vm2875, %v4978, %v4280
      %v5043 = vsel %vm2875, %v4979, %v4282
      %v5044 = vsel %vm2875, %v4980, %v4284
      %v5045 = vsel %vm2875, %v4981, %v4286
      %v5046 = vsel %vm2875, %v4982, %v4288
      %v5047 = vsel %vm2875, %v4983, %v4290
      %v5048 = vsel %vm2875, %v4984, %v4292
      %v5049 = vsel %vm2875, %v4985, %v4294
      %v5050 = vsel %vm2875, %v4986, %v4296
      %v5051 = vsel %vm2875, %v4987, %v4298
      %v5052 = vsel %vm2875, %v4988, %v4300
      %v5053 = vsel %vm2875, %v4989, %v4302
      %v5054 = vsel %vm2875, %v4990, %v4304
      %v5055 = vsel %vm2875, %v4991, %v4306
      %v5056 = vsel %vm2875, %v4992, %v4308
      %v5057 = vsel %vm2875, %v4993, %v4310
      %v5058 = vsel %vm2875, %v4994, %v4312
      %v5059 = vsel %vm2875, %v4995, %v4314
      %v5060 = vsel %vm2908, %v4996, %v2024
      %v5061 = vsel %vm2908, %v4997, %v4365
      %v5062 = vsel %vm2908, %v4998, %v2026
      %v5063 = vsel %vm2908, %v4999, %v4367
      %v5064 = vsel %vm2908, %v5000, %v2028
      %v5065 = vsel %vm2908, %v5001, %v4369
      %v5066 = vsel %vm2908, %v5002, %v2030
      %v5067 = vsel %vm2908, %v5003, %v4371
      %v5068 = vsel %vm2908, %v5004, %v2032
      %v5069 = vsel %vm2908, %v5005, %v4373
      %v5070 = vsel %vm2908, %v5006, %v2034
      %v5071 = vsel %vm2908, %v5007, %v4375
      %v5072 = vsel %vm2908, %v5008, %v4377
      %v5073 = vsel %vm2908, %v5009, %v4379
      %v5074 = vsel %vm2908, %v5010, %v4381
      %v5075 = vsel %vm2908, %v5011, %v4383
      %v5076 = vsel %vm2908, %v5012, %v2040
      %v5077 = vsel %vm2908, %v5013, %v4385
      %v5078 = vsel %vm2908, %v5014, %v2042
      %v5079 = vsel %vm2908, %v5015, %v4387
      %v5080 = vsel %vm2908, %v5016, %v2044
      %v5081 = vsel %vm2908, %v5017, %v4389
      %v5082 = vsel %vm2908, %v5018, %v2046
      %v5083 = vsel %vm2908, %v5019, %v4391
      %v5084 = vsel %vm2908, %v5020, %v2048
      %v5085 = vsel %vm2908, %v5021, %v4393
      %v5086 = vsel %vm2908, %v5022, %v2050
      %v5087 = vsel %vm2908, %v5023, %v4395
      %v5088 = vsel %vm2908, %v5024, %v4397
      %v5089 = vsel %vm2908, %v5025, %v4399
      %v5090 = vsel %vm2908, %v5026, %v4401
      %v5091 = vsel %vm2908, %v5027, %v4403
      %v5092 = vsel %vm2908, %v5028, %v2056
      %v5093 = vsel %vm2908, %v5029, %v4405
      %v5094 = vsel %vm2908, %v5030, %v2058
      %v5095 = vsel %vm2908, %v5031, %v4407
      %v5096 = vsel %vm2908, %v5032, %v2060
      %v5097 = vsel %vm2908, %v5033, %v4409
      %v5098 = vsel %vm2908, %v5034, %v2062
      %v5099 = vsel %vm2908, %v5035, %v4411
      %v5100 = vsel %vm2908, %v5036, %v2064
      %v5101 = vsel %vm2908, %v5037, %v4413
      %v5102 = vsel %vm2908, %v5038, %v2066
      %v5103 = vsel %vm2908, %v5039, %v4415
      %v5104 = vsel %vm2908, %v5040, %v4417
      %v5105 = vsel %vm2908, %v5041, %v4419
      %v5106 = vsel %vm2908, %v5042, %v4421
      %v5107 = vsel %vm2908, %v5043, %v4423
      %v5108 = vsel %vm2908, %v5044, %v4425
      %v5109 = vsel %vm2908, %v5045, %v4427
      %v5110 = vsel %vm2908, %v5046, %v4429
      %v5111 = vsel %vm2908, %v5047, %v4431
      %v5112 = vsel %vm2908, %v5048, %v4433
      %v5113 = vsel %vm2908, %v5049, %v4435
      %v5114 = vsel %vm2908, %v5050, %v4437
      %v5115 = vsel %vm2908, %v5051, %v4439
      %v5116 = vsel %vm2908, %v5052, %v4441
      %v5117 = vsel %vm2908, %v5053, %v4443
      %v5118 = vsel %vm2908, %v5054, %v4445
      %v5119 = vsel %vm2908, %v5055, %v4447
      %v5120 = vsel %vm2908, %v5056, %v4449
      %v5121 = vsel %vm2908, %v5057, %v4451
      %v5122 = vsel %vm2908, %v5058, %v4453
      %v5123 = vsel %vm2908, %v5059, %v4455
      %v5188 = vrot.slane %v5060, 1
      %v5189 = vrot.slane %v5061, 1
      %v5190 = vsel %vm841, %v5188, %v5189
      %v5191 = vrot.slane %v5062, 1
      %v5192 = vrot.slane %v5063, 1
      %v5193 = vsel %vm841, %v5191, %v5192
      %v5194 = vrot.slane %v5064, 1
      %v5195 = vrot.slane %v5065, 1
      %v5196 = vsel %vm841, %v5194, %v5195
      %v5197 = vrot.slane %v5066, 1
      %v5198 = vrot.slane %v5067, 1
      %v5199 = vsel %vm841, %v5197, %v5198
      %v5200 = vrot.slane %v5068, 1
      %v5201 = vrot.slane %v5069, 1
      %v5202 = vsel %vm841, %v5200, %v5201
      %v5203 = vrot.slane %v5070, 1
      %v5204 = vrot.slane %v5071, 1
      %v5205 = vsel %vm841, %v5203, %v5204
      %v5206 = vrot.slane %v5072, 1
      %v5207 = vrot.slane %v5073, 1
      %v5208 = vsel %vm841, %v5206, %v5207
      %v5209 = vrot.slane %v5074, 1
      %v5210 = vrot.slane %v5075, 1
      %v5211 = vsel %vm841, %v5209, %v5210
      %v5212 = vrot.slane %v5076, 1
      %v5213 = vrot.slane %v5077, 1
      %v5214 = vsel %vm841, %v5212, %v5213
      %v5215 = vrot.slane %v5078, 1
      %v5216 = vrot.slane %v5079, 1
      %v5217 = vsel %vm841, %v5215, %v5216
      %v5218 = vrot.slane %v5080, 1
      %v5219 = vrot.slane %v5081, 1
      %v5220 = vsel %vm841, %v5218, %v5219
      %v5221 = vrot.slane %v5082, 1
      %v5222 = vrot.slane %v5083, 1
      %v5223 = vsel %vm841, %v5221, %v5222
      %v5224 = vrot.slane %v5084, 1
      %v5225 = vrot.slane %v5085, 1
      %v5226 = vsel %vm841, %v5224, %v5225
      %v5227 = vrot.slane %v5086, 1
      %v5228 = vrot.slane %v5087, 1
      %v5229 = vsel %vm841, %v5227, %v5228
      %v5230 = vrot.slane %v5088, 1
      %v5231 = vrot.slane %v5089, 1
      %v5232 = vsel %vm841, %v5230, %v5231
      %v5233 = vrot.slane %v5090, 1
      %v5234 = vrot.slane %v5091, 1
      %v5235 = vsel %vm841, %v5233, %v5234
      %v5236 = vrot.slane %v5092, 1
      %v5237 = vrot.slane %v5093, 1
      %v5238 = vsel %vm841, %v5236, %v5237
      %v5239 = vrot.slane %v5094, 1
      %v5240 = vrot.slane %v5095, 1
      %v5241 = vsel %vm841, %v5239, %v5240
      %v5242 = vrot.slane %v5096, 1
      %v5243 = vrot.slane %v5097, 1
      %v5244 = vsel %vm841, %v5242, %v5243
      %v5245 = vrot.slane %v5098, 1
      %v5246 = vrot.slane %v5099, 1
      %v5247 = vsel %vm841, %v5245, %v5246
      %v5248 = vrot.slane %v5100, 1
      %v5249 = vrot.slane %v5101, 1
      %v5250 = vsel %vm841, %v5248, %v5249
      %v5251 = vrot.slane %v5102, 1
      %v5252 = vrot.slane %v5103, 1
      %v5253 = vsel %vm841, %v5251, %v5252
      %v5254 = vrot.slane %v5104, 1
      %v5255 = vrot.slane %v5105, 1
      %v5256 = vsel %vm841, %v5254, %v5255
      %v5257 = vrot.slane %v5106, 1
      %v5258 = vrot.slane %v5107, 1
      %v5259 = vsel %vm841, %v5257, %v5258
      %v5260 = vrot.slane %v5108, 1
      %v5261 = vrot.slane %v5109, 1
      %v5262 = vsel %vm841, %v5260, %v5261
      %v5263 = vrot.slane %v5110, 1
      %v5264 = vrot.slane %v5111, 1
      %v5265 = vsel %vm841, %v5263, %v5264
      %v5266 = vrot.slane %v5112, 1
      %v5267 = vrot.slane %v5113, 1
      %v5268 = vsel %vm841, %v5266, %v5267
      %v5269 = vrot.slane %v5114, 1
      %v5270 = vrot.slane %v5115, 1
      %v5271 = vsel %vm841, %v5269, %v5270
      %v5272 = vrot.slane %v5116, 1
      %v5273 = vrot.slane %v5117, 1
      %v5274 = vsel %vm841, %v5272, %v5273
      %v5275 = vrot.slane %v5118, 1
      %v5276 = vrot.slane %v5119, 1
      %v5277 = vsel %vm841, %v5275, %v5276
      %v5278 = vrot.slane %v5120, 1
      %v5279 = vrot.slane %v5121, 1
      %v5280 = vsel %vm841, %v5278, %v5279
      %v5281 = vrot.slane %v5122, 1
      %v5282 = vrot.slane %v5123, 1
      %v5283 = vsel %vm841, %v5281, %v5282
      %5284 = vrot.lane.b32.xlu0 %v5190, 64
      %v5285 = vpop.permute.xlu0 %5284
      %5286 = vrot.lane.b32.xlu0 %v5193, 64
      %v5287 = vpop.permute.xlu0 %5286
      %5288 = vrot.lane.b32.xlu0 %v5196, 64
      %v5289 = vpop.permute.xlu0 %5288
      %5290 = vrot.lane.b32.xlu0 %v5199, 64
      %v5291 = vpop.permute.xlu0 %5290
      %5292 = vrot.lane.b32.xlu0 %v5202, 64
      %v5293 = vpop.permute.xlu0 %5292
      %5294 = vrot.lane.b32.xlu0 %v5205, 64
      %v5295 = vpop.permute.xlu0 %5294
      %5296 = vrot.lane.b32.xlu0 %v5208, 64
      %v5297 = vpop.permute.xlu0 %5296
      %5298 = vrot.lane.b32.xlu0 %v5211, 64
      %v5299 = vpop.permute.xlu0 %5298
      %5300 = vrot.lane.b32.xlu0 %v5214, 64
      %v5301 = vpop.permute.xlu0 %5300
      %5302 = vrot.lane.b32.xlu0 %v5217, 64
      %v5303 = vpop.permute.xlu0 %5302
      %5304 = vrot.lane.b32.xlu0 %v5220, 64
      %v5305 = vpop.permute.xlu0 %5304
      %5306 = vrot.lane.b32.xlu0 %v5223, 64
      %v5307 = vpop.permute.xlu0 %5306
      %5308 = vrot.lane.b32.xlu0 %v5226, 64
      %v5309 = vpop.permute.xlu0 %5308
      %5310 = vrot.lane.b32.xlu0 %v5229, 64
      %v5311 = vpop.permute.xlu0 %5310
      %5312 = vrot.lane.b32.xlu0 %v5232, 64
      %v5313 = vpop.permute.xlu0 %5312
      %5314 = vrot.lane.b32.xlu0 %v5235, 64
      %v5315 = vpop.permute.xlu0 %5314
      %5316 = vrot.lane.b32.xlu0 %v5238, 64
      %v5317 = vpop.permute.xlu0 %5316
      %5318 = vrot.lane.b32.xlu0 %v5241, 64
      %v5319 = vpop.permute.xlu0 %5318
      %5320 = vrot.lane.b32.xlu0 %v5244, 64
      %v5321 = vpop.permute.xlu0 %5320
      %5322 = vrot.lane.b32.xlu0 %v5247, 64
      %v5323 = vpop.permute.xlu0 %5322
      %5324 = vrot.lane.b32.xlu0 %v5250, 64
      %v5325 = vpop.permute.xlu0 %5324
      %5326 = vrot.lane.b32.xlu0 %v5253, 64
      %v5327 = vpop.permute.xlu0 %5326
      %5328 = vrot.lane.b32.xlu0 %v5256, 64
      %v5329 = vpop.permute.xlu0 %5328
      %5330 = vrot.lane.b32.xlu0 %v5259, 64
      %v5331 = vpop.permute.xlu0 %5330
      %5332 = vrot.lane.b32.xlu0 %v5262, 64
      %v5333 = vpop.permute.xlu0 %5332
      %5334 = vrot.lane.b32.xlu0 %v5265, 64
      %v5335 = vpop.permute.xlu0 %5334
      %5336 = vrot.lane.b32.xlu0 %v5268, 64
      %v5337 = vpop.permute.xlu0 %5336
      %5338 = vrot.lane.b32.xlu0 %v5271, 64
      %v5339 = vpop.permute.xlu0 %5338
      %5340 = vrot.lane.b32.xlu0 %v5274, 64
      %v5341 = vpop.permute.xlu0 %5340
      %5342 = vrot.lane.b32.xlu0 %v5277, 64
      %v5343 = vpop.permute.xlu0 %5342
      %5344 = vrot.lane.b32.xlu0 %v5280, 64
      %v5345 = vpop.permute.xlu0 %5344
      %5346 = vrot.lane.b32.xlu0 %v5283, 64
      %v5347 = vpop.permute.xlu0 %5346
      %vm5380 = vcmask 523264
      %v5381 = vsel %vm5380, %v3074, %v5285
      %v5382 = vsel %vm5380, %v3075, %v5287
      %v5383 = vsel %vm5380, %v3076, %v5289
      %v5384 = vsel %vm5380, %v3077, %v5291
      %v5385 = vsel %vm5380, %v3078, %v5293
      %v5386 = vsel %vm5380, %v3079, %v5295
      %v5387 = vsel %vm5380, %v3080, %v5297
      %v5388 = vsel %vm5380, %v3081, %v5299
      %v5389 = vsel %vm5380, %v3082, %v5301
      %v5390 = vsel %vm5380, %v3083, %v5303
      %v5391 = vsel %vm5380, %v3084, %v5305
      %v5392 = vsel %vm5380, %v3085, %v5307
      %v5393 = vsel %vm5380, %v3086, %v5309
      %v5394 = vsel %vm5380, %v3087, %v5311
      %v5395 = vsel %vm5380, %v3088, %v5313
      %v5396 = vsel %vm5380, %v3089, %v5315
      %v5397 = vsel %vm5380, %v3090, %v5317
      %v5398 = vsel %vm5380, %v3091, %v5319
      %v5399 = vsel %vm5380, %v3092, %v5321
      %v5400 = vsel %vm5380, %v3093, %v5323
      %v5401 = vsel %vm5380, %v3094, %v5325
      %v5402 = vsel %vm5380, %v3095, %v5327
      %v5403 = vsel %vm5380, %v3096, %v5329
      %v5404 = vsel %vm5380, %v3097, %v5331
      %v5405 = vsel %vm5380, %v3098, %v5333
      %v5406 = vsel %vm5380, %v3099, %v5335
      %v5407 = vsel %vm5380, %v3100, %v5337
      %v5408 = vsel %vm5380, %v3101, %v5339
      %v5409 = vsel %vm5380, %v3102, %v5341
      %v5410 = vsel %vm5380, %v3103, %v5343
      %v5411 = vsel %vm5380, %v3104, %v5345
      %v5412 = vsel %vm5380, %v3105, %v5347
      %v5413 = vld [vmem:[%s3] sm:$0xff]
      %v5414 = vld [vmem:[%s3 + $0x8] sm:$0xff]
      %v5415 = vld [vmem:[%s3 + $0x10] sm:$0xff]
      %v5416 = vld [vmem:[%s3 + $0x18] sm:$0xff]
      %v5417 = vld [vmem:[%s3 + $0x20] sm:$0xff]
      %v5418 = vld [vmem:[%s3 + $0x28] sm:$0xff]
      %v5419 = vld [vmem:[%s3 + $0x30] sm:$0xff]
      %v5420 = vld [vmem:[%s3 + $0x38] sm:$0xff]
      %v5421 = vld [vmem:[%s3 + $0x40] sm:$0xff]
      %v5422 = vld [vmem:[%s3 + $0x48] sm:$0xff]
      %v5423 = vld [vmem:[%s3 + $0x50] sm:$0xff]
      %v5424 = vld [vmem:[%s3 + $0x58] sm:$0xff]
      %v5425 = vld [vmem:[%s3 + $0x60] sm:$0xff]
      %v5426 = vld [vmem:[%s3 + $0x68] sm:$0xf]
      %vm5427 = vcmask 883712
      %v5429 = vsel %vm5427, %v5381, 0
      %v5432 = vsel %vm5427, %v5382, 0
      %v5435 = vsel %vm5427, %v5383, 0
      %v5438 = vsel %vm5427, %v5384, 0
      %v5441 = vsel %vm5427, %v5385, 0
      %v5444 = vsel %vm5427, %v5386, 0
      %v5447 = vsel %vm5427, %v5387, 0
      %v5450 = vsel %vm5427, %v5388, 0
      %v5453 = vsel %vm5427, %v5389, 0
      %v5456 = vsel %vm5427, %v5390, 0
      %v5459 = vsel %vm5427, %v5391, 0
      %v5462 = vsel %vm5427, %v5392, 0
      %v5465 = vsel %vm5427, %v5393, 0
      %v5468 = vsel %vm5427, %v5394, 0
      %v5471 = vsel %vm5427, %v5395, 0
      %v5474 = vsel %vm5427, %v5396, 0
      %v5477 = vsel %vm5427, %v5397, 0
      %v5480 = vsel %vm5427, %v5398, 0
      %v5483 = vsel %vm5427, %v5399, 0
      %v5486 = vsel %vm5427, %v5400, 0
      %v5489 = vsel %vm5427, %v5401, 0
      %v5492 = vsel %vm5427, %v5402, 0
      %v5495 = vsel %vm5427, %v5403, 0
      %v5498 = vsel %vm5427, %v5404, 0
      %v5501 = vsel %vm5427, %v5405, 0
      %v5504 = vsel %vm5427, %v5406, 0
      %v5507 = vsel %vm5427, %v5407, 0
      %v5510 = vsel %vm5427, %v5408, 0
      %v5513 = vsel %vm5427, %v5409, 0
      %v5516 = vsel %vm5427, %v5410, 0
      %v5519 = vsel %vm5427, %v5411, 0
      %v5522 = vsel %vm5427, %v5412, 0
      %vm5524 = vcmask 1043456
      %v5526 = vsel %vm5524, %v5426, 0
      %5528 = vmatpush.msra.mxu0 0.0
      %5529 = vmatpush.msra.mxu0 0.0
      %5530 = vmatpush.msra.mxu0 %v5526
      %5531 = vmatpush.msra.mxu0 %v5425
      %5532 = vmatpush.msra.mxu0 %v5424
      %5533 = vmatpush.msra.mxu0 %v5423
      %5534 = vmatpush.msra.mxu0 %v5422
      %5535 = vmatpush.msra.mxu0 %v5421
      %5536 = vmatpush.msra.mxu0 %v5420
      %5537 = vmatpush.msra.mxu0 %v5419
      %5538 = vmatpush.msra.mxu0 %v5418
      %5539 = vmatpush.msra.mxu0 %v5417
      %5540 = vmatpush.msra.mxu0 %v5416
      %5541 = vmatpush.msra.mxu0 %v5415
      %5542 = vmatpush.msra.mxu0 %v5414
      %5543 = vmatpush.msra.mxu0 %v5413
      %5544 = vmatmul.f32.gmra.mxu0 %v5429
      %v5545 = vpop.f32.mrf.mxu0
      %v5546 = vadd.f32 0.0, %v5545
      %5547 = vmatmul.f32.gmra.mxu0 %v5432
      %v5548 = vpop.f32.mrf.mxu0
      %v5549 = vadd.f32 0.0, %v5548
      %5550 = vmatmul.f32.gmra.mxu0 %v5435
      %v5551 = vpop.f32.mrf.mxu0
      %v5552 = vadd.f32 0.0, %v5551
      %5553 = vmatmul.f32.gmra.mxu0 %v5438
      %v5554 = vpop.f32.mrf.mxu0
      %v5555 = vadd.f32 0.0, %v5554
      %5556 = vmatmul.f32.gmra.mxu0 %v5441
      %v5557 = vpop.f32.mrf.mxu0
      %v5558 = vadd.f32 0.0, %v5557
      %5559 = vmatmul.f32.gmra.mxu0 %v5444
      %v5560 = vpop.f32.mrf.mxu0
      %v5561 = vadd.f32 0.0, %v5560
      %5562 = vmatmul.f32.gmra.mxu0 %v5447
      %v5563 = vpop.f32.mrf.mxu0
      %v5564 = vadd.f32 0.0, %v5563
      %5565 = vmatmul.f32.gmra.mxu0 %v5450
      %v5566 = vpop.f32.mrf.mxu0
      %v5567 = vadd.f32 0.0, %v5566
      %5568 = vmatmul.f32.gmra.mxu0 %v5453
      %v5569 = vpop.f32.mrf.mxu0
      %v5570 = vadd.f32 0.0, %v5569
      %5571 = vmatmul.f32.gmra.mxu0 %v5456
      %v5572 = vpop.f32.mrf.mxu0
      %v5573 = vadd.f32 0.0, %v5572
      %5574 = vmatmul.f32.gmra.mxu0 %v5459
      %v5575 = vpop.f32.mrf.mxu0
      %v5576 = vadd.f32 0.0, %v5575
      %5577 = vmatmul.f32.gmra.mxu0 %v5462
      %v5578 = vpop.f32.mrf.mxu0
      %v5579 = vadd.f32 0.0, %v5578
      %5580 = vmatmul.f32.gmra.mxu0 %v5465
      %v5581 = vpop.f32.mrf.mxu0
      %v5582 = vadd.f32 0.0, %v5581
      %5583 = vmatmul.f32.gmra.mxu0 %v5468
      %v5584 = vpop.f32.mrf.mxu0
      %v5585 = vadd.f32 0.0, %v5584
      %5586 = vmatmul.f32.gmra.mxu0 %v5471
      %v5587 = vpop.f32.mrf.mxu0
      %v5588 = vadd.f32 0.0, %v5587
      %5589 = vmatmul.f32.gmra.mxu0 %v5474
      %v5590 = vpop.f32.mrf.mxu0
      %v5591 = vadd.f32 0.0, %v5590
      %5592 = vmatmul.f32.gmra.mxu0 %v5477
      %v5593 = vpop.f32.mrf.mxu0
      %v5594 = vadd.f32 0.0, %v5593
      %5595 = vmatmul.f32.gmra.mxu0 %v5480
      %v5596 = vpop.f32.mrf.mxu0
      %v5597 = vadd.f32 0.0, %v5596
      %5598 = vmatmul.f32.gmra.mxu0 %v5483
      %v5599 = vpop.f32.mrf.mxu0
      %v5600 = vadd.f32 0.0, %v5599
      %5601 = vmatmul.f32.gmra.mxu0 %v5486
      %v5602 = vpop.f32.mrf.mxu0
      %v5603 = vadd.f32 0.0, %v5602
      %5604 = vmatmul.f32.gmra.mxu0 %v5489
      %v5605 = vpop.f32.mrf.mxu0
      %v5606 = vadd.f32 0.0, %v5605
      %5607 = vmatmul.f32.gmra.mxu0 %v5492
      %v5608 = vpop.f32.mrf.mxu0
      %v5609 = vadd.f32 0.0, %v5608
      %5610 = vmatmul.f32.gmra.mxu0 %v5495
      %v5611 = vpop.f32.mrf.mxu0
      %v5612 = vadd.f32 0.0, %v5611
      %5613 = vmatmul.f32.gmra.mxu0 %v5498
      %v5614 = vpop.f32.mrf.mxu0
      %v5615 = vadd.f32 0.0, %v5614
      %5616 = vmatmul.f32.gmra.mxu0 %v5501
      %v5617 = vpop.f32.mrf.mxu0
      %v5618 = vadd.f32 0.0, %v5617
      %5619 = vmatmul.f32.gmra.mxu0 %v5504
      %v5620 = vpop.f32.mrf.mxu0
      %v5621 = vadd.f32 0.0, %v5620
      %5622 = vmatmul.f32.gmra.mxu0 %v5507
      %v5623 = vpop.f32.mrf.mxu0
      %v5624 = vadd.f32 0.0, %v5623
      %5625 = vmatmul.f32.gmra.mxu0 %v5510
      %v5626 = vpop.f32.mrf.mxu0
      %v5627 = vadd.f32 0.0, %v5626
      %5628 = vmatmul.f32.gmra.mxu0 %v5513
      %v5629 = vpop.f32.mrf.mxu0
      %v5630 = vadd.f32 0.0, %v5629
      %5631 = vmatmul.f32.gmra.mxu0 %v5516
      %v5632 = vpop.f32.mrf.mxu0
      %v5633 = vadd.f32 0.0, %v5632
      %5634 = vmatmul.f32.gmra.mxu0 %v5519
      %v5635 = vpop.f32.mrf.mxu0
      %v5636 = vadd.f32 0.0, %v5635
      %5637 = vmatmul.f32.gmra.mxu0 %v5522
      %v5638 = vpop.f32.mrf.mxu0
      %v5639 = vadd.f32 0.0, %v5638
      %5640 = vdwg.mxu0
      %5641 = vst.msk [vmem:[%s403] sm:$0xff] %vm466, %v5546
      %5642 = vst.msk [vmem:[%s403 + $0x8] sm:$0xff] %vm466, %v5549
      %5643 = vst.msk [vmem:[%s403 + $0x10] sm:$0xff] %vm466, %v5552
      %5644 = vst.msk [vmem:[%s403 + $0x18] sm:$0xff] %vm466, %v5555
      %5645 = vst.msk [vmem:[%s403 + $0x20] sm:$0xff] %vm466, %v5558
      %5646 = vst.msk [vmem:[%s403 + $0x28] sm:$0xff] %vm466, %v5561
      %5647 = vst.msk [vmem:[%s403 + $0x30] sm:$0xff] %vm466, %v5564
      %5648 = vst.msk [vmem:[%s403 + $0x38] sm:$0xff] %vm466, %v5567
      %5649 = vst.msk [vmem:[%s403 + $0x40] sm:$0xff] %vm466, %v5570
      %5650 = vst.msk [vmem:[%s403 + $0x48] sm:$0xff] %vm466, %v5573
      %5651 = vst.msk [vmem:[%s403 + $0x50] sm:$0xff] %vm466, %v5576
      %5652 = vst.msk [vmem:[%s403 + $0x58] sm:$0xff] %vm466, %v5579
      %5653 = vst.msk [vmem:[%s403 + $0x60] sm:$0xff] %vm466, %v5582
      %5654 = vst.msk [vmem:[%s403 + $0x68] sm:$0xff] %vm466, %v5585
      %5655 = vst.msk [vmem:[%s403 + $0x70] sm:$0xff] %vm466, %v5588
      %5656 = vst.msk [vmem:[%s403 + $0x78] sm:$0xff] %vm466, %v5591
      %5657 = vst.msk [vmem:[%s403 + $0x80] sm:$0xff] %vm466, %v5594
      %5658 = vst.msk [vmem:[%s403 + $0x88] sm:$0xff] %vm466, %v5597
      %5659 = vst.msk [vmem:[%s403 + $0x90] sm:$0xff] %vm466, %v5600
      %5660 = vst.msk [vmem:[%s403 + $0x98] sm:$0xff] %vm466, %v5603
      %5661 = vst.msk [vmem:[%s403 + $0xa0] sm:$0xff] %vm466, %v5606
      %5662 = vst.msk [vmem:[%s403 + $0xa8] sm:$0xff] %vm466, %v5609
      %5663 = vst.msk [vmem:[%s403 + $0xb0] sm:$0xff] %vm466, %v5612
      %5664 = vst.msk [vmem:[%s403 + $0xb8] sm:$0xff] %vm466, %v5615
      %5665 = vst.msk [vmem:[%s403 + $0xc0] sm:$0xff] %vm466, %v5618
      %5666 = vst.msk [vmem:[%s403 + $0xc8] sm:$0xff] %vm466, %v5621
      %5667 = vst.msk [vmem:[%s403 + $0xd0] sm:$0xff] %vm466, %v5624
      %5668 = vst.msk [vmem:[%s403 + $0xd8] sm:$0xff] %vm466, %v5627
      %5669 = vst.msk [vmem:[%s403 + $0xe0] sm:$0xff] %vm466, %v5630
      %5670 = vst.msk [vmem:[%s403 + $0xe8] sm:$0xff] %vm466, %v5633
      %5671 = vst.msk [vmem:[%s403 + $0xf0] sm:$0xff] %vm466, %v5636
      %5672 = vst.msk [vmem:[%s403 + $0xf8] sm:$0xff] %vm466, %v5639
      %v5673 = vsel %vm466, %v5546, 0.0
      %v5674 = vsel %vm466, %v5549, 0.0
      %v5675 = vadd.f32 %v5673, %v5674
      %v5676 = vsel %vm466, %v5552, 0.0
      %v5677 = vadd.f32 %v5675, %v5676
      %v5678 = vsel %vm466, %v5555, 0.0
      %v5679 = vadd.f32 %v5677, %v5678
      %v5680 = vsel %vm466, %v5558, 0.0
      %v5681 = vadd.f32 %v5679, %v5680
      %v5682 = vsel %vm466, %v5561, 0.0
      %v5683 = vadd.f32 %v5681, %v5682
      %v5684 = vsel %vm466, %v5564, 0.0
      %v5685 = vadd.f32 %v5683, %v5684
      %v5686 = vsel %vm466, %v5567, 0.0
      %v5687 = vadd.f32 %v5685, %v5686
      %v5688 = vsel %vm466, %v5570, 0.0
      %v5689 = vadd.f32 %v5687, %v5688
      %v5690 = vsel %vm466, %v5573, 0.0
      %v5691 = vadd.f32 %v5689, %v5690
      %v5692 = vsel %vm466, %v5576, 0.0
      %v5693 = vadd.f32 %v5691, %v5692
      %v5694 = vsel %vm466, %v5579, 0.0
      %v5695 = vadd.f32 %v5693, %v5694
      %v5696 = vsel %vm466, %v5582, 0.0
      %v5697 = vadd.f32 %v5695, %v5696
      %v5698 = vsel %vm466, %v5585, 0.0
      %v5699 = vadd.f32 %v5697, %v5698
      %v5700 = vsel %vm466, %v5588, 0.0
      %v5701 = vadd.f32 %v5699, %v5700
      %v5702 = vsel %vm466, %v5591, 0.0
      %v5703 = vadd.f32 %v5701, %v5702
      %v5704 = vsel %vm466, %v5594, 0.0
      %v5705 = vadd.f32 %v5703, %v5704
      %v5706 = vsel %vm466, %v5597, 0.0
      %v5707 = vadd.f32 %v5705, %v5706
      %v5708 = vsel %vm466, %v5600, 0.0
      %v5709 = vadd.f32 %v5707, %v5708
      %v5710 = vsel %vm466, %v5603, 0.0
      %v5711 = vadd.f32 %v5709, %v5710
      %v5712 = vsel %vm466, %v5606, 0.0
      %v5713 = vadd.f32 %v5711, %v5712
      %v5714 = vsel %vm466, %v5609, 0.0
      %v5715 = vadd.f32 %v5713, %v5714
      %v5716 = vsel %vm466, %v5612, 0.0
      %v5717 = vadd.f32 %v5715, %v5716
      %v5718 = vsel %vm466, %v5615, 0.0
      %v5719 = vadd.f32 %v5717, %v5718
      %v5720 = vsel %vm466, %v5618, 0.0
      %v5721 = vadd.f32 %v5719, %v5720
      %v5722 = vsel %vm466, %v5621, 0.0
      %v5723 = vadd.f32 %v5721, %v5722
      %v5724 = vsel %vm466, %v5624, 0.0
      %v5725 = vadd.f32 %v5723, %v5724
      %v5726 = vsel %vm466, %v5627, 0.0
      %v5727 = vadd.f32 %v5725, %v5726
      %v5728 = vsel %vm466, %v5630, 0.0
      %v5729 = vadd.f32 %v5727, %v5728
      %v5730 = vsel %vm466, %v5633, 0.0
      %v5731 = vadd.f32 %v5729, %v5730
      %v5732 = vsel %vm466, %v5636, 0.0
      %v5733 = vadd.f32 %v5731, %v5732
      %v5734 = vsel %vm466, %v5639, 0.0
      %v5735 = vadd.f32 %v5733, %v5734
      %v5736 = vrot.slane %v5735, 4
      %v5737 = vadd.f32 %v5735, %v5736
      %v5738 = vrot.slane %v5737, 2
      %v5739 = vadd.f32 %v5737, %v5738
      %v5740 = vrot.slane %v5739, 1
      %v5741 = vadd.f32 %v5739, %v5740
      %v5742 = vmul.f32 %v5546, %v5546
      %v5743 = vmul.f32 %v5549, %v5549
      %v5744 = vmul.f32 %v5552, %v5552
      %v5745 = vmul.f32 %v5555, %v5555
      %v5746 = vmul.f32 %v5558, %v5558
      %v5747 = vmul.f32 %v5561, %v5561
      %v5748 = vmul.f32 %v5564, %v5564
      %v5749 = vmul.f32 %v5567, %v5567
      %v5750 = vmul.f32 %v5570, %v5570
      %v5751 = vmul.f32 %v5573, %v5573
      %v5752 = vmul.f32 %v5576, %v5576
      %v5753 = vmul.f32 %v5579, %v5579
      %v5754 = vmul.f32 %v5582, %v5582
      %v5755 = vmul.f32 %v5585, %v5585
      %v5756 = vmul.f32 %v5588, %v5588
      %v5757 = vmul.f32 %v5591, %v5591
      %v5758 = vmul.f32 %v5594, %v5594
      %v5759 = vmul.f32 %v5597, %v5597
      %v5760 = vmul.f32 %v5600, %v5600
      %v5761 = vmul.f32 %v5603, %v5603
      %v5762 = vmul.f32 %v5606, %v5606
      %v5763 = vmul.f32 %v5609, %v5609
      %v5764 = vmul.f32 %v5612, %v5612
      %v5765 = vmul.f32 %v5615, %v5615
      %v5766 = vmul.f32 %v5618, %v5618
      %v5767 = vmul.f32 %v5621, %v5621
      %v5768 = vmul.f32 %v5624, %v5624
      %v5769 = vmul.f32 %v5627, %v5627
      %v5770 = vmul.f32 %v5630, %v5630
      %v5771 = vmul.f32 %v5633, %v5633
      %v5772 = vmul.f32 %v5636, %v5636
      %v5773 = vmul.f32 %v5639, %v5639
      %v5774 = vsel %vm466, %v5742, 0.0
      %v5775 = vsel %vm466, %v5743, 0.0
      %v5776 = vadd.f32 %v5774, %v5775
      %v5777 = vsel %vm466, %v5744, 0.0
      %v5778 = vadd.f32 %v5776, %v5777
      %v5779 = vsel %vm466, %v5745, 0.0
      %v5780 = vadd.f32 %v5778, %v5779
      %v5781 = vsel %vm466, %v5746, 0.0
      %v5782 = vadd.f32 %v5780, %v5781
      %v5783 = vsel %vm466, %v5747, 0.0
      %v5784 = vadd.f32 %v5782, %v5783
      %v5785 = vsel %vm466, %v5748, 0.0
      %v5786 = vadd.f32 %v5784, %v5785
      %v5787 = vsel %vm466, %v5749, 0.0
      %v5788 = vadd.f32 %v5786, %v5787
      %v5789 = vsel %vm466, %v5750, 0.0
      %v5790 = vadd.f32 %v5788, %v5789
      %v5791 = vsel %vm466, %v5751, 0.0
      %v5792 = vadd.f32 %v5790, %v5791
      %v5793 = vsel %vm466, %v5752, 0.0
      %v5794 = vadd.f32 %v5792, %v5793
      %v5795 = vsel %vm466, %v5753, 0.0
      %v5796 = vadd.f32 %v5794, %v5795
      %v5797 = vsel %vm466, %v5754, 0.0
      %v5798 = vadd.f32 %v5796, %v5797
      %v5799 = vsel %vm466, %v5755, 0.0
      %v5800 = vadd.f32 %v5798, %v5799
      %v5801 = vsel %vm466, %v5756, 0.0
      %v5802 = vadd.f32 %v5800, %v5801
      %v5803 = vsel %vm466, %v5757, 0.0
      %v5804 = vadd.f32 %v5802, %v5803
      %v5805 = vsel %vm466, %v5758, 0.0
      %v5806 = vadd.f32 %v5804, %v5805
      %v5807 = vsel %vm466, %v5759, 0.0
      %v5808 = vadd.f32 %v5806, %v5807
      %v5809 = vsel %vm466, %v5760, 0.0
      %v5810 = vadd.f32 %v5808, %v5809
      %v5811 = vsel %vm466, %v5761, 0.0
      %v5812 = vadd.f32 %v5810, %v5811
      %v5813 = vsel %vm466, %v5762, 0.0
      %v5814 = vadd.f32 %v5812, %v5813
      %v5815 = vsel %vm466, %v5763, 0.0
      %v5816 = vadd.f32 %v5814, %v5815
      %v5817 = vsel %vm466, %v5764, 0.0
      %v5818 = vadd.f32 %v5816, %v5817
      %v5819 = vsel %vm466, %v5765, 0.0
      %v5820 = vadd.f32 %v5818, %v5819
      %v5821 = vsel %vm466, %v5766, 0.0
      %v5822 = vadd.f32 %v5820, %v5821
      %v5823 = vsel %vm466, %v5767, 0.0
      %v5824 = vadd.f32 %v5822, %v5823
      %v5825 = vsel %vm466, %v5768, 0.0
      %v5826 = vadd.f32 %v5824, %v5825
      %v5827 = vsel %vm466, %v5769, 0.0
      %v5828 = vadd.f32 %v5826, %v5827
      %v5829 = vsel %vm466, %v5770, 0.0
      %v5830 = vadd.f32 %v5828, %v5829
      %v5831 = vsel %vm466, %v5771, 0.0
      %v5832 = vadd.f32 %v5830, %v5831
      %v5833 = vsel %vm466, %v5772, 0.0
      %v5834 = vadd.f32 %v5832, %v5833
      %v5835 = vsel %vm466, %v5773, 0.0
      %v5836 = vadd.f32 %v5834, %v5835
      %v5837 = vrot.slane %v5836, 4
      %v5838 = vadd.f32 %v5836, %v5837
      %v5839 = vrot.slane %v5838, 2
      %v5840 = vadd.f32 %v5838, %v5839
      %v5841 = vrot.slane %v5840, 1
      %v5842 = vadd.f32 %v5840, %v5841
      %vm5843 = vcmask 1040384
      %v5844 = vsel %vm5843, %v5741, %v5842
      %5845 = vst.msk [vmem:[%s411] sm:$0x3] %vm468, %v5844
      %s5846 = smul.u32 4, %s22
      %p5847 = scmp.lt.s32.totalorder %s21, 1
      %s5848 = scalar_select %p5847, %s21, 1
      %p5849 = scmp.lt.s32.totalorder %s5846, 3
      %s5850 = scalar_select %p5849, %s5846, 3
      %s5851 = smul.addr %s5850, 8
      %s5852 = smul.addr %s5848, 32
      %s5853 = sadd.s32 %s5851, %s5852
      %s5854 = smul.addr %s5853, 8
      %s5855 = scalar_lea.vmem %s4, %s5854
      %p5856 = scmp.lt.s32.totalorder %s21, 1
      %s5857 = scalar_select %p5856, %s21, 1
      %p5858 = scmp.lt.s32.totalorder %s22, 0
      %s5859 = scalar_select %p5858, %s22, 0
      %s5860 = sadd.s32 %s5859, %s5857
      %s5861 = smul.addr %s5860, 2
      %s5862 = scalar_lea.vmem %s5, %s5861
      // Predicated region
      $region37: #{down_double_3d_conv.3} parent=35 // pred_check
        %p5863 = pneg %p170
      $region38: #{down_double_3d_conv.3} parent=35 // pred_check_branch
        %5865 = sbr.rel (%p5863) target = $region40
      $region39: #{down_double_3d_conv.3} parent=35 // pred_region
        %s5866 = smul.u32 4, %s22
      $region40: #{down_double_3d_conv.3} parent=35 // pred_fallthru
        _
      // Predicated region
      $region41: #{down_double_3d_conv.3} parent=35 // pred_check
        %p5867 = pneg %p198
      $region42: #{down_double_3d_conv.3} parent=35 // pred_check_branch
        %5869 = sbr.rel (%p5867) target = $region44
      $region43: #{down_double_3d_conv.3} parent=35 // pred_region
        _
      $region44: #{down_double_3d_conv.3} parent=35 // pred_fallthru
        _
    $region36: #{down_double_3d_conv.3} parent=5 // pred_fallthru
      _
    %p5870 = scmp.le.s32.totalorder 2, %s12
    // Predicated region
    $region45: #{down_double_3d_conv.3} parent=5 // pred_check
      %p5871 = pneg %p5870
    $region46: #{down_double_3d_conv.3} parent=5 // pred_check_branch
      %5873 = sbr.rel (%p5871) target = $region48
    $region47: #{down_double_3d_conv.3} parent=5 // pred_region
      %s5874 = ssub.s32 %s12, 2
      // Predicated region
      $region49: #{down_double_3d_conv.3} parent=47 // pred_check
        %p5875 = pneg %p176
      $region50: #{down_double_3d_conv.3} parent=47 // pred_check_branch
        %5877 = sbr.rel (%p5875) target = $region52
      $region51: #{down_double_3d_conv.3} parent=47 // pred_region
        %s5878 = smul.u32 4, %s24
        %p5879 = scmp.lt.s32.totalorder %s23, 1
        %s5880 = scalar_select %p5879, %s23, 1
        %p5881 = scmp.lt.s32.totalorder %s5878, 3
        %s5882 = scalar_select %p5881, %s5878, 3
        %s5883 = smul.addr %s5882, 8
        %s5884 = smul.addr %s5880, 32
        %s5885 = sadd.s32 %s5883, %s5884
        %s5886 = smul.addr %s5885, 8
        %s5887 = scalar_lea.vmem %s4, %s5886
      $region52: #{down_double_3d_conv.3} parent=47 // pred_fallthru
        _
      // Predicated region
      $region53: #{down_double_3d_conv.3} parent=47 // pred_check
        %p5888 = pneg %p204
      $region54: #{down_double_3d_conv.3} parent=47 // pred_check_branch
        %5890 = sbr.rel (%p5888) target = $region56
      $region55: #{down_double_3d_conv.3} parent=47 // pred_region
        %p5891 = scmp.lt.s32.totalorder %s23, 1
        %s5892 = scalar_select %p5891, %s23, 1
        %p5893 = scmp.lt.s32.totalorder %s24, 0
        %s5894 = scalar_select %p5893, %s24, 0
        %s5895 = sadd.s32 %s5894, %s5892
        %s5896 = smul.addr %s5895, 2
        %s5897 = scalar_lea.vmem %s5, %s5896
      $region56: #{down_double_3d_conv.3} parent=47 // pred_fallthru
        _
    $region48: #{down_double_3d_conv.3} parent=5 // pred_fallthru
      _
  $region6: #{down_double_3d_conv.3} parent=0 // loop_footer
    %s16 = sadd.s32 1, %s12
  $region7: #{down_double_3d_conv.3} parent=0 // loop_footer_branch
    %11 = sbr.rel target = $region3
  $region8: #{down_double_3d_conv.3} parent=0 // loop_exit
    _

</llo_original>
